<compile_context>
chip_gen: v7x
topology: tpu7x:2x2x1
jax: 0.10.0
libtpu: 0.0.40
codegen_flags: <defaults>
</compile_context>

<pallas_src>
import functools

import numpy as np

import jax
import jax.numpy as jnp
from jax import lax
from jax.experimental import pallas as pl
from jax.experimental.pallas import tpu as pltpu

LRELU_SLOPE = 0.2
BN_EPS = 1e-5


def _round_up(x, m):
  return (x + m - 1) // m * m


# ----------------------------------------------------------------------------
# Fused forward kernel
# ----------------------------------------------------------------------------

def _netd_kernel(
    a1_ref,
    wb1t_ref, wb1b_ref,
    s013_ref, s113_ref,
    wb3t_ref, wb3b_ref, g3_ref, b3_ref, r3_ref, rt3_ref, msk3_ref,
    s034_ref, s134_ref,
    wb4t_ref, wb4b_ref, g4_ref, b4_ref, r4_ref, rt4_ref, msk4_ref,
    s045_ref, s145_ref,
    wb5t_ref, wb5b_ref, g5_ref, b5_ref, r5_ref, rt5_ref, msk5_ref,
    w6s_ref, g6_ref,
    out_ref, *, n_batch):
  f32 = jnp.float32
  bf16 = jnp.bfloat16
  n = n_batch

  def lrelu(y):
    # slope < 1  ->  max(y, slope*y) == LeakyReLU(y); no compare+select.
    return jnp.maximum(y, LRELU_SLOPE * y)

  def conv(a, m_out, wt_ref, wb_ref):
    # Split-K over the two row-pair offsets: out[i] = a[i] @ Wt + a[i+1] @ Wb.
    # a: (>= m_out+1, K) bf16 stacked row-pair activation (no pad columns);
    # both dots are lane-dense (256 output lanes) with K a multiple of 128.
    top = jnp.dot(a[0:m_out, :], wt_ref[...], preferred_element_type=f32)
    bot = jnp.dot(a[1:m_out + 1, :], wb_ref[...], preferred_element_type=f32)
    return top + bot

  def batchnorm(y, msk_ref, g_ref, b_ref, r_ref, rt_ref, count):
    # Training-mode batch statistics over (N, H, W); garbage/pad rows of the
    # stacked activation are masked to zero before the one-pass sums.
    ym = y * msk_ref[...]
    sums = jnp.concatenate(
        [jnp.sum(ym, axis=0, keepdims=True),
         jnp.sum(ym * ym, axis=0, keepdims=True)], axis=0)          # (2, Wo*C)
    stats = jnp.dot(sums, r_ref[...], preferred_element_type=f32)   # (2, C)
    inv = 1.0 / count
    mean = stats[0:1, :] * inv
    var = stats[1:2, :] * inv - mean * mean                         # biased
    scale = g_ref[...] * lax.rsqrt(var + BN_EPS)
    shift = b_ref[...] - mean * scale
    ss = jnp.dot(jnp.concatenate([scale, shift], axis=0), rt_ref[...],
                 preferred_element_type=f32)                        # (2, Wo*C)
    return y * ss[0:1, :] + ss[1:2, :]

  def relayout(act, s0_ref, s1_ref):
    # Next layer's row-pair layout via two exact 0/1 bf16 selection dots
    # (row-parity split, row zero-pad and trailing pad rows are baked into the
    # selection matrices) plus one 128-aligned lane concat.
    a_bf = act.astype(bf16)
    rp0 = jnp.dot(s0_ref[...], a_bf, preferred_element_type=f32)
    rp1 = jnp.dot(s1_ref[...], a_bf, preferred_element_type=f32)
    return jnp.concatenate([rp0, rp1], axis=-1).astype(bf16)

  m1 = _round_up(n * 33, 8)
  m3 = _round_up(n * 17, 8)
  m4 = _round_up(n * 9, 8)
  m5 = _round_up(n * 5, 8)

  # ---- conv1 (nc -> ndf) + LeakyReLU --------------------------------------
  y1 = conv(a1_ref[...], m1, wb1t_ref, wb1b_ref)
  a3 = relayout(lrelu(y1), s013_ref, s113_ref)

  # ---- conv3 (ndf -> 2*ndf) + BN + LeakyReLU ------------------------------
  y3 = batchnorm(conv(a3, m3, wb3t_ref, wb3b_ref),
                 msk3_ref, g3_ref, b3_ref, r3_ref, rt3_ref,
                 float(n * 16 * 16))
  a4 = relayout(lrelu(y3), s034_ref, s134_ref)

  # ---- conv4 (2*ndf -> 4*ndf) + BN + LeakyReLU ----------------------------
  y4 = batchnorm(conv(a4, m4, wb4t_ref, wb4b_ref),
                 msk4_ref, g4_ref, b4_ref, r4_ref, rt4_ref,
                 float(n * 8 * 8))
  a5 = relayout(lrelu(y4), s045_ref, s145_ref)

  # ---- conv5 (4*ndf -> 8*ndf) + BN + LeakyReLU ----------------------------
  y5 = batchnorm(conv(a5, m5, wb5t_ref, wb5b_ref),
                 msk5_ref, g5_ref, b5_ref, r5_ref, rt5_ref,
                 float(n * 4 * 4))
  act5 = lrelu(y5)                                          # (m5, 4*8*ndf)

  # ---- conv6 (8*ndf -> 1, 4x4 valid) + sigmoid, fully stacked -------------
  rowsum = jnp.sum(act5 * w6s_ref[...], axis=1, keepdims=True)   # (m5, 1)
  z = jnp.dot(g6_ref[...], rowsum, preferred_element_type=f32)   # (N, 1)
  out_ref[...] = jax.nn.sigmoid(z)


# ----------------------------------------------------------------------------
# Host-side parameter packing
# ----------------------------------------------------------------------------

def _banded_weight_halves(w_conv, w_in):
  """(Cout,Cin,4,4) conv weight -> two banded halves, each (2*W*Cin, Wo*Cout).

  Half `da` multiplies activation block-row i+da.  K index = rp*(W*Cin) +
  w*Cin + ci (row-pair layout, NO spatial pad columns); O index = j*Cout + co.
  Tap (kh, kw) = (2*da + rp, kw) lands at input column w = 2*j + kw - 1;
  out-of-range w (the spatial zero padding) is simply dropped.
  """
  cout, cin, _, _ = w_conv.shape
  w_out = w_in // 2
  halves = []
  for da in range(2):
    wb = np.zeros((2 * w_in * cin, w_out * cout), np.float32)
    for rp in range(2):
      kh = 2 * da + rp
      for kw in range(4):
        for j in range(w_out):
          w = 2 * j + kw - 1
          if 0 <= w < w_in:
            k0 = rp * (w_in * cin) + w * cin
            wb[k0:k0 + cin, j * cout:(j + 1) * cout] = w_conv[:, :, kh, kw].T
    halves.append(wb)
  return halves


def _selection_matrices(n, r_cur, r_next):
  """Batched row-parity selection (exact 0/1, shipped as bf16).

  Maps conv output rows (b, i), i in [0, r_cur) [valid i < r_cur-1] onto the
  next layer's row-pair rows (b, a), a in [0, r_next); extra zero rows/cols
  provide the trailing pad rows needed by the next conv's split-K slice and
  absorb the per-sample garbage / alignment-pad rows.
  """
  ho = r_cur - 1
  cols = _round_up(n * r_cur, 8)
  rows = _round_up(n * r_next, 8) + 8
  sel0 = np.zeros((rows, cols), np.float32)
  sel1 = np.zeros((rows, cols), np.float32)
  for b in range(n):
    for a in range(r_next):
      i0 = 2 * a - 1
      if 0 <= i0 < ho:
        sel0[b * r_next + a, b * r_cur + i0] = 1.0
      i1 = 2 * a
      if i1 < ho:
        sel1[b * r_next + a, b * r_cur + i1] = 1.0
  return sel0, sel1


def _row_mask(n, r_cur):
  """1.0 for valid stacked rows, 0.0 for per-sample garbage / alignment rows."""
  rows = _round_up(n * r_cur, 8)
  m = np.zeros((rows, 1), np.float32)
  for b in range(n):
    m[b * r_cur:b * r_cur + r_cur - 1, 0] = 1.0
  return m


def _fold_matrices(wo, cout):
  r = np.zeros((wo * cout, cout), np.float32)
  r[np.arange(wo * cout), np.arange(wo * cout) % cout] = 1.0
  return r, r.T.copy()


def _structural_constants(n):
  """Batch-size-dependent exact 0/1 matrices and row masks."""
  s013, s113 = _selection_matrices(n, 33, 17)
  s034, s134 = _selection_matrices(n, 17, 9)
  s045, s145 = _selection_matrices(n, 9, 5)
  msk3 = _row_mask(n, 17)
  msk4 = _row_mask(n, 9)
  msk5 = _row_mask(n, 5)
  m5 = _round_up(n * 5, 8)
  g6 = np.zeros((n, m5), np.float32)
  e6 = np.zeros((m5, 4), np.float32)
  for b in range(n):
    g6[b, b * 5:b * 5 + 4] = 1.0
    e6[b * 5:b * 5 + 4, :] = np.eye(4, dtype=np.float32)
  bf16 = jnp.bfloat16
  return {
      "s013": jnp.asarray(s013, bf16), "s113": jnp.asarray(s113, bf16),
      "s034": jnp.asarray(s034, bf16), "s134": jnp.asarray(s134, bf16),
      "s045": jnp.asarray(s045, bf16), "s145": jnp.asarray(s145, bf16),
      "msk3": jnp.asarray(msk3), "msk4": jnp.asarray(msk4),
      "msk5": jnp.asarray(msk5),
      "g6": jnp.asarray(g6), "e6": jnp.asarray(e6),
  }


def init_params(key, nc=3, ndf=8):
  """Synthetic DCGAN-ish parameters; returns (kernel params, dense reference)."""
  ks = jax.random.split(key, 11)

  def conv_w(k, cout, cin):
    return 0.02 * jax.random.normal(k, (cout, cin, 4, 4), jnp.float32)

  w1 = conv_w(ks[0], ndf, nc)
  w3 = conv_w(ks[1], ndf * 2, ndf)
  w4 = conv_w(ks[2], ndf * 4, ndf * 2)
  w5 = conv_w(ks[3], ndf * 8, ndf * 4)
  w6 = conv_w(ks[4], 1, ndf * 8)

  def affine(kg, kb, c):
    g = 1.0 + 0.1 * jax.random.normal(kg, (1, c), jnp.float32)
    b = 0.05 * jax.random.normal(kb, (1, c), jnp.float32)
    return g, b

  g3, b3 = affine(ks[5], ks[6], ndf * 2)
  g4, b4 = affine(ks[7], ks[8], ndf * 4)
  g5, b5 = affine(ks[9], ks[10], ndf * 8)

  bf16 = jnp.bfloat16

  def banded(w, w_in):
    t, b_ = _banded_weight_halves(np.asarray(w), w_in)
    return jnp.asarray(t, bf16), jnp.asarray(b_, bf16)

  wb1t, wb1b = banded(w1, 64)
  wb3t, wb3b = banded(w3, 32)
  wb4t, wb4b = banded(w4, 16)
  wb5t, wb5b = banded(w5, 8)

  r3, rt3 = _fold_matrices(16, ndf * 2)
  r4, rt4 = _fold_matrices(8, ndf * 4)
  r5, rt5 = _fold_matrices(4, ndf * 8)

  # conv6 weight arranged to the (h, j*Cout + c) activation lane layout.
  w6map = jnp.asarray(
      np.transpose(np.asarray(w6)[0], (1, 2, 0)).reshape(4, 4 * ndf * 8),
      jnp.float32)

  params = {
      "wb1t": wb1t, "wb1b": wb1b, "wb3t": wb3t, "wb3b": wb3b,
      "wb4t": wb4t, "wb4b": wb4b, "wb5t": wb5t, "wb5b": wb5b,
      "g3": g3, "b3": b3, "g4": g4, "b4": b4, "g5": g5, "b5": b5,
      "r3": jnp.asarray(r3), "rt3": jnp.asarray(rt3),
      "r4": jnp.asarray(r4), "rt4": jnp.asarray(rt4),
      "r5": jnp.asarray(r5), "rt5": jnp.asarray(rt5),
      "w6map": w6map,
  }
  dense = {"w1": w1, "w3": w3, "w4": w4, "w5": w5, "w6": w6,
           "g3": g3, "b3": b3, "g4": g4, "b4": b4, "g5": g5, "b5": b5}
  return params, dense


# ----------------------------------------------------------------------------
# Forward wrapper
# ----------------------------------------------------------------------------

def netd_forward(x_nchw, params):
  """x_nchw: (N, nc, 64, 64) float32 -> (N,) float32 (training-mode BN)."""
  n, nc, h, w = x_nchw.shape
  assert h == 64 and w == 64, "fineSize=64 branch requires 64x64 inputs"

  # Row-pair stacked layout for conv1's input (no pad columns, bf16):
  #   a1[(b, a), rp*(64*nc) + w*nc + c] = x[b, 2a + rp - 1, w, c]  (0 at pads)
  x = jnp.transpose(x_nchw, (0, 2, 3, 1))                    # NHWC
  xp = jnp.pad(x, ((0, 0), (1, 1), (0, 0), (0, 0)))          # (N, 66, 64, nc)
  a1 = xp.reshape(n, 33, 2 * 64 * nc).reshape(n * 33, 2 * 64 * nc)
  m1 = _round_up(n * 33, 8)
  a1 = jnp.pad(a1, ((0, m1 + 8 - n * 33), (0, 0))).astype(jnp.bfloat16)

  sc = _structural_constants(n)
  # conv6 weight tiled over the batch rows (zero rows at garbage/pad rows).
  w6s = sc["e6"] @ params["w6map"]

  args = (
      a1,
      params["wb1t"], params["wb1b"],
      sc["s013"], sc["s113"],
      params["wb3t"], params["wb3b"], params["g3"], params["b3"],
      params["r3"], params["rt3"], sc["msk3"],
      sc["s034"], sc["s134"],
      params["wb4t"], params["wb4b"], params["g4"], params["b4"],
      params["r4"], params["rt4"], sc["msk4"],
      sc["s045"], sc["s145"],
      params["wb5t"], params["wb5b"], params["g5"], params["b5"],
      params["r5"], params["rt5"], sc["msk5"],
      w6s, sc["g6"],
  )

  out = pl.pallas_call(
      functools.partial(_netd_kernel, n_batch=n),
      out_shape=jax.ShapeDtypeStruct((n, 1), jnp.float32),
      in_specs=[pl.BlockSpec(memory_space=pltpu.MemorySpace.VMEM)] * len(args),
      out_specs=pl.BlockSpec(memory_space=pltpu.MemorySpace.VMEM),
  )(*args)
  # conv6 output is (N,1,1,1); flatten(1,-1)+squeeze(1) -> (N,)
  return out.reshape(n)


# ----------------------------------------------------------------------------
# Pure-JAX reference (f32) matching the PyTorch module
# ----------------------------------------------------------------------------

def _reference_forward(x, d):
  def conv(x, w, stride, pad):
    return lax.conv_general_dilated(
        x, w, window_strides=(stride, stride),
        padding=[(pad, pad), (pad, pad)],
        dimension_numbers=("NCHW", "OIHW", "NCHW"),
        precision=lax.Precision.HIGHEST)

  def bn(x, g, b):
    mean = jnp.mean(x, axis=(0, 2, 3), keepdims=True)
    var = jnp.mean((x - mean) ** 2, axis=(0, 2, 3), keepdims=True)
    xn = (x - mean) * lax.rsqrt(var + BN_EPS)
    return xn * g.reshape(1, -1, 1, 1) + b.reshape(1, -1, 1, 1)

  def lrelu(x):
    return jnp.where(x > 0, x, LRELU_SLOPE * x)

  x = lrelu(conv(x, d["w1"], 2, 1))
  x = lrelu(bn(conv(x, d["w3"], 2, 1), d["g3"], d["b3"]))
  x = lrelu(bn(conv(x, d["w4"], 2, 1), d["g4"], d["b4"]))
  x = lrelu(bn(conv(x, d["w5"], 2, 1), d["g5"], d["b5"]))
  x = jax.nn.sigmoid(conv(x, d["w6"], 1, 0))
  return x.reshape(x.shape[0])


if __name__ == "__main__":
  key = jax.random.PRNGKey(0)
  k_x, k_p = jax.random.split(key)

  N, nc, ndf, fine_size = 4, 3, 8, 64   # fineSize=64 branch (no conv2/bn2)
  x = jax.random.normal(k_x, (N, nc, fine_size, fine_size), jnp.float32)
  params, dense = init_params(k_p, nc=nc, ndf=ndf)

  fwd = jax.jit(netd_forward)
  out = jax.block_until_ready(fwd(x, params))

  assert out.shape == (N,), out.shape
  assert bool(jnp.all(jnp.isfinite(out))), "non-finite output"
  assert bool(jnp.all((out >= 0.0) & (out <= 1.0))), "sigmoid range violated"

  ref = _reference_forward(x, dense)
  assert bool(jnp.allclose(out, ref, atol=3e-2)), (out, ref)

  print("KERNEL_OK")
</pallas_src>

<mosaic_0001>
module attributes {stable_mosaic.version = 11 : i64} {
  func.func @_netd_kernel(%arg0: memref<144x384xbf16, #tpu.memory_space<vmem>>, %arg1: memref<384x256xbf16, #tpu.memory_space<vmem>>, %arg2: memref<384x256xbf16, #tpu.memory_space<vmem>>, %arg3: memref<80x136xbf16, #tpu.memory_space<vmem>>, %arg4: memref<80x136xbf16, #tpu.memory_space<vmem>>, %arg5: memref<512x256xbf16, #tpu.memory_space<vmem>>, %arg6: memref<512x256xbf16, #tpu.memory_space<vmem>>, %arg7: memref<1x16xf32, #tpu.memory_space<vmem>>, %arg8: memref<1x16xf32, #tpu.memory_space<vmem>>, %arg9: memref<256x16xf32, #tpu.memory_space<vmem>>, %arg10: memref<16x256xf32, #tpu.memory_space<vmem>>, %arg11: memref<72x1xf32, #tpu.memory_space<vmem>>, %arg12: memref<48x72xbf16, #tpu.memory_space<vmem>>, %arg13: memref<48x72xbf16, #tpu.memory_space<vmem>>, %arg14: memref<512x256xbf16, #tpu.memory_space<vmem>>, %arg15: memref<512x256xbf16, #tpu.memory_space<vmem>>, %arg16: memref<1x32xf32, #tpu.memory_space<vmem>>, %arg17: memref<1x32xf32, #tpu.memory_space<vmem>>, %arg18: memref<256x32xf32, #tpu.memory_space<vmem>>, %arg19: memref<32x256xf32, #tpu.memory_space<vmem>>, %arg20: memref<40x1xf32, #tpu.memory_space<vmem>>, %arg21: memref<32x40xbf16, #tpu.memory_space<vmem>>, %arg22: memref<32x40xbf16, #tpu.memory_space<vmem>>, %arg23: memref<512x256xbf16, #tpu.memory_space<vmem>>, %arg24: memref<512x256xbf16, #tpu.memory_space<vmem>>, %arg25: memref<1x64xf32, #tpu.memory_space<vmem>>, %arg26: memref<1x64xf32, #tpu.memory_space<vmem>>, %arg27: memref<256x64xf32, #tpu.memory_space<vmem>>, %arg28: memref<64x256xf32, #tpu.memory_space<vmem>>, %arg29: memref<24x1xf32, #tpu.memory_space<vmem>>, %arg30: memref<24x256xf32, #tpu.memory_space<vmem>>, %arg31: memref<4x24xf32, #tpu.memory_space<vmem>>, %arg32: memref<4x1xf32, #tpu.memory_space<vmem>>) attributes {dimension_semantics = [], scalar_prefetch = 0 : i64, scratch_operands = 0 : i64, tpu.core_type = #tpu.core_type<tc>} {
    %c0 = arith.constant 0 : index
    %c0_0 = arith.constant 0 : index
    %0 = vector.load %arg0[%c0, %c0_0] : memref<144x384xbf16, #tpu.memory_space<vmem>>, vector<144x384xbf16>
    %1 = vector.extract_strided_slice %0 {offsets = [0, 0], sizes = [136, 384], strides = [1, 1]} : vector<144x384xbf16> to vector<136x384xbf16>
    %c0_1 = arith.constant 0 : index
    %c0_2 = arith.constant 0 : index
    %2 = vector.load %arg1[%c0_1, %c0_2] : memref<384x256xbf16, #tpu.memory_space<vmem>>, vector<384x256xbf16>
    %cst = arith.constant dense<0.000000e+00> : vector<136x256xf32>
    %3 = tpu.matmul %1, %2, %cst {dimension_numbers = #tpu.dot_dimension_numbers<[1], [0], [0], [1], [0, 0, 1, 1], [], []>} : vector<136x384xbf16>, vector<384x256xbf16>, vector<136x256xf32> -> vector<136x256xf32>
    %4 = vector.extract_strided_slice %0 {offsets = [1, 0], sizes = [136, 384], strides = [1, 1]} : vector<144x384xbf16> to vector<136x384xbf16>
    %c0_3 = arith.constant 0 : index
    %c0_4 = arith.constant 0 : index
    %5 = vector.load %arg2[%c0_3, %c0_4] : memref<384x256xbf16, #tpu.memory_space<vmem>>, vector<384x256xbf16>
    %cst_5 = arith.constant dense<0.000000e+00> : vector<136x256xf32>
    %6 = tpu.matmul %4, %5, %cst_5 {dimension_numbers = #tpu.dot_dimension_numbers<[1], [0], [0], [1], [0, 0, 1, 1], [], []>} : vector<136x384xbf16>, vector<384x256xbf16>, vector<136x256xf32> -> vector<136x256xf32>
    %7 = arith.addf %3, %6 : vector<136x256xf32>
    %cst_6 = arith.constant 2.000000e-01 : f32
    %8 = vector.broadcast %cst_6 : f32 to vector<136x256xf32>
    %9 = arith.mulf %8, %7 : vector<136x256xf32>
    %10 = arith.maximumf %7, %9 : vector<136x256xf32>
    %11 = arith.truncf %10 : vector<136x256xf32> to vector<136x256xbf16>
    %c0_7 = arith.constant 0 : index
    %c0_8 = arith.constant 0 : index
    %12 = vector.load %arg3[%c0_7, %c0_8] : memref<80x136xbf16, #tpu.memory_space<vmem>>, vector<80x136xbf16>
    %cst_9 = arith.constant dense<0.000000e+00> : vector<80x256xf32>
    %13 = tpu.matmul %12, %11, %cst_9 {dimension_numbers = #tpu.dot_dimension_numbers<[1], [0], [0], [1], [0, 0, 1, 1], [], []>} : vector<80x136xbf16>, vector<136x256xbf16>, vector<80x256xf32> -> vector<80x256xf32>
    %c0_10 = arith.constant 0 : index
    %c0_11 = arith.constant 0 : index
    %14 = vector.load %arg4[%c0_10, %c0_11] : memref<80x136xbf16, #tpu.memory_space<vmem>>, vector<80x136xbf16>
    %cst_12 = arith.constant dense<0.000000e+00> : vector<80x256xf32>
    %15 = tpu.matmul %14, %11, %cst_12 {dimension_numbers = #tpu.dot_dimension_numbers<[1], [0], [0], [1], [0, 0, 1, 1], [], []>} : vector<80x136xbf16>, vector<136x256xbf16>, vector<80x256xf32> -> vector<80x256xf32>
    %16 = tpu.concatenate %13, %15 in 1 : vector<80x256xf32>, vector<80x256xf32> -> vector<80x512xf32>
    %17 = arith.truncf %16 : vector<80x512xf32> to vector<80x512xbf16>
    %18 = vector.extract_strided_slice %17 {offsets = [0, 0], sizes = [72, 512], strides = [1, 1]} : vector<80x512xbf16> to vector<72x512xbf16>
    %c0_13 = arith.constant 0 : index
    %c0_14 = arith.constant 0 : index
    %19 = vector.load %arg5[%c0_13, %c0_14] : memref<512x256xbf16, #tpu.memory_space<vmem>>, vector<512x256xbf16>
    %cst_15 = arith.constant dense<0.000000e+00> : vector<72x256xf32>
    %20 = tpu.matmul %18, %19, %cst_15 {dimension_numbers = #tpu.dot_dimension_numbers<[1], [0], [0], [1], [0, 0, 1, 1], [], []>} : vector<72x512xbf16>, vector<512x256xbf16>, vector<72x256xf32> -> vector<72x256xf32>
    %21 = vector.extract_strided_slice %17 {offsets = [1, 0], sizes = [72, 512], strides = [1, 1]} : vector<80x512xbf16> to vector<72x512xbf16>
    %c0_16 = arith.constant 0 : index
    %c0_17 = arith.constant 0 : index
    %22 = vector.load %arg6[%c0_16, %c0_17] : memref<512x256xbf16, #tpu.memory_space<vmem>>, vector<512x256xbf16>
    %cst_18 = arith.constant dense<0.000000e+00> : vector<72x256xf32>
    %23 = tpu.matmul %21, %22, %cst_18 {dimension_numbers = #tpu.dot_dimension_numbers<[1], [0], [0], [1], [0, 0, 1, 1], [], []>} : vector<72x512xbf16>, vector<512x256xbf16>, vector<72x256xf32> -> vector<72x256xf32>
    %24 = arith.addf %20, %23 : vector<72x256xf32>
    %c0_19 = arith.constant 0 : index
    %c0_20 = arith.constant 0 : index
    %25 = vector.load %arg11[%c0_19, %c0_20] : memref<72x1xf32, #tpu.memory_space<vmem>>, vector<72x1xf32>
    %26 = vector.broadcast %25 : vector<72x1xf32> to vector<72x256xf32>
    %27 = arith.mulf %24, %26 : vector<72x256xf32>
    %cst_21 = arith.constant dense<0.000000e+00> : vector<256xf32>
    %28 = vector.multi_reduction <add>, %27, %cst_21 [0] : vector<72x256xf32> to vector<256xf32>
    %29 = vector.shape_cast %28 : vector<256xf32> to vector<1x256xf32>
    %30 = arith.mulf %27, %27 : vector<72x256xf32>
    %cst_22 = arith.constant dense<0.000000e+00> : vector<256xf32>
    %31 = vector.multi_reduction <add>, %30, %cst_22 [0] : vector<72x256xf32> to vector<256xf32>
    %32 = vector.shape_cast %31 : vector<256xf32> to vector<1x256xf32>
    %33 = tpu.concatenate %29, %32 in 0 : vector<1x256xf32>, vector<1x256xf32> -> vector<2x256xf32>
    %c0_23 = arith.constant 0 : index
    %c0_24 = arith.constant 0 : index
    %34 = vector.load %arg9[%c0_23, %c0_24] : memref<256x16xf32, #tpu.memory_space<vmem>>, vector<256x16xf32>
    %cst_25 = arith.constant dense<0.000000e+00> : vector<2x16xf32>
    %35 = tpu.matmul %33, %34, %cst_25 {dimension_numbers = #tpu.dot_dimension_numbers<[1], [0], [0], [1], [0, 0, 1, 1], [], []>} : vector<2x256xf32>, vector<256x16xf32>, vector<2x16xf32> -> vector<2x16xf32>
    %36 = vector.extract_strided_slice %35 {offsets = [0, 0], sizes = [1, 16], strides = [1, 1]} : vector<2x16xf32> to vector<1x16xf32>
    %cst_26 = arith.constant 9.765625E-4 : f32
    %37 = vector.broadcast %cst_26 : f32 to vector<1x16xf32>
    %38 = arith.mulf %36, %37 : vector<1x16xf32>
    %39 = vector.extract_strided_slice %35 {offsets = [1, 0], sizes = [1, 16], strides = [1, 1]} : vector<2x16xf32> to vector<1x16xf32>
    %cst_27 = arith.constant 9.765625E-4 : f32
    %40 = vector.broadcast %cst_27 : f32 to vector<1x16xf32>
    %41 = arith.mulf %39, %40 : vector<1x16xf32>
    %42 = arith.mulf %38, %38 : vector<1x16xf32>
    %43 = arith.subf %41, %42 : vector<1x16xf32>
    %c0_28 = arith.constant 0 : index
    %c0_29 = arith.constant 0 : index
    %44 = vector.load %arg7[%c0_28, %c0_29] : memref<1x16xf32, #tpu.memory_space<vmem>>, vector<1x16xf32>
    %cst_30 = arith.constant 9.99999974E-6 : f32
    %45 = vector.broadcast %cst_30 : f32 to vector<1x16xf32>
    %46 = arith.addf %43, %45 : vector<1x16xf32>
    %47 = math.rsqrt %46 : vector<1x16xf32>
    %48 = arith.mulf %44, %47 : vector<1x16xf32>
    %c0_31 = arith.constant 0 : index
    %c0_32 = arith.constant 0 : index
    %49 = vector.load %arg8[%c0_31, %c0_32] : memref<1x16xf32, #tpu.memory_space<vmem>>, vector<1x16xf32>
    %50 = arith.mulf %38, %48 : vector<1x16xf32>
    %51 = arith.subf %49, %50 : vector<1x16xf32>
    %52 = tpu.concatenate %48, %51 in 0 : vector<1x16xf32>, vector<1x16xf32> -> vector<2x16xf32>
    %c0_33 = arith.constant 0 : index
    %c0_34 = arith.constant 0 : index
    %53 = vector.load %arg10[%c0_33, %c0_34] : memref<16x256xf32, #tpu.memory_space<vmem>>, vector<16x256xf32>
    %cst_35 = arith.constant dense<0.000000e+00> : vector<2x256xf32>
    %54 = tpu.matmul %52, %53, %cst_35 {dimension_numbers = #tpu.dot_dimension_numbers<[1], [0], [0], [1], [0, 0, 1, 1], [], []>} : vector<2x16xf32>, vector<16x256xf32>, vector<2x256xf32> -> vector<2x256xf32>
    %55 = vector.extract_strided_slice %54 {offsets = [0, 0], sizes = [1, 256], strides = [1, 1]} : vector<2x256xf32> to vector<1x256xf32>
    %56 = vector.broadcast %55 : vector<1x256xf32> to vector<72x256xf32>
    %57 = arith.mulf %24, %56 : vector<72x256xf32>
    %58 = vector.extract_strided_slice %54 {offsets = [1, 0], sizes = [1, 256], strides = [1, 1]} : vector<2x256xf32> to vector<1x256xf32>
    %59 = vector.broadcast %58 : vector<1x256xf32> to vector<72x256xf32>
    %60 = arith.addf %57, %59 : vector<72x256xf32>
    %cst_36 = arith.constant 2.000000e-01 : f32
    %61 = vector.broadcast %cst_36 : f32 to vector<72x256xf32>
    %62 = arith.mulf %61, %60 : vector<72x256xf32>
    %63 = arith.maximumf %60, %62 : vector<72x256xf32>
    %64 = arith.truncf %63 : vector<72x256xf32> to vector<72x256xbf16>
    %c0_37 = arith.constant 0 : index
    %c0_38 = arith.constant 0 : index
    %65 = vector.load %arg12[%c0_37, %c0_38] : memref<48x72xbf16, #tpu.memory_space<vmem>>, vector<48x72xbf16>
    %cst_39 = arith.constant dense<0.000000e+00> : vector<48x256xf32>
    %66 = tpu.matmul %65, %64, %cst_39 {dimension_numbers = #tpu.dot_dimension_numbers<[1], [0], [0], [1], [0, 0, 1, 1], [], []>} : vector<48x72xbf16>, vector<72x256xbf16>, vector<48x256xf32> -> vector<48x256xf32>
    %c0_40 = arith.constant 0 : index
    %c0_41 = arith.constant 0 : index
    %67 = vector.load %arg13[%c0_40, %c0_41] : memref<48x72xbf16, #tpu.memory_space<vmem>>, vector<48x72xbf16>
    %cst_42 = arith.constant dense<0.000000e+00> : vector<48x256xf32>
    %68 = tpu.matmul %67, %64, %cst_42 {dimension_numbers = #tpu.dot_dimension_numbers<[1], [0], [0], [1], [0, 0, 1, 1], [], []>} : vector<48x72xbf16>, vector<72x256xbf16>, vector<48x256xf32> -> vector<48x256xf32>
    %69 = tpu.concatenate %66, %68 in 1 : vector<48x256xf32>, vector<48x256xf32> -> vector<48x512xf32>
    %70 = arith.truncf %69 : vector<48x512xf32> to vector<48x512xbf16>
    %71 = vector.extract_strided_slice %70 {offsets = [0, 0], sizes = [40, 512], strides = [1, 1]} : vector<48x512xbf16> to vector<40x512xbf16>
    %c0_43 = arith.constant 0 : index
    %c0_44 = arith.constant 0 : index
    %72 = vector.load %arg14[%c0_43, %c0_44] : memref<512x256xbf16, #tpu.memory_space<vmem>>, vector<512x256xbf16>
    %cst_45 = arith.constant dense<0.000000e+00> : vector<40x256xf32>
    %73 = tpu.matmul %71, %72, %cst_45 {dimension_numbers = #tpu.dot_dimension_numbers<[1], [0], [0], [1], [0, 0, 1, 1], [], []>} : vector<40x512xbf16>, vector<512x256xbf16>, vector<40x256xf32> -> vector<40x256xf32>
    %74 = vector.extract_strided_slice %70 {offsets = [1, 0], sizes = [40, 512], strides = [1, 1]} : vector<48x512xbf16> to vector<40x512xbf16>
    %c0_46 = arith.constant 0 : index
    %c0_47 = arith.constant 0 : index
    %75 = vector.load %arg15[%c0_46, %c0_47] : memref<512x256xbf16, #tpu.memory_space<vmem>>, vector<512x256xbf16>
    %cst_48 = arith.constant dense<0.000000e+00> : vector<40x256xf32>
    %76 = tpu.matmul %74, %75, %cst_48 {dimension_numbers = #tpu.dot_dimension_numbers<[1], [0], [0], [1], [0, 0, 1, 1], [], []>} : vector<40x512xbf16>, vector<512x256xbf16>, vector<40x256xf32> -> vector<40x256xf32>
    %77 = arith.addf %73, %76 : vector<40x256xf32>
    %c0_49 = arith.constant 0 : index
    %c0_50 = arith.constant 0 : index
    %78 = vector.load %arg20[%c0_49, %c0_50] : memref<40x1xf32, #tpu.memory_space<vmem>>, vector<40x1xf32>
    %79 = vector.broadcast %78 : vector<40x1xf32> to vector<40x256xf32>
    %80 = arith.mulf %77, %79 : vector<40x256xf32>
    %cst_51 = arith.constant dense<0.000000e+00> : vector<256xf32>
    %81 = vector.multi_reduction <add>, %80, %cst_51 [0] : vector<40x256xf32> to vector<256xf32>
    %82 = vector.shape_cast %81 : vector<256xf32> to vector<1x256xf32>
    %83 = arith.mulf %80, %80 : vector<40x256xf32>
    %cst_52 = arith.constant dense<0.000000e+00> : vector<256xf32>
    %84 = vector.multi_reduction <add>, %83, %cst_52 [0] : vector<40x256xf32> to vector<256xf32>
    %85 = vector.shape_cast %84 : vector<256xf32> to vector<1x256xf32>
    %86 = tpu.concatenate %82, %85 in 0 : vector<1x256xf32>, vector<1x256xf32> -> vector<2x256xf32>
    %c0_53 = arith.constant 0 : index
    %c0_54 = arith.constant 0 : index
    %87 = vector.load %arg18[%c0_53, %c0_54] : memref<256x32xf32, #tpu.memory_space<vmem>>, vector<256x32xf32>
    %cst_55 = arith.constant dense<0.000000e+00> : vector<2x32xf32>
    %88 = tpu.matmul %86, %87, %cst_55 {dimension_numbers = #tpu.dot_dimension_numbers<[1], [0], [0], [1], [0, 0, 1, 1], [], []>} : vector<2x256xf32>, vector<256x32xf32>, vector<2x32xf32> -> vector<2x32xf32>
    %89 = vector.extract_strided_slice %88 {offsets = [0, 0], sizes = [1, 32], strides = [1, 1]} : vector<2x32xf32> to vector<1x32xf32>
    %cst_56 = arith.constant 3.906250e-03 : f32
    %90 = vector.broadcast %cst_56 : f32 to vector<1x32xf32>
    %91 = arith.mulf %89, %90 : vector<1x32xf32>
    %92 = vector.extract_strided_slice %88 {offsets = [1, 0], sizes = [1, 32], strides = [1, 1]} : vector<2x32xf32> to vector<1x32xf32>
    %cst_57 = arith.constant 3.906250e-03 : f32
    %93 = vector.broadcast %cst_57 : f32 to vector<1x32xf32>
    %94 = arith.mulf %92, %93 : vector<1x32xf32>
    %95 = arith.mulf %91, %91 : vector<1x32xf32>
    %96 = arith.subf %94, %95 : vector<1x32xf32>
    %c0_58 = arith.constant 0 : index
    %c0_59 = arith.constant 0 : index
    %97 = vector.load %arg16[%c0_58, %c0_59] : memref<1x32xf32, #tpu.memory_space<vmem>>, vector<1x32xf32>
    %cst_60 = arith.constant 9.99999974E-6 : f32
    %98 = vector.broadcast %cst_60 : f32 to vector<1x32xf32>
    %99 = arith.addf %96, %98 : vector<1x32xf32>
    %100 = math.rsqrt %99 : vector<1x32xf32>
    %101 = arith.mulf %97, %100 : vector<1x32xf32>
    %c0_61 = arith.constant 0 : index
    %c0_62 = arith.constant 0 : index
    %102 = vector.load %arg17[%c0_61, %c0_62] : memref<1x32xf32, #tpu.memory_space<vmem>>, vector<1x32xf32>
    %103 = arith.mulf %91, %101 : vector<1x32xf32>
    %104 = arith.subf %102, %103 : vector<1x32xf32>
    %105 = tpu.concatenate %101, %104 in 0 : vector<1x32xf32>, vector<1x32xf32> -> vector<2x32xf32>
    %c0_63 = arith.constant 0 : index
    %c0_64 = arith.constant 0 : index
    %106 = vector.load %arg19[%c0_63, %c0_64] : memref<32x256xf32, #tpu.memory_space<vmem>>, vector<32x256xf32>
    %cst_65 = arith.constant dense<0.000000e+00> : vector<2x256xf32>
    %107 = tpu.matmul %105, %106, %cst_65 {dimension_numbers = #tpu.dot_dimension_numbers<[1], [0], [0], [1], [0, 0, 1, 1], [], []>} : vector<2x32xf32>, vector<32x256xf32>, vector<2x256xf32> -> vector<2x256xf32>
    %108 = vector.extract_strided_slice %107 {offsets = [0, 0], sizes = [1, 256], strides = [1, 1]} : vector<2x256xf32> to vector<1x256xf32>
    %109 = vector.broadcast %108 : vector<1x256xf32> to vector<40x256xf32>
    %110 = arith.mulf %77, %109 : vector<40x256xf32>
    %111 = vector.extract_strided_slice %107 {offsets = [1, 0], sizes = [1, 256], strides = [1, 1]} : vector<2x256xf32> to vector<1x256xf32>
    %112 = vector.broadcast %111 : vector<1x256xf32> to vector<40x256xf32>
    %113 = arith.addf %110, %112 : vector<40x256xf32>
    %cst_66 = arith.constant 2.000000e-01 : f32
    %114 = vector.broadcast %cst_66 : f32 to vector<40x256xf32>
    %115 = arith.mulf %114, %113 : vector<40x256xf32>
    %116 = arith.maximumf %113, %115 : vector<40x256xf32>
    %117 = arith.truncf %116 : vector<40x256xf32> to vector<40x256xbf16>
    %c0_67 = arith.constant 0 : index
    %c0_68 = arith.constant 0 : index
    %118 = vector.load %arg21[%c0_67, %c0_68] : memref<32x40xbf16, #tpu.memory_space<vmem>>, vector<32x40xbf16>
    %cst_69 = arith.constant dense<0.000000e+00> : vector<32x256xf32>
    %119 = tpu.matmul %118, %117, %cst_69 {dimension_numbers = #tpu.dot_dimension_numbers<[1], [0], [0], [1], [0, 0, 1, 1], [], []>} : vector<32x40xbf16>, vector<40x256xbf16>, vector<32x256xf32> -> vector<32x256xf32>
    %c0_70 = arith.constant 0 : index
    %c0_71 = arith.constant 0 : index
    %120 = vector.load %arg22[%c0_70, %c0_71] : memref<32x40xbf16, #tpu.memory_space<vmem>>, vector<32x40xbf16>
    %cst_72 = arith.constant dense<0.000000e+00> : vector<32x256xf32>
    %121 = tpu.matmul %120, %117, %cst_72 {dimension_numbers = #tpu.dot_dimension_numbers<[1], [0], [0], [1], [0, 0, 1, 1], [], []>} : vector<32x40xbf16>, vector<40x256xbf16>, vector<32x256xf32> -> vector<32x256xf32>
    %122 = tpu.concatenate %119, %121 in 1 : vector<32x256xf32>, vector<32x256xf32> -> vector<32x512xf32>
    %123 = arith.truncf %122 : vector<32x512xf32> to vector<32x512xbf16>
    %124 = vector.extract_strided_slice %123 {offsets = [0, 0], sizes = [24, 512], strides = [1, 1]} : vector<32x512xbf16> to vector<24x512xbf16>
    %c0_73 = arith.constant 0 : index
    %c0_74 = arith.constant 0 : index
    %125 = vector.load %arg23[%c0_73, %c0_74] : memref<512x256xbf16, #tpu.memory_space<vmem>>, vector<512x256xbf16>
    %cst_75 = arith.constant dense<0.000000e+00> : vector<24x256xf32>
    %126 = tpu.matmul %124, %125, %cst_75 {dimension_numbers = #tpu.dot_dimension_numbers<[1], [0], [0], [1], [0, 0, 1, 1], [], []>} : vector<24x512xbf16>, vector<512x256xbf16>, vector<24x256xf32> -> vector<24x256xf32>
    %127 = vector.extract_strided_slice %123 {offsets = [1, 0], sizes = [24, 512], strides = [1, 1]} : vector<32x512xbf16> to vector<24x512xbf16>
    %c0_76 = arith.constant 0 : index
    %c0_77 = arith.constant 0 : index
    %128 = vector.load %arg24[%c0_76, %c0_77] : memref<512x256xbf16, #tpu.memory_space<vmem>>, vector<512x256xbf16>
    %cst_78 = arith.constant dense<0.000000e+00> : vector<24x256xf32>
    %129 = tpu.matmul %127, %128, %cst_78 {dimension_numbers = #tpu.dot_dimension_numbers<[1], [0], [0], [1], [0, 0, 1, 1], [], []>} : vector<24x512xbf16>, vector<512x256xbf16>, vector<24x256xf32> -> vector<24x256xf32>
    %130 = arith.addf %126, %129 : vector<24x256xf32>
    %c0_79 = arith.constant 0 : index
    %c0_80 = arith.constant 0 : index
    %131 = vector.load %arg29[%c0_79, %c0_80] : memref<24x1xf32, #tpu.memory_space<vmem>>, vector<24x1xf32>
    %132 = vector.broadcast %131 : vector<24x1xf32> to vector<24x256xf32>
    %133 = arith.mulf %130, %132 : vector<24x256xf32>
    %cst_81 = arith.constant dense<0.000000e+00> : vector<256xf32>
    %134 = vector.multi_reduction <add>, %133, %cst_81 [0] : vector<24x256xf32> to vector<256xf32>
    %135 = vector.shape_cast %134 : vector<256xf32> to vector<1x256xf32>
    %136 = arith.mulf %133, %133 : vector<24x256xf32>
    %cst_82 = arith.constant dense<0.000000e+00> : vector<256xf32>
    %137 = vector.multi_reduction <add>, %136, %cst_82 [0] : vector<24x256xf32> to vector<256xf32>
    %138 = vector.shape_cast %137 : vector<256xf32> to vector<1x256xf32>
    %139 = tpu.concatenate %135, %138 in 0 : vector<1x256xf32>, vector<1x256xf32> -> vector<2x256xf32>
    %c0_83 = arith.constant 0 : index
    %c0_84 = arith.constant 0 : index
    %140 = vector.load %arg27[%c0_83, %c0_84] : memref<256x64xf32, #tpu.memory_space<vmem>>, vector<256x64xf32>
    %cst_85 = arith.constant dense<0.000000e+00> : vector<2x64xf32>
    %141 = tpu.matmul %139, %140, %cst_85 {dimension_numbers = #tpu.dot_dimension_numbers<[1], [0], [0], [1], [0, 0, 1, 1], [], []>} : vector<2x256xf32>, vector<256x64xf32>, vector<2x64xf32> -> vector<2x64xf32>
    %142 = vector.extract_strided_slice %141 {offsets = [0, 0], sizes = [1, 64], strides = [1, 1]} : vector<2x64xf32> to vector<1x64xf32>
    %cst_86 = arith.constant 1.562500e-02 : f32
    %143 = vector.broadcast %cst_86 : f32 to vector<1x64xf32>
    %144 = arith.mulf %142, %143 : vector<1x64xf32>
    %145 = vector.extract_strided_slice %141 {offsets = [1, 0], sizes = [1, 64], strides = [1, 1]} : vector<2x64xf32> to vector<1x64xf32>
    %cst_87 = arith.constant 1.562500e-02 : f32
    %146 = vector.broadcast %cst_87 : f32 to vector<1x64xf32>
    %147 = arith.mulf %145, %146 : vector<1x64xf32>
    %148 = arith.mulf %144, %144 : vector<1x64xf32>
    %149 = arith.subf %147, %148 : vector<1x64xf32>
    %c0_88 = arith.constant 0 : index
    %c0_89 = arith.constant 0 : index
    %150 = vector.load %arg25[%c0_88, %c0_89] : memref<1x64xf32, #tpu.memory_space<vmem>>, vector<1x64xf32>
    %cst_90 = arith.constant 9.99999974E-6 : f32
    %151 = vector.broadcast %cst_90 : f32 to vector<1x64xf32>
    %152 = arith.addf %149, %151 : vector<1x64xf32>
    %153 = math.rsqrt %152 : vector<1x64xf32>
    %154 = arith.mulf %150, %153 : vector<1x64xf32>
    %c0_91 = arith.constant 0 : index
    %c0_92 = arith.constant 0 : index
    %155 = vector.load %arg26[%c0_91, %c0_92] : memref<1x64xf32, #tpu.memory_space<vmem>>, vector<1x64xf32>
    %156 = arith.mulf %144, %154 : vector<1x64xf32>
    %157 = arith.subf %155, %156 : vector<1x64xf32>
    %158 = tpu.concatenate %154, %157 in 0 : vector<1x64xf32>, vector<1x64xf32> -> vector<2x64xf32>
    %c0_93 = arith.constant 0 : index
    %c0_94 = arith.constant 0 : index
    %159 = vector.load %arg28[%c0_93, %c0_94] : memref<64x256xf32, #tpu.memory_space<vmem>>, vector<64x256xf32>
    %cst_95 = arith.constant dense<0.000000e+00> : vector<2x256xf32>
    %160 = tpu.matmul %158, %159, %cst_95 {dimension_numbers = #tpu.dot_dimension_numbers<[1], [0], [0], [1], [0, 0, 1, 1], [], []>} : vector<2x64xf32>, vector<64x256xf32>, vector<2x256xf32> -> vector<2x256xf32>
    %161 = vector.extract_strided_slice %160 {offsets = [0, 0], sizes = [1, 256], strides = [1, 1]} : vector<2x256xf32> to vector<1x256xf32>
    %162 = vector.broadcast %161 : vector<1x256xf32> to vector<24x256xf32>
    %163 = arith.mulf %130, %162 : vector<24x256xf32>
    %164 = vector.extract_strided_slice %160 {offsets = [1, 0], sizes = [1, 256], strides = [1, 1]} : vector<2x256xf32> to vector<1x256xf32>
    %165 = vector.broadcast %164 : vector<1x256xf32> to vector<24x256xf32>
    %166 = arith.addf %163, %165 : vector<24x256xf32>
    %cst_96 = arith.constant 2.000000e-01 : f32
    %167 = vector.broadcast %cst_96 : f32 to vector<24x256xf32>
    %168 = arith.mulf %167, %166 : vector<24x256xf32>
    %169 = arith.maximumf %166, %168 : vector<24x256xf32>
    %c0_97 = arith.constant 0 : index
    %c0_98 = arith.constant 0 : index
    %170 = vector.load %arg30[%c0_97, %c0_98] : memref<24x256xf32, #tpu.memory_space<vmem>>, vector<24x256xf32>
    %171 = arith.mulf %169, %170 : vector<24x256xf32>
    %cst_99 = arith.constant dense<0.000000e+00> : vector<24xf32>
    %172 = vector.multi_reduction <add>, %171, %cst_99 [1] : vector<24x256xf32> to vector<24xf32>
    %173 = vector.shape_cast %172 : vector<24xf32> to vector<24x1xf32>
    %c0_100 = arith.constant 0 : index
    %c0_101 = arith.constant 0 : index
    %174 = vector.load %arg31[%c0_100, %c0_101] : memref<4x24xf32, #tpu.memory_space<vmem>>, vector<4x24xf32>
    %cst_102 = arith.constant dense<0.000000e+00> : vector<4x1xf32>
    %175 = tpu.matmul %174, %173, %cst_102 {dimension_numbers = #tpu.dot_dimension_numbers<[1], [0], [0], [1], [0, 0, 1, 1], [], []>} : vector<4x24xf32>, vector<24x1xf32>, vector<4x1xf32> -> vector<4x1xf32>
    %176 = arith.negf %175 : vector<4x1xf32>
    %177 = math.exp %176 : vector<4x1xf32>
    %cst_103 = arith.constant 1.000000e+00 : f32
    %178 = vector.broadcast %cst_103 : f32 to vector<4x1xf32>
    %179 = arith.addf %178, %177 : vector<4x1xf32>
    %180 = arith.divf %178, %179 : vector<4x1xf32>
    %c0_104 = arith.constant 0 : index
    %c0_105 = arith.constant 0 : index
    %181 = vector.load %arg32[%c0_104, %c0_105] : memref<4x1xf32, #tpu.memory_space<vmem>>, vector<4x1xf32>
    tpu.vector_store %arg32[%c0_104, %c0_105], %180 {strides = array<i32>} : memref<4x1xf32, #tpu.memory_space<vmem>>, vector<4x1xf32>,
    return
  }
}

</mosaic_0001>

<llo_original>
// kernel: netd_forward.1
$region0: #{netd_forward.1}
  #allocation0 [shape = 'u32[]', space=smem, size = 0x4, offset = 0x4, fixed_abs, tag = 'smem constant byte address 0x4 - core index']
  #allocation1 [shape = 'u32[144,128]{1,0:T(1,128)}', space=vmem, size = 0x12000, scoped, tag = 'internal scratch']
  %s0 = inlined_call_operand.smem [shape: u32[33], index: -1, kind: input, shape index: {}]
  %s1 = sld [smem:[%s0]]
  %s2 = scalar_lea.smem %s0, 1
  %s3 = sld [smem:[%s2]]
  %s4 = scalar_lea.smem %s0, 2
  %s5 = sld [smem:[%s4]]
  %s6 = scalar_lea.smem %s0, 3
  %s7 = sld [smem:[%s6]]
  %s8 = scalar_lea.smem %s0, 4
  %s9 = sld [smem:[%s8]]
  %s10 = scalar_lea.smem %s0, 5
  %s11 = sld [smem:[%s10]]
  %s12 = scalar_lea.smem %s0, 6
  %s13 = sld [smem:[%s12]]
  %s14 = scalar_lea.smem %s0, 7
  %s15 = sld [smem:[%s14]]
  %s16 = scalar_lea.smem %s0, 8
  %s17 = sld [smem:[%s16]]
  %s18 = scalar_lea.smem %s0, 9
  %s19 = sld [smem:[%s18]]
  %s20 = scalar_lea.smem %s0, 10
  %s21 = sld [smem:[%s20]]
  %s22 = scalar_lea.smem %s0, 11
  %s23 = sld [smem:[%s22]]
  %s24 = scalar_lea.smem %s0, 12
  %s25 = sld [smem:[%s24]]
  %s26 = scalar_lea.smem %s0, 13
  %s27 = sld [smem:[%s26]]
  %s28 = scalar_lea.smem %s0, 14
  %s29 = sld [smem:[%s28]]
  %s30 = scalar_lea.smem %s0, 15
  %s31 = sld [smem:[%s30]]
  %s32 = scalar_lea.smem %s0, 16
  %s33 = sld [smem:[%s32]]
  %s34 = scalar_lea.smem %s0, 17
  %s35 = sld [smem:[%s34]]
  %s36 = scalar_lea.smem %s0, 18
  %s37 = sld [smem:[%s36]]
  %s38 = scalar_lea.smem %s0, 19
  %s39 = sld [smem:[%s38]]
  %s40 = scalar_lea.smem %s0, 20
  %s41 = sld [smem:[%s40]]
  %s42 = scalar_lea.smem %s0, 21
  %s43 = sld [smem:[%s42]]
  %s44 = scalar_lea.smem %s0, 22
  %s45 = sld [smem:[%s44]]
  %s46 = scalar_lea.smem %s0, 23
  %s47 = sld [smem:[%s46]]
  %s48 = scalar_lea.smem %s0, 24
  %s49 = sld [smem:[%s48]]
  %s50 = scalar_lea.smem %s0, 25
  %s51 = sld [smem:[%s50]]
  %s52 = scalar_lea.smem %s0, 26
  %s53 = sld [smem:[%s52]]
  %s54 = scalar_lea.smem %s0, 27
  %s55 = sld [smem:[%s54]]
  %s56 = scalar_lea.smem %s0, 28
  %s57 = sld [smem:[%s56]]
  %s58 = scalar_lea.smem %s0, 29
  %s59 = sld [smem:[%s58]]
  %s60 = scalar_lea.smem %s0, 30
  %s61 = sld [smem:[%s60]]
  %s62 = scalar_lea.smem %s0, 31
  %s63 = sld [smem:[%s62]]
  %s64 = scalar_lea.smem %s0, 32
  %s65 = sld [smem:[%s64]]
  %s66 = sld [smem:[#allocation0]]
  $region138: #{netd_forward.1} parent=0
    _
  %s68 = ssub.s32 1, %s66
  %s69 = scalar_select 0, %s68, %s66
  // Predicated region
  $region2: #{netd_forward.1} parent=0 // pred_check
    _
  $region3: #{netd_forward.1} parent=0 // pred_check_branch
    %71 = sbr.rel (0) target = $region5
  $region4: #{netd_forward.1} parent=0 // pred_region
    _
  $region5: #{netd_forward.1} parent=0 // pred_fallthru
    _
  // Predicated region
  $region6: #{netd_forward.1} parent=0 // pred_check
    _
  $region7: #{netd_forward.1} parent=0 // pred_check_branch
    %73 = sbr.rel (0) target = $region9
  $region8: #{netd_forward.1} parent=0 // pred_region
    _
  $region9: #{netd_forward.1} parent=0 // pred_fallthru
    _
  // Predicated region
  $region10: #{netd_forward.1} parent=0 // pred_check
    _
  $region11: #{netd_forward.1} parent=0 // pred_check_branch
    %75 = sbr.rel (0) target = $region13
  $region12: #{netd_forward.1} parent=0 // pred_region
    _
  $region13: #{netd_forward.1} parent=0 // pred_fallthru
    _
  // Predicated region
  $region14: #{netd_forward.1} parent=0 // pred_check
    _
  $region15: #{netd_forward.1} parent=0 // pred_check_branch
    %77 = sbr.rel (0) target = $region17
  $region16: #{netd_forward.1} parent=0 // pred_region
    _
  $region17: #{netd_forward.1} parent=0 // pred_fallthru
    _
  // Predicated region
  $region18: #{netd_forward.1} parent=0 // pred_check
    _
  $region19: #{netd_forward.1} parent=0 // pred_check_branch
    %79 = sbr.rel (0) target = $region21
  $region20: #{netd_forward.1} parent=0 // pred_region
    _
  $region21: #{netd_forward.1} parent=0 // pred_fallthru
    _
  // Predicated region
  $region22: #{netd_forward.1} parent=0 // pred_check
    _
  $region23: #{netd_forward.1} parent=0 // pred_check_branch
    %81 = sbr.rel (0) target = $region25
  $region24: #{netd_forward.1} parent=0 // pred_region
    _
  $region25: #{netd_forward.1} parent=0 // pred_fallthru
    _
  // Predicated region
  $region26: #{netd_forward.1} parent=0 // pred_check
    _
  $region27: #{netd_forward.1} parent=0 // pred_check_branch
    %83 = sbr.rel (0) target = $region29
  $region28: #{netd_forward.1} parent=0 // pred_region
    _
  $region29: #{netd_forward.1} parent=0 // pred_fallthru
    _
  // Predicated region
  $region30: #{netd_forward.1} parent=0 // pred_check
    _
  $region31: #{netd_forward.1} parent=0 // pred_check_branch
    %85 = sbr.rel (0) target = $region33
  $region32: #{netd_forward.1} parent=0 // pred_region
    _
  $region33: #{netd_forward.1} parent=0 // pred_fallthru
    _
  // Predicated region
  $region34: #{netd_forward.1} parent=0 // pred_check
    _
  $region35: #{netd_forward.1} parent=0 // pred_check_branch
    %87 = sbr.rel (0) target = $region37
  $region36: #{netd_forward.1} parent=0 // pred_region
    _
  $region37: #{netd_forward.1} parent=0 // pred_fallthru
    _
  // Predicated region
  $region38: #{netd_forward.1} parent=0 // pred_check
    _
  $region39: #{netd_forward.1} parent=0 // pred_check_branch
    %89 = sbr.rel (0) target = $region41
  $region40: #{netd_forward.1} parent=0 // pred_region
    _
  $region41: #{netd_forward.1} parent=0 // pred_fallthru
    _
  // Predicated region
  $region42: #{netd_forward.1} parent=0 // pred_check
    _
  $region43: #{netd_forward.1} parent=0 // pred_check_branch
    %91 = sbr.rel (0) target = $region45
  $region44: #{netd_forward.1} parent=0 // pred_region
    _
  $region45: #{netd_forward.1} parent=0 // pred_fallthru
    _
  // Predicated region
  $region46: #{netd_forward.1} parent=0 // pred_check
    _
  $region47: #{netd_forward.1} parent=0 // pred_check_branch
    %93 = sbr.rel (0) target = $region49
  $region48: #{netd_forward.1} parent=0 // pred_region
    _
  $region49: #{netd_forward.1} parent=0 // pred_fallthru
    _
  // Predicated region
  $region50: #{netd_forward.1} parent=0 // pred_check
    _
  $region51: #{netd_forward.1} parent=0 // pred_check_branch
    %95 = sbr.rel (0) target = $region53
  $region52: #{netd_forward.1} parent=0 // pred_region
    _
  $region53: #{netd_forward.1} parent=0 // pred_fallthru
    _
  // Predicated region
  $region54: #{netd_forward.1} parent=0 // pred_check
    _
  $region55: #{netd_forward.1} parent=0 // pred_check_branch
    %97 = sbr.rel (0) target = $region57
  $region56: #{netd_forward.1} parent=0 // pred_region
    _
  $region57: #{netd_forward.1} parent=0 // pred_fallthru
    _
  // Predicated region
  $region58: #{netd_forward.1} parent=0 // pred_check
    _
  $region59: #{netd_forward.1} parent=0 // pred_check_branch
    %99 = sbr.rel (0) target = $region61
  $region60: #{netd_forward.1} parent=0 // pred_region
    _
  $region61: #{netd_forward.1} parent=0 // pred_fallthru
    _
  // Predicated region
  $region62: #{netd_forward.1} parent=0 // pred_check
    _
  $region63: #{netd_forward.1} parent=0 // pred_check_branch
    %101 = sbr.rel (0) target = $region65
  $region64: #{netd_forward.1} parent=0 // pred_region
    _
  $region65: #{netd_forward.1} parent=0 // pred_fallthru
    _
  // Predicated region
  $region66: #{netd_forward.1} parent=0 // pred_check
    _
  $region67: #{netd_forward.1} parent=0 // pred_check_branch
    %103 = sbr.rel (0) target = $region69
  $region68: #{netd_forward.1} parent=0 // pred_region
    _
  $region69: #{netd_forward.1} parent=0 // pred_fallthru
    _
  // Predicated region
  $region70: #{netd_forward.1} parent=0 // pred_check
    _
  $region71: #{netd_forward.1} parent=0 // pred_check_branch
    %105 = sbr.rel (0) target = $region73
  $region72: #{netd_forward.1} parent=0 // pred_region
    _
  $region73: #{netd_forward.1} parent=0 // pred_fallthru
    _
  // Predicated region
  $region74: #{netd_forward.1} parent=0 // pred_check
    _
  $region75: #{netd_forward.1} parent=0 // pred_check_branch
    %107 = sbr.rel (0) target = $region77
  $region76: #{netd_forward.1} parent=0 // pred_region
    _
  $region77: #{netd_forward.1} parent=0 // pred_fallthru
    _
  // Predicated region
  $region78: #{netd_forward.1} parent=0 // pred_check
    _
  $region79: #{netd_forward.1} parent=0 // pred_check_branch
    %109 = sbr.rel (0) target = $region81
  $region80: #{netd_forward.1} parent=0 // pred_region
    _
  $region81: #{netd_forward.1} parent=0 // pred_fallthru
    _
  // Predicated region
  $region82: #{netd_forward.1} parent=0 // pred_check
    _
  $region83: #{netd_forward.1} parent=0 // pred_check_branch
    %111 = sbr.rel (0) target = $region85
  $region84: #{netd_forward.1} parent=0 // pred_region
    _
  $region85: #{netd_forward.1} parent=0 // pred_fallthru
    _
  // Predicated region
  $region86: #{netd_forward.1} parent=0 // pred_check
    _
  $region87: #{netd_forward.1} parent=0 // pred_check_branch
    %113 = sbr.rel (0) target = $region89
  $region88: #{netd_forward.1} parent=0 // pred_region
    _
  $region89: #{netd_forward.1} parent=0 // pred_fallthru
    _
  // Predicated region
  $region90: #{netd_forward.1} parent=0 // pred_check
    _
  $region91: #{netd_forward.1} parent=0 // pred_check_branch
    %115 = sbr.rel (0) target = $region93
  $region92: #{netd_forward.1} parent=0 // pred_region
    _
  $region93: #{netd_forward.1} parent=0 // pred_fallthru
    _
  // Predicated region
  $region94: #{netd_forward.1} parent=0 // pred_check
    _
  $region95: #{netd_forward.1} parent=0 // pred_check_branch
    %117 = sbr.rel (0) target = $region97
  $region96: #{netd_forward.1} parent=0 // pred_region
    _
  $region97: #{netd_forward.1} parent=0 // pred_fallthru
    _
  // Predicated region
  $region98: #{netd_forward.1} parent=0 // pred_check
    _
  $region99: #{netd_forward.1} parent=0 // pred_check_branch
    %119 = sbr.rel (0) target = $region101
  $region100: #{netd_forward.1} parent=0 // pred_region
    _
  $region101: #{netd_forward.1} parent=0 // pred_fallthru
    _
  // Predicated region
  $region102: #{netd_forward.1} parent=0 // pred_check
    _
  $region103: #{netd_forward.1} parent=0 // pred_check_branch
    %121 = sbr.rel (0) target = $region105
  $region104: #{netd_forward.1} parent=0 // pred_region
    _
  $region105: #{netd_forward.1} parent=0 // pred_fallthru
    _
  // Predicated region
  $region106: #{netd_forward.1} parent=0 // pred_check
    _
  $region107: #{netd_forward.1} parent=0 // pred_check_branch
    %123 = sbr.rel (0) target = $region109
  $region108: #{netd_forward.1} parent=0 // pred_region
    _
  $region109: #{netd_forward.1} parent=0 // pred_fallthru
    _
  // Predicated region
  $region110: #{netd_forward.1} parent=0 // pred_check
    _
  $region111: #{netd_forward.1} parent=0 // pred_check_branch
    %125 = sbr.rel (0) target = $region113
  $region112: #{netd_forward.1} parent=0 // pred_region
    _
  $region113: #{netd_forward.1} parent=0 // pred_fallthru
    _
  // Predicated region
  $region114: #{netd_forward.1} parent=0 // pred_check
    _
  $region115: #{netd_forward.1} parent=0 // pred_check_branch
    %127 = sbr.rel (0) target = $region117
  $region116: #{netd_forward.1} parent=0 // pred_region
    _
  $region117: #{netd_forward.1} parent=0 // pred_fallthru
    _
  // Predicated region
  $region118: #{netd_forward.1} parent=0 // pred_check
    _
  $region119: #{netd_forward.1} parent=0 // pred_check_branch
    %129 = sbr.rel (0) target = $region121
  $region120: #{netd_forward.1} parent=0 // pred_region
    _
  $region121: #{netd_forward.1} parent=0 // pred_fallthru
    _
  // Predicated region
  $region122: #{netd_forward.1} parent=0 // pred_check
    _
  $region123: #{netd_forward.1} parent=0 // pred_check_branch
    %131 = sbr.rel (0) target = $region125
  $region124: #{netd_forward.1} parent=0 // pred_region
    _
  $region125: #{netd_forward.1} parent=0 // pred_fallthru
    _
  // Predicated region
  $region126: #{netd_forward.1} parent=0 // pred_check
    _
  $region127: #{netd_forward.1} parent=0 // pred_check_branch
    %133 = sbr.rel (0) target = $region129
  $region128: #{netd_forward.1} parent=0 // pred_region
    _
  $region129: #{netd_forward.1} parent=0 // pred_fallthru
    _
  %v135 = vld [vmem:[%s1] sm:$0xff]
  %v136 = vld [vmem:[%s1 + $0x8] sm:$0xf]
  %v137 = vld [vmem:[%s1 + $0xc] sm:$0xff]
  %v138 = vld [vmem:[%s1 + $0x14] sm:$0xf]
  %v139 = vld [vmem:[%s1 + $0x18] sm:$0xff]
  %v140 = vld [vmem:[%s1 + $0x20] sm:$0xf]
  %v141 = vld [vmem:[%s1 + $0x24] sm:$0xff]
  %v142 = vld [vmem:[%s1 + $0x2c] sm:$0xf]
  %v143 = vld [vmem:[%s1 + $0x30] sm:$0xff]
  %v144 = vld [vmem:[%s1 + $0x38] sm:$0xf]
  %v145 = vld [vmem:[%s1 + $0x3c] sm:$0xff]
  %v146 = vld [vmem:[%s1 + $0x44] sm:$0xf]
  %v147 = vld [vmem:[%s1 + $0x48] sm:$0xff]
  %v148 = vld [vmem:[%s1 + $0x50] sm:$0xf]
  %v149 = vld [vmem:[%s1 + $0x54] sm:$0xff]
  %v150 = vld [vmem:[%s1 + $0x5c] sm:$0xf]
  %v151 = vld [vmem:[%s1 + $0x60] sm:$0xff]
  %v152 = vld [vmem:[%s1 + $0x68] sm:$0xf]
  %v153 = vld [vmem:[%s1 + $0x6c] sm:$0xff]
  %v154 = vld [vmem:[%s1 + $0x74] sm:$0xf]
  %v155 = vld [vmem:[%s1 + $0x78] sm:$0xff]
  %v156 = vld [vmem:[%s1 + $0x80] sm:$0xf]
  %v157 = vld [vmem:[%s1 + $0x84] sm:$0xff]
  %v158 = vld [vmem:[%s1 + $0x8c] sm:$0xf]
  %v159 = vld [vmem:[%s1 + $0x90] sm:$0xff]
  %v160 = vld [vmem:[%s1 + $0x98] sm:$0xf]
  %v161 = vld [vmem:[%s1 + $0x9c] sm:$0xff]
  %v162 = vld [vmem:[%s1 + $0xa4] sm:$0xf]
  %v163 = vld [vmem:[%s1 + $0xa8] sm:$0xff]
  %v164 = vld [vmem:[%s1 + $0xb0] sm:$0xf]
  %v165 = vld [vmem:[%s1 + $0xb4] sm:$0xff]
  %v166 = vld [vmem:[%s1 + $0xbc] sm:$0xf]
  %v167 = vld [vmem:[%s1 + $0xc0] sm:$0xff]
  %v168 = vld [vmem:[%s1 + $0xc8] sm:$0xf]
  %v169 = vld [vmem:[%s1 + $0xcc] sm:$0xff]
  %v170 = vld [vmem:[%s1 + $0xd4] sm:$0xf]
  %v171 = vld [vmem:[%s3] sm:$0xff]
  %v172 = vld [vmem:[%s3 + $0x8] sm:$0xff]
  %v173 = vld [vmem:[%s3 + $0x10] sm:$0xff]
  %v174 = vld [vmem:[%s3 + $0x18] sm:$0xff]
  %v175 = vld [vmem:[%s3 + $0x20] sm:$0xff]
  %v176 = vld [vmem:[%s3 + $0x28] sm:$0xff]
  %v177 = vld [vmem:[%s3 + $0x30] sm:$0xff]
  %v178 = vld [vmem:[%s3 + $0x38] sm:$0xff]
  %v179 = vld [vmem:[%s3 + $0x40] sm:$0xff]
  %v180 = vld [vmem:[%s3 + $0x48] sm:$0xff]
  %v181 = vld [vmem:[%s3 + $0x50] sm:$0xff]
  %v182 = vld [vmem:[%s3 + $0x58] sm:$0xff]
  %v183 = vld [vmem:[%s3 + $0x60] sm:$0xff]
  %v184 = vld [vmem:[%s3 + $0x68] sm:$0xff]
  %v185 = vld [vmem:[%s3 + $0x70] sm:$0xff]
  %v186 = vld [vmem:[%s3 + $0x78] sm:$0xff]
  %v187 = vld [vmem:[%s3 + $0x80] sm:$0xff]
  %v188 = vld [vmem:[%s3 + $0x88] sm:$0xff]
  %v189 = vld [vmem:[%s3 + $0x90] sm:$0xff]
  %v190 = vld [vmem:[%s3 + $0x98] sm:$0xff]
  %v191 = vld [vmem:[%s3 + $0xa0] sm:$0xff]
  %v192 = vld [vmem:[%s3 + $0xa8] sm:$0xff]
  %v193 = vld [vmem:[%s3 + $0xb0] sm:$0xff]
  %v194 = vld [vmem:[%s3 + $0xb8] sm:$0xff]
  %v195 = vld [vmem:[%s3 + $0xc0] sm:$0xff]
  %v196 = vld [vmem:[%s3 + $0xc8] sm:$0xff]
  %v197 = vld [vmem:[%s3 + $0xd0] sm:$0xff]
  %v198 = vld [vmem:[%s3 + $0xd8] sm:$0xff]
  %v199 = vld [vmem:[%s3 + $0xe0] sm:$0xff]
  %v200 = vld [vmem:[%s3 + $0xe8] sm:$0xff]
  %v201 = vld [vmem:[%s3 + $0xf0] sm:$0xff]
  %v202 = vld [vmem:[%s3 + $0xf8] sm:$0xff]
  %v203 = vld [vmem:[%s3 + $0x100] sm:$0xff]
  %v204 = vld [vmem:[%s3 + $0x108] sm:$0xff]
  %v205 = vld [vmem:[%s3 + $0x110] sm:$0xff]
  %v206 = vld [vmem:[%s3 + $0x118] sm:$0xff]
  %v207 = vld [vmem:[%s3 + $0x120] sm:$0xff]
  %v208 = vld [vmem:[%s3 + $0x128] sm:$0xff]
  %v209 = vld [vmem:[%s3 + $0x130] sm:$0xff]
  %v210 = vld [vmem:[%s3 + $0x138] sm:$0xff]
  %v211 = vld [vmem:[%s3 + $0x140] sm:$0xff]
  %v212 = vld [vmem:[%s3 + $0x148] sm:$0xff]
  %v213 = vld [vmem:[%s3 + $0x150] sm:$0xff]
  %v214 = vld [vmem:[%s3 + $0x158] sm:$0xff]
  %v215 = vld [vmem:[%s3 + $0x160] sm:$0xff]
  %v216 = vld [vmem:[%s3 + $0x168] sm:$0xff]
  %v217 = vld [vmem:[%s3 + $0x170] sm:$0xff]
  %v218 = vld [vmem:[%s3 + $0x178] sm:$0xff]
  %v219 = vld [vmem:[%s5] sm:$0xff]
  %v220 = vld [vmem:[%s5 + $0x8] sm:$0xff]
  %v221 = vld [vmem:[%s5 + $0x10] sm:$0xff]
  %v222 = vld [vmem:[%s5 + $0x18] sm:$0xff]
  %v223 = vld [vmem:[%s5 + $0x20] sm:$0xff]
  %v224 = vld [vmem:[%s5 + $0x28] sm:$0xff]
  %v225 = vld [vmem:[%s5 + $0x30] sm:$0xff]
  %v226 = vld [vmem:[%s5 + $0x38] sm:$0xff]
  %v227 = vld [vmem:[%s5 + $0x40] sm:$0xff]
  %v228 = vld [vmem:[%s5 + $0x48] sm:$0xff]
  %v229 = vld [vmem:[%s5 + $0x50] sm:$0xff]
  %v230 = vld [vmem:[%s5 + $0x58] sm:$0xff]
  %v231 = vld [vmem:[%s5 + $0x60] sm:$0xff]
  %v232 = vld [vmem:[%s5 + $0x68] sm:$0xff]
  %v233 = vld [vmem:[%s5 + $0x70] sm:$0xff]
  %v234 = vld [vmem:[%s5 + $0x78] sm:$0xff]
  %v235 = vld [vmem:[%s5 + $0x80] sm:$0xff]
  %v236 = vld [vmem:[%s5 + $0x88] sm:$0xff]
  %v237 = vld [vmem:[%s5 + $0x90] sm:$0xff]
  %v238 = vld [vmem:[%s5 + $0x98] sm:$0xff]
  %v239 = vld [vmem:[%s5 + $0xa0] sm:$0xff]
  %v240 = vld [vmem:[%s5 + $0xa8] sm:$0xff]
  %v241 = vld [vmem:[%s5 + $0xb0] sm:$0xff]
  %v242 = vld [vmem:[%s5 + $0xb8] sm:$0xff]
  %v243 = vld [vmem:[%s5 + $0xc0] sm:$0xff]
  %v244 = vld [vmem:[%s5 + $0xc8] sm:$0xff]
  %v245 = vld [vmem:[%s5 + $0xd0] sm:$0xff]
  %v246 = vld [vmem:[%s5 + $0xd8] sm:$0xff]
  %v247 = vld [vmem:[%s5 + $0xe0] sm:$0xff]
  %v248 = vld [vmem:[%s5 + $0xe8] sm:$0xff]
  %v249 = vld [vmem:[%s5 + $0xf0] sm:$0xff]
  %v250 = vld [vmem:[%s5 + $0xf8] sm:$0xff]
  %v251 = vld [vmem:[%s5 + $0x100] sm:$0xff]
  %v252 = vld [vmem:[%s5 + $0x108] sm:$0xff]
  %v253 = vld [vmem:[%s5 + $0x110] sm:$0xff]
  %v254 = vld [vmem:[%s5 + $0x118] sm:$0xff]
  %v255 = vld [vmem:[%s5 + $0x120] sm:$0xff]
  %v256 = vld [vmem:[%s5 + $0x128] sm:$0xff]
  %v257 = vld [vmem:[%s5 + $0x130] sm:$0xff]
  %v258 = vld [vmem:[%s5 + $0x138] sm:$0xff]
  %v259 = vld [vmem:[%s5 + $0x140] sm:$0xff]
  %v260 = vld [vmem:[%s5 + $0x148] sm:$0xff]
  %v261 = vld [vmem:[%s5 + $0x150] sm:$0xff]
  %v262 = vld [vmem:[%s5 + $0x158] sm:$0xff]
  %v263 = vld [vmem:[%s5 + $0x160] sm:$0xff]
  %v264 = vld [vmem:[%s5 + $0x168] sm:$0xff]
  %v265 = vld [vmem:[%s5 + $0x170] sm:$0xff]
  %v266 = vld [vmem:[%s5 + $0x178] sm:$0xff]
  %v303 = vunpack.c.l.b16 %v135
  %v304 = vunpack.c.h.b16 %v135
  %v305 = vunpack.c.l.b16 %v136
  %v306 = vunpack.c.l.b16 %v137
  %v307 = vunpack.c.h.b16 %v137
  %v308 = vunpack.c.l.b16 %v138
  %v309 = vunpack.c.l.b16 %v139
  %v310 = vunpack.c.h.b16 %v139
  %v311 = vunpack.c.l.b16 %v140
  %v312 = vunpack.c.l.b16 %v141
  %v313 = vunpack.c.h.b16 %v141
  %v314 = vunpack.c.l.b16 %v142
  %v315 = vunpack.c.l.b16 %v143
  %v316 = vunpack.c.h.b16 %v143
  %v317 = vunpack.c.l.b16 %v144
  %v318 = vunpack.c.l.b16 %v145
  %v319 = vunpack.c.h.b16 %v145
  %v320 = vunpack.c.l.b16 %v146
  %v321 = vunpack.c.l.b16 %v147
  %v322 = vunpack.c.h.b16 %v147
  %v323 = vunpack.c.l.b16 %v148
  %v324 = vunpack.c.l.b16 %v149
  %v325 = vunpack.c.h.b16 %v149
  %v326 = vunpack.c.l.b16 %v150
  %v327 = vunpack.c.l.b16 %v151
  %v328 = vunpack.c.h.b16 %v151
  %v329 = vunpack.c.l.b16 %v152
  %v330 = vunpack.c.l.b16 %v153
  %v331 = vunpack.c.h.b16 %v153
  %v332 = vunpack.c.l.b16 %v154
  %v333 = vunpack.c.l.b16 %v155
  %v334 = vunpack.c.h.b16 %v155
  %v335 = vunpack.c.l.b16 %v156
  %v336 = vunpack.c.l.b16 %v157
  %v337 = vunpack.c.h.b16 %v157
  %v338 = vunpack.c.l.b16 %v158
  %v339 = vunpack.c.l.b16 %v159
  %v340 = vunpack.c.h.b16 %v159
  %v341 = vunpack.c.l.b16 %v160
  %v342 = vunpack.c.l.b16 %v161
  %v343 = vunpack.c.h.b16 %v161
  %v344 = vunpack.c.l.b16 %v162
  %v345 = vunpack.c.l.b16 %v163
  %v346 = vunpack.c.h.b16 %v163
  %v347 = vunpack.c.l.b16 %v164
  %v348 = vunpack.c.l.b16 %v165
  %v349 = vunpack.c.h.b16 %v165
  %v350 = vunpack.c.l.b16 %v166
  %v351 = vunpack.c.l.b16 %v167
  %v352 = vunpack.c.h.b16 %v167
  %v353 = vunpack.c.l.b16 %v168
  %v354 = vunpack.c.l.b16 %v169
  %v355 = vunpack.c.h.b16 %v169
  %v356 = vunpack.c.l.b16 %v170
  %v357 = vpack.c.b16 %v306, %v303
  %v358 = vpack.c.b16 %v307, %v304
  %v359 = vpack.c.b16 %v308, %v305
  %v360 = vpack.c.b16 %v312, %v309
  %v361 = vpack.c.b16 %v313, %v310
  %v362 = vpack.c.b16 %v314, %v311
  %v363 = vpack.c.b16 %v318, %v315
  %v364 = vpack.c.b16 %v319, %v316
  %v365 = vpack.c.b16 %v320, %v317
  %v366 = vpack.c.b16 %v324, %v321
  %v367 = vpack.c.b16 %v325, %v322
  %v368 = vpack.c.b16 %v326, %v323
  %v369 = vpack.c.b16 %v330, %v327
  %v370 = vpack.c.b16 %v331, %v328
  %v371 = vpack.c.b16 %v332, %v329
  %v372 = vpack.c.b16 %v336, %v333
  %v373 = vpack.c.b16 %v337, %v334
  %v374 = vpack.c.b16 %v338, %v335
  %v375 = vpack.c.b16 %v342, %v339
  %v376 = vpack.c.b16 %v343, %v340
  %v377 = vpack.c.b16 %v344, %v341
  %v378 = vpack.c.b16 %v348, %v345
  %v379 = vpack.c.b16 %v349, %v346
  %v380 = vpack.c.b16 %v350, %v347
  %v381 = vpack.c.b16 %v354, %v351
  %v382 = vpack.c.b16 %v355, %v352
  %v383 = vpack.c.b16 %v356, %v353
  %vm384 = vsmask.f32 7424
  %v386 = vshrl.u32 %v357, 16
  %v388 = vshll.u32 %v357, 16
  %v390 = vrot.slane %v388, 1
  %v391 = vor.u32 %v386, %v390
  %v393 = vshll.u32 %v360, 16
  %v395 = vrot.slane %v393, 1
  %v396 = vsel %vm384, %v391, %v395
  %v398 = vshrl.u32 %v358, 16
  %v400 = vshll.u32 %v358, 16
  %v402 = vrot.slane %v400, 1
  %v403 = vor.u32 %v398, %v402
  %v405 = vshll.u32 %v361, 16
  %v407 = vrot.slane %v405, 1
  %v408 = vsel %vm384, %v403, %v407
  %v410 = vshrl.u32 %v359, 16
  %v412 = vshll.u32 %v359, 16
  %v414 = vrot.slane %v412, 1
  %v415 = vor.u32 %v410, %v414
  %v417 = vshll.u32 %v362, 16
  %v419 = vrot.slane %v417, 1
  %v420 = vsel %vm384, %v415, %v419
  %v421 = vshrl.u32 %v360, 16
  %v423 = vor.u32 %v421, %v395
  %v425 = vshll.u32 %v363, 16
  %v427 = vrot.slane %v425, 1
  %v428 = vsel %vm384, %v423, %v427
  %v429 = vshrl.u32 %v361, 16
  %v431 = vor.u32 %v429, %v407
  %v433 = vshll.u32 %v364, 16
  %v435 = vrot.slane %v433, 1
  %v436 = vsel %vm384, %v431, %v435
  %v437 = vshrl.u32 %v362, 16
  %v439 = vor.u32 %v437, %v419
  %v441 = vshll.u32 %v365, 16
  %v443 = vrot.slane %v441, 1
  %v444 = vsel %vm384, %v439, %v443
  %v445 = vshrl.u32 %v363, 16
  %v447 = vor.u32 %v445, %v427
  %v449 = vshll.u32 %v366, 16
  %v451 = vrot.slane %v449, 1
  %v452 = vsel %vm384, %v447, %v451
  %v453 = vshrl.u32 %v364, 16
  %v455 = vor.u32 %v453, %v435
  %v457 = vshll.u32 %v367, 16
  %v459 = vrot.slane %v457, 1
  %v460 = vsel %vm384, %v455, %v459
  %v461 = vshrl.u32 %v365, 16
  %v463 = vor.u32 %v461, %v443
  %v465 = vshll.u32 %v368, 16
  %v467 = vrot.slane %v465, 1
  %v468 = vsel %vm384, %v463, %v467
  %v469 = vshrl.u32 %v366, 16
  %v471 = vor.u32 %v469, %v451
  %v473 = vshll.u32 %v369, 16
  %v475 = vrot.slane %v473, 1
  %v476 = vsel %vm384, %v471, %v475
  %v477 = vshrl.u32 %v367, 16
  %v479 = vor.u32 %v477, %v459
  %v481 = vshll.u32 %v370, 16
  %v483 = vrot.slane %v481, 1
  %v484 = vsel %vm384, %v479, %v483
  %v485 = vshrl.u32 %v368, 16
  %v487 = vor.u32 %v485, %v467
  %v489 = vshll.u32 %v371, 16
  %v491 = vrot.slane %v489, 1
  %v492 = vsel %vm384, %v487, %v491
  %v493 = vshrl.u32 %v369, 16
  %v495 = vor.u32 %v493, %v475
  %v497 = vshll.u32 %v372, 16
  %v499 = vrot.slane %v497, 1
  %v500 = vsel %vm384, %v495, %v499
  %v501 = vshrl.u32 %v370, 16
  %v503 = vor.u32 %v501, %v483
  %v505 = vshll.u32 %v373, 16
  %v507 = vrot.slane %v505, 1
  %v508 = vsel %vm384, %v503, %v507
  %v509 = vshrl.u32 %v371, 16
  %v511 = vor.u32 %v509, %v491
  %v513 = vshll.u32 %v374, 16
  %v515 = vrot.slane %v513, 1
  %v516 = vsel %vm384, %v511, %v515
  %v517 = vshrl.u32 %v372, 16
  %v519 = vor.u32 %v517, %v499
  %v521 = vshll.u32 %v375, 16
  %v523 = vrot.slane %v521, 1
  %v524 = vsel %vm384, %v519, %v523
  %v525 = vshrl.u32 %v373, 16
  %v527 = vor.u32 %v525, %v507
  %v529 = vshll.u32 %v376, 16
  %v531 = vrot.slane %v529, 1
  %v532 = vsel %vm384, %v527, %v531
  %v533 = vshrl.u32 %v374, 16
  %v535 = vor.u32 %v533, %v515
  %v537 = vshll.u32 %v377, 16
  %v539 = vrot.slane %v537, 1
  %v540 = vsel %vm384, %v535, %v539
  %v541 = vshrl.u32 %v375, 16
  %v543 = vor.u32 %v541, %v523
  %v545 = vshll.u32 %v378, 16
  %v547 = vrot.slane %v545, 1
  %v548 = vsel %vm384, %v543, %v547
  %v549 = vshrl.u32 %v376, 16
  %v551 = vor.u32 %v549, %v531
  %v553 = vshll.u32 %v379, 16
  %v555 = vrot.slane %v553, 1
  %v556 = vsel %vm384, %v551, %v555
  %v557 = vshrl.u32 %v377, 16
  %v559 = vor.u32 %v557, %v539
  %v561 = vshll.u32 %v380, 16
  %v563 = vrot.slane %v561, 1
  %v564 = vsel %vm384, %v559, %v563
  %v565 = vshrl.u32 %v378, 16
  %v567 = vor.u32 %v565, %v547
  %v569 = vshll.u32 %v381, 16
  %v571 = vrot.slane %v569, 1
  %v572 = vsel %vm384, %v567, %v571
  %v573 = vshrl.u32 %v379, 16
  %v575 = vor.u32 %v573, %v555
  %v577 = vshll.u32 %v382, 16
  %v579 = vrot.slane %v577, 1
  %v580 = vsel %vm384, %v575, %v579
  %v581 = vshrl.u32 %v380, 16
  %v583 = vor.u32 %v581, %v563
  %v585 = vshll.u32 %v383, 16
  %v587 = vrot.slane %v585, 1
  %v588 = vsel %vm384, %v583, %v587
  %v589 = vshrl.u32 %v381, 16
  %v591 = vor.u32 %v589, %v571
  %v592 = vshrl.u32 %v382, 16
  %v594 = vor.u32 %v592, %v579
  %v595 = vshrl.u32 %v383, 16
  %v597 = vor.u32 %v595, %v587
  %v673 = vunpack.c.l.b16 %v219
  %v674 = vunpack.c.h.b16 %v219
  %v675 = vunpack.c.l.b16 %v220
  %v676 = vunpack.c.h.b16 %v220
  %v677 = vunpack.c.l.b16 %v221
  %v678 = vunpack.c.h.b16 %v221
  %v679 = vunpack.c.l.b16 %v222
  %v680 = vunpack.c.h.b16 %v222
  %v681 = vunpack.c.l.b16 %v223
  %v682 = vunpack.c.h.b16 %v223
  %v683 = vunpack.c.l.b16 %v224
  %v684 = vunpack.c.h.b16 %v224
  %v685 = vunpack.c.l.b16 %v225
  %v686 = vunpack.c.h.b16 %v225
  %v687 = vunpack.c.l.b16 %v226
  %v688 = vunpack.c.h.b16 %v226
  %v689 = vunpack.c.l.b16 %v227
  %v690 = vunpack.c.h.b16 %v227
  %v691 = vunpack.c.l.b16 %v228
  %v692 = vunpack.c.h.b16 %v228
  %v693 = vunpack.c.l.b16 %v229
  %v694 = vunpack.c.h.b16 %v229
  %v695 = vunpack.c.l.b16 %v230
  %v696 = vunpack.c.h.b16 %v230
  %v697 = vunpack.c.l.b16 %v231
  %v698 = vunpack.c.h.b16 %v231
  %v699 = vunpack.c.l.b16 %v232
  %v700 = vunpack.c.h.b16 %v232
  %v701 = vunpack.c.l.b16 %v233
  %v702 = vunpack.c.h.b16 %v233
  %v703 = vunpack.c.l.b16 %v234
  %v704 = vunpack.c.h.b16 %v234
  %v705 = vunpack.c.l.b16 %v235
  %v706 = vunpack.c.h.b16 %v235
  %v707 = vunpack.c.l.b16 %v236
  %v708 = vunpack.c.h.b16 %v236
  %v709 = vunpack.c.l.b16 %v237
  %v710 = vunpack.c.h.b16 %v237
  %v711 = vunpack.c.l.b16 %v238
  %v712 = vunpack.c.h.b16 %v238
  %v713 = vunpack.c.l.b16 %v239
  %v714 = vunpack.c.h.b16 %v239
  %v715 = vunpack.c.l.b16 %v240
  %v716 = vunpack.c.h.b16 %v240
  %v717 = vunpack.c.l.b16 %v241
  %v718 = vunpack.c.h.b16 %v241
  %v719 = vunpack.c.l.b16 %v242
  %v720 = vunpack.c.h.b16 %v242
  %v721 = vunpack.c.l.b16 %v243
  %v722 = vunpack.c.h.b16 %v243
  %v723 = vunpack.c.l.b16 %v244
  %v724 = vunpack.c.h.b16 %v244
  %v725 = vunpack.c.l.b16 %v245
  %v726 = vunpack.c.h.b16 %v245
  %v727 = vunpack.c.l.b16 %v246
  %v728 = vunpack.c.h.b16 %v246
  %v729 = vunpack.c.l.b16 %v247
  %v730 = vunpack.c.h.b16 %v247
  %v731 = vunpack.c.l.b16 %v248
  %v732 = vunpack.c.h.b16 %v248
  %v733 = vunpack.c.l.b16 %v249
  %v734 = vunpack.c.h.b16 %v249
  %v735 = vunpack.c.l.b16 %v250
  %v736 = vunpack.c.h.b16 %v250
  %v737 = vunpack.c.l.b16 %v251
  %v738 = vunpack.c.h.b16 %v251
  %v739 = vunpack.c.l.b16 %v252
  %v740 = vunpack.c.h.b16 %v252
  %v741 = vunpack.c.l.b16 %v253
  %v742 = vunpack.c.h.b16 %v253
  %v743 = vunpack.c.l.b16 %v254
  %v744 = vunpack.c.h.b16 %v254
  %v745 = vunpack.c.l.b16 %v255
  %v746 = vunpack.c.h.b16 %v255
  %v747 = vunpack.c.l.b16 %v256
  %v748 = vunpack.c.h.b16 %v256
  %v749 = vunpack.c.l.b16 %v257
  %v750 = vunpack.c.h.b16 %v257
  %v751 = vunpack.c.l.b16 %v258
  %v752 = vunpack.c.h.b16 %v258
  %v753 = vunpack.c.l.b16 %v259
  %v754 = vunpack.c.h.b16 %v259
  %v755 = vunpack.c.l.b16 %v260
  %v756 = vunpack.c.h.b16 %v260
  %v757 = vunpack.c.l.b16 %v261
  %v758 = vunpack.c.h.b16 %v261
  %v759 = vunpack.c.l.b16 %v262
  %v760 = vunpack.c.h.b16 %v262
  %v761 = vunpack.c.l.b16 %v263
  %v762 = vunpack.c.h.b16 %v263
  %v763 = vunpack.c.l.b16 %v264
  %v764 = vunpack.c.h.b16 %v264
  %v765 = vunpack.c.l.b16 %v265
  %v766 = vunpack.c.h.b16 %v265
  %v767 = vunpack.c.l.b16 %v266
  %v768 = vunpack.c.h.b16 %v266
  %v769 = vpack.c.b16 %v675, %v673
  %v770 = vpack.c.b16 %v676, %v674
  %v771 = vpack.c.b16 %v679, %v677
  %v772 = vpack.c.b16 %v680, %v678
  %v773 = vpack.c.b16 %v683, %v681
  %v774 = vpack.c.b16 %v684, %v682
  %v775 = vpack.c.b16 %v687, %v685
  %v776 = vpack.c.b16 %v688, %v686
  %v777 = vpack.c.b16 %v691, %v689
  %v778 = vpack.c.b16 %v692, %v690
  %v779 = vpack.c.b16 %v695, %v693
  %v780 = vpack.c.b16 %v696, %v694
  %v781 = vpack.c.b16 %v699, %v697
  %v782 = vpack.c.b16 %v700, %v698
  %v783 = vpack.c.b16 %v703, %v701
  %v784 = vpack.c.b16 %v704, %v702
  %v785 = vpack.c.b16 %v707, %v705
  %v786 = vpack.c.b16 %v708, %v706
  %v787 = vpack.c.b16 %v711, %v709
  %v788 = vpack.c.b16 %v712, %v710
  %v789 = vpack.c.b16 %v715, %v713
  %v790 = vpack.c.b16 %v716, %v714
  %v791 = vpack.c.b16 %v719, %v717
  %v792 = vpack.c.b16 %v720, %v718
  %v793 = vpack.c.b16 %v723, %v721
  %v794 = vpack.c.b16 %v724, %v722
  %v795 = vpack.c.b16 %v727, %v725
  %v796 = vpack.c.b16 %v728, %v726
  %v797 = vpack.c.b16 %v731, %v729
  %v798 = vpack.c.b16 %v732, %v730
  %v799 = vpack.c.b16 %v735, %v733
  %v800 = vpack.c.b16 %v736, %v734
  %v801 = vpack.c.b16 %v739, %v737
  %v802 = vpack.c.b16 %v740, %v738
  %v803 = vpack.c.b16 %v743, %v741
  %v804 = vpack.c.b16 %v744, %v742
  %v805 = vpack.c.b16 %v747, %v745
  %v806 = vpack.c.b16 %v748, %v746
  %v807 = vpack.c.b16 %v751, %v749
  %v808 = vpack.c.b16 %v752, %v750
  %v809 = vpack.c.b16 %v755, %v753
  %v810 = vpack.c.b16 %v756, %v754
  %v811 = vpack.c.b16 %v759, %v757
  %v812 = vpack.c.b16 %v760, %v758
  %v813 = vpack.c.b16 %v763, %v761
  %v814 = vpack.c.b16 %v764, %v762
  %v815 = vpack.c.b16 %v767, %v765
  %v816 = vpack.c.b16 %v768, %v766
  %865 = vmatprep.subr.bf16.mxu0 %v770
  %866 = vmatpush1.bf16.msra.mxu0 %v769
  %867 = vmatprep.subr.bf16.mxu0 %v772
  %868 = vmatpush1.bf16.msra.mxu0 %v771
  %869 = vmatprep.subr.bf16.mxu0 %v774
  %870 = vmatpush1.bf16.msra.mxu0 %v773
  %871 = vmatprep.subr.bf16.mxu0 %v776
  %872 = vmatpush1.bf16.msra.mxu0 %v775
  %873 = vmatprep.subr.bf16.mxu0 %v778
  %874 = vmatpush1.bf16.msra.mxu0 %v777
  %875 = vmatprep.subr.bf16.mxu0 %v780
  %876 = vmatpush1.bf16.msra.mxu0 %v779
  %877 = vmatprep.subr.bf16.mxu0 %v782
  %878 = vmatpush1.bf16.msra.mxu0 %v781
  %879 = vmatprep.subr.bf16.mxu0 %v784
  %880 = vmatpush1.bf16.msra.mxu0 %v783
  %881 = vmatprep.subr.bf16.mxu0 %v786
  %882 = vmatpush1.bf16.msra.mxu0 %v785
  %883 = vmatprep.subr.bf16.mxu0 %v788
  %884 = vmatpush1.bf16.msra.mxu0 %v787
  %885 = vmatprep.subr.bf16.mxu0 %v790
  %886 = vmatpush1.bf16.msra.mxu0 %v789
  %887 = vmatprep.subr.bf16.mxu0 %v792
  %888 = vmatpush1.bf16.msra.mxu0 %v791
  %889 = vmatprep.subr.bf16.mxu0 %v794
  %890 = vmatpush1.bf16.msra.mxu0 %v793
  %891 = vmatprep.subr.bf16.mxu0 %v796
  %892 = vmatpush1.bf16.msra.mxu0 %v795
  %893 = vmatprep.subr.bf16.mxu0 %v798
  %894 = vmatpush1.bf16.msra.mxu0 %v797
  %895 = vmatprep.subr.bf16.mxu0 %v800
  %896 = vmatpush1.bf16.msra.mxu0 %v799
  %897 = vmatprep.mubr.bf16.mxu0 %v408
  %898 = vmatmul.mubr.bf16.gmra.mrb[0].mxu0 %v396
  %v899 = vpop.f32.mrb[0].mxu0
  %v900 = vadd.f32 0.0, %v899
  %v901 = vpop.f32.mrb[0].mxu0
  %v902 = vadd.f32 0.0, %v901
  %v903 = vpop.f32.mrb[0].mxu0
  %v904 = vadd.f32 0.0, %v903
  %v905 = vpop.f32.mrb[0].mxu0
  %v906 = vadd.f32 0.0, %v905
  %907 = vmatprep.mubr.bf16.mxu0 %v436
  %908 = vmatmul.mubr.bf16.gmra.mrb[0].mxu0 %v428
  %v909 = vpop.f32.mrb[0].mxu0
  %v910 = vadd.f32 0.0, %v909
  %v911 = vpop.f32.mrb[0].mxu0
  %v912 = vadd.f32 0.0, %v911
  %v913 = vpop.f32.mrb[0].mxu0
  %v914 = vadd.f32 0.0, %v913
  %v915 = vpop.f32.mrb[0].mxu0
  %v916 = vadd.f32 0.0, %v915
  %917 = vmatprep.mubr.bf16.mxu0 %v460
  %918 = vmatmul.mubr.bf16.gmra.mrb[0].mxu0 %v452
  %v919 = vpop.f32.mrb[0].mxu0
  %v920 = vadd.f32 0.0, %v919
  %v921 = vpop.f32.mrb[0].mxu0
  %v922 = vadd.f32 0.0, %v921
  %v923 = vpop.f32.mrb[0].mxu0
  %v924 = vadd.f32 0.0, %v923
  %v925 = vpop.f32.mrb[0].mxu0
  %v926 = vadd.f32 0.0, %v925
  %927 = vmatprep.mubr.bf16.mxu0 %v484
  %928 = vmatmul.mubr.bf16.gmra.mrb[0].mxu0 %v476
  %v929 = vpop.f32.mrb[0].mxu0
  %v930 = vadd.f32 0.0, %v929
  %v931 = vpop.f32.mrb[0].mxu0
  %v932 = vadd.f32 0.0, %v931
  %v933 = vpop.f32.mrb[0].mxu0
  %v934 = vadd.f32 0.0, %v933
  %v935 = vpop.f32.mrb[0].mxu0
  %v936 = vadd.f32 0.0, %v935
  %937 = vmatprep.mubr.bf16.mxu0 %v508
  %938 = vmatmul.mubr.bf16.gmra.mrb[0].mxu0 %v500
  %v939 = vpop.f32.mrb[0].mxu0
  %v940 = vadd.f32 0.0, %v939
  %v941 = vpop.f32.mrb[0].mxu0
  %v942 = vadd.f32 0.0, %v941
  %v943 = vpop.f32.mrb[0].mxu0
  %v944 = vadd.f32 0.0, %v943
  %v945 = vpop.f32.mrb[0].mxu0
  %v946 = vadd.f32 0.0, %v945
  %947 = vmatprep.mubr.bf16.mxu0 %v532
  %948 = vmatmul.mubr.bf16.gmra.mrb[0].mxu0 %v524
  %v949 = vpop.f32.mrb[0].mxu0
  %v950 = vadd.f32 0.0, %v949
  %v951 = vpop.f32.mrb[0].mxu0
  %v952 = vadd.f32 0.0, %v951
  %v953 = vpop.f32.mrb[0].mxu0
  %v954 = vadd.f32 0.0, %v953
  %v955 = vpop.f32.mrb[0].mxu0
  %v956 = vadd.f32 0.0, %v955
  %957 = vmatprep.mubr.bf16.mxu0 %v556
  %958 = vmatmul.mubr.bf16.gmra.mrb[0].mxu0 %v548
  %v959 = vpop.f32.mrb[0].mxu0
  %v960 = vadd.f32 0.0, %v959
  %v961 = vpop.f32.mrb[0].mxu0
  %v962 = vadd.f32 0.0, %v961
  %v963 = vpop.f32.mrb[0].mxu0
  %v964 = vadd.f32 0.0, %v963
  %v965 = vpop.f32.mrb[0].mxu0
  %v966 = vadd.f32 0.0, %v965
  %967 = vmatprep.mubr.bf16.mxu0 %v580
  %968 = vmatmul.mubr.bf16.gmra.mrb[0].mxu0 %v572
  %v969 = vpop.f32.mrb[0].mxu0
  %v970 = vadd.f32 0.0, %v969
  %v971 = vpop.f32.mrb[0].mxu0
  %v972 = vadd.f32 0.0, %v971
  %v973 = vpop.f32.mrb[0].mxu0
  %v974 = vadd.f32 0.0, %v973
  %v975 = vpop.f32.mrb[0].mxu0
  %v976 = vadd.f32 0.0, %v975
  %977 = vmatprep.mubr.bf16.mxu0 %v594
  %978 = vmatmul.mubr.bf16.gmra.mrb[0].mxu0 %v591
  %v979 = vpop.f32.mrb[0].mxu0
  %v980 = vadd.f32 0.0, %v979
  %v981 = vpop.f32.mrb[0].mxu0
  %v982 = vadd.f32 0.0, %v981
  %v983 = vpop.f32.mrb[0].mxu0
  %v984 = vpop.f32.mrb[0].mxu0
  %985 = vdwg.mxu0
  %986 = vmatprep.subr.bf16.mxu0 %v802
  %987 = vmatpush1.bf16.msra.mxu0 %v801
  %988 = vmatprep.subr.bf16.mxu0 %v804
  %989 = vmatpush1.bf16.msra.mxu0 %v803
  %990 = vmatprep.subr.bf16.mxu0 %v806
  %991 = vmatpush1.bf16.msra.mxu0 %v805
  %992 = vmatprep.subr.bf16.mxu0 %v808
  %993 = vmatpush1.bf16.msra.mxu0 %v807
  %994 = vmatprep.subr.bf16.mxu0 %v810
  %995 = vmatpush1.bf16.msra.mxu0 %v809
  %996 = vmatprep.subr.bf16.mxu0 %v812
  %997 = vmatpush1.bf16.msra.mxu0 %v811
  %998 = vmatprep.subr.bf16.mxu0 %v814
  %999 = vmatpush1.bf16.msra.mxu0 %v813
  %1000 = vmatprep.subr.bf16.mxu0 %v816
  %1001 = vmatpush1.bf16.msra.mxu0 %v815
  %1002 = vmatprep.subr.bf16.mxu0 0
  %1003 = vmatpush1.bf16.msra.mxu0 0
  %1004 = vmatprep.subr.bf16.mxu0 0
  %1005 = vmatpush1.bf16.msra.mxu0 0
  %1006 = vmatprep.subr.bf16.mxu0 0
  %1007 = vmatpush1.bf16.msra.mxu0 0
  %1008 = vmatprep.subr.bf16.mxu0 0
  %1009 = vmatpush1.bf16.msra.mxu0 0
  %1010 = vmatprep.subr.bf16.mxu0 0
  %1011 = vmatpush1.bf16.msra.mxu0 0
  %1012 = vmatprep.subr.bf16.mxu0 0
  %1013 = vmatpush1.bf16.msra.mxu0 0
  %1014 = vmatprep.subr.bf16.mxu0 0
  %1015 = vmatpush1.bf16.msra.mxu0 0
  %1016 = vmatprep.subr.bf16.mxu0 0
  %1017 = vmatpush1.bf16.msra.mxu0 0
  %1018 = vmatprep.mubr.bf16.mxu0 0
  %1019 = vmatmul.mubr.bf16.gmra.mrb[0].mxu0 %v420
  %v1020 = vpop.f32.mrb[0].mxu0
  %v1021 = vadd.f32 %v900, %v1020
  %v1022 = vpop.f32.mrb[0].mxu0
  %v1023 = vadd.f32 %v902, %v1022
  %v1024 = vpop.f32.mrb[0].mxu0
  %v1025 = vadd.f32 %v904, %v1024
  %v1026 = vpop.f32.mrb[0].mxu0
  %v1027 = vadd.f32 %v906, %v1026
  %1028 = vmatprep.mubr.bf16.mxu0 0
  %1029 = vmatmul.mubr.bf16.gmra.mrb[0].mxu0 %v444
  %v1030 = vpop.f32.mrb[0].mxu0
  %v1031 = vadd.f32 %v910, %v1030
  %v1032 = vpop.f32.mrb[0].mxu0
  %v1033 = vadd.f32 %v912, %v1032
  %v1034 = vpop.f32.mrb[0].mxu0
  %v1035 = vadd.f32 %v914, %v1034
  %v1036 = vpop.f32.mrb[0].mxu0
  %v1037 = vadd.f32 %v916, %v1036
  %1038 = vmatprep.mubr.bf16.mxu0 0
  %1039 = vmatmul.mubr.bf16.gmra.mrb[0].mxu0 %v468
  %v1040 = vpop.f32.mrb[0].mxu0
  %v1041 = vadd.f32 %v920, %v1040
  %v1042 = vpop.f32.mrb[0].mxu0
  %v1043 = vadd.f32 %v922, %v1042
  %v1044 = vpop.f32.mrb[0].mxu0
  %v1045 = vadd.f32 %v924, %v1044
  %v1046 = vpop.f32.mrb[0].mxu0
  %v1047 = vadd.f32 %v926, %v1046
  %1048 = vmatprep.mubr.bf16.mxu0 0
  %1049 = vmatmul.mubr.bf16.gmra.mrb[0].mxu0 %v492
  %v1050 = vpop.f32.mrb[0].mxu0
  %v1051 = vadd.f32 %v930, %v1050
  %v1052 = vpop.f32.mrb[0].mxu0
  %v1053 = vadd.f32 %v932, %v1052
  %v1054 = vpop.f32.mrb[0].mxu0
  %v1055 = vadd.f32 %v934, %v1054
  %v1056 = vpop.f32.mrb[0].mxu0
  %v1057 = vadd.f32 %v936, %v1056
  %1058 = vmatprep.mubr.bf16.mxu0 0
  %1059 = vmatmul.mubr.bf16.gmra.mrb[0].mxu0 %v516
  %v1060 = vpop.f32.mrb[0].mxu0
  %v1061 = vadd.f32 %v940, %v1060
  %v1062 = vpop.f32.mrb[0].mxu0
  %v1063 = vadd.f32 %v942, %v1062
  %v1064 = vpop.f32.mrb[0].mxu0
  %v1065 = vadd.f32 %v944, %v1064
  %v1066 = vpop.f32.mrb[0].mxu0
  %v1067 = vadd.f32 %v946, %v1066
  %1068 = vmatprep.mubr.bf16.mxu0 0
  %1069 = vmatmul.mubr.bf16.gmra.mrb[0].mxu0 %v540
  %v1070 = vpop.f32.mrb[0].mxu0
  %v1071 = vadd.f32 %v950, %v1070
  %v1072 = vpop.f32.mrb[0].mxu0
  %v1073 = vadd.f32 %v952, %v1072
  %v1074 = vpop.f32.mrb[0].mxu0
  %v1075 = vadd.f32 %v954, %v1074
  %v1076 = vpop.f32.mrb[0].mxu0
  %v1077 = vadd.f32 %v956, %v1076
  %1078 = vmatprep.mubr.bf16.mxu0 0
  %1079 = vmatmul.mubr.bf16.gmra.mrb[0].mxu0 %v564
  %v1080 = vpop.f32.mrb[0].mxu0
  %v1081 = vadd.f32 %v960, %v1080
  %v1082 = vpop.f32.mrb[0].mxu0
  %v1083 = vadd.f32 %v962, %v1082
  %v1084 = vpop.f32.mrb[0].mxu0
  %v1085 = vadd.f32 %v964, %v1084
  %v1086 = vpop.f32.mrb[0].mxu0
  %v1087 = vadd.f32 %v966, %v1086
  %1088 = vmatprep.mubr.bf16.mxu0 0
  %1089 = vmatmul.mubr.bf16.gmra.mrb[0].mxu0 %v588
  %v1090 = vpop.f32.mrb[0].mxu0
  %v1091 = vadd.f32 %v970, %v1090
  %v1092 = vpop.f32.mrb[0].mxu0
  %v1093 = vadd.f32 %v972, %v1092
  %v1094 = vpop.f32.mrb[0].mxu0
  %v1095 = vadd.f32 %v974, %v1094
  %v1096 = vpop.f32.mrb[0].mxu0
  %v1097 = vadd.f32 %v976, %v1096
  %1098 = vmatprep.mubr.bf16.mxu0 0
  %1099 = vmatmul.mubr.bf16.gmra.mrb[0].mxu0 %v597
  %v1100 = vpop.f32.mrb[0].mxu0
  %v1101 = vadd.f32 %v980, %v1100
  %v1102 = vpop.f32.mrb[0].mxu0
  %v1103 = vadd.f32 %v982, %v1102
  %v1104 = vpop.f32.mrb[0].mxu0
  %v1105 = vpop.f32.mrb[0].mxu0
  %1106 = vdwg.mxu0
  %v1107 = vpack.c.b16 %v351, %v351
  %v1108 = vpack.c.b16 %v352, %v352
  %v1109 = vpack.c.b16 %v353, %v353
  %v1185 = vunpack.c.l.b16 %v171
  %v1186 = vunpack.c.h.b16 %v171
  %v1187 = vunpack.c.l.b16 %v172
  %v1188 = vunpack.c.h.b16 %v172
  %v1189 = vunpack.c.l.b16 %v173
  %v1190 = vunpack.c.h.b16 %v173
  %v1191 = vunpack.c.l.b16 %v174
  %v1192 = vunpack.c.h.b16 %v174
  %v1193 = vunpack.c.l.b16 %v175
  %v1194 = vunpack.c.h.b16 %v175
  %v1195 = vunpack.c.l.b16 %v176
  %v1196 = vunpack.c.h.b16 %v176
  %v1197 = vunpack.c.l.b16 %v177
  %v1198 = vunpack.c.h.b16 %v177
  %v1199 = vunpack.c.l.b16 %v178
  %v1200 = vunpack.c.h.b16 %v178
  %v1201 = vunpack.c.l.b16 %v179
  %v1202 = vunpack.c.h.b16 %v179
  %v1203 = vunpack.c.l.b16 %v180
  %v1204 = vunpack.c.h.b16 %v180
  %v1205 = vunpack.c.l.b16 %v181
  %v1206 = vunpack.c.h.b16 %v181
  %v1207 = vunpack.c.l.b16 %v182
  %v1208 = vunpack.c.h.b16 %v182
  %v1209 = vunpack.c.l.b16 %v183
  %v1210 = vunpack.c.h.b16 %v183
  %v1211 = vunpack.c.l.b16 %v184
  %v1212 = vunpack.c.h.b16 %v184
  %v1213 = vunpack.c.l.b16 %v185
  %v1214 = vunpack.c.h.b16 %v185
  %v1215 = vunpack.c.l.b16 %v186
  %v1216 = vunpack.c.h.b16 %v186
  %v1217 = vunpack.c.l.b16 %v187
  %v1218 = vunpack.c.h.b16 %v187
  %v1219 = vunpack.c.l.b16 %v188
  %v1220 = vunpack.c.h.b16 %v188
  %v1221 = vunpack.c.l.b16 %v189
  %v1222 = vunpack.c.h.b16 %v189
  %v1223 = vunpack.c.l.b16 %v190
  %v1224 = vunpack.c.h.b16 %v190
  %v1225 = vunpack.c.l.b16 %v191
  %v1226 = vunpack.c.h.b16 %v191
  %v1227 = vunpack.c.l.b16 %v192
  %v1228 = vunpack.c.h.b16 %v192
  %v1229 = vunpack.c.l.b16 %v193
  %v1230 = vunpack.c.h.b16 %v193
  %v1231 = vunpack.c.l.b16 %v194
  %v1232 = vunpack.c.h.b16 %v194
  %v1233 = vunpack.c.l.b16 %v195
  %v1234 = vunpack.c.h.b16 %v195
  %v1235 = vunpack.c.l.b16 %v196
  %v1236 = vunpack.c.h.b16 %v196
  %v1237 = vunpack.c.l.b16 %v197
  %v1238 = vunpack.c.h.b16 %v197
  %v1239 = vunpack.c.l.b16 %v198
  %v1240 = vunpack.c.h.b16 %v198
  %v1241 = vunpack.c.l.b16 %v199
  %v1242 = vunpack.c.h.b16 %v199
  %v1243 = vunpack.c.l.b16 %v200
  %v1244 = vunpack.c.h.b16 %v200
  %v1245 = vunpack.c.l.b16 %v201
  %v1246 = vunpack.c.h.b16 %v201
  %v1247 = vunpack.c.l.b16 %v202
  %v1248 = vunpack.c.h.b16 %v202
  %v1249 = vunpack.c.l.b16 %v203
  %v1250 = vunpack.c.h.b16 %v203
  %v1251 = vunpack.c.l.b16 %v204
  %v1252 = vunpack.c.h.b16 %v204
  %v1253 = vunpack.c.l.b16 %v205
  %v1254 = vunpack.c.h.b16 %v205
  %v1255 = vunpack.c.l.b16 %v206
  %v1256 = vunpack.c.h.b16 %v206
  %v1257 = vunpack.c.l.b16 %v207
  %v1258 = vunpack.c.h.b16 %v207
  %v1259 = vunpack.c.l.b16 %v208
  %v1260 = vunpack.c.h.b16 %v208
  %v1261 = vunpack.c.l.b16 %v209
  %v1262 = vunpack.c.h.b16 %v209
  %v1263 = vunpack.c.l.b16 %v210
  %v1264 = vunpack.c.h.b16 %v210
  %v1265 = vunpack.c.l.b16 %v211
  %v1266 = vunpack.c.h.b16 %v211
  %v1267 = vunpack.c.l.b16 %v212
  %v1268 = vunpack.c.h.b16 %v212
  %v1269 = vunpack.c.l.b16 %v213
  %v1270 = vunpack.c.h.b16 %v213
  %v1271 = vunpack.c.l.b16 %v214
  %v1272 = vunpack.c.h.b16 %v214
  %v1273 = vunpack.c.l.b16 %v215
  %v1274 = vunpack.c.h.b16 %v215
  %v1275 = vunpack.c.l.b16 %v216
  %v1276 = vunpack.c.h.b16 %v216
  %v1277 = vunpack.c.l.b16 %v217
  %v1278 = vunpack.c.h.b16 %v217
  %v1279 = vunpack.c.l.b16 %v218
  %v1280 = vunpack.c.h.b16 %v218
  %v1281 = vpack.c.b16 %v1187, %v1185
  %v1282 = vpack.c.b16 %v1188, %v1186
  %v1283 = vpack.c.b16 %v1191, %v1189
  %v1284 = vpack.c.b16 %v1192, %v1190
  %v1285 = vpack.c.b16 %v1195, %v1193
  %v1286 = vpack.c.b16 %v1196, %v1194
  %v1287 = vpack.c.b16 %v1199, %v1197
  %v1288 = vpack.c.b16 %v1200, %v1198
  %v1289 = vpack.c.b16 %v1203, %v1201
  %v1290 = vpack.c.b16 %v1204, %v1202
  %v1291 = vpack.c.b16 %v1207, %v1205
  %v1292 = vpack.c.b16 %v1208, %v1206
  %v1293 = vpack.c.b16 %v1211, %v1209
  %v1294 = vpack.c.b16 %v1212, %v1210
  %v1295 = vpack.c.b16 %v1215, %v1213
  %v1296 = vpack.c.b16 %v1216, %v1214
  %v1297 = vpack.c.b16 %v1219, %v1217
  %v1298 = vpack.c.b16 %v1220, %v1218
  %v1299 = vpack.c.b16 %v1223, %v1221
  %v1300 = vpack.c.b16 %v1224, %v1222
  %v1301 = vpack.c.b16 %v1227, %v1225
  %v1302 = vpack.c.b16 %v1228, %v1226
  %v1303 = vpack.c.b16 %v1231, %v1229
  %v1304 = vpack.c.b16 %v1232, %v1230
  %v1305 = vpack.c.b16 %v1235, %v1233
  %v1306 = vpack.c.b16 %v1236, %v1234
  %v1307 = vpack.c.b16 %v1239, %v1237
  %v1308 = vpack.c.b16 %v1240, %v1238
  %v1309 = vpack.c.b16 %v1243, %v1241
  %v1310 = vpack.c.b16 %v1244, %v1242
  %v1311 = vpack.c.b16 %v1247, %v1245
  %v1312 = vpack.c.b16 %v1248, %v1246
  %v1313 = vpack.c.b16 %v1251, %v1249
  %v1314 = vpack.c.b16 %v1252, %v1250
  %v1315 = vpack.c.b16 %v1255, %v1253
  %v1316 = vpack.c.b16 %v1256, %v1254
  %v1317 = vpack.c.b16 %v1259, %v1257
  %v1318 = vpack.c.b16 %v1260, %v1258
  %v1319 = vpack.c.b16 %v1263, %v1261
  %v1320 = vpack.c.b16 %v1264, %v1262
  %v1321 = vpack.c.b16 %v1267, %v1265
  %v1322 = vpack.c.b16 %v1268, %v1266
  %v1323 = vpack.c.b16 %v1271, %v1269
  %v1324 = vpack.c.b16 %v1272, %v1270
  %v1325 = vpack.c.b16 %v1275, %v1273
  %v1326 = vpack.c.b16 %v1276, %v1274
  %v1327 = vpack.c.b16 %v1279, %v1277
  %v1328 = vpack.c.b16 %v1280, %v1278
  %1377 = vmatprep.subr.bf16.mxu0 %v1282
  %1378 = vmatpush1.bf16.msra.mxu0 %v1281
  %1379 = vmatprep.subr.bf16.mxu0 %v1284
  %1380 = vmatpush1.bf16.msra.mxu0 %v1283
  %1381 = vmatprep.subr.bf16.mxu0 %v1286
  %1382 = vmatpush1.bf16.msra.mxu0 %v1285
  %1383 = vmatprep.subr.bf16.mxu0 %v1288
  %1384 = vmatpush1.bf16.msra.mxu0 %v1287
  %1385 = vmatprep.subr.bf16.mxu0 %v1290
  %1386 = vmatpush1.bf16.msra.mxu0 %v1289
  %1387 = vmatprep.subr.bf16.mxu0 %v1292
  %1388 = vmatpush1.bf16.msra.mxu0 %v1291
  %1389 = vmatprep.subr.bf16.mxu0 %v1294
  %1390 = vmatpush1.bf16.msra.mxu0 %v1293
  %1391 = vmatprep.subr.bf16.mxu0 %v1296
  %1392 = vmatpush1.bf16.msra.mxu0 %v1295
  %1393 = vmatprep.subr.bf16.mxu0 %v1298
  %1394 = vmatpush1.bf16.msra.mxu0 %v1297
  %1395 = vmatprep.subr.bf16.mxu0 %v1300
  %1396 = vmatpush1.bf16.msra.mxu0 %v1299
  %1397 = vmatprep.subr.bf16.mxu0 %v1302
  %1398 = vmatpush1.bf16.msra.mxu0 %v1301
  %1399 = vmatprep.subr.bf16.mxu0 %v1304
  %1400 = vmatpush1.bf16.msra.mxu0 %v1303
  %1401 = vmatprep.subr.bf16.mxu0 %v1306
  %1402 = vmatpush1.bf16.msra.mxu0 %v1305
  %1403 = vmatprep.subr.bf16.mxu0 %v1308
  %1404 = vmatpush1.bf16.msra.mxu0 %v1307
  %1405 = vmatprep.subr.bf16.mxu0 %v1310
  %1406 = vmatpush1.bf16.msra.mxu0 %v1309
  %1407 = vmatprep.subr.bf16.mxu0 %v1312
  %1408 = vmatpush1.bf16.msra.mxu0 %v1311
  %1409 = vmatprep.mubr.bf16.mxu0 %v358
  %1410 = vmatmul.mubr.bf16.gmra.mrb[0].mxu0 %v357
  %v1411 = vpop.f32.mrb[0].mxu0
  %v1412 = vadd.f32 %v1021, %v1411
  %v1413 = vpop.f32.mrb[0].mxu0
  %v1414 = vadd.f32 %v1023, %v1413
  %v1415 = vpop.f32.mrb[0].mxu0
  %v1416 = vadd.f32 %v1025, %v1415
  %v1417 = vpop.f32.mrb[0].mxu0
  %v1418 = vadd.f32 %v1027, %v1417
  %1419 = vmatprep.mubr.bf16.mxu0 %v361
  %1420 = vmatmul.mubr.bf16.gmra.mrb[0].mxu0 %v360
  %v1421 = vpop.f32.mrb[0].mxu0
  %v1422 = vadd.f32 %v1031, %v1421
  %v1423 = vpop.f32.mrb[0].mxu0
  %v1424 = vadd.f32 %v1033, %v1423
  %v1425 = vpop.f32.mrb[0].mxu0
  %v1426 = vadd.f32 %v1035, %v1425
  %v1427 = vpop.f32.mrb[0].mxu0
  %v1428 = vadd.f32 %v1037, %v1427
  %1429 = vmatprep.mubr.bf16.mxu0 %v364
  %1430 = vmatmul.mubr.bf16.gmra.mrb[0].mxu0 %v363
  %v1431 = vpop.f32.mrb[0].mxu0
  %v1432 = vadd.f32 %v1041, %v1431
  %v1433 = vpop.f32.mrb[0].mxu0
  %v1434 = vadd.f32 %v1043, %v1433
  %v1435 = vpop.f32.mrb[0].mxu0
  %v1436 = vadd.f32 %v1045, %v1435
  %v1437 = vpop.f32.mrb[0].mxu0
  %v1438 = vadd.f32 %v1047, %v1437
  %1439 = vmatprep.mubr.bf16.mxu0 %v367
  %1440 = vmatmul.mubr.bf16.gmra.mrb[0].mxu0 %v366
  %v1441 = vpop.f32.mrb[0].mxu0
  %v1442 = vadd.f32 %v1051, %v1441
  %v1443 = vpop.f32.mrb[0].mxu0
  %v1444 = vadd.f32 %v1053, %v1443
  %v1445 = vpop.f32.mrb[0].mxu0
  %v1446 = vadd.f32 %v1055, %v1445
  %v1447 = vpop.f32.mrb[0].mxu0
  %v1448 = vadd.f32 %v1057, %v1447
  %1449 = vmatprep.mubr.bf16.mxu0 %v370
  %1450 = vmatmul.mubr.bf16.gmra.mrb[0].mxu0 %v369
  %v1451 = vpop.f32.mrb[0].mxu0
  %v1452 = vadd.f32 %v1061, %v1451
  %v1453 = vpop.f32.mrb[0].mxu0
  %v1454 = vadd.f32 %v1063, %v1453
  %v1455 = vpop.f32.mrb[0].mxu0
  %v1456 = vadd.f32 %v1065, %v1455
  %v1457 = vpop.f32.mrb[0].mxu0
  %v1458 = vadd.f32 %v1067, %v1457
  %1459 = vmatprep.mubr.bf16.mxu0 %v373
  %1460 = vmatmul.mubr.bf16.gmra.mrb[0].mxu0 %v372
  %v1461 = vpop.f32.mrb[0].mxu0
  %v1462 = vadd.f32 %v1071, %v1461
  %v1463 = vpop.f32.mrb[0].mxu0
  %v1464 = vadd.f32 %v1073, %v1463
  %v1465 = vpop.f32.mrb[0].mxu0
  %v1466 = vadd.f32 %v1075, %v1465
  %v1467 = vpop.f32.mrb[0].mxu0
  %v1468 = vadd.f32 %v1077, %v1467
  %1469 = vmatprep.mubr.bf16.mxu0 %v376
  %1470 = vmatmul.mubr.bf16.gmra.mrb[0].mxu0 %v375
  %v1471 = vpop.f32.mrb[0].mxu0
  %v1472 = vadd.f32 %v1081, %v1471
  %v1473 = vpop.f32.mrb[0].mxu0
  %v1474 = vadd.f32 %v1083, %v1473
  %v1475 = vpop.f32.mrb[0].mxu0
  %v1476 = vadd.f32 %v1085, %v1475
  %v1477 = vpop.f32.mrb[0].mxu0
  %v1478 = vadd.f32 %v1087, %v1477
  %1479 = vmatprep.mubr.bf16.mxu0 %v379
  %1480 = vmatmul.mubr.bf16.gmra.mrb[0].mxu0 %v378
  %v1481 = vpop.f32.mrb[0].mxu0
  %v1482 = vadd.f32 %v1091, %v1481
  %v1483 = vpop.f32.mrb[0].mxu0
  %v1484 = vadd.f32 %v1093, %v1483
  %v1485 = vpop.f32.mrb[0].mxu0
  %v1486 = vadd.f32 %v1095, %v1485
  %v1487 = vpop.f32.mrb[0].mxu0
  %v1488 = vadd.f32 %v1097, %v1487
  %1489 = vmatprep.mubr.bf16.mxu0 %v1108
  %1490 = vmatmul.mubr.bf16.gmra.mrb[0].mxu0 %v1107
  %v1491 = vpop.f32.mrb[0].mxu0
  %v1492 = vadd.f32 %v1101, %v1491
  %v1493 = vpop.f32.mrb[0].mxu0
  %v1494 = vadd.f32 %v1103, %v1493
  %v1495 = vpop.f32.mrb[0].mxu0
  %v1496 = vpop.f32.mrb[0].mxu0
  %1497 = vdwg.mxu0
  %1498 = vmatprep.subr.bf16.mxu0 %v1314
  %1499 = vmatpush1.bf16.msra.mxu0 %v1313
  %1500 = vmatprep.subr.bf16.mxu0 %v1316
  %1501 = vmatpush1.bf16.msra.mxu0 %v1315
  %1502 = vmatprep.subr.bf16.mxu0 %v1318
  %1503 = vmatpush1.bf16.msra.mxu0 %v1317
  %1504 = vmatprep.subr.bf16.mxu0 %v1320
  %1505 = vmatpush1.bf16.msra.mxu0 %v1319
  %1506 = vmatprep.subr.bf16.mxu0 %v1322
  %1507 = vmatpush1.bf16.msra.mxu0 %v1321
  %1508 = vmatprep.subr.bf16.mxu0 %v1324
  %1509 = vmatpush1.bf16.msra.mxu0 %v1323
  %1510 = vmatprep.subr.bf16.mxu0 %v1326
  %1511 = vmatpush1.bf16.msra.mxu0 %v1325
  %1512 = vmatprep.subr.bf16.mxu0 %v1328
  %1513 = vmatpush1.bf16.msra.mxu0 %v1327
  %1514 = vmatprep.subr.bf16.mxu0 0
  %1515 = vmatpush1.bf16.msra.mxu0 0
  %1516 = vmatprep.subr.bf16.mxu0 0
  %1517 = vmatpush1.bf16.msra.mxu0 0
  %1518 = vmatprep.subr.bf16.mxu0 0
  %1519 = vmatpush1.bf16.msra.mxu0 0
  %1520 = vmatprep.subr.bf16.mxu0 0
  %1521 = vmatpush1.bf16.msra.mxu0 0
  %1522 = vmatprep.subr.bf16.mxu0 0
  %1523 = vmatpush1.bf16.msra.mxu0 0
  %1524 = vmatprep.subr.bf16.mxu0 0
  %1525 = vmatpush1.bf16.msra.mxu0 0
  %1526 = vmatprep.subr.bf16.mxu0 0
  %1527 = vmatpush1.bf16.msra.mxu0 0
  %1528 = vmatprep.subr.bf16.mxu0 0
  %1529 = vmatpush1.bf16.msra.mxu0 0
  %1530 = vmatprep.mubr.bf16.mxu0 0
  %1531 = vmatmul.mubr.bf16.gmra.mrb[0].mxu0 %v359
  %v1532 = vpop.f32.mrb[0].mxu0
  %v1533 = vadd.f32 %v1412, %v1532
  %v1534 = vpop.f32.mrb[0].mxu0
  %v1535 = vadd.f32 %v1414, %v1534
  %v1536 = vpop.f32.mrb[0].mxu0
  %v1537 = vadd.f32 %v1416, %v1536
  %v1538 = vpop.f32.mrb[0].mxu0
  %v1539 = vadd.f32 %v1418, %v1538
  %1540 = vmatprep.mubr.bf16.mxu0 0
  %1541 = vmatmul.mubr.bf16.gmra.mrb[0].mxu0 %v362
  %v1542 = vpop.f32.mrb[0].mxu0
  %v1543 = vadd.f32 %v1422, %v1542
  %v1544 = vpop.f32.mrb[0].mxu0
  %v1545 = vadd.f32 %v1424, %v1544
  %v1546 = vpop.f32.mrb[0].mxu0
  %v1547 = vadd.f32 %v1426, %v1546
  %v1548 = vpop.f32.mrb[0].mxu0
  %v1549 = vadd.f32 %v1428, %v1548
  %1550 = vmatprep.mubr.bf16.mxu0 0
  %1551 = vmatmul.mubr.bf16.gmra.mrb[0].mxu0 %v365
  %v1552 = vpop.f32.mrb[0].mxu0
  %v1553 = vadd.f32 %v1432, %v1552
  %v1554 = vpop.f32.mrb[0].mxu0
  %v1555 = vadd.f32 %v1434, %v1554
  %v1556 = vpop.f32.mrb[0].mxu0
  %v1557 = vadd.f32 %v1436, %v1556
  %v1558 = vpop.f32.mrb[0].mxu0
  %v1559 = vadd.f32 %v1438, %v1558
  %1560 = vmatprep.mubr.bf16.mxu0 0
  %1561 = vmatmul.mubr.bf16.gmra.mrb[0].mxu0 %v368
  %v1562 = vpop.f32.mrb[0].mxu0
  %v1563 = vadd.f32 %v1442, %v1562
  %v1564 = vpop.f32.mrb[0].mxu0
  %v1565 = vadd.f32 %v1444, %v1564
  %v1566 = vpop.f32.mrb[0].mxu0
  %v1567 = vadd.f32 %v1446, %v1566
  %v1568 = vpop.f32.mrb[0].mxu0
  %v1569 = vadd.f32 %v1448, %v1568
  %1570 = vmatprep.mubr.bf16.mxu0 0
  %1571 = vmatmul.mubr.bf16.gmra.mrb[0].mxu0 %v371
  %v1572 = vpop.f32.mrb[0].mxu0
  %v1573 = vadd.f32 %v1452, %v1572
  %v1574 = vpop.f32.mrb[0].mxu0
  %v1575 = vadd.f32 %v1454, %v1574
  %v1576 = vpop.f32.mrb[0].mxu0
  %v1577 = vadd.f32 %v1456, %v1576
  %v1578 = vpop.f32.mrb[0].mxu0
  %v1579 = vadd.f32 %v1458, %v1578
  %1580 = vmatprep.mubr.bf16.mxu0 0
  %1581 = vmatmul.mubr.bf16.gmra.mrb[0].mxu0 %v374
  %v1582 = vpop.f32.mrb[0].mxu0
  %v1583 = vadd.f32 %v1462, %v1582
  %v1584 = vpop.f32.mrb[0].mxu0
  %v1585 = vadd.f32 %v1464, %v1584
  %v1586 = vpop.f32.mrb[0].mxu0
  %v1587 = vadd.f32 %v1466, %v1586
  %v1588 = vpop.f32.mrb[0].mxu0
  %v1589 = vadd.f32 %v1468, %v1588
  %1590 = vmatprep.mubr.bf16.mxu0 0
  %1591 = vmatmul.mubr.bf16.gmra.mrb[0].mxu0 %v377
  %v1592 = vpop.f32.mrb[0].mxu0
  %v1593 = vadd.f32 %v1472, %v1592
  %v1594 = vpop.f32.mrb[0].mxu0
  %v1595 = vadd.f32 %v1474, %v1594
  %v1596 = vpop.f32.mrb[0].mxu0
  %v1597 = vadd.f32 %v1476, %v1596
  %v1598 = vpop.f32.mrb[0].mxu0
  %v1599 = vadd.f32 %v1478, %v1598
  %1600 = vmatprep.mubr.bf16.mxu0 0
  %1601 = vmatmul.mubr.bf16.gmra.mrb[0].mxu0 %v380
  %v1602 = vpop.f32.mrb[0].mxu0
  %v1603 = vadd.f32 %v1482, %v1602
  %v1604 = vpop.f32.mrb[0].mxu0
  %v1605 = vadd.f32 %v1484, %v1604
  %v1606 = vpop.f32.mrb[0].mxu0
  %v1607 = vadd.f32 %v1486, %v1606
  %v1608 = vpop.f32.mrb[0].mxu0
  %v1609 = vadd.f32 %v1488, %v1608
  %1610 = vmatprep.mubr.bf16.mxu0 0
  %1611 = vmatmul.mubr.bf16.gmra.mrb[0].mxu0 %v1109
  %v1612 = vpop.f32.mrb[0].mxu0
  %v1613 = vadd.f32 %v1492, %v1612
  %v1614 = vpop.f32.mrb[0].mxu0
  %v1615 = vadd.f32 %v1494, %v1614
  %v1616 = vpop.f32.mrb[0].mxu0
  %v1617 = vpop.f32.mrb[0].mxu0
  %1618 = vdwg.mxu0
  %v1619 = vmul.f32 %v1533, 0.2
  %v1620 = vmul.f32 %v1535, 0.2
  %v1621 = vmul.f32 %v1537, 0.2
  %v1622 = vmul.f32 %v1539, 0.2
  %v1623 = vmul.f32 %v1543, 0.2
  %v1624 = vmul.f32 %v1545, 0.2
  %v1625 = vmul.f32 %v1547, 0.2
  %v1626 = vmul.f32 %v1549, 0.2
  %v1627 = vmul.f32 %v1553, 0.2
  %v1628 = vmul.f32 %v1555, 0.2
  %v1629 = vmul.f32 %v1557, 0.2
  %v1630 = vmul.f32 %v1559, 0.2
  %v1631 = vmul.f32 %v1563, 0.2
  %v1632 = vmul.f32 %v1565, 0.2
  %v1633 = vmul.f32 %v1567, 0.2
  %v1634 = vmul.f32 %v1569, 0.2
  %v1635 = vmul.f32 %v1573, 0.2
  %v1636 = vmul.f32 %v1575, 0.2
  %v1637 = vmul.f32 %v1577, 0.2
  %v1638 = vmul.f32 %v1579, 0.2
  %v1639 = vmul.f32 %v1583, 0.2
  %v1640 = vmul.f32 %v1585, 0.2
  %v1641 = vmul.f32 %v1587, 0.2
  %v1642 = vmul.f32 %v1589, 0.2
  %v1643 = vmul.f32 %v1593, 0.2
  %v1644 = vmul.f32 %v1595, 0.2
  %v1645 = vmul.f32 %v1597, 0.2
  %v1646 = vmul.f32 %v1599, 0.2
  %v1647 = vmul.f32 %v1603, 0.2
  %v1648 = vmul.f32 %v1605, 0.2
  %v1649 = vmul.f32 %v1607, 0.2
  %v1650 = vmul.f32 %v1609, 0.2
  %v1651 = vmul.f32 %v1613, 0.2
  %v1652 = vmul.f32 %v1615, 0.2
  %v1653 = vmax.f32 %v1533, %v1619
  %v1654 = vmax.f32 %v1535, %v1620
  %v1655 = vmax.f32 %v1537, %v1621
  %v1656 = vmax.f32 %v1539, %v1622
  %v1657 = vmax.f32 %v1543, %v1623
  %v1658 = vmax.f32 %v1545, %v1624
  %v1659 = vmax.f32 %v1547, %v1625
  %v1660 = vmax.f32 %v1549, %v1626
  %v1661 = vmax.f32 %v1553, %v1627
  %v1662 = vmax.f32 %v1555, %v1628
  %v1663 = vmax.f32 %v1557, %v1629
  %v1664 = vmax.f32 %v1559, %v1630
  %v1665 = vmax.f32 %v1563, %v1631
  %v1666 = vmax.f32 %v1565, %v1632
  %v1667 = vmax.f32 %v1567, %v1633
  %v1668 = vmax.f32 %v1569, %v1634
  %v1669 = vmax.f32 %v1573, %v1635
  %v1670 = vmax.f32 %v1575, %v1636
  %v1671 = vmax.f32 %v1577, %v1637
  %v1672 = vmax.f32 %v1579, %v1638
  %v1673 = vmax.f32 %v1583, %v1639
  %v1674 = vmax.f32 %v1585, %v1640
  %v1675 = vmax.f32 %v1587, %v1641
  %v1676 = vmax.f32 %v1589, %v1642
  %v1677 = vmax.f32 %v1593, %v1643
  %v1678 = vmax.f32 %v1595, %v1644
  %v1679 = vmax.f32 %v1597, %v1645
  %v1680 = vmax.f32 %v1599, %v1646
  %v1681 = vmax.f32 %v1603, %v1647
  %v1682 = vmax.f32 %v1605, %v1648
  %v1683 = vmax.f32 %v1607, %v1649
  %v1684 = vmax.f32 %v1609, %v1650
  %v1685 = vmax.f32 %v1613, %v1651
  %v1686 = vmax.f32 %v1615, %v1652
  %v1687 = vpack.c.bf16 %v1655, %v1653
  %v1688 = vpack.c.bf16 %v1656, %v1654
  %v1689 = vpack.c.bf16 %v1659, %v1657
  %v1690 = vpack.c.bf16 %v1660, %v1658
  %v1691 = vpack.c.bf16 %v1663, %v1661
  %v1692 = vpack.c.bf16 %v1664, %v1662
  %v1693 = vpack.c.bf16 %v1667, %v1665
  %v1694 = vpack.c.bf16 %v1668, %v1666
  %v1695 = vpack.c.bf16 %v1671, %v1669
  %v1696 = vpack.c.bf16 %v1672, %v1670
  %v1697 = vpack.c.bf16 %v1675, %v1673
  %v1698 = vpack.c.bf16 %v1676, %v1674
  %v1699 = vpack.c.bf16 %v1679, %v1677
  %v1700 = vpack.c.bf16 %v1680, %v1678
  %v1701 = vpack.c.bf16 %v1683, %v1681
  %v1702 = vpack.c.bf16 %v1684, %v1682
  %v1703 = vpack.c.bf16 %v1685, %v1685
  %v1704 = vpack.c.bf16 %v1686, %v1686
  %v1705 = vld [vmem:[%s7] sm:$0xff]
  %v1706 = vld [vmem:[%s7 + $0x8] sm:$0xff]
  %v1707 = vld [vmem:[%s7 + $0x10] sm:$0xff]
  %v1708 = vld [vmem:[%s7 + $0x18] sm:$0xff]
  %v1709 = vld [vmem:[%s7 + $0x20] sm:$0xff]
  %v1710 = vld [vmem:[%s7 + $0x28] sm:$0xff]
  %v1711 = vld [vmem:[%s7 + $0x30] sm:$0xff]
  %v1712 = vld [vmem:[%s7 + $0x38] sm:$0xff]
  %v1713 = vld [vmem:[%s7 + $0x40] sm:$0xff]
  %v1714 = vld [vmem:[%s7 + $0x48] sm:$0xff]
  %v1725 = vunpack.c.l.b16 %v1705
  %v1726 = vunpack.c.h.b16 %v1705
  %v1727 = vunpack.c.l.b16 %v1706
  %v1728 = vunpack.c.h.b16 %v1706
  %v1729 = vunpack.c.l.b16 %v1707
  %v1730 = vunpack.c.h.b16 %v1707
  %v1731 = vunpack.c.l.b16 %v1708
  %v1732 = vunpack.c.h.b16 %v1708
  %v1733 = vunpack.c.l.b16 %v1709
  %v1734 = vunpack.c.h.b16 %v1709
  %v1735 = vunpack.c.l.b16 %v1710
  %v1736 = vunpack.c.h.b16 %v1710
  %v1737 = vunpack.c.l.b16 %v1711
  %v1738 = vunpack.c.h.b16 %v1711
  %v1739 = vunpack.c.l.b16 %v1712
  %v1740 = vunpack.c.h.b16 %v1712
  %v1741 = vunpack.c.l.b16 %v1713
  %v1742 = vunpack.c.h.b16 %v1713
  %v1743 = vunpack.c.l.b16 %v1714
  %v1744 = vunpack.c.h.b16 %v1714
  %v1745 = vpack.c.b16 %v1727, %v1725
  %v1746 = vpack.c.b16 %v1728, %v1726
  %v1747 = vpack.c.b16 %v1731, %v1729
  %v1748 = vpack.c.b16 %v1732, %v1730
  %v1749 = vpack.c.b16 %v1735, %v1733
  %v1750 = vpack.c.b16 %v1736, %v1734
  %v1751 = vpack.c.b16 %v1739, %v1737
  %v1752 = vpack.c.b16 %v1740, %v1738
  %v1753 = vpack.c.b16 %v1743, %v1741
  %v1754 = vpack.c.b16 %v1744, %v1742
  %vm1760 = vcmask 64512
  %v1762 = vsel %vm1760, %v1746, 0
  %v1765 = vsel %vm1760, %v1748, 0
  %v1768 = vsel %vm1760, %v1750, 0
  %v1771 = vsel %vm1760, %v1752, 0
  %v1774 = vsel %vm1760, %v1754, 0
  %vm1776 = vcmask 1043456
  %v1778 = vsel %vm1776, %v1703, 0
  %v1781 = vsel %vm1776, %v1704, 0
  %1783 = vmatprep.subr.bf16.mxu0 %v1688
  %1784 = vmatpush1.bf16.msra.mxu0 %v1687
  %1785 = vmatprep.subr.bf16.mxu0 %v1690
  %1786 = vmatpush1.bf16.msra.mxu0 %v1689
  %1787 = vmatprep.subr.bf16.mxu0 %v1692
  %1788 = vmatpush1.bf16.msra.mxu0 %v1691
  %1789 = vmatprep.subr.bf16.mxu0 %v1694
  %1790 = vmatpush1.bf16.msra.mxu0 %v1693
  %1791 = vmatprep.subr.bf16.mxu0 %v1696
  %1792 = vmatpush1.bf16.msra.mxu0 %v1695
  %1793 = vmatprep.subr.bf16.mxu0 %v1698
  %1794 = vmatpush1.bf16.msra.mxu0 %v1697
  %1795 = vmatprep.subr.bf16.mxu0 %v1700
  %1796 = vmatpush1.bf16.msra.mxu0 %v1699
  %1797 = vmatprep.subr.bf16.mxu0 %v1702
  %1798 = vmatpush1.bf16.msra.mxu0 %v1701
  %1799 = vmatprep.subr.bf16.mxu0 %v1781
  %1800 = vmatpush1.bf16.msra.mxu0 %v1778
  %1801 = vmatprep.subr.bf16.mxu0 0
  %1802 = vmatpush1.bf16.msra.mxu0 0
  %1803 = vmatprep.subr.bf16.mxu0 0
  %1804 = vmatpush1.bf16.msra.mxu0 0
  %1805 = vmatprep.subr.bf16.mxu0 0
  %1806 = vmatpush1.bf16.msra.mxu0 0
  %1807 = vmatprep.subr.bf16.mxu0 0
  %1808 = vmatpush1.bf16.msra.mxu0 0
  %1809 = vmatprep.subr.bf16.mxu0 0
  %1810 = vmatpush1.bf16.msra.mxu0 0
  %1811 = vmatprep.subr.bf16.mxu0 0
  %1812 = vmatpush1.bf16.msra.mxu0 0
  %1813 = vmatprep.subr.bf16.mxu0 0
  %1814 = vmatpush1.bf16.msra.mxu0 0
  %1815 = vmatprep.mubr.bf16.mxu0 %v1762
  %1816 = vmatmul.mubr.bf16.gmra.mrb[0].mxu0 %v1745
  %v1817 = vpop.f32.mrb[0].mxu0
  %v1818 = vadd.f32 0.0, %v1817
  %v1819 = vpop.f32.mrb[0].mxu0
  %v1820 = vadd.f32 0.0, %v1819
  %v1821 = vpop.f32.mrb[0].mxu0
  %v1822 = vadd.f32 0.0, %v1821
  %v1823 = vpop.f32.mrb[0].mxu0
  %v1824 = vadd.f32 0.0, %v1823
  %1825 = vmatprep.mubr.bf16.mxu0 %v1765
  %1826 = vmatmul.mubr.bf16.gmra.mrb[0].mxu0 %v1747
  %v1827 = vpop.f32.mrb[0].mxu0
  %v1828 = vadd.f32 0.0, %v1827
  %v1829 = vpop.f32.mrb[0].mxu0
  %v1830 = vadd.f32 0.0, %v1829
  %v1831 = vpop.f32.mrb[0].mxu0
  %v1832 = vadd.f32 0.0, %v1831
  %v1833 = vpop.f32.mrb[0].mxu0
  %v1834 = vadd.f32 0.0, %v1833
  %1835 = vmatprep.mubr.bf16.mxu0 %v1768
  %1836 = vmatmul.mubr.bf16.gmra.mrb[0].mxu0 %v1749
  %v1837 = vpop.f32.mrb[0].mxu0
  %v1838 = vadd.f32 0.0, %v1837
  %v1839 = vpop.f32.mrb[0].mxu0
  %v1840 = vadd.f32 0.0, %v1839
  %v1841 = vpop.f32.mrb[0].mxu0
  %v1842 = vadd.f32 0.0, %v1841
  %v1843 = vpop.f32.mrb[0].mxu0
  %v1844 = vadd.f32 0.0, %v1843
  %1845 = vmatprep.mubr.bf16.mxu0 %v1771
  %1846 = vmatmul.mubr.bf16.gmra.mrb[0].mxu0 %v1751
  %v1847 = vpop.f32.mrb[0].mxu0
  %v1848 = vadd.f32 0.0, %v1847
  %v1849 = vpop.f32.mrb[0].mxu0
  %v1850 = vadd.f32 0.0, %v1849
  %v1851 = vpop.f32.mrb[0].mxu0
  %v1852 = vadd.f32 0.0, %v1851
  %v1853 = vpop.f32.mrb[0].mxu0
  %v1854 = vadd.f32 0.0, %v1853
  %1855 = vmatprep.mubr.bf16.mxu0 %v1774
  %1856 = vmatmul.mubr.bf16.gmra.mrb[0].mxu0 %v1753
  %v1857 = vpop.f32.mrb[0].mxu0
  %v1858 = vadd.f32 0.0, %v1857
  %v1859 = vpop.f32.mrb[0].mxu0
  %v1860 = vadd.f32 0.0, %v1859
  %v1861 = vpop.f32.mrb[0].mxu0
  %v1862 = vadd.f32 0.0, %v1861
  %v1863 = vpop.f32.mrb[0].mxu0
  %v1864 = vadd.f32 0.0, %v1863
  %1865 = vdwg.mxu0
  %v1866 = vld [vmem:[%s9] sm:$0xff]
  %v1867 = vld [vmem:[%s9 + $0x8] sm:$0xff]
  %v1868 = vld [vmem:[%s9 + $0x10] sm:$0xff]
  %v1869 = vld [vmem:[%s9 + $0x18] sm:$0xff]
  %v1870 = vld [vmem:[%s9 + $0x20] sm:$0xff]
  %v1871 = vld [vmem:[%s9 + $0x28] sm:$0xff]
  %v1872 = vld [vmem:[%s9 + $0x30] sm:$0xff]
  %v1873 = vld [vmem:[%s9 + $0x38] sm:$0xff]
  %v1874 = vld [vmem:[%s9 + $0x40] sm:$0xff]
  %v1875 = vld [vmem:[%s9 + $0x48] sm:$0xff]
  %v1886 = vunpack.c.l.b16 %v1866
  %v1887 = vunpack.c.h.b16 %v1866
  %v1888 = vunpack.c.l.b16 %v1867
  %v1889 = vunpack.c.h.b16 %v1867
  %v1890 = vunpack.c.l.b16 %v1868
  %v1891 = vunpack.c.h.b16 %v1868
  %v1892 = vunpack.c.l.b16 %v1869
  %v1893 = vunpack.c.h.b16 %v1869
  %v1894 = vunpack.c.l.b16 %v1870
  %v1895 = vunpack.c.h.b16 %v1870
  %v1896 = vunpack.c.l.b16 %v1871
  %v1897 = vunpack.c.h.b16 %v1871
  %v1898 = vunpack.c.l.b16 %v1872
  %v1899 = vunpack.c.h.b16 %v1872
  %v1900 = vunpack.c.l.b16 %v1873
  %v1901 = vunpack.c.h.b16 %v1873
  %v1902 = vunpack.c.l.b16 %v1874
  %v1903 = vunpack.c.h.b16 %v1874
  %v1904 = vunpack.c.l.b16 %v1875
  %v1905 = vunpack.c.h.b16 %v1875
  %v1906 = vpack.c.b16 %v1888, %v1886
  %v1907 = vpack.c.b16 %v1889, %v1887
  %v1908 = vpack.c.b16 %v1892, %v1890
  %v1909 = vpack.c.b16 %v1893, %v1891
  %v1910 = vpack.c.b16 %v1896, %v1894
  %v1911 = vpack.c.b16 %v1897, %v1895
  %v1912 = vpack.c.b16 %v1900, %v1898
  %v1913 = vpack.c.b16 %v1901, %v1899
  %v1914 = vpack.c.b16 %v1904, %v1902
  %v1915 = vpack.c.b16 %v1905, %v1903
  %v1922 = vsel %vm1760, %v1907, 0
  %v1925 = vsel %vm1760, %v1909, 0
  %v1928 = vsel %vm1760, %v1911, 0
  %v1931 = vsel %vm1760, %v1913, 0
  %v1934 = vsel %vm1760, %v1915, 0
  %1936 = vmatprep.subr.bf16.mxu0 %v1688
  %1937 = vmatpush1.bf16.msra.mxu0 %v1687
  %1938 = vmatprep.subr.bf16.mxu0 %v1690
  %1939 = vmatpush1.bf16.msra.mxu0 %v1689
  %1940 = vmatprep.subr.bf16.mxu0 %v1692
  %1941 = vmatpush1.bf16.msra.mxu0 %v1691
  %1942 = vmatprep.subr.bf16.mxu0 %v1694
  %1943 = vmatpush1.bf16.msra.mxu0 %v1693
  %1944 = vmatprep.subr.bf16.mxu0 %v1696
  %1945 = vmatpush1.bf16.msra.mxu0 %v1695
  %1946 = vmatprep.subr.bf16.mxu0 %v1698
  %1947 = vmatpush1.bf16.msra.mxu0 %v1697
  %1948 = vmatprep.subr.bf16.mxu0 %v1700
  %1949 = vmatpush1.bf16.msra.mxu0 %v1699
  %1950 = vmatprep.subr.bf16.mxu0 %v1702
  %1951 = vmatpush1.bf16.msra.mxu0 %v1701
  %1952 = vmatprep.subr.bf16.mxu0 %v1781
  %1953 = vmatpush1.bf16.msra.mxu0 %v1778
  %1954 = vmatprep.subr.bf16.mxu0 0
  %1955 = vmatpush1.bf16.msra.mxu0 0
  %1956 = vmatprep.subr.bf16.mxu0 0
  %1957 = vmatpush1.bf16.msra.mxu0 0
  %1958 = vmatprep.subr.bf16.mxu0 0
  %1959 = vmatpush1.bf16.msra.mxu0 0
  %1960 = vmatprep.subr.bf16.mxu0 0
  %1961 = vmatpush1.bf16.msra.mxu0 0
  %1962 = vmatprep.subr.bf16.mxu0 0
  %1963 = vmatpush1.bf16.msra.mxu0 0
  %1964 = vmatprep.subr.bf16.mxu0 0
  %1965 = vmatpush1.bf16.msra.mxu0 0
  %1966 = vmatprep.subr.bf16.mxu0 0
  %1967 = vmatpush1.bf16.msra.mxu0 0
  %1968 = vmatprep.mubr.bf16.mxu0 %v1922
  %1969 = vmatmul.mubr.bf16.gmra.mrb[0].mxu0 %v1906
  %v1970 = vpop.f32.mrb[0].mxu0
  %v1971 = vadd.f32 0.0, %v1970
  %v1972 = vpop.f32.mrb[0].mxu0
  %v1973 = vadd.f32 0.0, %v1972
  %v1974 = vpop.f32.mrb[0].mxu0
  %v1975 = vadd.f32 0.0, %v1974
  %v1976 = vpop.f32.mrb[0].mxu0
  %v1977 = vadd.f32 0.0, %v1976
  %1978 = vmatprep.mubr.bf16.mxu0 %v1925
  %1979 = vmatmul.mubr.bf16.gmra.mrb[0].mxu0 %v1908
  %v1980 = vpop.f32.mrb[0].mxu0
  %v1981 = vadd.f32 0.0, %v1980
  %v1982 = vpop.f32.mrb[0].mxu0
  %v1983 = vadd.f32 0.0, %v1982
  %v1984 = vpop.f32.mrb[0].mxu0
  %v1985 = vadd.f32 0.0, %v1984
  %v1986 = vpop.f32.mrb[0].mxu0
  %v1987 = vadd.f32 0.0, %v1986
  %1988 = vmatprep.mubr.bf16.mxu0 %v1928
  %1989 = vmatmul.mubr.bf16.gmra.mrb[0].mxu0 %v1910
  %v1990 = vpop.f32.mrb[0].mxu0
  %v1991 = vadd.f32 0.0, %v1990
  %v1992 = vpop.f32.mrb[0].mxu0
  %v1993 = vadd.f32 0.0, %v1992
  %v1994 = vpop.f32.mrb[0].mxu0
  %v1995 = vadd.f32 0.0, %v1994
  %v1996 = vpop.f32.mrb[0].mxu0
  %v1997 = vadd.f32 0.0, %v1996
  %1998 = vmatprep.mubr.bf16.mxu0 %v1931
  %1999 = vmatmul.mubr.bf16.gmra.mrb[0].mxu0 %v1912
  %v2000 = vpop.f32.mrb[0].mxu0
  %v2001 = vadd.f32 0.0, %v2000
  %v2002 = vpop.f32.mrb[0].mxu0
  %v2003 = vadd.f32 0.0, %v2002
  %v2004 = vpop.f32.mrb[0].mxu0
  %v2005 = vadd.f32 0.0, %v2004
  %v2006 = vpop.f32.mrb[0].mxu0
  %v2007 = vadd.f32 0.0, %v2006
  %2008 = vmatprep.mubr.bf16.mxu0 %v1934
  %2009 = vmatmul.mubr.bf16.gmra.mrb[0].mxu0 %v1914
  %v2010 = vpop.f32.mrb[0].mxu0
  %v2011 = vadd.f32 0.0, %v2010
  %v2012 = vpop.f32.mrb[0].mxu0
  %v2013 = vadd.f32 0.0, %v2012
  %v2014 = vpop.f32.mrb[0].mxu0
  %v2015 = vadd.f32 0.0, %v2014
  %v2016 = vpop.f32.mrb[0].mxu0
  %v2017 = vadd.f32 0.0, %v2016
  %2018 = vdwg.mxu0
  %v2019 = vpack.c.bf16 %v1822, %v1818
  %v2020 = vpack.c.bf16 %v1824, %v1820
  %v2021 = vpack.c.bf16 %v1975, %v1971
  %v2022 = vpack.c.bf16 %v1977, %v1973
  %v2023 = vpack.c.bf16 %v1832, %v1828
  %v2024 = vpack.c.bf16 %v1834, %v1830
  %v2025 = vpack.c.bf16 %v1985, %v1981
  %v2026 = vpack.c.bf16 %v1987, %v1983
  %v2027 = vpack.c.bf16 %v1842, %v1838
  %v2028 = vpack.c.bf16 %v1844, %v1840
  %v2029 = vpack.c.bf16 %v1995, %v1991
  %v2030 = vpack.c.bf16 %v1997, %v1993
  %v2031 = vpack.c.bf16 %v1852, %v1848
  %v2032 = vpack.c.bf16 %v1854, %v1850
  %v2033 = vpack.c.bf16 %v2005, %v2001
  %v2034 = vpack.c.bf16 %v2007, %v2003
  %v2035 = vpack.c.bf16 %v1862, %v1858
  %v2036 = vpack.c.bf16 %v1864, %v1860
  %v2037 = vpack.c.bf16 %v2015, %v2011
  %v2038 = vpack.c.bf16 %v2017, %v2013
  %v2039 = vld [vmem:[%s11] sm:$0xff]
  %v2040 = vld [vmem:[%s11 + $0x8] sm:$0xff]
  %v2041 = vld [vmem:[%s11 + $0x10] sm:$0xff]
  %v2042 = vld [vmem:[%s11 + $0x18] sm:$0xff]
  %v2043 = vld [vmem:[%s11 + $0x20] sm:$0xff]
  %v2044 = vld [vmem:[%s11 + $0x28] sm:$0xff]
  %v2045 = vld [vmem:[%s11 + $0x30] sm:$0xff]
  %v2046 = vld [vmem:[%s11 + $0x38] sm:$0xff]
  %v2047 = vld [vmem:[%s11 + $0x40] sm:$0xff]
  %v2048 = vld [vmem:[%s11 + $0x48] sm:$0xff]
  %v2049 = vld [vmem:[%s11 + $0x50] sm:$0xff]
  %v2050 = vld [vmem:[%s11 + $0x58] sm:$0xff]
  %v2051 = vld [vmem:[%s11 + $0x60] sm:$0xff]
  %v2052 = vld [vmem:[%s11 + $0x68] sm:$0xff]
  %v2053 = vld [vmem:[%s11 + $0x70] sm:$0xff]
  %v2054 = vld [vmem:[%s11 + $0x78] sm:$0xff]
  %v2055 = vld [vmem:[%s11 + $0x80] sm:$0xff]
  %v2056 = vld [vmem:[%s11 + $0x88] sm:$0xff]
  %v2057 = vld [vmem:[%s11 + $0x90] sm:$0xff]
  %v2058 = vld [vmem:[%s11 + $0x98] sm:$0xff]
  %v2059 = vld [vmem:[%s11 + $0xa0] sm:$0xff]
  %v2060 = vld [vmem:[%s11 + $0xa8] sm:$0xff]
  %v2061 = vld [vmem:[%s11 + $0xb0] sm:$0xff]
  %v2062 = vld [vmem:[%s11 + $0xb8] sm:$0xff]
  %v2063 = vld [vmem:[%s11 + $0xc0] sm:$0xff]
  %v2064 = vld [vmem:[%s11 + $0xc8] sm:$0xff]
  %v2065 = vld [vmem:[%s11 + $0xd0] sm:$0xff]
  %v2066 = vld [vmem:[%s11 + $0xd8] sm:$0xff]
  %v2067 = vld [vmem:[%s11 + $0xe0] sm:$0xff]
  %v2068 = vld [vmem:[%s11 + $0xe8] sm:$0xff]
  %v2069 = vld [vmem:[%s11 + $0xf0] sm:$0xff]
  %v2070 = vld [vmem:[%s11 + $0xf8] sm:$0xff]
  %v2071 = vld [vmem:[%s11 + $0x100] sm:$0xff]
  %v2072 = vld [vmem:[%s11 + $0x108] sm:$0xff]
  %v2073 = vld [vmem:[%s11 + $0x110] sm:$0xff]
  %v2074 = vld [vmem:[%s11 + $0x118] sm:$0xff]
  %v2075 = vld [vmem:[%s11 + $0x120] sm:$0xff]
  %v2076 = vld [vmem:[%s11 + $0x128] sm:$0xff]
  %v2077 = vld [vmem:[%s11 + $0x130] sm:$0xff]
  %v2078 = vld [vmem:[%s11 + $0x138] sm:$0xff]
  %v2079 = vld [vmem:[%s11 + $0x140] sm:$0xff]
  %v2080 = vld [vmem:[%s11 + $0x148] sm:$0xff]
  %v2081 = vld [vmem:[%s11 + $0x150] sm:$0xff]
  %v2082 = vld [vmem:[%s11 + $0x158] sm:$0xff]
  %v2083 = vld [vmem:[%s11 + $0x160] sm:$0xff]
  %v2084 = vld [vmem:[%s11 + $0x168] sm:$0xff]
  %v2085 = vld [vmem:[%s11 + $0x170] sm:$0xff]
  %v2086 = vld [vmem:[%s11 + $0x178] sm:$0xff]
  %v2087 = vld [vmem:[%s11 + $0x180] sm:$0xff]
  %v2088 = vld [vmem:[%s11 + $0x188] sm:$0xff]
  %v2089 = vld [vmem:[%s11 + $0x190] sm:$0xff]
  %v2090 = vld [vmem:[%s11 + $0x198] sm:$0xff]
  %v2091 = vld [vmem:[%s11 + $0x1a0] sm:$0xff]
  %v2092 = vld [vmem:[%s11 + $0x1a8] sm:$0xff]
  %v2093 = vld [vmem:[%s11 + $0x1b0] sm:$0xff]
  %v2094 = vld [vmem:[%s11 + $0x1b8] sm:$0xff]
  %v2095 = vld [vmem:[%s11 + $0x1c0] sm:$0xff]
  %v2096 = vld [vmem:[%s11 + $0x1c8] sm:$0xff]
  %v2097 = vld [vmem:[%s11 + $0x1d0] sm:$0xff]
  %v2098 = vld [vmem:[%s11 + $0x1d8] sm:$0xff]
  %v2099 = vld [vmem:[%s11 + $0x1e0] sm:$0xff]
  %v2100 = vld [vmem:[%s11 + $0x1e8] sm:$0xff]
  %v2101 = vld [vmem:[%s11 + $0x1f0] sm:$0xff]
  %v2102 = vld [vmem:[%s11 + $0x1f8] sm:$0xff]
  %v2103 = vld [vmem:[%s13] sm:$0xff]
  %v2104 = vld [vmem:[%s13 + $0x8] sm:$0xff]
  %v2105 = vld [vmem:[%s13 + $0x10] sm:$0xff]
  %v2106 = vld [vmem:[%s13 + $0x18] sm:$0xff]
  %v2107 = vld [vmem:[%s13 + $0x20] sm:$0xff]
  %v2108 = vld [vmem:[%s13 + $0x28] sm:$0xff]
  %v2109 = vld [vmem:[%s13 + $0x30] sm:$0xff]
  %v2110 = vld [vmem:[%s13 + $0x38] sm:$0xff]
  %v2111 = vld [vmem:[%s13 + $0x40] sm:$0xff]
  %v2112 = vld [vmem:[%s13 + $0x48] sm:$0xff]
  %v2113 = vld [vmem:[%s13 + $0x50] sm:$0xff]
  %v2114 = vld [vmem:[%s13 + $0x58] sm:$0xff]
  %v2115 = vld [vmem:[%s13 + $0x60] sm:$0xff]
  %v2116 = vld [vmem:[%s13 + $0x68] sm:$0xff]
  %v2117 = vld [vmem:[%s13 + $0x70] sm:$0xff]
  %v2118 = vld [vmem:[%s13 + $0x78] sm:$0xff]
  %v2119 = vld [vmem:[%s13 + $0x80] sm:$0xff]
  %v2120 = vld [vmem:[%s13 + $0x88] sm:$0xff]
  %v2121 = vld [vmem:[%s13 + $0x90] sm:$0xff]
  %v2122 = vld [vmem:[%s13 + $0x98] sm:$0xff]
  %v2123 = vld [vmem:[%s13 + $0xa0] sm:$0xff]
  %v2124 = vld [vmem:[%s13 + $0xa8] sm:$0xff]
  %v2125 = vld [vmem:[%s13 + $0xb0] sm:$0xff]
  %v2126 = vld [vmem:[%s13 + $0xb8] sm:$0xff]
  %v2127 = vld [vmem:[%s13 + $0xc0] sm:$0xff]
  %v2128 = vld [vmem:[%s13 + $0xc8] sm:$0xff]
  %v2129 = vld [vmem:[%s13 + $0xd0] sm:$0xff]
  %v2130 = vld [vmem:[%s13 + $0xd8] sm:$0xff]
  %v2131 = vld [vmem:[%s13 + $0xe0] sm:$0xff]
  %v2132 = vld [vmem:[%s13 + $0xe8] sm:$0xff]
  %v2133 = vld [vmem:[%s13 + $0xf0] sm:$0xff]
  %v2134 = vld [vmem:[%s13 + $0xf8] sm:$0xff]
  %v2135 = vld [vmem:[%s13 + $0x100] sm:$0xff]
  %v2136 = vld [vmem:[%s13 + $0x108] sm:$0xff]
  %v2137 = vld [vmem:[%s13 + $0x110] sm:$0xff]
  %v2138 = vld [vmem:[%s13 + $0x118] sm:$0xff]
  %v2139 = vld [vmem:[%s13 + $0x120] sm:$0xff]
  %v2140 = vld [vmem:[%s13 + $0x128] sm:$0xff]
  %v2141 = vld [vmem:[%s13 + $0x130] sm:$0xff]
  %v2142 = vld [vmem:[%s13 + $0x138] sm:$0xff]
  %v2143 = vld [vmem:[%s13 + $0x140] sm:$0xff]
  %v2144 = vld [vmem:[%s13 + $0x148] sm:$0xff]
  %v2145 = vld [vmem:[%s13 + $0x150] sm:$0xff]
  %v2146 = vld [vmem:[%s13 + $0x158] sm:$0xff]
  %v2147 = vld [vmem:[%s13 + $0x160] sm:$0xff]
  %v2148 = vld [vmem:[%s13 + $0x168] sm:$0xff]
  %v2149 = vld [vmem:[%s13 + $0x170] sm:$0xff]
  %v2150 = vld [vmem:[%s13 + $0x178] sm:$0xff]
  %v2151 = vld [vmem:[%s13 + $0x180] sm:$0xff]
  %v2152 = vld [vmem:[%s13 + $0x188] sm:$0xff]
  %v2153 = vld [vmem:[%s13 + $0x190] sm:$0xff]
  %v2154 = vld [vmem:[%s13 + $0x198] sm:$0xff]
  %v2155 = vld [vmem:[%s13 + $0x1a0] sm:$0xff]
  %v2156 = vld [vmem:[%s13 + $0x1a8] sm:$0xff]
  %v2157 = vld [vmem:[%s13 + $0x1b0] sm:$0xff]
  %v2158 = vld [vmem:[%s13 + $0x1b8] sm:$0xff]
  %v2159 = vld [vmem:[%s13 + $0x1c0] sm:$0xff]
  %v2160 = vld [vmem:[%s13 + $0x1c8] sm:$0xff]
  %v2161 = vld [vmem:[%s13 + $0x1d0] sm:$0xff]
  %v2162 = vld [vmem:[%s13 + $0x1d8] sm:$0xff]
  %v2163 = vld [vmem:[%s13 + $0x1e0] sm:$0xff]
  %v2164 = vld [vmem:[%s13 + $0x1e8] sm:$0xff]
  %v2165 = vld [vmem:[%s13 + $0x1f0] sm:$0xff]
  %v2166 = vld [vmem:[%s13 + $0x1f8] sm:$0xff]
  %v2168 = vshrl.u32 %v2019, 16
  %v2170 = vshll.u32 %v2019, 16
  %v2172 = vrot.slane %v2170, 1
  %v2173 = vor.u32 %v2168, %v2172
  %v2175 = vshll.u32 %v2023, 16
  %v2177 = vrot.slane %v2175, 1
  %v2178 = vsel %vm384, %v2173, %v2177
  %v2180 = vshrl.u32 %v2020, 16
  %v2182 = vshll.u32 %v2020, 16
  %v2184 = vrot.slane %v2182, 1
  %v2185 = vor.u32 %v2180, %v2184
  %v2187 = vshll.u32 %v2024, 16
  %v2189 = vrot.slane %v2187, 1
  %v2190 = vsel %vm384, %v2185, %v2189
  %v2192 = vshrl.u32 %v2021, 16
  %v2194 = vshll.u32 %v2021, 16
  %v2196 = vrot.slane %v2194, 1
  %v2197 = vor.u32 %v2192, %v2196
  %v2199 = vshll.u32 %v2025, 16
  %v2201 = vrot.slane %v2199, 1
  %v2202 = vsel %vm384, %v2197, %v2201
  %v2204 = vshrl.u32 %v2022, 16
  %v2206 = vshll.u32 %v2022, 16
  %v2208 = vrot.slane %v2206, 1
  %v2209 = vor.u32 %v2204, %v2208
  %v2211 = vshll.u32 %v2026, 16
  %v2213 = vrot.slane %v2211, 1
  %v2214 = vsel %vm384, %v2209, %v2213
  %v2215 = vshrl.u32 %v2023, 16
  %v2217 = vor.u32 %v2215, %v2177
  %v2219 = vshll.u32 %v2027, 16
  %v2221 = vrot.slane %v2219, 1
  %v2222 = vsel %vm384, %v2217, %v2221
  %v2223 = vshrl.u32 %v2024, 16
  %v2225 = vor.u32 %v2223, %v2189
  %v2227 = vshll.u32 %v2028, 16
  %v2229 = vrot.slane %v2227, 1
  %v2230 = vsel %vm384, %v2225, %v2229
  %v2231 = vshrl.u32 %v2025, 16
  %v2233 = vor.u32 %v2231, %v2201
  %v2235 = vshll.u32 %v2029, 16
  %v2237 = vrot.slane %v2235, 1
  %v2238 = vsel %vm384, %v2233, %v2237
  %v2239 = vshrl.u32 %v2026, 16
  %v2241 = vor.u32 %v2239, %v2213
  %v2243 = vshll.u32 %v2030, 16
  %v2245 = vrot.slane %v2243, 1
  %v2246 = vsel %vm384, %v2241, %v2245
  %v2247 = vshrl.u32 %v2027, 16
  %v2249 = vor.u32 %v2247, %v2221
  %v2251 = vshll.u32 %v2031, 16
  %v2253 = vrot.slane %v2251, 1
  %v2254 = vsel %vm384, %v2249, %v2253
  %v2255 = vshrl.u32 %v2028, 16
  %v2257 = vor.u32 %v2255, %v2229
  %v2259 = vshll.u32 %v2032, 16
  %v2261 = vrot.slane %v2259, 1
  %v2262 = vsel %vm384, %v2257, %v2261
  %v2263 = vshrl.u32 %v2029, 16
  %v2265 = vor.u32 %v2263, %v2237
  %v2267 = vshll.u32 %v2033, 16
  %v2269 = vrot.slane %v2267, 1
  %v2270 = vsel %vm384, %v2265, %v2269
  %v2271 = vshrl.u32 %v2030, 16
  %v2273 = vor.u32 %v2271, %v2245
  %v2275 = vshll.u32 %v2034, 16
  %v2277 = vrot.slane %v2275, 1
  %v2278 = vsel %vm384, %v2273, %v2277
  %v2279 = vshrl.u32 %v2031, 16
  %v2281 = vor.u32 %v2279, %v2253
  %v2283 = vshll.u32 %v2035, 16
  %v2285 = vrot.slane %v2283, 1
  %v2286 = vsel %vm384, %v2281, %v2285
  %v2287 = vshrl.u32 %v2032, 16
  %v2289 = vor.u32 %v2287, %v2261
  %v2291 = vshll.u32 %v2036, 16
  %v2293 = vrot.slane %v2291, 1
  %v2294 = vsel %vm384, %v2289, %v2293
  %v2295 = vshrl.u32 %v2033, 16
  %v2297 = vor.u32 %v2295, %v2269
  %v2299 = vshll.u32 %v2037, 16
  %v2301 = vrot.slane %v2299, 1
  %v2302 = vsel %vm384, %v2297, %v2301
  %v2303 = vshrl.u32 %v2034, 16
  %v2305 = vor.u32 %v2303, %v2277
  %v2307 = vshll.u32 %v2038, 16
  %v2309 = vrot.slane %v2307, 1
  %v2310 = vsel %vm384, %v2305, %v2309
  %v2311 = vshrl.u32 %v2035, 16
  %v2313 = vor.u32 %v2311, %v2285
  %v2314 = vshrl.u32 %v2036, 16
  %v2316 = vor.u32 %v2314, %v2293
  %v2317 = vshrl.u32 %v2037, 16
  %v2319 = vor.u32 %v2317, %v2301
  %v2320 = vshrl.u32 %v2038, 16
  %v2322 = vor.u32 %v2320, %v2309
  %v2407 = vunpack.c.l.b16 %v2103
  %v2408 = vunpack.c.h.b16 %v2103
  %v2409 = vunpack.c.l.b16 %v2104
  %v2410 = vunpack.c.h.b16 %v2104
  %v2411 = vunpack.c.l.b16 %v2105
  %v2412 = vunpack.c.h.b16 %v2105
  %v2413 = vunpack.c.l.b16 %v2106
  %v2414 = vunpack.c.h.b16 %v2106
  %v2415 = vunpack.c.l.b16 %v2107
  %v2416 = vunpack.c.h.b16 %v2107
  %v2417 = vunpack.c.l.b16 %v2108
  %v2418 = vunpack.c.h.b16 %v2108
  %v2419 = vunpack.c.l.b16 %v2109
  %v2420 = vunpack.c.h.b16 %v2109
  %v2421 = vunpack.c.l.b16 %v2110
  %v2422 = vunpack.c.h.b16 %v2110
  %v2423 = vunpack.c.l.b16 %v2111
  %v2424 = vunpack.c.h.b16 %v2111
  %v2425 = vunpack.c.l.b16 %v2112
  %v2426 = vunpack.c.h.b16 %v2112
  %v2427 = vunpack.c.l.b16 %v2113
  %v2428 = vunpack.c.h.b16 %v2113
  %v2429 = vunpack.c.l.b16 %v2114
  %v2430 = vunpack.c.h.b16 %v2114
  %v2431 = vunpack.c.l.b16 %v2115
  %v2432 = vunpack.c.h.b16 %v2115
  %v2433 = vunpack.c.l.b16 %v2116
  %v2434 = vunpack.c.h.b16 %v2116
  %v2435 = vunpack.c.l.b16 %v2117
  %v2436 = vunpack.c.h.b16 %v2117
  %v2437 = vunpack.c.l.b16 %v2118
  %v2438 = vunpack.c.h.b16 %v2118
  %v2439 = vunpack.c.l.b16 %v2119
  %v2440 = vunpack.c.h.b16 %v2119
  %v2441 = vunpack.c.l.b16 %v2120
  %v2442 = vunpack.c.h.b16 %v2120
  %v2443 = vunpack.c.l.b16 %v2121
  %v2444 = vunpack.c.h.b16 %v2121
  %v2445 = vunpack.c.l.b16 %v2122
  %v2446 = vunpack.c.h.b16 %v2122
  %v2447 = vunpack.c.l.b16 %v2123
  %v2448 = vunpack.c.h.b16 %v2123
  %v2449 = vunpack.c.l.b16 %v2124
  %v2450 = vunpack.c.h.b16 %v2124
  %v2451 = vunpack.c.l.b16 %v2125
  %v2452 = vunpack.c.h.b16 %v2125
  %v2453 = vunpack.c.l.b16 %v2126
  %v2454 = vunpack.c.h.b16 %v2126
  %v2455 = vunpack.c.l.b16 %v2127
  %v2456 = vunpack.c.h.b16 %v2127
  %v2457 = vunpack.c.l.b16 %v2128
  %v2458 = vunpack.c.h.b16 %v2128
  %v2459 = vunpack.c.l.b16 %v2129
  %v2460 = vunpack.c.h.b16 %v2129
  %v2461 = vunpack.c.l.b16 %v2130
  %v2462 = vunpack.c.h.b16 %v2130
  %v2463 = vunpack.c.l.b16 %v2131
  %v2464 = vunpack.c.h.b16 %v2131
  %v2465 = vunpack.c.l.b16 %v2132
  %v2466 = vunpack.c.h.b16 %v2132
  %v2467 = vunpack.c.l.b16 %v2133
  %v2468 = vunpack.c.h.b16 %v2133
  %v2469 = vunpack.c.l.b16 %v2134
  %v2470 = vunpack.c.h.b16 %v2134
  %v2471 = vunpack.c.l.b16 %v2135
  %v2472 = vunpack.c.h.b16 %v2135
  %v2473 = vunpack.c.l.b16 %v2136
  %v2474 = vunpack.c.h.b16 %v2136
  %v2475 = vunpack.c.l.b16 %v2137
  %v2476 = vunpack.c.h.b16 %v2137
  %v2477 = vunpack.c.l.b16 %v2138
  %v2478 = vunpack.c.h.b16 %v2138
  %v2479 = vunpack.c.l.b16 %v2139
  %v2480 = vunpack.c.h.b16 %v2139
  %v2481 = vunpack.c.l.b16 %v2140
  %v2482 = vunpack.c.h.b16 %v2140
  %v2483 = vunpack.c.l.b16 %v2141
  %v2484 = vunpack.c.h.b16 %v2141
  %v2485 = vunpack.c.l.b16 %v2142
  %v2486 = vunpack.c.h.b16 %v2142
  %v2487 = vunpack.c.l.b16 %v2143
  %v2488 = vunpack.c.h.b16 %v2143
  %v2489 = vunpack.c.l.b16 %v2144
  %v2490 = vunpack.c.h.b16 %v2144
  %v2491 = vunpack.c.l.b16 %v2145
  %v2492 = vunpack.c.h.b16 %v2145
  %v2493 = vunpack.c.l.b16 %v2146
  %v2494 = vunpack.c.h.b16 %v2146
  %v2495 = vunpack.c.l.b16 %v2147
  %v2496 = vunpack.c.h.b16 %v2147
  %v2497 = vunpack.c.l.b16 %v2148
  %v2498 = vunpack.c.h.b16 %v2148
  %v2499 = vunpack.c.l.b16 %v2149
  %v2500 = vunpack.c.h.b16 %v2149
  %v2501 = vunpack.c.l.b16 %v2150
  %v2502 = vunpack.c.h.b16 %v2150
  %v2503 = vunpack.c.l.b16 %v2151
  %v2504 = vunpack.c.h.b16 %v2151
  %v2505 = vunpack.c.l.b16 %v2152
  %v2506 = vunpack.c.h.b16 %v2152
  %v2507 = vunpack.c.l.b16 %v2153
  %v2508 = vunpack.c.h.b16 %v2153
  %v2509 = vunpack.c.l.b16 %v2154
  %v2510 = vunpack.c.h.b16 %v2154
  %v2511 = vunpack.c.l.b16 %v2155
  %v2512 = vunpack.c.h.b16 %v2155
  %v2513 = vunpack.c.l.b16 %v2156
  %v2514 = vunpack.c.h.b16 %v2156
  %v2515 = vunpack.c.l.b16 %v2157
  %v2516 = vunpack.c.h.b16 %v2157
  %v2517 = vunpack.c.l.b16 %v2158
  %v2518 = vunpack.c.h.b16 %v2158
  %v2519 = vunpack.c.l.b16 %v2159
  %v2520 = vunpack.c.h.b16 %v2159
  %v2521 = vunpack.c.l.b16 %v2160
  %v2522 = vunpack.c.h.b16 %v2160
  %v2523 = vunpack.c.l.b16 %v2161
  %v2524 = vunpack.c.h.b16 %v2161
  %v2525 = vunpack.c.l.b16 %v2162
  %v2526 = vunpack.c.h.b16 %v2162
  %v2527 = vunpack.c.l.b16 %v2163
  %v2528 = vunpack.c.h.b16 %v2163
  %v2529 = vunpack.c.l.b16 %v2164
  %v2530 = vunpack.c.h.b16 %v2164
  %v2531 = vunpack.c.l.b16 %v2165
  %v2532 = vunpack.c.h.b16 %v2165
  %v2533 = vunpack.c.l.b16 %v2166
  %v2534 = vunpack.c.h.b16 %v2166
  %v2535 = vpack.c.b16 %v2409, %v2407
  %v2536 = vpack.c.b16 %v2410, %v2408
  %v2537 = vpack.c.b16 %v2413, %v2411
  %v2538 = vpack.c.b16 %v2414, %v2412
  %v2539 = vpack.c.b16 %v2417, %v2415
  %v2540 = vpack.c.b16 %v2418, %v2416
  %v2541 = vpack.c.b16 %v2421, %v2419
  %v2542 = vpack.c.b16 %v2422, %v2420
  %v2543 = vpack.c.b16 %v2425, %v2423
  %v2544 = vpack.c.b16 %v2426, %v2424
  %v2545 = vpack.c.b16 %v2429, %v2427
  %v2546 = vpack.c.b16 %v2430, %v2428
  %v2547 = vpack.c.b16 %v2433, %v2431
  %v2548 = vpack.c.b16 %v2434, %v2432
  %v2549 = vpack.c.b16 %v2437, %v2435
  %v2550 = vpack.c.b16 %v2438, %v2436
  %v2551 = vpack.c.b16 %v2441, %v2439
  %v2552 = vpack.c.b16 %v2442, %v2440
  %v2553 = vpack.c.b16 %v2445, %v2443
  %v2554 = vpack.c.b16 %v2446, %v2444
  %v2555 = vpack.c.b16 %v2449, %v2447
  %v2556 = vpack.c.b16 %v2450, %v2448
  %v2557 = vpack.c.b16 %v2453, %v2451
  %v2558 = vpack.c.b16 %v2454, %v2452
  %v2559 = vpack.c.b16 %v2457, %v2455
  %v2560 = vpack.c.b16 %v2458, %v2456
  %v2561 = vpack.c.b16 %v2461, %v2459
  %v2562 = vpack.c.b16 %v2462, %v2460
  %v2563 = vpack.c.b16 %v2465, %v2463
  %v2564 = vpack.c.b16 %v2466, %v2464
  %v2565 = vpack.c.b16 %v2469, %v2467
  %v2566 = vpack.c.b16 %v2470, %v2468
  %v2567 = vpack.c.b16 %v2473, %v2471
  %v2568 = vpack.c.b16 %v2474, %v2472
  %v2569 = vpack.c.b16 %v2477, %v2475
  %v2570 = vpack.c.b16 %v2478, %v2476
  %v2571 = vpack.c.b16 %v2481, %v2479
  %v2572 = vpack.c.b16 %v2482, %v2480
  %v2573 = vpack.c.b16 %v2485, %v2483
  %v2574 = vpack.c.b16 %v2486, %v2484
  %v2575 = vpack.c.b16 %v2489, %v2487
  %v2576 = vpack.c.b16 %v2490, %v2488
  %v2577 = vpack.c.b16 %v2493, %v2491
  %v2578 = vpack.c.b16 %v2494, %v2492
  %v2579 = vpack.c.b16 %v2497, %v2495
  %v2580 = vpack.c.b16 %v2498, %v2496
  %v2581 = vpack.c.b16 %v2501, %v2499
  %v2582 = vpack.c.b16 %v2502, %v2500
  %v2583 = vpack.c.b16 %v2505, %v2503
  %v2584 = vpack.c.b16 %v2506, %v2504
  %v2585 = vpack.c.b16 %v2509, %v2507
  %v2586 = vpack.c.b16 %v2510, %v2508
  %v2587 = vpack.c.b16 %v2513, %v2511
  %v2588 = vpack.c.b16 %v2514, %v2512
  %v2589 = vpack.c.b16 %v2517, %v2515
  %v2590 = vpack.c.b16 %v2518, %v2516
  %v2591 = vpack.c.b16 %v2521, %v2519
  %v2592 = vpack.c.b16 %v2522, %v2520
  %v2593 = vpack.c.b16 %v2525, %v2523
  %v2594 = vpack.c.b16 %v2526, %v2524
  %v2595 = vpack.c.b16 %v2529, %v2527
  %v2596 = vpack.c.b16 %v2530, %v2528
  %v2597 = vpack.c.b16 %v2533, %v2531
  %v2598 = vpack.c.b16 %v2534, %v2532
  %2663 = vmatprep.subr.bf16.mxu0 %v2536
  %2664 = vmatpush1.bf16.msra.mxu0 %v2535
  %2665 = vmatprep.subr.bf16.mxu0 %v2538
  %2666 = vmatpush1.bf16.msra.mxu0 %v2537
  %2667 = vmatprep.subr.bf16.mxu0 %v2540
  %2668 = vmatpush1.bf16.msra.mxu0 %v2539
  %2669 = vmatprep.subr.bf16.mxu0 %v2542
  %2670 = vmatpush1.bf16.msra.mxu0 %v2541
  %2671 = vmatprep.subr.bf16.mxu0 %v2544
  %2672 = vmatpush1.bf16.msra.mxu0 %v2543
  %2673 = vmatprep.subr.bf16.mxu0 %v2546
  %2674 = vmatpush1.bf16.msra.mxu0 %v2545
  %2675 = vmatprep.subr.bf16.mxu0 %v2548
  %2676 = vmatpush1.bf16.msra.mxu0 %v2547
  %2677 = vmatprep.subr.bf16.mxu0 %v2550
  %2678 = vmatpush1.bf16.msra.mxu0 %v2549
  %2679 = vmatprep.subr.bf16.mxu0 %v2552
  %2680 = vmatpush1.bf16.msra.mxu0 %v2551
  %2681 = vmatprep.subr.bf16.mxu0 %v2554
  %2682 = vmatpush1.bf16.msra.mxu0 %v2553
  %2683 = vmatprep.subr.bf16.mxu0 %v2556
  %2684 = vmatpush1.bf16.msra.mxu0 %v2555
  %2685 = vmatprep.subr.bf16.mxu0 %v2558
  %2686 = vmatpush1.bf16.msra.mxu0 %v2557
  %2687 = vmatprep.subr.bf16.mxu0 %v2560
  %2688 = vmatpush1.bf16.msra.mxu0 %v2559
  %2689 = vmatprep.subr.bf16.mxu0 %v2562
  %2690 = vmatpush1.bf16.msra.mxu0 %v2561
  %2691 = vmatprep.subr.bf16.mxu0 %v2564
  %2692 = vmatpush1.bf16.msra.mxu0 %v2563
  %2693 = vmatprep.subr.bf16.mxu0 %v2566
  %2694 = vmatpush1.bf16.msra.mxu0 %v2565
  %2695 = vmatprep.mubr.bf16.mxu0 %v2190
  %2696 = vmatmul.mubr.bf16.gmra.mrb[0].mxu0 %v2178
  %v2697 = vpop.f32.mrb[0].mxu0
  %v2698 = vadd.f32 0.0, %v2697
  %v2699 = vpop.f32.mrb[0].mxu0
  %v2700 = vadd.f32 0.0, %v2699
  %v2701 = vpop.f32.mrb[0].mxu0
  %v2702 = vadd.f32 0.0, %v2701
  %v2703 = vpop.f32.mrb[0].mxu0
  %v2704 = vadd.f32 0.0, %v2703
  %2705 = vmatprep.mubr.bf16.mxu0 %v2230
  %2706 = vmatmul.mubr.bf16.gmra.mrb[0].mxu0 %v2222
  %v2707 = vpop.f32.mrb[0].mxu0
  %v2708 = vadd.f32 0.0, %v2707
  %v2709 = vpop.f32.mrb[0].mxu0
  %v2710 = vadd.f32 0.0, %v2709
  %v2711 = vpop.f32.mrb[0].mxu0
  %v2712 = vadd.f32 0.0, %v2711
  %v2713 = vpop.f32.mrb[0].mxu0
  %v2714 = vadd.f32 0.0, %v2713
  %2715 = vmatprep.mubr.bf16.mxu0 %v2262
  %2716 = vmatmul.mubr.bf16.gmra.mrb[0].mxu0 %v2254
  %v2717 = vpop.f32.mrb[0].mxu0
  %v2718 = vadd.f32 0.0, %v2717
  %v2719 = vpop.f32.mrb[0].mxu0
  %v2720 = vadd.f32 0.0, %v2719
  %v2721 = vpop.f32.mrb[0].mxu0
  %v2722 = vadd.f32 0.0, %v2721
  %v2723 = vpop.f32.mrb[0].mxu0
  %v2724 = vadd.f32 0.0, %v2723
  %2725 = vmatprep.mubr.bf16.mxu0 %v2294
  %2726 = vmatmul.mubr.bf16.gmra.mrb[0].mxu0 %v2286
  %v2727 = vpop.f32.mrb[0].mxu0
  %v2728 = vadd.f32 0.0, %v2727
  %v2729 = vpop.f32.mrb[0].mxu0
  %v2730 = vadd.f32 0.0, %v2729
  %v2731 = vpop.f32.mrb[0].mxu0
  %v2732 = vadd.f32 0.0, %v2731
  %v2733 = vpop.f32.mrb[0].mxu0
  %v2734 = vadd.f32 0.0, %v2733
  %2735 = vmatprep.mubr.bf16.mxu0 %v2316
  %2736 = vmatmul.mubr.bf16.gmra.mrb[0].mxu0 %v2313
  %v2737 = vpop.f32.mrb[0].mxu0
  %v2738 = vadd.f32 0.0, %v2737
  %v2739 = vpop.f32.mrb[0].mxu0
  %v2740 = vadd.f32 0.0, %v2739
  %v2741 = vpop.f32.mrb[0].mxu0
  %v2742 = vpop.f32.mrb[0].mxu0
  %2743 = vdwg.mxu0
  %2744 = vmatprep.subr.bf16.mxu0 %v2568
  %2745 = vmatpush1.bf16.msra.mxu0 %v2567
  %2746 = vmatprep.subr.bf16.mxu0 %v2570
  %2747 = vmatpush1.bf16.msra.mxu0 %v2569
  %2748 = vmatprep.subr.bf16.mxu0 %v2572
  %2749 = vmatpush1.bf16.msra.mxu0 %v2571
  %2750 = vmatprep.subr.bf16.mxu0 %v2574
  %2751 = vmatpush1.bf16.msra.mxu0 %v2573
  %2752 = vmatprep.subr.bf16.mxu0 %v2576
  %2753 = vmatpush1.bf16.msra.mxu0 %v2575
  %2754 = vmatprep.subr.bf16.mxu0 %v2578
  %2755 = vmatpush1.bf16.msra.mxu0 %v2577
  %2756 = vmatprep.subr.bf16.mxu0 %v2580
  %2757 = vmatpush1.bf16.msra.mxu0 %v2579
  %2758 = vmatprep.subr.bf16.mxu0 %v2582
  %2759 = vmatpush1.bf16.msra.mxu0 %v2581
  %2760 = vmatprep.subr.bf16.mxu0 %v2584
  %2761 = vmatpush1.bf16.msra.mxu0 %v2583
  %2762 = vmatprep.subr.bf16.mxu0 %v2586
  %2763 = vmatpush1.bf16.msra.mxu0 %v2585
  %2764 = vmatprep.subr.bf16.mxu0 %v2588
  %2765 = vmatpush1.bf16.msra.mxu0 %v2587
  %2766 = vmatprep.subr.bf16.mxu0 %v2590
  %2767 = vmatpush1.bf16.msra.mxu0 %v2589
  %2768 = vmatprep.subr.bf16.mxu0 %v2592
  %2769 = vmatpush1.bf16.msra.mxu0 %v2591
  %2770 = vmatprep.subr.bf16.mxu0 %v2594
  %2771 = vmatpush1.bf16.msra.mxu0 %v2593
  %2772 = vmatprep.subr.bf16.mxu0 %v2596
  %2773 = vmatpush1.bf16.msra.mxu0 %v2595
  %2774 = vmatprep.subr.bf16.mxu0 %v2598
  %2775 = vmatpush1.bf16.msra.mxu0 %v2597
  %2776 = vmatprep.mubr.bf16.mxu0 %v2214
  %2777 = vmatmul.mubr.bf16.gmra.mrb[0].mxu0 %v2202
  %v2778 = vpop.f32.mrb[0].mxu0
  %v2779 = vadd.f32 %v2698, %v2778
  %v2780 = vpop.f32.mrb[0].mxu0
  %v2781 = vadd.f32 %v2700, %v2780
  %v2782 = vpop.f32.mrb[0].mxu0
  %v2783 = vadd.f32 %v2702, %v2782
  %v2784 = vpop.f32.mrb[0].mxu0
  %v2785 = vadd.f32 %v2704, %v2784
  %2786 = vmatprep.mubr.bf16.mxu0 %v2246
  %2787 = vmatmul.mubr.bf16.gmra.mrb[0].mxu0 %v2238
  %v2788 = vpop.f32.mrb[0].mxu0
  %v2789 = vadd.f32 %v2708, %v2788
  %v2790 = vpop.f32.mrb[0].mxu0
  %v2791 = vadd.f32 %v2710, %v2790
  %v2792 = vpop.f32.mrb[0].mxu0
  %v2793 = vadd.f32 %v2712, %v2792
  %v2794 = vpop.f32.mrb[0].mxu0
  %v2795 = vadd.f32 %v2714, %v2794
  %2796 = vmatprep.mubr.bf16.mxu0 %v2278
  %2797 = vmatmul.mubr.bf16.gmra.mrb[0].mxu0 %v2270
  %v2798 = vpop.f32.mrb[0].mxu0
  %v2799 = vadd.f32 %v2718, %v2798
  %v2800 = vpop.f32.mrb[0].mxu0
  %v2801 = vadd.f32 %v2720, %v2800
  %v2802 = vpop.f32.mrb[0].mxu0
  %v2803 = vadd.f32 %v2722, %v2802
  %v2804 = vpop.f32.mrb[0].mxu0
  %v2805 = vadd.f32 %v2724, %v2804
  %2806 = vmatprep.mubr.bf16.mxu0 %v2310
  %2807 = vmatmul.mubr.bf16.gmra.mrb[0].mxu0 %v2302
  %v2808 = vpop.f32.mrb[0].mxu0
  %v2809 = vadd.f32 %v2728, %v2808
  %v2810 = vpop.f32.mrb[0].mxu0
  %v2811 = vadd.f32 %v2730, %v2810
  %v2812 = vpop.f32.mrb[0].mxu0
  %v2813 = vadd.f32 %v2732, %v2812
  %v2814 = vpop.f32.mrb[0].mxu0
  %v2815 = vadd.f32 %v2734, %v2814
  %2816 = vmatprep.mubr.bf16.mxu0 %v2322
  %2817 = vmatmul.mubr.bf16.gmra.mrb[0].mxu0 %v2319
  %v2818 = vpop.f32.mrb[0].mxu0
  %v2819 = vadd.f32 %v2738, %v2818
  %v2820 = vpop.f32.mrb[0].mxu0
  %v2821 = vadd.f32 %v2740, %v2820
  %v2822 = vpop.f32.mrb[0].mxu0
  %v2823 = vpop.f32.mrb[0].mxu0
  %2824 = vdwg.mxu0
  %v2889 = vunpack.c.l.b16 %v2039
  %v2890 = vunpack.c.h.b16 %v2039
  %v2891 = vunpack.c.l.b16 %v2040
  %v2892 = vunpack.c.h.b16 %v2040
  %v2893 = vunpack.c.l.b16 %v2041
  %v2894 = vunpack.c.h.b16 %v2041
  %v2895 = vunpack.c.l.b16 %v2042
  %v2896 = vunpack.c.h.b16 %v2042
  %v2897 = vunpack.c.l.b16 %v2043
  %v2898 = vunpack.c.h.b16 %v2043
  %v2899 = vunpack.c.l.b16 %v2044
  %v2900 = vunpack.c.h.b16 %v2044
  %v2901 = vunpack.c.l.b16 %v2045
  %v2902 = vunpack.c.h.b16 %v2045
  %v2903 = vunpack.c.l.b16 %v2046
  %v2904 = vunpack.c.h.b16 %v2046
  %v2905 = vunpack.c.l.b16 %v2047
  %v2906 = vunpack.c.h.b16 %v2047
  %v2907 = vunpack.c.l.b16 %v2048
  %v2908 = vunpack.c.h.b16 %v2048
  %v2909 = vunpack.c.l.b16 %v2049
  %v2910 = vunpack.c.h.b16 %v2049
  %v2911 = vunpack.c.l.b16 %v2050
  %v2912 = vunpack.c.h.b16 %v2050
  %v2913 = vunpack.c.l.b16 %v2051
  %v2914 = vunpack.c.h.b16 %v2051
  %v2915 = vunpack.c.l.b16 %v2052
  %v2916 = vunpack.c.h.b16 %v2052
  %v2917 = vunpack.c.l.b16 %v2053
  %v2918 = vunpack.c.h.b16 %v2053
  %v2919 = vunpack.c.l.b16 %v2054
  %v2920 = vunpack.c.h.b16 %v2054
  %v2921 = vunpack.c.l.b16 %v2055
  %v2922 = vunpack.c.h.b16 %v2055
  %v2923 = vunpack.c.l.b16 %v2056
  %v2924 = vunpack.c.h.b16 %v2056
  %v2925 = vunpack.c.l.b16 %v2057
  %v2926 = vunpack.c.h.b16 %v2057
  %v2927 = vunpack.c.l.b16 %v2058
  %v2928 = vunpack.c.h.b16 %v2058
  %v2929 = vunpack.c.l.b16 %v2059
  %v2930 = vunpack.c.h.b16 %v2059
  %v2931 = vunpack.c.l.b16 %v2060
  %v2932 = vunpack.c.h.b16 %v2060
  %v2933 = vunpack.c.l.b16 %v2061
  %v2934 = vunpack.c.h.b16 %v2061
  %v2935 = vunpack.c.l.b16 %v2062
  %v2936 = vunpack.c.h.b16 %v2062
  %v2937 = vunpack.c.l.b16 %v2063
  %v2938 = vunpack.c.h.b16 %v2063
  %v2939 = vunpack.c.l.b16 %v2064
  %v2940 = vunpack.c.h.b16 %v2064
  %v2941 = vunpack.c.l.b16 %v2065
  %v2942 = vunpack.c.h.b16 %v2065
  %v2943 = vunpack.c.l.b16 %v2066
  %v2944 = vunpack.c.h.b16 %v2066
  %v2945 = vunpack.c.l.b16 %v2067
  %v2946 = vunpack.c.h.b16 %v2067
  %v2947 = vunpack.c.l.b16 %v2068
  %v2948 = vunpack.c.h.b16 %v2068
  %v2949 = vunpack.c.l.b16 %v2069
  %v2950 = vunpack.c.h.b16 %v2069
  %v2951 = vunpack.c.l.b16 %v2070
  %v2952 = vunpack.c.h.b16 %v2070
  %v2953 = vunpack.c.l.b16 %v2071
  %v2954 = vunpack.c.h.b16 %v2071
  %v2955 = vunpack.c.l.b16 %v2072
  %v2956 = vunpack.c.h.b16 %v2072
  %v2957 = vunpack.c.l.b16 %v2073
  %v2958 = vunpack.c.h.b16 %v2073
  %v2959 = vunpack.c.l.b16 %v2074
  %v2960 = vunpack.c.h.b16 %v2074
  %v2961 = vunpack.c.l.b16 %v2075
  %v2962 = vunpack.c.h.b16 %v2075
  %v2963 = vunpack.c.l.b16 %v2076
  %v2964 = vunpack.c.h.b16 %v2076
  %v2965 = vunpack.c.l.b16 %v2077
  %v2966 = vunpack.c.h.b16 %v2077
  %v2967 = vunpack.c.l.b16 %v2078
  %v2968 = vunpack.c.h.b16 %v2078
  %v2969 = vunpack.c.l.b16 %v2079
  %v2970 = vunpack.c.h.b16 %v2079
  %v2971 = vunpack.c.l.b16 %v2080
  %v2972 = vunpack.c.h.b16 %v2080
  %v2973 = vunpack.c.l.b16 %v2081
  %v2974 = vunpack.c.h.b16 %v2081
  %v2975 = vunpack.c.l.b16 %v2082
  %v2976 = vunpack.c.h.b16 %v2082
  %v2977 = vunpack.c.l.b16 %v2083
  %v2978 = vunpack.c.h.b16 %v2083
  %v2979 = vunpack.c.l.b16 %v2084
  %v2980 = vunpack.c.h.b16 %v2084
  %v2981 = vunpack.c.l.b16 %v2085
  %v2982 = vunpack.c.h.b16 %v2085
  %v2983 = vunpack.c.l.b16 %v2086
  %v2984 = vunpack.c.h.b16 %v2086
  %v2985 = vunpack.c.l.b16 %v2087
  %v2986 = vunpack.c.h.b16 %v2087
  %v2987 = vunpack.c.l.b16 %v2088
  %v2988 = vunpack.c.h.b16 %v2088
  %v2989 = vunpack.c.l.b16 %v2089
  %v2990 = vunpack.c.h.b16 %v2089
  %v2991 = vunpack.c.l.b16 %v2090
  %v2992 = vunpack.c.h.b16 %v2090
  %v2993 = vunpack.c.l.b16 %v2091
  %v2994 = vunpack.c.h.b16 %v2091
  %v2995 = vunpack.c.l.b16 %v2092
  %v2996 = vunpack.c.h.b16 %v2092
  %v2997 = vunpack.c.l.b16 %v2093
  %v2998 = vunpack.c.h.b16 %v2093
  %v2999 = vunpack.c.l.b16 %v2094
  %v3000 = vunpack.c.h.b16 %v2094
  %v3001 = vunpack.c.l.b16 %v2095
  %v3002 = vunpack.c.h.b16 %v2095
  %v3003 = vunpack.c.l.b16 %v2096
  %v3004 = vunpack.c.h.b16 %v2096
  %v3005 = vunpack.c.l.b16 %v2097
  %v3006 = vunpack.c.h.b16 %v2097
  %v3007 = vunpack.c.l.b16 %v2098
  %v3008 = vunpack.c.h.b16 %v2098
  %v3009 = vunpack.c.l.b16 %v2099
  %v3010 = vunpack.c.h.b16 %v2099
  %v3011 = vunpack.c.l.b16 %v2100
  %v3012 = vunpack.c.h.b16 %v2100
  %v3013 = vunpack.c.l.b16 %v2101
  %v3014 = vunpack.c.h.b16 %v2101
  %v3015 = vunpack.c.l.b16 %v2102
  %v3016 = vunpack.c.h.b16 %v2102
  %v3017 = vpack.c.b16 %v2891, %v2889
  %v3018 = vpack.c.b16 %v2892, %v2890
  %v3019 = vpack.c.b16 %v2895, %v2893
  %v3020 = vpack.c.b16 %v2896, %v2894
  %v3021 = vpack.c.b16 %v2899, %v2897
  %v3022 = vpack.c.b16 %v2900, %v2898
  %v3023 = vpack.c.b16 %v2903, %v2901
  %v3024 = vpack.c.b16 %v2904, %v2902
  %v3025 = vpack.c.b16 %v2907, %v2905
  %v3026 = vpack.c.b16 %v2908, %v2906
  %v3027 = vpack.c.b16 %v2911, %v2909
  %v3028 = vpack.c.b16 %v2912, %v2910
  %v3029 = vpack.c.b16 %v2915, %v2913
  %v3030 = vpack.c.b16 %v2916, %v2914
  %v3031 = vpack.c.b16 %v2919, %v2917
  %v3032 = vpack.c.b16 %v2920, %v2918
  %v3033 = vpack.c.b16 %v2923, %v2921
  %v3034 = vpack.c.b16 %v2924, %v2922
  %v3035 = vpack.c.b16 %v2927, %v2925
  %v3036 = vpack.c.b16 %v2928, %v2926
  %v3037 = vpack.c.b16 %v2931, %v2929
  %v3038 = vpack.c.b16 %v2932, %v2930
  %v3039 = vpack.c.b16 %v2935, %v2933
  %v3040 = vpack.c.b16 %v2936, %v2934
  %v3041 = vpack.c.b16 %v2939, %v2937
  %v3042 = vpack.c.b16 %v2940, %v2938
  %v3043 = vpack.c.b16 %v2943, %v2941
  %v3044 = vpack.c.b16 %v2944, %v2942
  %v3045 = vpack.c.b16 %v2947, %v2945
  %v3046 = vpack.c.b16 %v2948, %v2946
  %v3047 = vpack.c.b16 %v2951, %v2949
  %v3048 = vpack.c.b16 %v2952, %v2950
  %v3049 = vpack.c.b16 %v2955, %v2953
  %v3050 = vpack.c.b16 %v2956, %v2954
  %v3051 = vpack.c.b16 %v2959, %v2957
  %v3052 = vpack.c.b16 %v2960, %v2958
  %v3053 = vpack.c.b16 %v2963, %v2961
  %v3054 = vpack.c.b16 %v2964, %v2962
  %v3055 = vpack.c.b16 %v2967, %v2965
  %v3056 = vpack.c.b16 %v2968, %v2966
  %v3057 = vpack.c.b16 %v2971, %v2969
  %v3058 = vpack.c.b16 %v2972, %v2970
  %v3059 = vpack.c.b16 %v2975, %v2973
  %v3060 = vpack.c.b16 %v2976, %v2974
  %v3061 = vpack.c.b16 %v2979, %v2977
  %v3062 = vpack.c.b16 %v2980, %v2978
  %v3063 = vpack.c.b16 %v2983, %v2981
  %v3064 = vpack.c.b16 %v2984, %v2982
  %v3065 = vpack.c.b16 %v2987, %v2985
  %v3066 = vpack.c.b16 %v2988, %v2986
  %v3067 = vpack.c.b16 %v2991, %v2989
  %v3068 = vpack.c.b16 %v2992, %v2990
  %v3069 = vpack.c.b16 %v2995, %v2993
  %v3070 = vpack.c.b16 %v2996, %v2994
  %v3071 = vpack.c.b16 %v2999, %v2997
  %v3072 = vpack.c.b16 %v3000, %v2998
  %v3073 = vpack.c.b16 %v3003, %v3001
  %v3074 = vpack.c.b16 %v3004, %v3002
  %v3075 = vpack.c.b16 %v3007, %v3005
  %v3076 = vpack.c.b16 %v3008, %v3006
  %v3077 = vpack.c.b16 %v3011, %v3009
  %v3078 = vpack.c.b16 %v3012, %v3010
  %v3079 = vpack.c.b16 %v3015, %v3013
  %v3080 = vpack.c.b16 %v3016, %v3014
  %3145 = vmatprep.subr.bf16.mxu0 %v3018
  %3146 = vmatpush1.bf16.msra.mxu0 %v3017
  %3147 = vmatprep.subr.bf16.mxu0 %v3020
  %3148 = vmatpush1.bf16.msra.mxu0 %v3019
  %3149 = vmatprep.subr.bf16.mxu0 %v3022
  %3150 = vmatpush1.bf16.msra.mxu0 %v3021
  %3151 = vmatprep.subr.bf16.mxu0 %v3024
  %3152 = vmatpush1.bf16.msra.mxu0 %v3023
  %3153 = vmatprep.subr.bf16.mxu0 %v3026
  %3154 = vmatpush1.bf16.msra.mxu0 %v3025
  %3155 = vmatprep.subr.bf16.mxu0 %v3028
  %3156 = vmatpush1.bf16.msra.mxu0 %v3027
  %3157 = vmatprep.subr.bf16.mxu0 %v3030
  %3158 = vmatpush1.bf16.msra.mxu0 %v3029
  %3159 = vmatprep.subr.bf16.mxu0 %v3032
  %3160 = vmatpush1.bf16.msra.mxu0 %v3031
  %3161 = vmatprep.subr.bf16.mxu0 %v3034
  %3162 = vmatpush1.bf16.msra.mxu0 %v3033
  %3163 = vmatprep.subr.bf16.mxu0 %v3036
  %3164 = vmatpush1.bf16.msra.mxu0 %v3035
  %3165 = vmatprep.subr.bf16.mxu0 %v3038
  %3166 = vmatpush1.bf16.msra.mxu0 %v3037
  %3167 = vmatprep.subr.bf16.mxu0 %v3040
  %3168 = vmatpush1.bf16.msra.mxu0 %v3039
  %3169 = vmatprep.subr.bf16.mxu0 %v3042
  %3170 = vmatpush1.bf16.msra.mxu0 %v3041
  %3171 = vmatprep.subr.bf16.mxu0 %v3044
  %3172 = vmatpush1.bf16.msra.mxu0 %v3043
  %3173 = vmatprep.subr.bf16.mxu0 %v3046
  %3174 = vmatpush1.bf16.msra.mxu0 %v3045
  %3175 = vmatprep.subr.bf16.mxu0 %v3048
  %3176 = vmatpush1.bf16.msra.mxu0 %v3047
  %3177 = vmatprep.mubr.bf16.mxu0 %v2020
  %3178 = vmatmul.mubr.bf16.gmra.mrb[0].mxu0 %v2019
  %v3179 = vpop.f32.mrb[0].mxu0
  %v3180 = vadd.f32 %v2779, %v3179
  %v3181 = vpop.f32.mrb[0].mxu0
  %v3182 = vadd.f32 %v2781, %v3181
  %v3183 = vpop.f32.mrb[0].mxu0
  %v3184 = vadd.f32 %v2783, %v3183
  %v3185 = vpop.f32.mrb[0].mxu0
  %v3186 = vadd.f32 %v2785, %v3185
  %3187 = vmatprep.mubr.bf16.mxu0 %v2024
  %3188 = vmatmul.mubr.bf16.gmra.mrb[0].mxu0 %v2023
  %v3189 = vpop.f32.mrb[0].mxu0
  %v3190 = vadd.f32 %v2789, %v3189
  %v3191 = vpop.f32.mrb[0].mxu0
  %v3192 = vadd.f32 %v2791, %v3191
  %v3193 = vpop.f32.mrb[0].mxu0
  %v3194 = vadd.f32 %v2793, %v3193
  %v3195 = vpop.f32.mrb[0].mxu0
  %v3196 = vadd.f32 %v2795, %v3195
  %3197 = vmatprep.mubr.bf16.mxu0 %v2028
  %3198 = vmatmul.mubr.bf16.gmra.mrb[0].mxu0 %v2027
  %v3199 = vpop.f32.mrb[0].mxu0
  %v3200 = vadd.f32 %v2799, %v3199
  %v3201 = vpop.f32.mrb[0].mxu0
  %v3202 = vadd.f32 %v2801, %v3201
  %v3203 = vpop.f32.mrb[0].mxu0
  %v3204 = vadd.f32 %v2803, %v3203
  %v3205 = vpop.f32.mrb[0].mxu0
  %v3206 = vadd.f32 %v2805, %v3205
  %3207 = vmatprep.mubr.bf16.mxu0 %v2032
  %3208 = vmatmul.mubr.bf16.gmra.mrb[0].mxu0 %v2031
  %v3209 = vpop.f32.mrb[0].mxu0
  %v3210 = vadd.f32 %v2809, %v3209
  %v3211 = vpop.f32.mrb[0].mxu0
  %v3212 = vadd.f32 %v2811, %v3211
  %v3213 = vpop.f32.mrb[0].mxu0
  %v3214 = vadd.f32 %v2813, %v3213
  %v3215 = vpop.f32.mrb[0].mxu0
  %v3216 = vadd.f32 %v2815, %v3215
  %3217 = vmatprep.mubr.bf16.mxu0 %v2036
  %3218 = vmatmul.mubr.bf16.gmra.mrb[0].mxu0 %v2035
  %v3219 = vpop.f32.mrb[0].mxu0
  %v3220 = vadd.f32 %v2819, %v3219
  %v3221 = vpop.f32.mrb[0].mxu0
  %v3222 = vadd.f32 %v2821, %v3221
  %v3223 = vpop.f32.mrb[0].mxu0
  %v3224 = vpop.f32.mrb[0].mxu0
  %3225 = vdwg.mxu0
  %3226 = vmatprep.subr.bf16.mxu0 %v3050
  %3227 = vmatpush1.bf16.msra.mxu0 %v3049
  %3228 = vmatprep.subr.bf16.mxu0 %v3052
  %3229 = vmatpush1.bf16.msra.mxu0 %v3051
  %3230 = vmatprep.subr.bf16.mxu0 %v3054
  %3231 = vmatpush1.bf16.msra.mxu0 %v3053
  %3232 = vmatprep.subr.bf16.mxu0 %v3056
  %3233 = vmatpush1.bf16.msra.mxu0 %v3055
  %3234 = vmatprep.subr.bf16.mxu0 %v3058
  %3235 = vmatpush1.bf16.msra.mxu0 %v3057
  %3236 = vmatprep.subr.bf16.mxu0 %v3060
  %3237 = vmatpush1.bf16.msra.mxu0 %v3059
  %3238 = vmatprep.subr.bf16.mxu0 %v3062
  %3239 = vmatpush1.bf16.msra.mxu0 %v3061
  %3240 = vmatprep.subr.bf16.mxu0 %v3064
  %3241 = vmatpush1.bf16.msra.mxu0 %v3063
  %3242 = vmatprep.subr.bf16.mxu0 %v3066
  %3243 = vmatpush1.bf16.msra.mxu0 %v3065
  %3244 = vmatprep.subr.bf16.mxu0 %v3068
  %3245 = vmatpush1.bf16.msra.mxu0 %v3067
  %3246 = vmatprep.subr.bf16.mxu0 %v3070
  %3247 = vmatpush1.bf16.msra.mxu0 %v3069
  %3248 = vmatprep.subr.bf16.mxu0 %v3072
  %3249 = vmatpush1.bf16.msra.mxu0 %v3071
  %3250 = vmatprep.subr.bf16.mxu0 %v3074
  %3251 = vmatpush1.bf16.msra.mxu0 %v3073
  %3252 = vmatprep.subr.bf16.mxu0 %v3076
  %3253 = vmatpush1.bf16.msra.mxu0 %v3075
  %3254 = vmatprep.subr.bf16.mxu0 %v3078
  %3255 = vmatpush1.bf16.msra.mxu0 %v3077
  %3256 = vmatprep.subr.bf16.mxu0 %v3080
  %3257 = vmatpush1.bf16.msra.mxu0 %v3079
  %3258 = vmatprep.mubr.bf16.mxu0 %v2022
  %3259 = vmatmul.mubr.bf16.gmra.mrb[0].mxu0 %v2021
  %v3260 = vpop.f32.mrb[0].mxu0
  %v3261 = vadd.f32 %v3180, %v3260
  %v3262 = vpop.f32.mrb[0].mxu0
  %v3263 = vadd.f32 %v3182, %v3262
  %v3264 = vpop.f32.mrb[0].mxu0
  %v3265 = vadd.f32 %v3184, %v3264
  %v3266 = vpop.f32.mrb[0].mxu0
  %v3267 = vadd.f32 %v3186, %v3266
  %3268 = vmatprep.mubr.bf16.mxu0 %v2026
  %3269 = vmatmul.mubr.bf16.gmra.mrb[0].mxu0 %v2025
  %v3270 = vpop.f32.mrb[0].mxu0
  %v3271 = vadd.f32 %v3190, %v3270
  %v3272 = vpop.f32.mrb[0].mxu0
  %v3273 = vadd.f32 %v3192, %v3272
  %v3274 = vpop.f32.mrb[0].mxu0
  %v3275 = vadd.f32 %v3194, %v3274
  %v3276 = vpop.f32.mrb[0].mxu0
  %v3277 = vadd.f32 %v3196, %v3276
  %3278 = vmatprep.mubr.bf16.mxu0 %v2030
  %3279 = vmatmul.mubr.bf16.gmra.mrb[0].mxu0 %v2029
  %v3280 = vpop.f32.mrb[0].mxu0
  %v3281 = vadd.f32 %v3200, %v3280
  %v3282 = vpop.f32.mrb[0].mxu0
  %v3283 = vadd.f32 %v3202, %v3282
  %v3284 = vpop.f32.mrb[0].mxu0
  %v3285 = vadd.f32 %v3204, %v3284
  %v3286 = vpop.f32.mrb[0].mxu0
  %v3287 = vadd.f32 %v3206, %v3286
  %3288 = vmatprep.mubr.bf16.mxu0 %v2034
  %3289 = vmatmul.mubr.bf16.gmra.mrb[0].mxu0 %v2033
  %v3290 = vpop.f32.mrb[0].mxu0
  %v3291 = vadd.f32 %v3210, %v3290
  %v3292 = vpop.f32.mrb[0].mxu0
  %v3293 = vadd.f32 %v3212, %v3292
  %v3294 = vpop.f32.mrb[0].mxu0
  %v3295 = vadd.f32 %v3214, %v3294
  %v3296 = vpop.f32.mrb[0].mxu0
  %v3297 = vadd.f32 %v3216, %v3296
  %3298 = vmatprep.mubr.bf16.mxu0 %v2038
  %3299 = vmatmul.mubr.bf16.gmra.mrb[0].mxu0 %v2037
  %v3300 = vpop.f32.mrb[0].mxu0
  %v3301 = vadd.f32 %v3220, %v3300
  %v3302 = vpop.f32.mrb[0].mxu0
  %v3303 = vadd.f32 %v3222, %v3302
  %v3304 = vpop.f32.mrb[0].mxu0
  %v3305 = vpop.f32.mrb[0].mxu0
  %3306 = vdwg.mxu0
  %v3307 = vld [vmem:[%s23] sm:$0xff]
  %v3308 = vld [vmem:[%s23 + $0x8] sm:$0xff]
  %v3309 = vld [vmem:[%s23 + $0x10] sm:$0xff]
  %v3310 = vld [vmem:[%s23 + $0x18] sm:$0xff]
  %v3311 = vld [vmem:[%s23 + $0x20] sm:$0xff]
  %v3312 = vld [vmem:[%s23 + $0x28] sm:$0xff]
  %v3313 = vld [vmem:[%s23 + $0x30] sm:$0xff]
  %v3314 = vld [vmem:[%s23 + $0x38] sm:$0xff]
  %v3315 = vld [vmem:[%s23 + $0x40] sm:$0xff]
  %3317 = vset.pattern.permute.xlu0 0
  %3318 = vperm.xlu0 %3317, %v3307
  %v3319 = vpop.permute.xlu0 %3318
  %3322 = vset.pattern.permute.xlu0 0
  %3323 = vperm.xlu0 %3322, %v3308
  %v3324 = vpop.permute.xlu0 %3323
  %3327 = vset.pattern.permute.xlu0 0
  %3328 = vperm.xlu0 %3327, %v3309
  %v3329 = vpop.permute.xlu0 %3328
  %3332 = vset.pattern.permute.xlu0 0
  %3333 = vperm.xlu0 %3332, %v3310
  %v3334 = vpop.permute.xlu0 %3333
  %3337 = vset.pattern.permute.xlu0 0
  %3338 = vperm.xlu0 %3337, %v3311
  %v3339 = vpop.permute.xlu0 %3338
  %3342 = vset.pattern.permute.xlu0 0
  %3343 = vperm.xlu0 %3342, %v3312
  %v3344 = vpop.permute.xlu0 %3343
  %3347 = vset.pattern.permute.xlu0 0
  %3348 = vperm.xlu0 %3347, %v3313
  %v3349 = vpop.permute.xlu0 %3348
  %3352 = vset.pattern.permute.xlu0 0
  %3353 = vperm.xlu0 %3352, %v3314
  %v3354 = vpop.permute.xlu0 %3353
  %3357 = vset.pattern.permute.xlu0 0
  %3358 = vperm.xlu0 %3357, %v3315
  %v3359 = vpop.permute.xlu0 %3358
  %v3361 = vmul.f32 %v3261, %v3319
  %v3362 = vmul.f32 %v3263, %v3319
  %v3363 = vmul.f32 %v3265, %v3324
  %v3364 = vmul.f32 %v3267, %v3324
  %v3365 = vmul.f32 %v3271, %v3329
  %v3366 = vmul.f32 %v3273, %v3329
  %v3367 = vmul.f32 %v3275, %v3334
  %v3368 = vmul.f32 %v3277, %v3334
  %v3369 = vmul.f32 %v3281, %v3339
  %v3370 = vmul.f32 %v3283, %v3339
  %v3371 = vmul.f32 %v3285, %v3344
  %v3372 = vmul.f32 %v3287, %v3344
  %v3373 = vmul.f32 %v3291, %v3349
  %v3374 = vmul.f32 %v3293, %v3349
  %v3375 = vmul.f32 %v3295, %v3354
  %v3376 = vmul.f32 %v3297, %v3354
  %v3377 = vmul.f32 %v3301, %v3359
  %v3378 = vmul.f32 %v3303, %v3359
  %v3379 = vadd.f32 %v3361, %v3363
  %v3380 = vadd.f32 %v3379, %v3365
  %v3381 = vadd.f32 %v3380, %v3367
  %v3382 = vadd.f32 %v3381, %v3369
  %v3383 = vadd.f32 %v3382, %v3371
  %v3384 = vadd.f32 %v3383, %v3373
  %v3385 = vadd.f32 %v3384, %v3375
  %v3386 = vadd.f32 %v3385, %v3377
  %v3387 = vrot.slane %v3386, 4
  %v3388 = vadd.f32 %v3386, %v3387
  %v3389 = vrot.slane %v3388, 2
  %v3390 = vadd.f32 %v3388, %v3389
  %v3391 = vrot.slane %v3390, 1
  %v3392 = vadd.f32 %v3390, %v3391
  %v3393 = vadd.f32 %v3362, %v3364
  %v3394 = vadd.f32 %v3393, %v3366
  %v3395 = vadd.f32 %v3394, %v3368
  %v3396 = vadd.f32 %v3395, %v3370
  %v3397 = vadd.f32 %v3396, %v3372
  %v3398 = vadd.f32 %v3397, %v3374
  %v3399 = vadd.f32 %v3398, %v3376
  %v3400 = vadd.f32 %v3399, %v3378
  %v3401 = vrot.slane %v3400, 4
  %v3402 = vadd.f32 %v3400, %v3401
  %v3403 = vrot.slane %v3402, 2
  %v3404 = vadd.f32 %v3402, %v3403
  %v3405 = vrot.slane %v3404, 1
  %v3406 = vadd.f32 %v3404, %v3405
  %v3407 = vmul.f32 %v3361, %v3361
  %v3408 = vmul.f32 %v3362, %v3362
  %v3409 = vmul.f32 %v3363, %v3363
  %v3410 = vmul.f32 %v3364, %v3364
  %v3411 = vmul.f32 %v3365, %v3365
  %v3412 = vmul.f32 %v3366, %v3366
  %v3413 = vmul.f32 %v3367, %v3367
  %v3414 = vmul.f32 %v3368, %v3368
  %v3415 = vmul.f32 %v3369, %v3369
  %v3416 = vmul.f32 %v3370, %v3370
  %v3417 = vmul.f32 %v3371, %v3371
  %v3418 = vmul.f32 %v3372, %v3372
  %v3419 = vmul.f32 %v3373, %v3373
  %v3420 = vmul.f32 %v3374, %v3374
  %v3421 = vmul.f32 %v3375, %v3375
  %v3422 = vmul.f32 %v3376, %v3376
  %v3423 = vmul.f32 %v3377, %v3377
  %v3424 = vmul.f32 %v3378, %v3378
  %v3425 = vadd.f32 %v3407, %v3409
  %v3426 = vadd.f32 %v3425, %v3411
  %v3427 = vadd.f32 %v3426, %v3413
  %v3428 = vadd.f32 %v3427, %v3415
  %v3429 = vadd.f32 %v3428, %v3417
  %v3430 = vadd.f32 %v3429, %v3419
  %v3431 = vadd.f32 %v3430, %v3421
  %v3432 = vadd.f32 %v3431, %v3423
  %v3433 = vrot.slane %v3432, 4
  %v3434 = vadd.f32 %v3432, %v3433
  %v3435 = vrot.slane %v3434, 2
  %v3436 = vadd.f32 %v3434, %v3435
  %v3437 = vrot.slane %v3436, 1
  %v3438 = vadd.f32 %v3436, %v3437
  %v3439 = vadd.f32 %v3408, %v3410
  %v3440 = vadd.f32 %v3439, %v3412
  %v3441 = vadd.f32 %v3440, %v3414
  %v3442 = vadd.f32 %v3441, %v3416
  %v3443 = vadd.f32 %v3442, %v3418
  %v3444 = vadd.f32 %v3443, %v3420
  %v3445 = vadd.f32 %v3444, %v3422
  %v3446 = vadd.f32 %v3445, %v3424
  %v3447 = vrot.slane %v3446, 4
  %v3448 = vadd.f32 %v3446, %v3447
  %v3449 = vrot.slane %v3448, 2
  %v3450 = vadd.f32 %v3448, %v3449
  %v3451 = vrot.slane %v3450, 1
  %v3452 = vadd.f32 %v3450, %v3451
  %vm3453 = vcmask 1040384
  %v3454 = vsel %vm3453, %v3392, %v3438
  %v3455 = vsel %vm3453, %v3406, %v3452
  %v3456 = vld [vmem:[%s19] sm:$0xff]
  %v3457 = vld [vmem:[%s19 + $0x8] sm:$0xff]
  %v3458 = vld [vmem:[%s19 + $0x10] sm:$0xff]
  %v3459 = vld [vmem:[%s19 + $0x18] sm:$0xff]
  %v3460 = vld [vmem:[%s19 + $0x20] sm:$0xff]
  %v3461 = vld [vmem:[%s19 + $0x28] sm:$0xff]
  %v3462 = vld [vmem:[%s19 + $0x30] sm:$0xff]
  %v3463 = vld [vmem:[%s19 + $0x38] sm:$0xff]
  %v3464 = vld [vmem:[%s19 + $0x40] sm:$0xff]
  %v3465 = vld [vmem:[%s19 + $0x48] sm:$0xff]
  %v3466 = vld [vmem:[%s19 + $0x50] sm:$0xff]
  %v3467 = vld [vmem:[%s19 + $0x58] sm:$0xff]
  %v3468 = vld [vmem:[%s19 + $0x60] sm:$0xff]
  %v3469 = vld [vmem:[%s19 + $0x68] sm:$0xff]
  %v3470 = vld [vmem:[%s19 + $0x70] sm:$0xff]
  %v3471 = vld [vmem:[%s19 + $0x78] sm:$0xff]
  %v3472 = vld [vmem:[%s19 + $0x80] sm:$0xff]
  %v3473 = vld [vmem:[%s19 + $0x88] sm:$0xff]
  %v3474 = vld [vmem:[%s19 + $0x90] sm:$0xff]
  %v3475 = vld [vmem:[%s19 + $0x98] sm:$0xff]
  %v3476 = vld [vmem:[%s19 + $0xa0] sm:$0xff]
  %v3477 = vld [vmem:[%s19 + $0xa8] sm:$0xff]
  %v3478 = vld [vmem:[%s19 + $0xb0] sm:$0xff]
  %v3479 = vld [vmem:[%s19 + $0xb8] sm:$0xff]
  %v3480 = vld [vmem:[%s19 + $0xc0] sm:$0xff]
  %v3481 = vld [vmem:[%s19 + $0xc8] sm:$0xff]
  %v3482 = vld [vmem:[%s19 + $0xd0] sm:$0xff]
  %v3483 = vld [vmem:[%s19 + $0xd8] sm:$0xff]
  %v3484 = vld [vmem:[%s19 + $0xe0] sm:$0xff]
  %v3485 = vld [vmem:[%s19 + $0xe8] sm:$0xff]
  %v3486 = vld [vmem:[%s19 + $0xf0] sm:$0xff]
  %v3487 = vld [vmem:[%s19 + $0xf8] sm:$0xff]
  %3488 = vmatprep.subr.mxu0 0.0
  %3489 = vmatpush1.msra.mxu0 %v3456
  %3490 = vmatprep.subr.mxu0 0.0
  %3491 = vmatpush1.msra.mxu0 %v3457
  %3492 = vmatprep.subr.mxu0 0.0
  %3493 = vmatpush1.msra.mxu0 %v3458
  %3494 = vmatprep.subr.mxu0 0.0
  %3495 = vmatpush1.msra.mxu0 %v3459
  %3496 = vmatprep.subr.mxu0 0.0
  %3497 = vmatpush1.msra.mxu0 %v3460
  %3498 = vmatprep.subr.mxu0 0.0
  %3499 = vmatpush1.msra.mxu0 %v3461
  %3500 = vmatprep.subr.mxu0 0.0
  %3501 = vmatpush1.msra.mxu0 %v3462
  %3502 = vmatprep.subr.mxu0 0.0
  %3503 = vmatpush1.msra.mxu0 %v3463
  %3504 = vmatprep.subr.mxu0 0.0
  %3505 = vmatpush1.msra.mxu0 %v3464
  %3506 = vmatprep.subr.mxu0 0.0
  %3507 = vmatpush1.msra.mxu0 %v3465
  %3508 = vmatprep.subr.mxu0 0.0
  %3509 = vmatpush1.msra.mxu0 %v3466
  %3510 = vmatprep.subr.mxu0 0.0
  %3511 = vmatpush1.msra.mxu0 %v3467
  %3512 = vmatprep.subr.mxu0 0.0
  %3513 = vmatpush1.msra.mxu0 %v3468
  %3514 = vmatprep.subr.mxu0 0.0
  %3515 = vmatpush1.msra.mxu0 %v3469
  %3516 = vmatprep.subr.mxu0 0.0
  %3517 = vmatpush1.msra.mxu0 %v3470
  %3518 = vmatprep.subr.mxu0 0.0
  %3519 = vmatpush1.msra.mxu0 %v3471
  %3520 = vmatprep.subr.mxu0 0.0
  %3521 = vmatpush1.msra.mxu0 %v3472
  %3522 = vmatprep.subr.mxu0 0.0
  %3523 = vmatpush1.msra.mxu0 %v3473
  %3524 = vmatprep.subr.mxu0 0.0
  %3525 = vmatpush1.msra.mxu0 %v3474
  %3526 = vmatprep.subr.mxu0 0.0
  %3527 = vmatpush1.msra.mxu0 %v3475
  %3528 = vmatprep.subr.mxu0 0.0
  %3529 = vmatpush1.msra.mxu0 %v3476
  %3530 = vmatprep.subr.mxu0 0.0
  %3531 = vmatpush1.msra.mxu0 %v3477
  %3532 = vmatprep.subr.mxu0 0.0
  %3533 = vmatpush1.msra.mxu0 %v3478
  %3534 = vmatprep.subr.mxu0 0.0
  %3535 = vmatpush1.msra.mxu0 %v3479
  %3536 = vmatprep.subr.mxu0 0.0
  %3537 = vmatpush1.msra.mxu0 %v3480
  %3538 = vmatprep.subr.mxu0 0.0
  %3539 = vmatpush1.msra.mxu0 %v3481
  %3540 = vmatprep.subr.mxu0 0.0
  %3541 = vmatpush1.msra.mxu0 %v3482
  %3542 = vmatprep.subr.mxu0 0.0
  %3543 = vmatpush1.msra.mxu0 %v3483
  %3544 = vmatprep.subr.mxu0 0.0
  %3545 = vmatpush1.msra.mxu0 %v3484
  %3546 = vmatprep.subr.mxu0 0.0
  %3547 = vmatpush1.msra.mxu0 %v3485
  %3548 = vmatprep.subr.mxu0 0.0
  %3549 = vmatpush1.msra.mxu0 %v3486
  %3550 = vmatprep.subr.mxu0 0.0
  %3551 = vmatpush1.msra.mxu0 %v3487
  %3552 = vmatprep.mubr.f32.mxu0 %v3455
  %3553 = vmatmul.mubr.f32.gmra.mrb[0].mxu0 %v3454
  %v3554 = vpop.f32.mrb[0].mxu0
  %v3555 = vadd.f32 0.0, %v3554
  %v3556 = vpop.f32.mrb[0].mxu0
  %3557 = vdwg.mxu0
  %v3558 = vmul.f32 %v3555, 0.0009765625
  %v3559 = vmul.f32 %v3558, %v3558
  %v3561 = vrot.slane %v3559, 7
  %v3563 = vsub.f32 %v3558, %v3561
  %v3564 = vld [vmem:[%s15] sm:$0x1]
  %v3565 = vadd.f32 %v3563, 1e-05
  %v3566 = vrsqrt.pop %v3565
  %v3569 = vunpack.c.l.s4 1966171168
  %v3570 = vunpack.c.0.s8 %v3569
  %v3571 = vlaneseq
  %v3572 = vshrl.u32 %v3571, 7
  %v3573 = vsub.s32 %v3570, %v3572
  %v3574 = vrot.slane %v3566, %v3573
  %v3575 = vcombine.high %v3574, %v3574
  %v3577 = vunpack.c.l.s4 1966171168
  %v3578 = vunpack.c.0.s8 %v3577
  %v3579 = vlaneseq
  %v3580 = vshrl.u32 %v3579, 7
  %v3581 = vsub.s32 %v3578, %v3580
  %v3582 = vrot.slane %v3575, %v3581
  %v3584 = vmul.f32 %v3564, %v3582
  %v3585 = vld [vmem:[%s17] sm:$0x1]
  %v3586 = vmul.f32 %v3558, %v3584
  %v3587 = vsub.f32 %v3585, %v3586
  %v3589 = vlaneseq
  %v3590 = vshrl.u32 %v3589, 7
  %v3591 = vsub.s32 0, %v3590
  %v3592 = vrot.slane %v3587, %v3591
  %v3594 = vsel %vm3453, %v3584, %v3592
  %v3595 = vld [vmem:[%s21] sm:$0xff]
  %v3596 = vld [vmem:[%s21 + $0x8] sm:$0xff]
  %v3597 = vld [vmem:[%s21 + $0x10] sm:$0xff]
  %v3598 = vld [vmem:[%s21 + $0x18] sm:$0xff]
  %vm3599 = vcmask 130048
  %v3601 = vsel %vm3599, %v3594, 0
  %3603 = vmatprep.subr.mxu0 %v3596
  %3604 = vmatpush1.msra.mxu0 %v3595
  %3605 = vmatprep.subr.mxu0 %v3598
  %3606 = vmatpush1.msra.mxu0 %v3597
  %3607 = vmatprep.subr.mxu0 0.0
  %3608 = vmatpush1.msra.mxu0 0.0
  %3609 = vmatprep.subr.mxu0 0.0
  %3610 = vmatpush1.msra.mxu0 0.0
  %3611 = vmatprep.subr.mxu0 0.0
  %3612 = vmatpush1.msra.mxu0 0.0
  %3613 = vmatprep.subr.mxu0 0.0
  %3614 = vmatpush1.msra.mxu0 0.0
  %3615 = vmatprep.subr.mxu0 0.0
  %3616 = vmatpush1.msra.mxu0 0.0
  %3617 = vmatprep.subr.mxu0 0.0
  %3618 = vmatpush1.msra.mxu0 0.0
  %3619 = vmatprep.subr.mxu0 0.0
  %3620 = vmatpush1.msra.mxu0 0.0
  %3621 = vmatprep.subr.mxu0 0.0
  %3622 = vmatpush1.msra.mxu0 0.0
  %3623 = vmatprep.subr.mxu0 0.0
  %3624 = vmatpush1.msra.mxu0 0.0
  %3625 = vmatprep.subr.mxu0 0.0
  %3626 = vmatpush1.msra.mxu0 0.0
  %3627 = vmatprep.subr.mxu0 0.0
  %3628 = vmatpush1.msra.mxu0 0.0
  %3629 = vmatprep.subr.mxu0 0.0
  %3630 = vmatpush1.msra.mxu0 0.0
  %3631 = vmatprep.subr.mxu0 0.0
  %3632 = vmatpush1.msra.mxu0 0.0
  %3633 = vmatprep.subr.mxu0 0.0
  %3634 = vmatpush1.msra.mxu0 0.0
  %3635 = vmatprep.subr.mxu0 0.0
  %3636 = vmatpush1.msra.mxu0 0.0
  %3637 = vmatprep.subr.mxu0 0.0
  %3638 = vmatpush1.msra.mxu0 0.0
  %3639 = vmatprep.subr.mxu0 0.0
  %3640 = vmatpush1.msra.mxu0 0.0
  %3641 = vmatprep.subr.mxu0 0.0
  %3642 = vmatpush1.msra.mxu0 0.0
  %3643 = vmatprep.subr.mxu0 0.0
  %3644 = vmatpush1.msra.mxu0 0.0
  %3645 = vmatprep.subr.mxu0 0.0
  %3646 = vmatpush1.msra.mxu0 0.0
  %3647 = vmatprep.subr.mxu0 0.0
  %3648 = vmatpush1.msra.mxu0 0.0
  %3649 = vmatprep.subr.mxu0 0.0
  %3650 = vmatpush1.msra.mxu0 0.0
  %3651 = vmatprep.subr.mxu0 0.0
  %3652 = vmatpush1.msra.mxu0 0.0
  %3653 = vmatprep.subr.mxu0 0.0
  %3654 = vmatpush1.msra.mxu0 0.0
  %3655 = vmatprep.subr.mxu0 0.0
  %3656 = vmatpush1.msra.mxu0 0.0
  %3657 = vmatprep.subr.mxu0 0.0
  %3658 = vmatpush1.msra.mxu0 0.0
  %3659 = vmatprep.subr.mxu0 0.0
  %3660 = vmatpush1.msra.mxu0 0.0
  %3661 = vmatprep.subr.mxu0 0.0
  %3662 = vmatpush1.msra.mxu0 0.0
  %3663 = vmatprep.subr.mxu0 0.0
  %3664 = vmatpush1.msra.mxu0 0.0
  %3665 = vmatprep.subr.mxu0 0.0
  %3666 = vmatpush1.msra.mxu0 0.0
  %3667 = vmatprep.mubr.f32.mxu0 0.0
  %3668 = vmatmul.mubr.f32.gmra.mrb[0].mxu0 %v3601
  %v3669 = vpop.f32.mrb[0].mxu0
  %v3670 = vadd.f32 0.0, %v3669
  %v3671 = vpop.f32.mrb[0].mxu0
  %v3672 = vadd.f32 0.0, %v3671
  %3673 = vdwg.mxu0
  %v3674 = vlaneseq
  %v3675 = vshrl.u32 %v3674, 7
  %v3676 = vsub.s32 0, %v3675
  %v3677 = vrot.slane %v3670, %v3676
  %v3678 = vlaneseq
  %v3679 = vshrl.u32 %v3678, 7
  %v3680 = vsub.s32 0, %v3679
  %v3681 = vrot.slane %v3672, %v3680
  %v3682 = vmul.f32 %v3261, %v3677
  %v3683 = vmul.f32 %v3263, %v3681
  %v3684 = vmul.f32 %v3265, %v3677
  %v3685 = vmul.f32 %v3267, %v3681
  %v3686 = vmul.f32 %v3271, %v3677
  %v3687 = vmul.f32 %v3273, %v3681
  %v3688 = vmul.f32 %v3275, %v3677
  %v3689 = vmul.f32 %v3277, %v3681
  %v3690 = vmul.f32 %v3281, %v3677
  %v3691 = vmul.f32 %v3283, %v3681
  %v3692 = vmul.f32 %v3285, %v3677
  %v3693 = vmul.f32 %v3287, %v3681
  %v3694 = vmul.f32 %v3291, %v3677
  %v3695 = vmul.f32 %v3293, %v3681
  %v3696 = vmul.f32 %v3295, %v3677
  %v3697 = vmul.f32 %v3297, %v3681
  %v3698 = vmul.f32 %v3301, %v3677
  %v3699 = vmul.f32 %v3303, %v3681
  %v3700 = vlaneseq
  %v3701 = vshrl.u32 %v3700, 7
  %v3702 = vsub.s32 1, %v3701
  %v3703 = vrot.slane %v3670, %v3702
  %v3704 = vlaneseq
  %v3705 = vshrl.u32 %v3704, 7
  %v3706 = vsub.s32 1, %v3705
  %v3707 = vrot.slane %v3672, %v3706
  %v3708 = vadd.f32 %v3682, %v3703
  %v3709 = vadd.f32 %v3683, %v3707
  %v3710 = vadd.f32 %v3684, %v3703
  %v3711 = vadd.f32 %v3685, %v3707
  %v3712 = vadd.f32 %v3686, %v3703
  %v3713 = vadd.f32 %v3687, %v3707
  %v3714 = vadd.f32 %v3688, %v3703
  %v3715 = vadd.f32 %v3689, %v3707
  %v3716 = vadd.f32 %v3690, %v3703
  %v3717 = vadd.f32 %v3691, %v3707
  %v3718 = vadd.f32 %v3692, %v3703
  %v3719 = vadd.f32 %v3693, %v3707
  %v3720 = vadd.f32 %v3694, %v3703
  %v3721 = vadd.f32 %v3695, %v3707
  %v3722 = vadd.f32 %v3696, %v3703
  %v3723 = vadd.f32 %v3697, %v3707
  %v3724 = vadd.f32 %v3698, %v3703
  %v3725 = vadd.f32 %v3699, %v3707
  %v3726 = vmul.f32 %v3708, 0.2
  %v3727 = vmul.f32 %v3709, 0.2
  %v3728 = vmul.f32 %v3710, 0.2
  %v3729 = vmul.f32 %v3711, 0.2
  %v3730 = vmul.f32 %v3712, 0.2
  %v3731 = vmul.f32 %v3713, 0.2
  %v3732 = vmul.f32 %v3714, 0.2
  %v3733 = vmul.f32 %v3715, 0.2
  %v3734 = vmul.f32 %v3716, 0.2
  %v3735 = vmul.f32 %v3717, 0.2
  %v3736 = vmul.f32 %v3718, 0.2
  %v3737 = vmul.f32 %v3719, 0.2
  %v3738 = vmul.f32 %v3720, 0.2
  %v3739 = vmul.f32 %v3721, 0.2
  %v3740 = vmul.f32 %v3722, 0.2
  %v3741 = vmul.f32 %v3723, 0.2
  %v3742 = vmul.f32 %v3724, 0.2
  %v3743 = vmul.f32 %v3725, 0.2
  %v3744 = vmax.f32 %v3708, %v3726
  %v3745 = vmax.f32 %v3709, %v3727
  %v3746 = vmax.f32 %v3710, %v3728
  %v3747 = vmax.f32 %v3711, %v3729
  %v3748 = vmax.f32 %v3712, %v3730
  %v3749 = vmax.f32 %v3713, %v3731
  %v3750 = vmax.f32 %v3714, %v3732
  %v3751 = vmax.f32 %v3715, %v3733
  %v3752 = vmax.f32 %v3716, %v3734
  %v3753 = vmax.f32 %v3717, %v3735
  %v3754 = vmax.f32 %v3718, %v3736
  %v3755 = vmax.f32 %v3719, %v3737
  %v3756 = vmax.f32 %v3720, %v3738
  %v3757 = vmax.f32 %v3721, %v3739
  %v3758 = vmax.f32 %v3722, %v3740
  %v3759 = vmax.f32 %v3723, %v3741
  %v3760 = vmax.f32 %v3724, %v3742
  %v3761 = vmax.f32 %v3725, %v3743
  %v3762 = vpack.c.bf16 %v3746, %v3744
  %v3763 = vpack.c.bf16 %v3747, %v3745
  %v3764 = vpack.c.bf16 %v3750, %v3748
  %v3765 = vpack.c.bf16 %v3751, %v3749
  %v3766 = vpack.c.bf16 %v3754, %v3752
  %v3767 = vpack.c.bf16 %v3755, %v3753
  %v3768 = vpack.c.bf16 %v3758, %v3756
  %v3769 = vpack.c.bf16 %v3759, %v3757
  %v3770 = vpack.c.bf16 %v3760, %v3760
  %v3771 = vpack.c.bf16 %v3761, %v3761
  %v3772 = vld [vmem:[%s25] sm:$0xf]
  %v3773 = vld [vmem:[%s25 + $0x4] sm:$0xf]
  %v3774 = vld [vmem:[%s25 + $0x8] sm:$0xf]
  %v3775 = vld [vmem:[%s25 + $0xc] sm:$0xf]
  %v3776 = vld [vmem:[%s25 + $0x10] sm:$0xf]
  %v3777 = vld [vmem:[%s25 + $0x14] sm:$0xf]
  %v3784 = vunpack.c.l.b16 %v3772
  %v3785 = vunpack.c.l.b16 %v3773
  %v3786 = vunpack.c.l.b16 %v3774
  %v3787 = vunpack.c.l.b16 %v3775
  %v3788 = vunpack.c.l.b16 %v3776
  %v3789 = vunpack.c.l.b16 %v3777
  %v3790 = vpack.c.b16 %v3785, %v3784
  %v3791 = vpack.c.b16 %v3787, %v3786
  %v3792 = vpack.c.b16 %v3789, %v3788
  %vm3793 = vcmask 588800
  %v3795 = vsel %vm3793, %v3790, 0
  %v3798 = vsel %vm3793, %v3791, 0
  %v3801 = vsel %vm3793, %v3792, 0
  %v3804 = vsel %vm1776, %v3770, 0
  %v3807 = vsel %vm1776, %v3771, 0
  %3809 = vmatprep.subr.bf16.mxu0 %v3763
  %3810 = vmatpush1.bf16.msra.mxu0 %v3762
  %3811 = vmatprep.subr.bf16.mxu0 %v3765
  %3812 = vmatpush1.bf16.msra.mxu0 %v3764
  %3813 = vmatprep.subr.bf16.mxu0 %v3767
  %3814 = vmatpush1.bf16.msra.mxu0 %v3766
  %3815 = vmatprep.subr.bf16.mxu0 %v3769
  %3816 = vmatpush1.bf16.msra.mxu0 %v3768
  %3817 = vmatprep.subr.bf16.mxu0 %v3807
  %3818 = vmatpush1.bf16.msra.mxu0 %v3804
  %3819 = vmatprep.subr.bf16.mxu0 0
  %3820 = vmatpush1.bf16.msra.mxu0 0
  %3821 = vmatprep.subr.bf16.mxu0 0
  %3822 = vmatpush1.bf16.msra.mxu0 0
  %3823 = vmatprep.subr.bf16.mxu0 0
  %3824 = vmatpush1.bf16.msra.mxu0 0
  %3825 = vmatprep.subr.bf16.mxu0 0
  %3826 = vmatpush1.bf16.msra.mxu0 0
  %3827 = vmatprep.subr.bf16.mxu0 0
  %3828 = vmatpush1.bf16.msra.mxu0 0
  %3829 = vmatprep.subr.bf16.mxu0 0
  %3830 = vmatpush1.bf16.msra.mxu0 0
  %3831 = vmatprep.subr.bf16.mxu0 0
  %3832 = vmatpush1.bf16.msra.mxu0 0
  %3833 = vmatprep.subr.bf16.mxu0 0
  %3834 = vmatpush1.bf16.msra.mxu0 0
  %3835 = vmatprep.subr.bf16.mxu0 0
  %3836 = vmatpush1.bf16.msra.mxu0 0
  %3837 = vmatprep.subr.bf16.mxu0 0
  %3838 = vmatpush1.bf16.msra.mxu0 0
  %3839 = vmatprep.subr.bf16.mxu0 0
  %3840 = vmatpush1.bf16.msra.mxu0 0
  %3841 = vmatprep.mubr.bf16.mxu0 0
  %3842 = vmatmul.mubr.bf16.gmra.mrb[0].mxu0 %v3795
  %v3843 = vpop.f32.mrb[0].mxu0
  %v3844 = vadd.f32 0.0, %v3843
  %v3845 = vpop.f32.mrb[0].mxu0
  %v3846 = vadd.f32 0.0, %v3845
  %v3847 = vpop.f32.mrb[0].mxu0
  %v3848 = vadd.f32 0.0, %v3847
  %v3849 = vpop.f32.mrb[0].mxu0
  %v3850 = vadd.f32 0.0, %v3849
  %3851 = vmatprep.mubr.bf16.mxu0 0
  %3852 = vmatmul.mubr.bf16.gmra.mrb[0].mxu0 %v3798
  %v3853 = vpop.f32.mrb[0].mxu0
  %v3854 = vadd.f32 0.0, %v3853
  %v3855 = vpop.f32.mrb[0].mxu0
  %v3856 = vadd.f32 0.0, %v3855
  %v3857 = vpop.f32.mrb[0].mxu0
  %v3858 = vadd.f32 0.0, %v3857
  %v3859 = vpop.f32.mrb[0].mxu0
  %v3860 = vadd.f32 0.0, %v3859
  %3861 = vmatprep.mubr.bf16.mxu0 0
  %3862 = vmatmul.mubr.bf16.gmra.mrb[0].mxu0 %v3801
  %v3863 = vpop.f32.mrb[0].mxu0
  %v3864 = vadd.f32 0.0, %v3863
  %v3865 = vpop.f32.mrb[0].mxu0
  %v3866 = vadd.f32 0.0, %v3865
  %v3867 = vpop.f32.mrb[0].mxu0
  %v3868 = vadd.f32 0.0, %v3867
  %v3869 = vpop.f32.mrb[0].mxu0
  %v3870 = vadd.f32 0.0, %v3869
  %3871 = vdwg.mxu0
  %v3872 = vld [vmem:[%s27] sm:$0xf]
  %v3873 = vld [vmem:[%s27 + $0x4] sm:$0xf]
  %v3874 = vld [vmem:[%s27 + $0x8] sm:$0xf]
  %v3875 = vld [vmem:[%s27 + $0xc] sm:$0xf]
  %v3876 = vld [vmem:[%s27 + $0x10] sm:$0xf]
  %v3877 = vld [vmem:[%s27 + $0x14] sm:$0xf]
  %v3884 = vunpack.c.l.b16 %v3872
  %v3885 = vunpack.c.l.b16 %v3873
  %v3886 = vunpack.c.l.b16 %v3874
  %v3887 = vunpack.c.l.b16 %v3875
  %v3888 = vunpack.c.l.b16 %v3876
  %v3889 = vunpack.c.l.b16 %v3877
  %v3890 = vpack.c.b16 %v3885, %v3884
  %v3891 = vpack.c.b16 %v3887, %v3886
  %v3892 = vpack.c.b16 %v3889, %v3888
  %v3894 = vsel %vm3793, %v3890, 0
  %v3897 = vsel %vm3793, %v3891, 0
  %v3900 = vsel %vm3793, %v3892, 0
  %3902 = vmatprep.subr.bf16.mxu0 %v3763
  %3903 = vmatpush1.bf16.msra.mxu0 %v3762
  %3904 = vmatprep.subr.bf16.mxu0 %v3765
  %3905 = vmatpush1.bf16.msra.mxu0 %v3764
  %3906 = vmatprep.subr.bf16.mxu0 %v3767
  %3907 = vmatpush1.bf16.msra.mxu0 %v3766
  %3908 = vmatprep.subr.bf16.mxu0 %v3769
  %3909 = vmatpush1.bf16.msra.mxu0 %v3768
  %3910 = vmatprep.subr.bf16.mxu0 %v3807
  %3911 = vmatpush1.bf16.msra.mxu0 %v3804
  %3912 = vmatprep.subr.bf16.mxu0 0
  %3913 = vmatpush1.bf16.msra.mxu0 0
  %3914 = vmatprep.subr.bf16.mxu0 0
  %3915 = vmatpush1.bf16.msra.mxu0 0
  %3916 = vmatprep.subr.bf16.mxu0 0
  %3917 = vmatpush1.bf16.msra.mxu0 0
  %3918 = vmatprep.subr.bf16.mxu0 0
  %3919 = vmatpush1.bf16.msra.mxu0 0
  %3920 = vmatprep.subr.bf16.mxu0 0
  %3921 = vmatpush1.bf16.msra.mxu0 0
  %3922 = vmatprep.subr.bf16.mxu0 0
  %3923 = vmatpush1.bf16.msra.mxu0 0
  %3924 = vmatprep.subr.bf16.mxu0 0
  %3925 = vmatpush1.bf16.msra.mxu0 0
  %3926 = vmatprep.subr.bf16.mxu0 0
  %3927 = vmatpush1.bf16.msra.mxu0 0
  %3928 = vmatprep.subr.bf16.mxu0 0
  %3929 = vmatpush1.bf16.msra.mxu0 0
  %3930 = vmatprep.subr.bf16.mxu0 0
  %3931 = vmatpush1.bf16.msra.mxu0 0
  %3932 = vmatprep.subr.bf16.mxu0 0
  %3933 = vmatpush1.bf16.msra.mxu0 0
  %3934 = vmatprep.mubr.bf16.mxu0 0
  %3935 = vmatmul.mubr.bf16.gmra.mrb[0].mxu0 %v3894
  %v3936 = vpop.f32.mrb[0].mxu0
  %v3937 = vadd.f32 0.0, %v3936
  %v3938 = vpop.f32.mrb[0].mxu0
  %v3939 = vadd.f32 0.0, %v3938
  %v3940 = vpop.f32.mrb[0].mxu0
  %v3941 = vadd.f32 0.0, %v3940
  %v3942 = vpop.f32.mrb[0].mxu0
  %v3943 = vadd.f32 0.0, %v3942
  %3944 = vmatprep.mubr.bf16.mxu0 0
  %3945 = vmatmul.mubr.bf16.gmra.mrb[0].mxu0 %v3897
  %v3946 = vpop.f32.mrb[0].mxu0
  %v3947 = vadd.f32 0.0, %v3946
  %v3948 = vpop.f32.mrb[0].mxu0
  %v3949 = vadd.f32 0.0, %v3948
  %v3950 = vpop.f32.mrb[0].mxu0
  %v3951 = vadd.f32 0.0, %v3950
  %v3952 = vpop.f32.mrb[0].mxu0
  %v3953 = vadd.f32 0.0, %v3952
  %3954 = vmatprep.mubr.bf16.mxu0 0
  %3955 = vmatmul.mubr.bf16.gmra.mrb[0].mxu0 %v3900
  %v3956 = vpop.f32.mrb[0].mxu0
  %v3957 = vadd.f32 0.0, %v3956
  %v3958 = vpop.f32.mrb[0].mxu0
  %v3959 = vadd.f32 0.0, %v3958
  %v3960 = vpop.f32.mrb[0].mxu0
  %v3961 = vadd.f32 0.0, %v3960
  %v3962 = vpop.f32.mrb[0].mxu0
  %v3963 = vadd.f32 0.0, %v3962
  %3964 = vdwg.mxu0
  %v3965 = vpack.c.bf16 %v3848, %v3844
  %v3966 = vpack.c.bf16 %v3850, %v3846
  %v3967 = vpack.c.bf16 %v3941, %v3937
  %v3968 = vpack.c.bf16 %v3943, %v3939
  %v3969 = vpack.c.bf16 %v3858, %v3854
  %v3970 = vpack.c.bf16 %v3860, %v3856
  %v3971 = vpack.c.bf16 %v3951, %v3947
  %v3972 = vpack.c.bf16 %v3953, %v3949
  %v3973 = vpack.c.bf16 %v3868, %v3864
  %v3974 = vpack.c.bf16 %v3870, %v3866
  %v3975 = vpack.c.bf16 %v3961, %v3957
  %v3976 = vpack.c.bf16 %v3963, %v3959
  %v3977 = vld [vmem:[%s29] sm:$0xff]
  %v3978 = vld [vmem:[%s29 + $0x8] sm:$0xff]
  %v3979 = vld [vmem:[%s29 + $0x10] sm:$0xff]
  %v3980 = vld [vmem:[%s29 + $0x18] sm:$0xff]
  %v3981 = vld [vmem:[%s29 + $0x20] sm:$0xff]
  %v3982 = vld [vmem:[%s29 + $0x28] sm:$0xff]
  %v3983 = vld [vmem:[%s29 + $0x30] sm:$0xff]
  %v3984 = vld [vmem:[%s29 + $0x38] sm:$0xff]
  %v3985 = vld [vmem:[%s29 + $0x40] sm:$0xff]
  %v3986 = vld [vmem:[%s29 + $0x48] sm:$0xff]
  %v3987 = vld [vmem:[%s29 + $0x50] sm:$0xff]
  %v3988 = vld [vmem:[%s29 + $0x58] sm:$0xff]
  %v3989 = vld [vmem:[%s29 + $0x60] sm:$0xff]
  %v3990 = vld [vmem:[%s29 + $0x68] sm:$0xff]
  %v3991 = vld [vmem:[%s29 + $0x70] sm:$0xff]
  %v3992 = vld [vmem:[%s29 + $0x78] sm:$0xff]
  %v3993 = vld [vmem:[%s29 + $0x80] sm:$0xff]
  %v3994 = vld [vmem:[%s29 + $0x88] sm:$0xff]
  %v3995 = vld [vmem:[%s29 + $0x90] sm:$0xff]
  %v3996 = vld [vmem:[%s29 + $0x98] sm:$0xff]
  %v3997 = vld [vmem:[%s29 + $0xa0] sm:$0xff]
  %v3998 = vld [vmem:[%s29 + $0xa8] sm:$0xff]
  %v3999 = vld [vmem:[%s29 + $0xb0] sm:$0xff]
  %v4000 = vld [vmem:[%s29 + $0xb8] sm:$0xff]
  %v4001 = vld [vmem:[%s29 + $0xc0] sm:$0xff]
  %v4002 = vld [vmem:[%s29 + $0xc8] sm:$0xff]
  %v4003 = vld [vmem:[%s29 + $0xd0] sm:$0xff]
  %v4004 = vld [vmem:[%s29 + $0xd8] sm:$0xff]
  %v4005 = vld [vmem:[%s29 + $0xe0] sm:$0xff]
  %v4006 = vld [vmem:[%s29 + $0xe8] sm:$0xff]
  %v4007 = vld [vmem:[%s29 + $0xf0] sm:$0xff]
  %v4008 = vld [vmem:[%s29 + $0xf8] sm:$0xff]
  %v4009 = vld [vmem:[%s29 + $0x100] sm:$0xff]
  %v4010 = vld [vmem:[%s29 + $0x108] sm:$0xff]
  %v4011 = vld [vmem:[%s29 + $0x110] sm:$0xff]
  %v4012 = vld [vmem:[%s29 + $0x118] sm:$0xff]
  %v4013 = vld [vmem:[%s29 + $0x120] sm:$0xff]
  %v4014 = vld [vmem:[%s29 + $0x128] sm:$0xff]
  %v4015 = vld [vmem:[%s29 + $0x130] sm:$0xff]
  %v4016 = vld [vmem:[%s29 + $0x138] sm:$0xff]
  %v4017 = vld [vmem:[%s29 + $0x140] sm:$0xff]
  %v4018 = vld [vmem:[%s29 + $0x148] sm:$0xff]
  %v4019 = vld [vmem:[%s29 + $0x150] sm:$0xff]
  %v4020 = vld [vmem:[%s29 + $0x158] sm:$0xff]
  %v4021 = vld [vmem:[%s29 + $0x160] sm:$0xff]
  %v4022 = vld [vmem:[%s29 + $0x168] sm:$0xff]
  %v4023 = vld [vmem:[%s29 + $0x170] sm:$0xff]
  %v4024 = vld [vmem:[%s29 + $0x178] sm:$0xff]
  %v4025 = vld [vmem:[%s29 + $0x180] sm:$0xff]
  %v4026 = vld [vmem:[%s29 + $0x188] sm:$0xff]
  %v4027 = vld [vmem:[%s29 + $0x190] sm:$0xff]
  %v4028 = vld [vmem:[%s29 + $0x198] sm:$0xff]
  %v4029 = vld [vmem:[%s29 + $0x1a0] sm:$0xff]
  %v4030 = vld [vmem:[%s29 + $0x1a8] sm:$0xff]
  %v4031 = vld [vmem:[%s29 + $0x1b0] sm:$0xff]
  %v4032 = vld [vmem:[%s29 + $0x1b8] sm:$0xff]
  %v4033 = vld [vmem:[%s29 + $0x1c0] sm:$0xff]
  %v4034 = vld [vmem:[%s29 + $0x1c8] sm:$0xff]
  %v4035 = vld [vmem:[%s29 + $0x1d0] sm:$0xff]
  %v4036 = vld [vmem:[%s29 + $0x1d8] sm:$0xff]
  %v4037 = vld [vmem:[%s29 + $0x1e0] sm:$0xff]
  %v4038 = vld [vmem:[%s29 + $0x1e8] sm:$0xff]
  %v4039 = vld [vmem:[%s29 + $0x1f0] sm:$0xff]
  %v4040 = vld [vmem:[%s29 + $0x1f8] sm:$0xff]
  %v4041 = vld [vmem:[%s31] sm:$0xff]
  %v4042 = vld [vmem:[%s31 + $0x8] sm:$0xff]
  %v4043 = vld [vmem:[%s31 + $0x10] sm:$0xff]
  %v4044 = vld [vmem:[%s31 + $0x18] sm:$0xff]
  %v4045 = vld [vmem:[%s31 + $0x20] sm:$0xff]
  %v4046 = vld [vmem:[%s31 + $0x28] sm:$0xff]
  %v4047 = vld [vmem:[%s31 + $0x30] sm:$0xff]
  %v4048 = vld [vmem:[%s31 + $0x38] sm:$0xff]
  %v4049 = vld [vmem:[%s31 + $0x40] sm:$0xff]
  %v4050 = vld [vmem:[%s31 + $0x48] sm:$0xff]
  %v4051 = vld [vmem:[%s31 + $0x50] sm:$0xff]
  %v4052 = vld [vmem:[%s31 + $0x58] sm:$0xff]
  %v4053 = vld [vmem:[%s31 + $0x60] sm:$0xff]
  %v4054 = vld [vmem:[%s31 + $0x68] sm:$0xff]
  %v4055 = vld [vmem:[%s31 + $0x70] sm:$0xff]
  %v4056 = vld [vmem:[%s31 + $0x78] sm:$0xff]
  %v4057 = vld [vmem:[%s31 + $0x80] sm:$0xff]
  %v4058 = vld [vmem:[%s31 + $0x88] sm:$0xff]
  %v4059 = vld [vmem:[%s31 + $0x90] sm:$0xff]
  %v4060 = vld [vmem:[%s31 + $0x98] sm:$0xff]
  %v4061 = vld [vmem:[%s31 + $0xa0] sm:$0xff]
  %v4062 = vld [vmem:[%s31 + $0xa8] sm:$0xff]
  %v4063 = vld [vmem:[%s31 + $0xb0] sm:$0xff]
  %v4064 = vld [vmem:[%s31 + $0xb8] sm:$0xff]
  %v4065 = vld [vmem:[%s31 + $0xc0] sm:$0xff]
  %v4066 = vld [vmem:[%s31 + $0xc8] sm:$0xff]
  %v4067 = vld [vmem:[%s31 + $0xd0] sm:$0xff]
  %v4068 = vld [vmem:[%s31 + $0xd8] sm:$0xff]
  %v4069 = vld [vmem:[%s31 + $0xe0] sm:$0xff]
  %v4070 = vld [vmem:[%s31 + $0xe8] sm:$0xff]
  %v4071 = vld [vmem:[%s31 + $0xf0] sm:$0xff]
  %v4072 = vld [vmem:[%s31 + $0xf8] sm:$0xff]
  %v4073 = vld [vmem:[%s31 + $0x100] sm:$0xff]
  %v4074 = vld [vmem:[%s31 + $0x108] sm:$0xff]
  %v4075 = vld [vmem:[%s31 + $0x110] sm:$0xff]
  %v4076 = vld [vmem:[%s31 + $0x118] sm:$0xff]
  %v4077 = vld [vmem:[%s31 + $0x120] sm:$0xff]
  %v4078 = vld [vmem:[%s31 + $0x128] sm:$0xff]
  %v4079 = vld [vmem:[%s31 + $0x130] sm:$0xff]
  %v4080 = vld [vmem:[%s31 + $0x138] sm:$0xff]
  %v4081 = vld [vmem:[%s31 + $0x140] sm:$0xff]
  %v4082 = vld [vmem:[%s31 + $0x148] sm:$0xff]
  %v4083 = vld [vmem:[%s31 + $0x150] sm:$0xff]
  %v4084 = vld [vmem:[%s31 + $0x158] sm:$0xff]
  %v4085 = vld [vmem:[%s31 + $0x160] sm:$0xff]
  %v4086 = vld [vmem:[%s31 + $0x168] sm:$0xff]
  %v4087 = vld [vmem:[%s31 + $0x170] sm:$0xff]
  %v4088 = vld [vmem:[%s31 + $0x178] sm:$0xff]
  %v4089 = vld [vmem:[%s31 + $0x180] sm:$0xff]
  %v4090 = vld [vmem:[%s31 + $0x188] sm:$0xff]
  %v4091 = vld [vmem:[%s31 + $0x190] sm:$0xff]
  %v4092 = vld [vmem:[%s31 + $0x198] sm:$0xff]
  %v4093 = vld [vmem:[%s31 + $0x1a0] sm:$0xff]
  %v4094 = vld [vmem:[%s31 + $0x1a8] sm:$0xff]
  %v4095 = vld [vmem:[%s31 + $0x1b0] sm:$0xff]
  %v4096 = vld [vmem:[%s31 + $0x1b8] sm:$0xff]
  %v4097 = vld [vmem:[%s31 + $0x1c0] sm:$0xff]
  %v4098 = vld [vmem:[%s31 + $0x1c8] sm:$0xff]
  %v4099 = vld [vmem:[%s31 + $0x1d0] sm:$0xff]
  %v4100 = vld [vmem:[%s31 + $0x1d8] sm:$0xff]
  %v4101 = vld [vmem:[%s31 + $0x1e0] sm:$0xff]
  %v4102 = vld [vmem:[%s31 + $0x1e8] sm:$0xff]
  %v4103 = vld [vmem:[%s31 + $0x1f0] sm:$0xff]
  %v4104 = vld [vmem:[%s31 + $0x1f8] sm:$0xff]
  %v4106 = vshrl.u32 %v3965, 16
  %v4108 = vshll.u32 %v3965, 16
  %v4110 = vrot.slane %v4108, 1
  %v4111 = vor.u32 %v4106, %v4110
  %v4113 = vshll.u32 %v3969, 16
  %v4115 = vrot.slane %v4113, 1
  %v4116 = vsel %vm384, %v4111, %v4115
  %v4118 = vshrl.u32 %v3966, 16
  %v4120 = vshll.u32 %v3966, 16
  %v4122 = vrot.slane %v4120, 1
  %v4123 = vor.u32 %v4118, %v4122
  %v4125 = vshll.u32 %v3970, 16
  %v4127 = vrot.slane %v4125, 1
  %v4128 = vsel %vm384, %v4123, %v4127
  %v4130 = vshrl.u32 %v3967, 16
  %v4132 = vshll.u32 %v3967, 16
  %v4134 = vrot.slane %v4132, 1
  %v4135 = vor.u32 %v4130, %v4134
  %v4137 = vshll.u32 %v3971, 16
  %v4139 = vrot.slane %v4137, 1
  %v4140 = vsel %vm384, %v4135, %v4139
  %v4142 = vshrl.u32 %v3968, 16
  %v4144 = vshll.u32 %v3968, 16
  %v4146 = vrot.slane %v4144, 1
  %v4147 = vor.u32 %v4142, %v4146
  %v4149 = vshll.u32 %v3972, 16
  %v4151 = vrot.slane %v4149, 1
  %v4152 = vsel %vm384, %v4147, %v4151
  %v4153 = vshrl.u32 %v3969, 16
  %v4155 = vor.u32 %v4153, %v4115
  %v4157 = vshll.u32 %v3973, 16
  %v4159 = vrot.slane %v4157, 1
  %v4160 = vsel %vm384, %v4155, %v4159
  %v4161 = vshrl.u32 %v3970, 16
  %v4163 = vor.u32 %v4161, %v4127
  %v4165 = vshll.u32 %v3974, 16
  %v4167 = vrot.slane %v4165, 1
  %v4168 = vsel %vm384, %v4163, %v4167
  %v4169 = vshrl.u32 %v3971, 16
  %v4171 = vor.u32 %v4169, %v4139
  %v4173 = vshll.u32 %v3975, 16
  %v4175 = vrot.slane %v4173, 1
  %v4176 = vsel %vm384, %v4171, %v4175
  %v4177 = vshrl.u32 %v3972, 16
  %v4179 = vor.u32 %v4177, %v4151
  %v4181 = vshll.u32 %v3976, 16
  %v4183 = vrot.slane %v4181, 1
  %v4184 = vsel %vm384, %v4179, %v4183
  %v4185 = vshrl.u32 %v3973, 16
  %v4187 = vor.u32 %v4185, %v4159
  %v4188 = vshrl.u32 %v3974, 16
  %v4190 = vor.u32 %v4188, %v4167
  %v4191 = vshrl.u32 %v3975, 16
  %v4193 = vor.u32 %v4191, %v4175
  %v4194 = vshrl.u32 %v3976, 16
  %v4196 = vor.u32 %v4194, %v4183
  %v4273 = vunpack.c.l.b16 %v4041
  %v4274 = vunpack.c.h.b16 %v4041
  %v4275 = vunpack.c.l.b16 %v4042
  %v4276 = vunpack.c.h.b16 %v4042
  %v4277 = vunpack.c.l.b16 %v4043
  %v4278 = vunpack.c.h.b16 %v4043
  %v4279 = vunpack.c.l.b16 %v4044
  %v4280 = vunpack.c.h.b16 %v4044
  %v4281 = vunpack.c.l.b16 %v4045
  %v4282 = vunpack.c.h.b16 %v4045
  %v4283 = vunpack.c.l.b16 %v4046
  %v4284 = vunpack.c.h.b16 %v4046
  %v4285 = vunpack.c.l.b16 %v4047
  %v4286 = vunpack.c.h.b16 %v4047
  %v4287 = vunpack.c.l.b16 %v4048
  %v4288 = vunpack.c.h.b16 %v4048
  %v4289 = vunpack.c.l.b16 %v4049
  %v4290 = vunpack.c.h.b16 %v4049
  %v4291 = vunpack.c.l.b16 %v4050
  %v4292 = vunpack.c.h.b16 %v4050
  %v4293 = vunpack.c.l.b16 %v4051
  %v4294 = vunpack.c.h.b16 %v4051
  %v4295 = vunpack.c.l.b16 %v4052
  %v4296 = vunpack.c.h.b16 %v4052
  %v4297 = vunpack.c.l.b16 %v4053
  %v4298 = vunpack.c.h.b16 %v4053
  %v4299 = vunpack.c.l.b16 %v4054
  %v4300 = vunpack.c.h.b16 %v4054
  %v4301 = vunpack.c.l.b16 %v4055
  %v4302 = vunpack.c.h.b16 %v4055
  %v4303 = vunpack.c.l.b16 %v4056
  %v4304 = vunpack.c.h.b16 %v4056
  %v4305 = vunpack.c.l.b16 %v4057
  %v4306 = vunpack.c.h.b16 %v4057
  %v4307 = vunpack.c.l.b16 %v4058
  %v4308 = vunpack.c.h.b16 %v4058
  %v4309 = vunpack.c.l.b16 %v4059
  %v4310 = vunpack.c.h.b16 %v4059
  %v4311 = vunpack.c.l.b16 %v4060
  %v4312 = vunpack.c.h.b16 %v4060
  %v4313 = vunpack.c.l.b16 %v4061
  %v4314 = vunpack.c.h.b16 %v4061
  %v4315 = vunpack.c.l.b16 %v4062
  %v4316 = vunpack.c.h.b16 %v4062
  %v4317 = vunpack.c.l.b16 %v4063
  %v4318 = vunpack.c.h.b16 %v4063
  %v4319 = vunpack.c.l.b16 %v4064
  %v4320 = vunpack.c.h.b16 %v4064
  %v4321 = vunpack.c.l.b16 %v4065
  %v4322 = vunpack.c.h.b16 %v4065
  %v4323 = vunpack.c.l.b16 %v4066
  %v4324 = vunpack.c.h.b16 %v4066
  %v4325 = vunpack.c.l.b16 %v4067
  %v4326 = vunpack.c.h.b16 %v4067
  %v4327 = vunpack.c.l.b16 %v4068
  %v4328 = vunpack.c.h.b16 %v4068
  %v4329 = vunpack.c.l.b16 %v4069
  %v4330 = vunpack.c.h.b16 %v4069
  %v4331 = vunpack.c.l.b16 %v4070
  %v4332 = vunpack.c.h.b16 %v4070
  %v4333 = vunpack.c.l.b16 %v4071
  %v4334 = vunpack.c.h.b16 %v4071
  %v4335 = vunpack.c.l.b16 %v4072
  %v4336 = vunpack.c.h.b16 %v4072
  %v4337 = vunpack.c.l.b16 %v4073
  %v4338 = vunpack.c.h.b16 %v4073
  %v4339 = vunpack.c.l.b16 %v4074
  %v4340 = vunpack.c.h.b16 %v4074
  %v4341 = vunpack.c.l.b16 %v4075
  %v4342 = vunpack.c.h.b16 %v4075
  %v4343 = vunpack.c.l.b16 %v4076
  %v4344 = vunpack.c.h.b16 %v4076
  %v4345 = vunpack.c.l.b16 %v4077
  %v4346 = vunpack.c.h.b16 %v4077
  %v4347 = vunpack.c.l.b16 %v4078
  %v4348 = vunpack.c.h.b16 %v4078
  %v4349 = vunpack.c.l.b16 %v4079
  %v4350 = vunpack.c.h.b16 %v4079
  %v4351 = vunpack.c.l.b16 %v4080
  %v4352 = vunpack.c.h.b16 %v4080
  %v4353 = vunpack.c.l.b16 %v4081
  %v4354 = vunpack.c.h.b16 %v4081
  %v4355 = vunpack.c.l.b16 %v4082
  %v4356 = vunpack.c.h.b16 %v4082
  %v4357 = vunpack.c.l.b16 %v4083
  %v4358 = vunpack.c.h.b16 %v4083
  %v4359 = vunpack.c.l.b16 %v4084
  %v4360 = vunpack.c.h.b16 %v4084
  %v4361 = vunpack.c.l.b16 %v4085
  %v4362 = vunpack.c.h.b16 %v4085
  %v4363 = vunpack.c.l.b16 %v4086
  %v4364 = vunpack.c.h.b16 %v4086
  %v4365 = vunpack.c.l.b16 %v4087
  %v4366 = vunpack.c.h.b16 %v4087
  %v4367 = vunpack.c.l.b16 %v4088
  %v4368 = vunpack.c.h.b16 %v4088
  %v4369 = vunpack.c.l.b16 %v4089
  %v4370 = vunpack.c.h.b16 %v4089
  %v4371 = vunpack.c.l.b16 %v4090
  %v4372 = vunpack.c.h.b16 %v4090
  %v4373 = vunpack.c.l.b16 %v4091
  %v4374 = vunpack.c.h.b16 %v4091
  %v4375 = vunpack.c.l.b16 %v4092
  %v4376 = vunpack.c.h.b16 %v4092
  %v4377 = vunpack.c.l.b16 %v4093
  %v4378 = vunpack.c.h.b16 %v4093
  %v4379 = vunpack.c.l.b16 %v4094
  %v4380 = vunpack.c.h.b16 %v4094
  %v4381 = vunpack.c.l.b16 %v4095
  %v4382 = vunpack.c.h.b16 %v4095
  %v4383 = vunpack.c.l.b16 %v4096
  %v4384 = vunpack.c.h.b16 %v4096
  %v4385 = vunpack.c.l.b16 %v4097
  %v4386 = vunpack.c.h.b16 %v4097
  %v4387 = vunpack.c.l.b16 %v4098
  %v4388 = vunpack.c.h.b16 %v4098
  %v4389 = vunpack.c.l.b16 %v4099
  %v4390 = vunpack.c.h.b16 %v4099
  %v4391 = vunpack.c.l.b16 %v4100
  %v4392 = vunpack.c.h.b16 %v4100
  %v4393 = vunpack.c.l.b16 %v4101
  %v4394 = vunpack.c.h.b16 %v4101
  %v4395 = vunpack.c.l.b16 %v4102
  %v4396 = vunpack.c.h.b16 %v4102
  %v4397 = vunpack.c.l.b16 %v4103
  %v4398 = vunpack.c.h.b16 %v4103
  %v4399 = vunpack.c.l.b16 %v4104
  %v4400 = vunpack.c.h.b16 %v4104
  %v4401 = vpack.c.b16 %v4275, %v4273
  %v4402 = vpack.c.b16 %v4276, %v4274
  %v4403 = vpack.c.b16 %v4279, %v4277
  %v4404 = vpack.c.b16 %v4280, %v4278
  %v4405 = vpack.c.b16 %v4283, %v4281
  %v4406 = vpack.c.b16 %v4284, %v4282
  %v4407 = vpack.c.b16 %v4287, %v4285
  %v4408 = vpack.c.b16 %v4288, %v4286
  %v4409 = vpack.c.b16 %v4291, %v4289
  %v4410 = vpack.c.b16 %v4292, %v4290
  %v4411 = vpack.c.b16 %v4295, %v4293
  %v4412 = vpack.c.b16 %v4296, %v4294
  %v4413 = vpack.c.b16 %v4299, %v4297
  %v4414 = vpack.c.b16 %v4300, %v4298
  %v4415 = vpack.c.b16 %v4303, %v4301
  %v4416 = vpack.c.b16 %v4304, %v4302
  %v4417 = vpack.c.b16 %v4307, %v4305
  %v4418 = vpack.c.b16 %v4308, %v4306
  %v4419 = vpack.c.b16 %v4311, %v4309
  %v4420 = vpack.c.b16 %v4312, %v4310
  %v4421 = vpack.c.b16 %v4315, %v4313
  %v4422 = vpack.c.b16 %v4316, %v4314
  %v4423 = vpack.c.b16 %v4319, %v4317
  %v4424 = vpack.c.b16 %v4320, %v4318
  %v4425 = vpack.c.b16 %v4323, %v4321
  %v4426 = vpack.c.b16 %v4324, %v4322
  %v4427 = vpack.c.b16 %v4327, %v4325
  %v4428 = vpack.c.b16 %v4328, %v4326
  %v4429 = vpack.c.b16 %v4331, %v4329
  %v4430 = vpack.c.b16 %v4332, %v4330
  %v4431 = vpack.c.b16 %v4335, %v4333
  %v4432 = vpack.c.b16 %v4336, %v4334
  %v4433 = vpack.c.b16 %v4339, %v4337
  %v4434 = vpack.c.b16 %v4340, %v4338
  %v4435 = vpack.c.b16 %v4343, %v4341
  %v4436 = vpack.c.b16 %v4344, %v4342
  %v4437 = vpack.c.b16 %v4347, %v4345
  %v4438 = vpack.c.b16 %v4348, %v4346
  %v4439 = vpack.c.b16 %v4351, %v4349
  %v4440 = vpack.c.b16 %v4352, %v4350
  %v4441 = vpack.c.b16 %v4355, %v4353
  %v4442 = vpack.c.b16 %v4356, %v4354
  %v4443 = vpack.c.b16 %v4359, %v4357
  %v4444 = vpack.c.b16 %v4360, %v4358
  %v4445 = vpack.c.b16 %v4363, %v4361
  %v4446 = vpack.c.b16 %v4364, %v4362
  %v4447 = vpack.c.b16 %v4367, %v4365
  %v4448 = vpack.c.b16 %v4368, %v4366
  %v4449 = vpack.c.b16 %v4371, %v4369
  %v4450 = vpack.c.b16 %v4372, %v4370
  %v4451 = vpack.c.b16 %v4375, %v4373
  %v4452 = vpack.c.b16 %v4376, %v4374
  %v4453 = vpack.c.b16 %v4379, %v4377
  %v4454 = vpack.c.b16 %v4380, %v4378
  %v4455 = vpack.c.b16 %v4383, %v4381
  %v4456 = vpack.c.b16 %v4384, %v4382
  %v4457 = vpack.c.b16 %v4387, %v4385
  %v4458 = vpack.c.b16 %v4388, %v4386
  %v4459 = vpack.c.b16 %v4391, %v4389
  %v4460 = vpack.c.b16 %v4392, %v4390
  %v4461 = vpack.c.b16 %v4395, %v4393
  %v4462 = vpack.c.b16 %v4396, %v4394
  %v4463 = vpack.c.b16 %v4399, %v4397
  %v4464 = vpack.c.b16 %v4400, %v4398
  %4529 = vmatprep.subr.bf16.mxu0 %v4402
  %4530 = vmatpush1.bf16.msra.mxu0 %v4401
  %4531 = vmatprep.subr.bf16.mxu0 %v4404
  %4532 = vmatpush1.bf16.msra.mxu0 %v4403
  %4533 = vmatprep.subr.bf16.mxu0 %v4406
  %4534 = vmatpush1.bf16.msra.mxu0 %v4405
  %4535 = vmatprep.subr.bf16.mxu0 %v4408
  %4536 = vmatpush1.bf16.msra.mxu0 %v4407
  %4537 = vmatprep.subr.bf16.mxu0 %v4410
  %4538 = vmatpush1.bf16.msra.mxu0 %v4409
  %4539 = vmatprep.subr.bf16.mxu0 %v4412
  %4540 = vmatpush1.bf16.msra.mxu0 %v4411
  %4541 = vmatprep.subr.bf16.mxu0 %v4414
  %4542 = vmatpush1.bf16.msra.mxu0 %v4413
  %4543 = vmatprep.subr.bf16.mxu0 %v4416
  %4544 = vmatpush1.bf16.msra.mxu0 %v4415
  %4545 = vmatprep.subr.bf16.mxu0 %v4418
  %4546 = vmatpush1.bf16.msra.mxu0 %v4417
  %4547 = vmatprep.subr.bf16.mxu0 %v4420
  %4548 = vmatpush1.bf16.msra.mxu0 %v4419
  %4549 = vmatprep.subr.bf16.mxu0 %v4422
  %4550 = vmatpush1.bf16.msra.mxu0 %v4421
  %4551 = vmatprep.subr.bf16.mxu0 %v4424
  %4552 = vmatpush1.bf16.msra.mxu0 %v4423
  %4553 = vmatprep.subr.bf16.mxu0 %v4426
  %4554 = vmatpush1.bf16.msra.mxu0 %v4425
  %4555 = vmatprep.subr.bf16.mxu0 %v4428
  %4556 = vmatpush1.bf16.msra.mxu0 %v4427
  %4557 = vmatprep.subr.bf16.mxu0 %v4430
  %4558 = vmatpush1.bf16.msra.mxu0 %v4429
  %4559 = vmatprep.subr.bf16.mxu0 %v4432
  %4560 = vmatpush1.bf16.msra.mxu0 %v4431
  %4561 = vmatprep.mubr.bf16.mxu0 %v4128
  %4562 = vmatmul.mubr.bf16.gmra.mrb[0].mxu0 %v4116
  %v4563 = vpop.f32.mrb[0].mxu0
  %v4564 = vadd.f32 0.0, %v4563
  %v4565 = vpop.f32.mrb[0].mxu0
  %v4566 = vadd.f32 0.0, %v4565
  %v4567 = vpop.f32.mrb[0].mxu0
  %v4568 = vadd.f32 0.0, %v4567
  %v4569 = vpop.f32.mrb[0].mxu0
  %v4570 = vadd.f32 0.0, %v4569
  %4571 = vmatprep.mubr.bf16.mxu0 %v4168
  %4572 = vmatmul.mubr.bf16.gmra.mrb[0].mxu0 %v4160
  %v4573 = vpop.f32.mrb[0].mxu0
  %v4574 = vadd.f32 0.0, %v4573
  %v4575 = vpop.f32.mrb[0].mxu0
  %v4576 = vadd.f32 0.0, %v4575
  %v4577 = vpop.f32.mrb[0].mxu0
  %v4578 = vadd.f32 0.0, %v4577
  %v4579 = vpop.f32.mrb[0].mxu0
  %v4580 = vadd.f32 0.0, %v4579
  %4581 = vmatprep.mubr.bf16.mxu0 %v4190
  %4582 = vmatmul.mubr.bf16.gmra.mrb[0].mxu0 %v4187
  %v4583 = vpop.f32.mrb[0].mxu0
  %v4584 = vadd.f32 0.0, %v4583
  %v4585 = vpop.f32.mrb[0].mxu0
  %v4586 = vadd.f32 0.0, %v4585
  %v4587 = vpop.f32.mrb[0].mxu0
  %v4588 = vpop.f32.mrb[0].mxu0
  %4589 = vdwg.mxu0
  %4590 = vmatprep.subr.bf16.mxu0 %v4434
  %4591 = vmatpush1.bf16.msra.mxu0 %v4433
  %4592 = vmatprep.subr.bf16.mxu0 %v4436
  %4593 = vmatpush1.bf16.msra.mxu0 %v4435
  %4594 = vmatprep.subr.bf16.mxu0 %v4438
  %4595 = vmatpush1.bf16.msra.mxu0 %v4437
  %4596 = vmatprep.subr.bf16.mxu0 %v4440
  %4597 = vmatpush1.bf16.msra.mxu0 %v4439
  %4598 = vmatprep.subr.bf16.mxu0 %v4442
  %4599 = vmatpush1.bf16.msra.mxu0 %v4441
  %4600 = vmatprep.subr.bf16.mxu0 %v4444
  %4601 = vmatpush1.bf16.msra.mxu0 %v4443
  %4602 = vmatprep.subr.bf16.mxu0 %v4446
  %4603 = vmatpush1.bf16.msra.mxu0 %v4445
  %4604 = vmatprep.subr.bf16.mxu0 %v4448
  %4605 = vmatpush1.bf16.msra.mxu0 %v4447
  %4606 = vmatprep.subr.bf16.mxu0 %v4450
  %4607 = vmatpush1.bf16.msra.mxu0 %v4449
  %4608 = vmatprep.subr.bf16.mxu0 %v4452
  %4609 = vmatpush1.bf16.msra.mxu0 %v4451
  %4610 = vmatprep.subr.bf16.mxu0 %v4454
  %4611 = vmatpush1.bf16.msra.mxu0 %v4453
  %4612 = vmatprep.subr.bf16.mxu0 %v4456
  %4613 = vmatpush1.bf16.msra.mxu0 %v4455
  %4614 = vmatprep.subr.bf16.mxu0 %v4458
  %4615 = vmatpush1.bf16.msra.mxu0 %v4457
  %4616 = vmatprep.subr.bf16.mxu0 %v4460
  %4617 = vmatpush1.bf16.msra.mxu0 %v4459
  %4618 = vmatprep.subr.bf16.mxu0 %v4462
  %4619 = vmatpush1.bf16.msra.mxu0 %v4461
  %4620 = vmatprep.subr.bf16.mxu0 %v4464
  %4621 = vmatpush1.bf16.msra.mxu0 %v4463
  %4622 = vmatprep.mubr.bf16.mxu0 %v4152
  %4623 = vmatmul.mubr.bf16.gmra.mrb[0].mxu0 %v4140
  %v4624 = vpop.f32.mrb[0].mxu0
  %v4625 = vadd.f32 %v4564, %v4624
  %v4626 = vpop.f32.mrb[0].mxu0
  %v4627 = vadd.f32 %v4566, %v4626
  %v4628 = vpop.f32.mrb[0].mxu0
  %v4629 = vadd.f32 %v4568, %v4628
  %v4630 = vpop.f32.mrb[0].mxu0
  %v4631 = vadd.f32 %v4570, %v4630
  %4632 = vmatprep.mubr.bf16.mxu0 %v4184
  %4633 = vmatmul.mubr.bf16.gmra.mrb[0].mxu0 %v4176
  %v4634 = vpop.f32.mrb[0].mxu0
  %v4635 = vadd.f32 %v4574, %v4634
  %v4636 = vpop.f32.mrb[0].mxu0
  %v4637 = vadd.f32 %v4576, %v4636
  %v4638 = vpop.f32.mrb[0].mxu0
  %v4639 = vadd.f32 %v4578, %v4638
  %v4640 = vpop.f32.mrb[0].mxu0
  %v4641 = vadd.f32 %v4580, %v4640
  %4642 = vmatprep.mubr.bf16.mxu0 %v4196
  %4643 = vmatmul.mubr.bf16.gmra.mrb[0].mxu0 %v4193
  %v4644 = vpop.f32.mrb[0].mxu0
  %v4645 = vadd.f32 %v4584, %v4644
  %v4646 = vpop.f32.mrb[0].mxu0
  %v4647 = vadd.f32 %v4586, %v4646
  %v4648 = vpop.f32.mrb[0].mxu0
  %v4649 = vpop.f32.mrb[0].mxu0
  %4650 = vdwg.mxu0
  %v4715 = vunpack.c.l.b16 %v3977
  %v4716 = vunpack.c.h.b16 %v3977
  %v4717 = vunpack.c.l.b16 %v3978
  %v4718 = vunpack.c.h.b16 %v3978
  %v4719 = vunpack.c.l.b16 %v3979
  %v4720 = vunpack.c.h.b16 %v3979
  %v4721 = vunpack.c.l.b16 %v3980
  %v4722 = vunpack.c.h.b16 %v3980
  %v4723 = vunpack.c.l.b16 %v3981
  %v4724 = vunpack.c.h.b16 %v3981
  %v4725 = vunpack.c.l.b16 %v3982
  %v4726 = vunpack.c.h.b16 %v3982
  %v4727 = vunpack.c.l.b16 %v3983
  %v4728 = vunpack.c.h.b16 %v3983
  %v4729 = vunpack.c.l.b16 %v3984
  %v4730 = vunpack.c.h.b16 %v3984
  %v4731 = vunpack.c.l.b16 %v3985
  %v4732 = vunpack.c.h.b16 %v3985
  %v4733 = vunpack.c.l.b16 %v3986
  %v4734 = vunpack.c.h.b16 %v3986
  %v4735 = vunpack.c.l.b16 %v3987
  %v4736 = vunpack.c.h.b16 %v3987
  %v4737 = vunpack.c.l.b16 %v3988
  %v4738 = vunpack.c.h.b16 %v3988
  %v4739 = vunpack.c.l.b16 %v3989
  %v4740 = vunpack.c.h.b16 %v3989
  %v4741 = vunpack.c.l.b16 %v3990
  %v4742 = vunpack.c.h.b16 %v3990
  %v4743 = vunpack.c.l.b16 %v3991
  %v4744 = vunpack.c.h.b16 %v3991
  %v4745 = vunpack.c.l.b16 %v3992
  %v4746 = vunpack.c.h.b16 %v3992
  %v4747 = vunpack.c.l.b16 %v3993
  %v4748 = vunpack.c.h.b16 %v3993
  %v4749 = vunpack.c.l.b16 %v3994
  %v4750 = vunpack.c.h.b16 %v3994
  %v4751 = vunpack.c.l.b16 %v3995
  %v4752 = vunpack.c.h.b16 %v3995
  %v4753 = vunpack.c.l.b16 %v3996
  %v4754 = vunpack.c.h.b16 %v3996
  %v4755 = vunpack.c.l.b16 %v3997
  %v4756 = vunpack.c.h.b16 %v3997
  %v4757 = vunpack.c.l.b16 %v3998
  %v4758 = vunpack.c.h.b16 %v3998
  %v4759 = vunpack.c.l.b16 %v3999
  %v4760 = vunpack.c.h.b16 %v3999
  %v4761 = vunpack.c.l.b16 %v4000
  %v4762 = vunpack.c.h.b16 %v4000
  %v4763 = vunpack.c.l.b16 %v4001
  %v4764 = vunpack.c.h.b16 %v4001
  %v4765 = vunpack.c.l.b16 %v4002
  %v4766 = vunpack.c.h.b16 %v4002
  %v4767 = vunpack.c.l.b16 %v4003
  %v4768 = vunpack.c.h.b16 %v4003
  %v4769 = vunpack.c.l.b16 %v4004
  %v4770 = vunpack.c.h.b16 %v4004
  %v4771 = vunpack.c.l.b16 %v4005
  %v4772 = vunpack.c.h.b16 %v4005
  %v4773 = vunpack.c.l.b16 %v4006
  %v4774 = vunpack.c.h.b16 %v4006
  %v4775 = vunpack.c.l.b16 %v4007
  %v4776 = vunpack.c.h.b16 %v4007
  %v4777 = vunpack.c.l.b16 %v4008
  %v4778 = vunpack.c.h.b16 %v4008
  %v4779 = vunpack.c.l.b16 %v4009
  %v4780 = vunpack.c.h.b16 %v4009
  %v4781 = vunpack.c.l.b16 %v4010
  %v4782 = vunpack.c.h.b16 %v4010
  %v4783 = vunpack.c.l.b16 %v4011
  %v4784 = vunpack.c.h.b16 %v4011
  %v4785 = vunpack.c.l.b16 %v4012
  %v4786 = vunpack.c.h.b16 %v4012
  %v4787 = vunpack.c.l.b16 %v4013
  %v4788 = vunpack.c.h.b16 %v4013
  %v4789 = vunpack.c.l.b16 %v4014
  %v4790 = vunpack.c.h.b16 %v4014
  %v4791 = vunpack.c.l.b16 %v4015
  %v4792 = vunpack.c.h.b16 %v4015
  %v4793 = vunpack.c.l.b16 %v4016
  %v4794 = vunpack.c.h.b16 %v4016
  %v4795 = vunpack.c.l.b16 %v4017
  %v4796 = vunpack.c.h.b16 %v4017
  %v4797 = vunpack.c.l.b16 %v4018
  %v4798 = vunpack.c.h.b16 %v4018
  %v4799 = vunpack.c.l.b16 %v4019
  %v4800 = vunpack.c.h.b16 %v4019
  %v4801 = vunpack.c.l.b16 %v4020
  %v4802 = vunpack.c.h.b16 %v4020
  %v4803 = vunpack.c.l.b16 %v4021
  %v4804 = vunpack.c.h.b16 %v4021
  %v4805 = vunpack.c.l.b16 %v4022
  %v4806 = vunpack.c.h.b16 %v4022
  %v4807 = vunpack.c.l.b16 %v4023
  %v4808 = vunpack.c.h.b16 %v4023
  %v4809 = vunpack.c.l.b16 %v4024
  %v4810 = vunpack.c.h.b16 %v4024
  %v4811 = vunpack.c.l.b16 %v4025
  %v4812 = vunpack.c.h.b16 %v4025
  %v4813 = vunpack.c.l.b16 %v4026
  %v4814 = vunpack.c.h.b16 %v4026
  %v4815 = vunpack.c.l.b16 %v4027
  %v4816 = vunpack.c.h.b16 %v4027
  %v4817 = vunpack.c.l.b16 %v4028
  %v4818 = vunpack.c.h.b16 %v4028
  %v4819 = vunpack.c.l.b16 %v4029
  %v4820 = vunpack.c.h.b16 %v4029
  %v4821 = vunpack.c.l.b16 %v4030
  %v4822 = vunpack.c.h.b16 %v4030
  %v4823 = vunpack.c.l.b16 %v4031
  %v4824 = vunpack.c.h.b16 %v4031
  %v4825 = vunpack.c.l.b16 %v4032
  %v4826 = vunpack.c.h.b16 %v4032
  %v4827 = vunpack.c.l.b16 %v4033
  %v4828 = vunpack.c.h.b16 %v4033
  %v4829 = vunpack.c.l.b16 %v4034
  %v4830 = vunpack.c.h.b16 %v4034
  %v4831 = vunpack.c.l.b16 %v4035
  %v4832 = vunpack.c.h.b16 %v4035
  %v4833 = vunpack.c.l.b16 %v4036
  %v4834 = vunpack.c.h.b16 %v4036
  %v4835 = vunpack.c.l.b16 %v4037
  %v4836 = vunpack.c.h.b16 %v4037
  %v4837 = vunpack.c.l.b16 %v4038
  %v4838 = vunpack.c.h.b16 %v4038
  %v4839 = vunpack.c.l.b16 %v4039
  %v4840 = vunpack.c.h.b16 %v4039
  %v4841 = vunpack.c.l.b16 %v4040
  %v4842 = vunpack.c.h.b16 %v4040
  %v4843 = vpack.c.b16 %v4717, %v4715
  %v4844 = vpack.c.b16 %v4718, %v4716
  %v4845 = vpack.c.b16 %v4721, %v4719
  %v4846 = vpack.c.b16 %v4722, %v4720
  %v4847 = vpack.c.b16 %v4725, %v4723
  %v4848 = vpack.c.b16 %v4726, %v4724
  %v4849 = vpack.c.b16 %v4729, %v4727
  %v4850 = vpack.c.b16 %v4730, %v4728
  %v4851 = vpack.c.b16 %v4733, %v4731
  %v4852 = vpack.c.b16 %v4734, %v4732
  %v4853 = vpack.c.b16 %v4737, %v4735
  %v4854 = vpack.c.b16 %v4738, %v4736
  %v4855 = vpack.c.b16 %v4741, %v4739
  %v4856 = vpack.c.b16 %v4742, %v4740
  %v4857 = vpack.c.b16 %v4745, %v4743
  %v4858 = vpack.c.b16 %v4746, %v4744
  %v4859 = vpack.c.b16 %v4749, %v4747
  %v4860 = vpack.c.b16 %v4750, %v4748
  %v4861 = vpack.c.b16 %v4753, %v4751
  %v4862 = vpack.c.b16 %v4754, %v4752
  %v4863 = vpack.c.b16 %v4757, %v4755
  %v4864 = vpack.c.b16 %v4758, %v4756
  %v4865 = vpack.c.b16 %v4761, %v4759
  %v4866 = vpack.c.b16 %v4762, %v4760
  %v4867 = vpack.c.b16 %v4765, %v4763
  %v4868 = vpack.c.b16 %v4766, %v4764
  %v4869 = vpack.c.b16 %v4769, %v4767
  %v4870 = vpack.c.b16 %v4770, %v4768
  %v4871 = vpack.c.b16 %v4773, %v4771
  %v4872 = vpack.c.b16 %v4774, %v4772
  %v4873 = vpack.c.b16 %v4777, %v4775
  %v4874 = vpack.c.b16 %v4778, %v4776
  %v4875 = vpack.c.b16 %v4781, %v4779
  %v4876 = vpack.c.b16 %v4782, %v4780
  %v4877 = vpack.c.b16 %v4785, %v4783
  %v4878 = vpack.c.b16 %v4786, %v4784
  %v4879 = vpack.c.b16 %v4789, %v4787
  %v4880 = vpack.c.b16 %v4790, %v4788
  %v4881 = vpack.c.b16 %v4793, %v4791
  %v4882 = vpack.c.b16 %v4794, %v4792
  %v4883 = vpack.c.b16 %v4797, %v4795
  %v4884 = vpack.c.b16 %v4798, %v4796
  %v4885 = vpack.c.b16 %v4801, %v4799
  %v4886 = vpack.c.b16 %v4802, %v4800
  %v4887 = vpack.c.b16 %v4805, %v4803
  %v4888 = vpack.c.b16 %v4806, %v4804
  %v4889 = vpack.c.b16 %v4809, %v4807
  %v4890 = vpack.c.b16 %v4810, %v4808
  %v4891 = vpack.c.b16 %v4813, %v4811
  %v4892 = vpack.c.b16 %v4814, %v4812
  %v4893 = vpack.c.b16 %v4817, %v4815
  %v4894 = vpack.c.b16 %v4818, %v4816
  %v4895 = vpack.c.b16 %v4821, %v4819
  %v4896 = vpack.c.b16 %v4822, %v4820
  %v4897 = vpack.c.b16 %v4825, %v4823
  %v4898 = vpack.c.b16 %v4826, %v4824
  %v4899 = vpack.c.b16 %v4829, %v4827
  %v4900 = vpack.c.b16 %v4830, %v4828
  %v4901 = vpack.c.b16 %v4833, %v4831
  %v4902 = vpack.c.b16 %v4834, %v4832
  %v4903 = vpack.c.b16 %v4837, %v4835
  %v4904 = vpack.c.b16 %v4838, %v4836
  %v4905 = vpack.c.b16 %v4841, %v4839
  %v4906 = vpack.c.b16 %v4842, %v4840
  %4971 = vmatprep.subr.bf16.mxu0 %v4844
  %4972 = vmatpush1.bf16.msra.mxu0 %v4843
  %4973 = vmatprep.subr.bf16.mxu0 %v4846
  %4974 = vmatpush1.bf16.msra.mxu0 %v4845
  %4975 = vmatprep.subr.bf16.mxu0 %v4848
  %4976 = vmatpush1.bf16.msra.mxu0 %v4847
  %4977 = vmatprep.subr.bf16.mxu0 %v4850
  %4978 = vmatpush1.bf16.msra.mxu0 %v4849
  %4979 = vmatprep.subr.bf16.mxu0 %v4852
  %4980 = vmatpush1.bf16.msra.mxu0 %v4851
  %4981 = vmatprep.subr.bf16.mxu0 %v4854
  %4982 = vmatpush1.bf16.msra.mxu0 %v4853
  %4983 = vmatprep.subr.bf16.mxu0 %v4856
  %4984 = vmatpush1.bf16.msra.mxu0 %v4855
  %4985 = vmatprep.subr.bf16.mxu0 %v4858
  %4986 = vmatpush1.bf16.msra.mxu0 %v4857
  %4987 = vmatprep.subr.bf16.mxu0 %v4860
  %4988 = vmatpush1.bf16.msra.mxu0 %v4859
  %4989 = vmatprep.subr.bf16.mxu0 %v4862
  %4990 = vmatpush1.bf16.msra.mxu0 %v4861
  %4991 = vmatprep.subr.bf16.mxu0 %v4864
  %4992 = vmatpush1.bf16.msra.mxu0 %v4863
  %4993 = vmatprep.subr.bf16.mxu0 %v4866
  %4994 = vmatpush1.bf16.msra.mxu0 %v4865
  %4995 = vmatprep.subr.bf16.mxu0 %v4868
  %4996 = vmatpush1.bf16.msra.mxu0 %v4867
  %4997 = vmatprep.subr.bf16.mxu0 %v4870
  %4998 = vmatpush1.bf16.msra.mxu0 %v4869
  %4999 = vmatprep.subr.bf16.mxu0 %v4872
  %5000 = vmatpush1.bf16.msra.mxu0 %v4871
  %5001 = vmatprep.subr.bf16.mxu0 %v4874
  %5002 = vmatpush1.bf16.msra.mxu0 %v4873
  %5003 = vmatprep.mubr.bf16.mxu0 %v3966
  %5004 = vmatmul.mubr.bf16.gmra.mrb[0].mxu0 %v3965
  %v5005 = vpop.f32.mrb[0].mxu0
  %v5006 = vadd.f32 %v4625, %v5005
  %v5007 = vpop.f32.mrb[0].mxu0
  %v5008 = vadd.f32 %v4627, %v5007
  %v5009 = vpop.f32.mrb[0].mxu0
  %v5010 = vadd.f32 %v4629, %v5009
  %v5011 = vpop.f32.mrb[0].mxu0
  %v5012 = vadd.f32 %v4631, %v5011
  %5013 = vmatprep.mubr.bf16.mxu0 %v3970
  %5014 = vmatmul.mubr.bf16.gmra.mrb[0].mxu0 %v3969
  %v5015 = vpop.f32.mrb[0].mxu0
  %v5016 = vadd.f32 %v4635, %v5015
  %v5017 = vpop.f32.mrb[0].mxu0
  %v5018 = vadd.f32 %v4637, %v5017
  %v5019 = vpop.f32.mrb[0].mxu0
  %v5020 = vadd.f32 %v4639, %v5019
  %v5021 = vpop.f32.mrb[0].mxu0
  %v5022 = vadd.f32 %v4641, %v5021
  %5023 = vmatprep.mubr.bf16.mxu0 %v3974
  %5024 = vmatmul.mubr.bf16.gmra.mrb[0].mxu0 %v3973
  %v5025 = vpop.f32.mrb[0].mxu0
  %v5026 = vadd.f32 %v4645, %v5025
  %v5027 = vpop.f32.mrb[0].mxu0
  %v5028 = vadd.f32 %v4647, %v5027
  %v5029 = vpop.f32.mrb[0].mxu0
  %v5030 = vpop.f32.mrb[0].mxu0
  %5031 = vdwg.mxu0
  %5032 = vmatprep.subr.bf16.mxu0 %v4876
  %5033 = vmatpush1.bf16.msra.mxu0 %v4875
  %5034 = vmatprep.subr.bf16.mxu0 %v4878
  %5035 = vmatpush1.bf16.msra.mxu0 %v4877
  %5036 = vmatprep.subr.bf16.mxu0 %v4880
  %5037 = vmatpush1.bf16.msra.mxu0 %v4879
  %5038 = vmatprep.subr.bf16.mxu0 %v4882
  %5039 = vmatpush1.bf16.msra.mxu0 %v4881
  %5040 = vmatprep.subr.bf16.mxu0 %v4884
  %5041 = vmatpush1.bf16.msra.mxu0 %v4883
  %5042 = vmatprep.subr.bf16.mxu0 %v4886
  %5043 = vmatpush1.bf16.msra.mxu0 %v4885
  %5044 = vmatprep.subr.bf16.mxu0 %v4888
  %5045 = vmatpush1.bf16.msra.mxu0 %v4887
  %5046 = vmatprep.subr.bf16.mxu0 %v4890
  %5047 = vmatpush1.bf16.msra.mxu0 %v4889
  %5048 = vmatprep.subr.bf16.mxu0 %v4892
  %5049 = vmatpush1.bf16.msra.mxu0 %v4891
  %5050 = vmatprep.subr.bf16.mxu0 %v4894
  %5051 = vmatpush1.bf16.msra.mxu0 %v4893
  %5052 = vmatprep.subr.bf16.mxu0 %v4896
  %5053 = vmatpush1.bf16.msra.mxu0 %v4895
  %5054 = vmatprep.subr.bf16.mxu0 %v4898
  %5055 = vmatpush1.bf16.msra.mxu0 %v4897
  %5056 = vmatprep.subr.bf16.mxu0 %v4900
  %5057 = vmatpush1.bf16.msra.mxu0 %v4899
  %5058 = vmatprep.subr.bf16.mxu0 %v4902
  %5059 = vmatpush1.bf16.msra.mxu0 %v4901
  %5060 = vmatprep.subr.bf16.mxu0 %v4904
  %5061 = vmatpush1.bf16.msra.mxu0 %v4903
  %5062 = vmatprep.subr.bf16.mxu0 %v4906
  %5063 = vmatpush1.bf16.msra.mxu0 %v4905
  %5064 = vmatprep.mubr.bf16.mxu0 %v3968
  %5065 = vmatmul.mubr.bf16.gmra.mrb[0].mxu0 %v3967
  %v5066 = vpop.f32.mrb[0].mxu0
  %v5067 = vadd.f32 %v5006, %v5066
  %v5068 = vpop.f32.mrb[0].mxu0
  %v5069 = vadd.f32 %v5008, %v5068
  %v5070 = vpop.f32.mrb[0].mxu0
  %v5071 = vadd.f32 %v5010, %v5070
  %v5072 = vpop.f32.mrb[0].mxu0
  %v5073 = vadd.f32 %v5012, %v5072
  %5074 = vmatprep.mubr.bf16.mxu0 %v3972
  %5075 = vmatmul.mubr.bf16.gmra.mrb[0].mxu0 %v3971
  %v5076 = vpop.f32.mrb[0].mxu0
  %v5077 = vadd.f32 %v5016, %v5076
  %v5078 = vpop.f32.mrb[0].mxu0
  %v5079 = vadd.f32 %v5018, %v5078
  %v5080 = vpop.f32.mrb[0].mxu0
  %v5081 = vadd.f32 %v5020, %v5080
  %v5082 = vpop.f32.mrb[0].mxu0
  %v5083 = vadd.f32 %v5022, %v5082
  %5084 = vmatprep.mubr.bf16.mxu0 %v3976
  %5085 = vmatmul.mubr.bf16.gmra.mrb[0].mxu0 %v3975
  %v5086 = vpop.f32.mrb[0].mxu0
  %v5087 = vadd.f32 %v5026, %v5086
  %v5088 = vpop.f32.mrb[0].mxu0
  %v5089 = vadd.f32 %v5028, %v5088
  %v5090 = vpop.f32.mrb[0].mxu0
  %v5091 = vpop.f32.mrb[0].mxu0
  %5092 = vdwg.mxu0
  %v5093 = vld [vmem:[%s41] sm:$0xff]
  %v5094 = vld [vmem:[%s41 + $0x8] sm:$0xff]
  %v5095 = vld [vmem:[%s41 + $0x10] sm:$0xff]
  %v5096 = vld [vmem:[%s41 + $0x18] sm:$0xff]
  %v5097 = vld [vmem:[%s41 + $0x20] sm:$0xff]
  %5099 = vset.pattern.permute.xlu0 0
  %5100 = vperm.xlu0 %5099, %v5093
  %v5101 = vpop.permute.xlu0 %5100
  %5104 = vset.pattern.permute.xlu0 0
  %5105 = vperm.xlu0 %5104, %v5094
  %v5106 = vpop.permute.xlu0 %5105
  %5109 = vset.pattern.permute.xlu0 0
  %5110 = vperm.xlu0 %5109, %v5095
  %v5111 = vpop.permute.xlu0 %5110
  %5114 = vset.pattern.permute.xlu0 0
  %5115 = vperm.xlu0 %5114, %v5096
  %v5116 = vpop.permute.xlu0 %5115
  %5119 = vset.pattern.permute.xlu0 0
  %5120 = vperm.xlu0 %5119, %v5097
  %v5121 = vpop.permute.xlu0 %5120
  %v5123 = vmul.f32 %v5067, %v5101
  %v5124 = vmul.f32 %v5069, %v5101
  %v5125 = vmul.f32 %v5071, %v5106
  %v5126 = vmul.f32 %v5073, %v5106
  %v5127 = vmul.f32 %v5077, %v5111
  %v5128 = vmul.f32 %v5079, %v5111
  %v5129 = vmul.f32 %v5081, %v5116
  %v5130 = vmul.f32 %v5083, %v5116
  %v5131 = vmul.f32 %v5087, %v5121
  %v5132 = vmul.f32 %v5089, %v5121
  %v5133 = vadd.f32 %v5123, %v5125
  %v5134 = vadd.f32 %v5133, %v5127
  %v5135 = vadd.f32 %v5134, %v5129
  %v5136 = vadd.f32 %v5135, %v5131
  %v5137 = vrot.slane %v5136, 4
  %v5138 = vadd.f32 %v5136, %v5137
  %v5139 = vrot.slane %v5138, 2
  %v5140 = vadd.f32 %v5138, %v5139
  %v5141 = vrot.slane %v5140, 1
  %v5142 = vadd.f32 %v5140, %v5141
  %v5143 = vadd.f32 %v5124, %v5126
  %v5144 = vadd.f32 %v5143, %v5128
  %v5145 = vadd.f32 %v5144, %v5130
  %v5146 = vadd.f32 %v5145, %v5132
  %v5147 = vrot.slane %v5146, 4
  %v5148 = vadd.f32 %v5146, %v5147
  %v5149 = vrot.slane %v5148, 2
  %v5150 = vadd.f32 %v5148, %v5149
  %v5151 = vrot.slane %v5150, 1
  %v5152 = vadd.f32 %v5150, %v5151
  %v5153 = vmul.f32 %v5123, %v5123
  %v5154 = vmul.f32 %v5124, %v5124
  %v5155 = vmul.f32 %v5125, %v5125
  %v5156 = vmul.f32 %v5126, %v5126
  %v5157 = vmul.f32 %v5127, %v5127
  %v5158 = vmul.f32 %v5128, %v5128
  %v5159 = vmul.f32 %v5129, %v5129
  %v5160 = vmul.f32 %v5130, %v5130
  %v5161 = vmul.f32 %v5131, %v5131
  %v5162 = vmul.f32 %v5132, %v5132
  %v5163 = vadd.f32 %v5153, %v5155
  %v5164 = vadd.f32 %v5163, %v5157
  %v5165 = vadd.f32 %v5164, %v5159
  %v5166 = vadd.f32 %v5165, %v5161
  %v5167 = vrot.slane %v5166, 4
  %v5168 = vadd.f32 %v5166, %v5167
  %v5169 = vrot.slane %v5168, 2
  %v5170 = vadd.f32 %v5168, %v5169
  %v5171 = vrot.slane %v5170, 1
  %v5172 = vadd.f32 %v5170, %v5171
  %v5173 = vadd.f32 %v5154, %v5156
  %v5174 = vadd.f32 %v5173, %v5158
  %v5175 = vadd.f32 %v5174, %v5160
  %v5176 = vadd.f32 %v5175, %v5162
  %v5177 = vrot.slane %v5176, 4
  %v5178 = vadd.f32 %v5176, %v5177
  %v5179 = vrot.slane %v5178, 2
  %v5180 = vadd.f32 %v5178, %v5179
  %v5181 = vrot.slane %v5180, 1
  %v5182 = vadd.f32 %v5180, %v5181
  %v5183 = vsel %vm3453, %v5142, %v5172
  %v5184 = vsel %vm3453, %v5152, %v5182
  %v5185 = vld [vmem:[%s37] sm:$0xff]
  %v5186 = vld [vmem:[%s37 + $0x8] sm:$0xff]
  %v5187 = vld [vmem:[%s37 + $0x10] sm:$0xff]
  %v5188 = vld [vmem:[%s37 + $0x18] sm:$0xff]
  %v5189 = vld [vmem:[%s37 + $0x20] sm:$0xff]
  %v5190 = vld [vmem:[%s37 + $0x28] sm:$0xff]
  %v5191 = vld [vmem:[%s37 + $0x30] sm:$0xff]
  %v5192 = vld [vmem:[%s37 + $0x38] sm:$0xff]
  %v5193 = vld [vmem:[%s37 + $0x40] sm:$0xff]
  %v5194 = vld [vmem:[%s37 + $0x48] sm:$0xff]
  %v5195 = vld [vmem:[%s37 + $0x50] sm:$0xff]
  %v5196 = vld [vmem:[%s37 + $0x58] sm:$0xff]
  %v5197 = vld [vmem:[%s37 + $0x60] sm:$0xff]
  %v5198 = vld [vmem:[%s37 + $0x68] sm:$0xff]
  %v5199 = vld [vmem:[%s37 + $0x70] sm:$0xff]
  %v5200 = vld [vmem:[%s37 + $0x78] sm:$0xff]
  %v5201 = vld [vmem:[%s37 + $0x80] sm:$0xff]
  %v5202 = vld [vmem:[%s37 + $0x88] sm:$0xff]
  %v5203 = vld [vmem:[%s37 + $0x90] sm:$0xff]
  %v5204 = vld [vmem:[%s37 + $0x98] sm:$0xff]
  %v5205 = vld [vmem:[%s37 + $0xa0] sm:$0xff]
  %v5206 = vld [vmem:[%s37 + $0xa8] sm:$0xff]
  %v5207 = vld [vmem:[%s37 + $0xb0] sm:$0xff]
  %v5208 = vld [vmem:[%s37 + $0xb8] sm:$0xff]
  %v5209 = vld [vmem:[%s37 + $0xc0] sm:$0xff]
  %v5210 = vld [vmem:[%s37 + $0xc8] sm:$0xff]
  %v5211 = vld [vmem:[%s37 + $0xd0] sm:$0xff]
  %v5212 = vld [vmem:[%s37 + $0xd8] sm:$0xff]
  %v5213 = vld [vmem:[%s37 + $0xe0] sm:$0xff]
  %v5214 = vld [vmem:[%s37 + $0xe8] sm:$0xff]
  %v5215 = vld [vmem:[%s37 + $0xf0] sm:$0xff]
  %v5216 = vld [vmem:[%s37 + $0xf8] sm:$0xff]
  %5217 = vmatprep.subr.mxu0 0.0
  %5218 = vmatpush1.msra.mxu0 %v5185
  %5219 = vmatprep.subr.mxu0 0.0
  %5220 = vmatpush1.msra.mxu0 %v5186
  %5221 = vmatprep.subr.mxu0 0.0
  %5222 = vmatpush1.msra.mxu0 %v5187
  %5223 = vmatprep.subr.mxu0 0.0
  %5224 = vmatpush1.msra.mxu0 %v5188
  %5225 = vmatprep.subr.mxu0 0.0
  %5226 = vmatpush1.msra.mxu0 %v5189
  %5227 = vmatprep.subr.mxu0 0.0
  %5228 = vmatpush1.msra.mxu0 %v5190
  %5229 = vmatprep.subr.mxu0 0.0
  %5230 = vmatpush1.msra.mxu0 %v5191
  %5231 = vmatprep.subr.mxu0 0.0
  %5232 = vmatpush1.msra.mxu0 %v5192
  %5233 = vmatprep.subr.mxu0 0.0
  %5234 = vmatpush1.msra.mxu0 %v5193
  %5235 = vmatprep.subr.mxu0 0.0
  %5236 = vmatpush1.msra.mxu0 %v5194
  %5237 = vmatprep.subr.mxu0 0.0
  %5238 = vmatpush1.msra.mxu0 %v5195
  %5239 = vmatprep.subr.mxu0 0.0
  %5240 = vmatpush1.msra.mxu0 %v5196
  %5241 = vmatprep.subr.mxu0 0.0
  %5242 = vmatpush1.msra.mxu0 %v5197
  %5243 = vmatprep.subr.mxu0 0.0
  %5244 = vmatpush1.msra.mxu0 %v5198
  %5245 = vmatprep.subr.mxu0 0.0
  %5246 = vmatpush1.msra.mxu0 %v5199
  %5247 = vmatprep.subr.mxu0 0.0
  %5248 = vmatpush1.msra.mxu0 %v5200
  %5249 = vmatprep.subr.mxu0 0.0
  %5250 = vmatpush1.msra.mxu0 %v5201
  %5251 = vmatprep.subr.mxu0 0.0
  %5252 = vmatpush1.msra.mxu0 %v5202
  %5253 = vmatprep.subr.mxu0 0.0
  %5254 = vmatpush1.msra.mxu0 %v5203
  %5255 = vmatprep.subr.mxu0 0.0
  %5256 = vmatpush1.msra.mxu0 %v5204
  %5257 = vmatprep.subr.mxu0 0.0
  %5258 = vmatpush1.msra.mxu0 %v5205
  %5259 = vmatprep.subr.mxu0 0.0
  %5260 = vmatpush1.msra.mxu0 %v5206
  %5261 = vmatprep.subr.mxu0 0.0
  %5262 = vmatpush1.msra.mxu0 %v5207
  %5263 = vmatprep.subr.mxu0 0.0
  %5264 = vmatpush1.msra.mxu0 %v5208
  %5265 = vmatprep.subr.mxu0 0.0
  %5266 = vmatpush1.msra.mxu0 %v5209
  %5267 = vmatprep.subr.mxu0 0.0
  %5268 = vmatpush1.msra.mxu0 %v5210
  %5269 = vmatprep.subr.mxu0 0.0
  %5270 = vmatpush1.msra.mxu0 %v5211
  %5271 = vmatprep.subr.mxu0 0.0
  %5272 = vmatpush1.msra.mxu0 %v5212
  %5273 = vmatprep.subr.mxu0 0.0
  %5274 = vmatpush1.msra.mxu0 %v5213
  %5275 = vmatprep.subr.mxu0 0.0
  %5276 = vmatpush1.msra.mxu0 %v5214
  %5277 = vmatprep.subr.mxu0 0.0
  %5278 = vmatpush1.msra.mxu0 %v5215
  %5279 = vmatprep.subr.mxu0 0.0
  %5280 = vmatpush1.msra.mxu0 %v5216
  %5281 = vmatprep.mubr.f32.mxu0 %v5184
  %5282 = vmatmul.mubr.f32.gmra.mrb[0].mxu0 %v5183
  %v5283 = vpop.f32.mrb[0].mxu0
  %v5284 = vadd.f32 0.0, %v5283
  %v5285 = vpop.f32.mrb[0].mxu0
  %5286 = vdwg.mxu0
  %v5287 = vmul.f32 %v5284, 0.00390625
  %v5288 = vmul.f32 %v5287, %v5287
  %v5290 = vrot.slane %v5288, 7
  %v5292 = vsub.f32 %v5287, %v5290
  %v5293 = vld [vmem:[%s33] sm:$0x1]
  %v5294 = vadd.f32 %v5292, 1e-05
  %v5295 = vrsqrt.pop %v5294
  %v5298 = vunpack.c.l.s4 1966171168
  %v5299 = vunpack.c.0.s8 %v5298
  %v5300 = vlaneseq
  %v5301 = vshrl.u32 %v5300, 7
  %v5302 = vsub.s32 %v5299, %v5301
  %v5303 = vrot.slane %v5295, %v5302
  %v5304 = vcombine.high %v5303, %v5303
  %v5306 = vunpack.c.l.s4 1966171168
  %v5307 = vunpack.c.0.s8 %v5306
  %v5308 = vlaneseq
  %v5309 = vshrl.u32 %v5308, 7
  %v5310 = vsub.s32 %v5307, %v5309
  %v5311 = vrot.slane %v5304, %v5310
  %v5313 = vmul.f32 %v5293, %v5311
  %v5314 = vld [vmem:[%s35] sm:$0x1]
  %v5315 = vmul.f32 %v5287, %v5313
  %v5316 = vsub.f32 %v5314, %v5315
  %v5318 = vlaneseq
  %v5319 = vshrl.u32 %v5318, 7
  %v5320 = vsub.s32 0, %v5319
  %v5321 = vrot.slane %v5316, %v5320
  %v5323 = vsel %vm3453, %v5313, %v5321
  %v5324 = vld [vmem:[%s39] sm:$0xff]
  %v5325 = vld [vmem:[%s39 + $0x8] sm:$0xff]
  %v5326 = vld [vmem:[%s39 + $0x10] sm:$0xff]
  %v5327 = vld [vmem:[%s39 + $0x18] sm:$0xff]
  %v5328 = vld [vmem:[%s39 + $0x20] sm:$0xff]
  %v5329 = vld [vmem:[%s39 + $0x28] sm:$0xff]
  %v5330 = vld [vmem:[%s39 + $0x30] sm:$0xff]
  %v5331 = vld [vmem:[%s39 + $0x38] sm:$0xff]
  %vm5332 = vcmask 261120
  %v5334 = vsel %vm5332, %v5323, 0
  %5336 = vmatprep.subr.mxu0 %v5325
  %5337 = vmatpush1.msra.mxu0 %v5324
  %5338 = vmatprep.subr.mxu0 %v5327
  %5339 = vmatpush1.msra.mxu0 %v5326
  %5340 = vmatprep.subr.mxu0 %v5329
  %5341 = vmatpush1.msra.mxu0 %v5328
  %5342 = vmatprep.subr.mxu0 %v5331
  %5343 = vmatpush1.msra.mxu0 %v5330
  %5344 = vmatprep.subr.mxu0 0.0
  %5345 = vmatpush1.msra.mxu0 0.0
  %5346 = vmatprep.subr.mxu0 0.0
  %5347 = vmatpush1.msra.mxu0 0.0
  %5348 = vmatprep.subr.mxu0 0.0
  %5349 = vmatpush1.msra.mxu0 0.0
  %5350 = vmatprep.subr.mxu0 0.0
  %5351 = vmatpush1.msra.mxu0 0.0
  %5352 = vmatprep.subr.mxu0 0.0
  %5353 = vmatpush1.msra.mxu0 0.0
  %5354 = vmatprep.subr.mxu0 0.0
  %5355 = vmatpush1.msra.mxu0 0.0
  %5356 = vmatprep.subr.mxu0 0.0
  %5357 = vmatpush1.msra.mxu0 0.0
  %5358 = vmatprep.subr.mxu0 0.0
  %5359 = vmatpush1.msra.mxu0 0.0
  %5360 = vmatprep.subr.mxu0 0.0
  %5361 = vmatpush1.msra.mxu0 0.0
  %5362 = vmatprep.subr.mxu0 0.0
  %5363 = vmatpush1.msra.mxu0 0.0
  %5364 = vmatprep.subr.mxu0 0.0
  %5365 = vmatpush1.msra.mxu0 0.0
  %5366 = vmatprep.subr.mxu0 0.0
  %5367 = vmatpush1.msra.mxu0 0.0
  %5368 = vmatprep.subr.mxu0 0.0
  %5369 = vmatpush1.msra.mxu0 0.0
  %5370 = vmatprep.subr.mxu0 0.0
  %5371 = vmatpush1.msra.mxu0 0.0
  %5372 = vmatprep.subr.mxu0 0.0
  %5373 = vmatpush1.msra.mxu0 0.0
  %5374 = vmatprep.subr.mxu0 0.0
  %5375 = vmatpush1.msra.mxu0 0.0
  %5376 = vmatprep.subr.mxu0 0.0
  %5377 = vmatpush1.msra.mxu0 0.0
  %5378 = vmatprep.subr.mxu0 0.0
  %5379 = vmatpush1.msra.mxu0 0.0
  %5380 = vmatprep.subr.mxu0 0.0
  %5381 = vmatpush1.msra.mxu0 0.0
  %5382 = vmatprep.subr.mxu0 0.0
  %5383 = vmatpush1.msra.mxu0 0.0
  %5384 = vmatprep.subr.mxu0 0.0
  %5385 = vmatpush1.msra.mxu0 0.0
  %5386 = vmatprep.subr.mxu0 0.0
  %5387 = vmatpush1.msra.mxu0 0.0
  %5388 = vmatprep.subr.mxu0 0.0
  %5389 = vmatpush1.msra.mxu0 0.0
  %5390 = vmatprep.subr.mxu0 0.0
  %5391 = vmatpush1.msra.mxu0 0.0
  %5392 = vmatprep.subr.mxu0 0.0
  %5393 = vmatpush1.msra.mxu0 0.0
  %5394 = vmatprep.subr.mxu0 0.0
  %5395 = vmatpush1.msra.mxu0 0.0
  %5396 = vmatprep.subr.mxu0 0.0
  %5397 = vmatpush1.msra.mxu0 0.0
  %5398 = vmatprep.subr.mxu0 0.0
  %5399 = vmatpush1.msra.mxu0 0.0
  %5400 = vmatprep.mubr.f32.mxu0 0.0
  %5401 = vmatmul.mubr.f32.gmra.mrb[0].mxu0 %v5334
  %v5402 = vpop.f32.mrb[0].mxu0
  %v5403 = vadd.f32 0.0, %v5402
  %v5404 = vpop.f32.mrb[0].mxu0
  %v5405 = vadd.f32 0.0, %v5404
  %5406 = vdwg.mxu0
  %v5407 = vlaneseq
  %v5408 = vshrl.u32 %v5407, 7
  %v5409 = vsub.s32 0, %v5408
  %v5410 = vrot.slane %v5403, %v5409
  %v5411 = vlaneseq
  %v5412 = vshrl.u32 %v5411, 7
  %v5413 = vsub.s32 0, %v5412
  %v5414 = vrot.slane %v5405, %v5413
  %v5415 = vmul.f32 %v5067, %v5410
  %v5416 = vmul.f32 %v5069, %v5414
  %v5417 = vmul.f32 %v5071, %v5410
  %v5418 = vmul.f32 %v5073, %v5414
  %v5419 = vmul.f32 %v5077, %v5410
  %v5420 = vmul.f32 %v5079, %v5414
  %v5421 = vmul.f32 %v5081, %v5410
  %v5422 = vmul.f32 %v5083, %v5414
  %v5423 = vmul.f32 %v5087, %v5410
  %v5424 = vmul.f32 %v5089, %v5414
  %v5425 = vlaneseq
  %v5426 = vshrl.u32 %v5425, 7
  %v5427 = vsub.s32 1, %v5426
  %v5428 = vrot.slane %v5403, %v5427
  %v5429 = vlaneseq
  %v5430 = vshrl.u32 %v5429, 7
  %v5431 = vsub.s32 1, %v5430
  %v5432 = vrot.slane %v5405, %v5431
  %v5433 = vadd.f32 %v5415, %v5428
  %v5434 = vadd.f32 %v5416, %v5432
  %v5435 = vadd.f32 %v5417, %v5428
  %v5436 = vadd.f32 %v5418, %v5432
  %v5437 = vadd.f32 %v5419, %v5428
  %v5438 = vadd.f32 %v5420, %v5432
  %v5439 = vadd.f32 %v5421, %v5428
  %v5440 = vadd.f32 %v5422, %v5432
  %v5441 = vadd.f32 %v5423, %v5428
  %v5442 = vadd.f32 %v5424, %v5432
  %v5443 = vmul.f32 %v5433, 0.2
  %v5444 = vmul.f32 %v5434, 0.2
  %v5445 = vmul.f32 %v5435, 0.2
  %v5446 = vmul.f32 %v5436, 0.2
  %v5447 = vmul.f32 %v5437, 0.2
  %v5448 = vmul.f32 %v5438, 0.2
  %v5449 = vmul.f32 %v5439, 0.2
  %v5450 = vmul.f32 %v5440, 0.2
  %v5451 = vmul.f32 %v5441, 0.2
  %v5452 = vmul.f32 %v5442, 0.2
  %v5453 = vmax.f32 %v5433, %v5443
  %v5454 = vmax.f32 %v5434, %v5444
  %v5455 = vmax.f32 %v5435, %v5445
  %v5456 = vmax.f32 %v5436, %v5446
  %v5457 = vmax.f32 %v5437, %v5447
  %v5458 = vmax.f32 %v5438, %v5448
  %v5459 = vmax.f32 %v5439, %v5449
  %v5460 = vmax.f32 %v5440, %v5450
  %v5461 = vmax.f32 %v5441, %v5451
  %v5462 = vmax.f32 %v5442, %v5452
  %v5463 = vpack.c.bf16 %v5455, %v5453
  %v5464 = vpack.c.bf16 %v5456, %v5454
  %v5465 = vpack.c.bf16 %v5459, %v5457
  %v5466 = vpack.c.bf16 %v5460, %v5458
  %v5467 = vpack.c.bf16 %v5461, %v5461
  %v5468 = vpack.c.bf16 %v5462, %v5462
  %v5469 = vld [vmem:[%s43] sm:$0xf]
  %v5470 = vld [vmem:[%s43 + $0x4] sm:$0xf]
  %v5471 = vld [vmem:[%s43 + $0x8] sm:$0xf]
  %v5472 = vld [vmem:[%s43 + $0xc] sm:$0xf]
  %v5477 = vunpack.c.l.b16 %v5469
  %v5478 = vunpack.c.l.b16 %v5470
  %v5479 = vunpack.c.l.b16 %v5471
  %v5480 = vunpack.c.l.b16 %v5472
  %v5481 = vpack.c.b16 %v5478, %v5477
  %v5482 = vpack.c.b16 %v5480, %v5479
  %vm5483 = vcmask 326656
  %v5485 = vsel %vm5483, %v5481, 0
  %v5488 = vsel %vm5483, %v5482, 0
  %v5491 = vsel %vm1776, %v5467, 0
  %v5494 = vsel %vm1776, %v5468, 0
  %5496 = vmatprep.subr.bf16.mxu0 %v5464
  %5497 = vmatpush1.bf16.msra.mxu0 %v5463
  %5498 = vmatprep.subr.bf16.mxu0 %v5466
  %5499 = vmatpush1.bf16.msra.mxu0 %v5465
  %5500 = vmatprep.subr.bf16.mxu0 %v5494
  %5501 = vmatpush1.bf16.msra.mxu0 %v5491
  %5502 = vmatprep.subr.bf16.mxu0 0
  %5503 = vmatpush1.bf16.msra.mxu0 0
  %5504 = vmatprep.subr.bf16.mxu0 0
  %5505 = vmatpush1.bf16.msra.mxu0 0
  %5506 = vmatprep.subr.bf16.mxu0 0
  %5507 = vmatpush1.bf16.msra.mxu0 0
  %5508 = vmatprep.subr.bf16.mxu0 0
  %5509 = vmatpush1.bf16.msra.mxu0 0
  %5510 = vmatprep.subr.bf16.mxu0 0
  %5511 = vmatpush1.bf16.msra.mxu0 0
  %5512 = vmatprep.subr.bf16.mxu0 0
  %5513 = vmatpush1.bf16.msra.mxu0 0
  %5514 = vmatprep.subr.bf16.mxu0 0
  %5515 = vmatpush1.bf16.msra.mxu0 0
  %5516 = vmatprep.subr.bf16.mxu0 0
  %5517 = vmatpush1.bf16.msra.mxu0 0
  %5518 = vmatprep.subr.bf16.mxu0 0
  %5519 = vmatpush1.bf16.msra.mxu0 0
  %5520 = vmatprep.subr.bf16.mxu0 0
  %5521 = vmatpush1.bf16.msra.mxu0 0
  %5522 = vmatprep.subr.bf16.mxu0 0
  %5523 = vmatpush1.bf16.msra.mxu0 0
  %5524 = vmatprep.subr.bf16.mxu0 0
  %5525 = vmatpush1.bf16.msra.mxu0 0
  %5526 = vmatprep.subr.bf16.mxu0 0
  %5527 = vmatpush1.bf16.msra.mxu0 0
  %5528 = vmatprep.mubr.bf16.mxu0 0
  %5529 = vmatmul.mubr.bf16.gmra.mrb[0].mxu0 %v5485
  %v5530 = vpop.f32.mrb[0].mxu0
  %v5531 = vadd.f32 0.0, %v5530
  %v5532 = vpop.f32.mrb[0].mxu0
  %v5533 = vadd.f32 0.0, %v5532
  %v5534 = vpop.f32.mrb[0].mxu0
  %v5535 = vadd.f32 0.0, %v5534
  %v5536 = vpop.f32.mrb[0].mxu0
  %v5537 = vadd.f32 0.0, %v5536
  %5538 = vmatprep.mubr.bf16.mxu0 0
  %5539 = vmatmul.mubr.bf16.gmra.mrb[0].mxu0 %v5488
  %v5540 = vpop.f32.mrb[0].mxu0
  %v5541 = vadd.f32 0.0, %v5540
  %v5542 = vpop.f32.mrb[0].mxu0
  %v5543 = vadd.f32 0.0, %v5542
  %v5544 = vpop.f32.mrb[0].mxu0
  %v5545 = vadd.f32 0.0, %v5544
  %v5546 = vpop.f32.mrb[0].mxu0
  %v5547 = vadd.f32 0.0, %v5546
  %5548 = vdwg.mxu0
  %v5549 = vld [vmem:[%s45] sm:$0xf]
  %v5550 = vld [vmem:[%s45 + $0x4] sm:$0xf]
  %v5551 = vld [vmem:[%s45 + $0x8] sm:$0xf]
  %v5552 = vld [vmem:[%s45 + $0xc] sm:$0xf]
  %v5557 = vunpack.c.l.b16 %v5549
  %v5558 = vunpack.c.l.b16 %v5550
  %v5559 = vunpack.c.l.b16 %v5551
  %v5560 = vunpack.c.l.b16 %v5552
  %v5561 = vpack.c.b16 %v5558, %v5557
  %v5562 = vpack.c.b16 %v5560, %v5559
  %v5564 = vsel %vm5483, %v5561, 0
  %v5567 = vsel %vm5483, %v5562, 0
  %5569 = vmatprep.subr.bf16.mxu0 %v5464
  %5570 = vmatpush1.bf16.msra.mxu0 %v5463
  %5571 = vmatprep.subr.bf16.mxu0 %v5466
  %5572 = vmatpush1.bf16.msra.mxu0 %v5465
  %5573 = vmatprep.subr.bf16.mxu0 %v5494
  %5574 = vmatpush1.bf16.msra.mxu0 %v5491
  %5575 = vmatprep.subr.bf16.mxu0 0
  %5576 = vmatpush1.bf16.msra.mxu0 0
  %5577 = vmatprep.subr.bf16.mxu0 0
  %5578 = vmatpush1.bf16.msra.mxu0 0
  %5579 = vmatprep.subr.bf16.mxu0 0
  %5580 = vmatpush1.bf16.msra.mxu0 0
  %5581 = vmatprep.subr.bf16.mxu0 0
  %5582 = vmatpush1.bf16.msra.mxu0 0
  %5583 = vmatprep.subr.bf16.mxu0 0
  %5584 = vmatpush1.bf16.msra.mxu0 0
  %5585 = vmatprep.subr.bf16.mxu0 0
  %5586 = vmatpush1.bf16.msra.mxu0 0
  %5587 = vmatprep.subr.bf16.mxu0 0
  %5588 = vmatpush1.bf16.msra.mxu0 0
  %5589 = vmatprep.subr.bf16.mxu0 0
  %5590 = vmatpush1.bf16.msra.mxu0 0
  %5591 = vmatprep.subr.bf16.mxu0 0
  %5592 = vmatpush1.bf16.msra.mxu0 0
  %5593 = vmatprep.subr.bf16.mxu0 0
  %5594 = vmatpush1.bf16.msra.mxu0 0
  %5595 = vmatprep.subr.bf16.mxu0 0
  %5596 = vmatpush1.bf16.msra.mxu0 0
  %5597 = vmatprep.subr.bf16.mxu0 0
  %5598 = vmatpush1.bf16.msra.mxu0 0
  %5599 = vmatprep.subr.bf16.mxu0 0
  %5600 = vmatpush1.bf16.msra.mxu0 0
  %5601 = vmatprep.mubr.bf16.mxu0 0
  %5602 = vmatmul.mubr.bf16.gmra.mrb[0].mxu0 %v5564
  %v5603 = vpop.f32.mrb[0].mxu0
  %v5604 = vadd.f32 0.0, %v5603
  %v5605 = vpop.f32.mrb[0].mxu0
  %v5606 = vadd.f32 0.0, %v5605
  %v5607 = vpop.f32.mrb[0].mxu0
  %v5608 = vadd.f32 0.0, %v5607
  %v5609 = vpop.f32.mrb[0].mxu0
  %v5610 = vadd.f32 0.0, %v5609
  %5611 = vmatprep.mubr.bf16.mxu0 0
  %5612 = vmatmul.mubr.bf16.gmra.mrb[0].mxu0 %v5567
  %v5613 = vpop.f32.mrb[0].mxu0
  %v5614 = vadd.f32 0.0, %v5613
  %v5615 = vpop.f32.mrb[0].mxu0
  %v5616 = vadd.f32 0.0, %v5615
  %v5617 = vpop.f32.mrb[0].mxu0
  %v5618 = vadd.f32 0.0, %v5617
  %v5619 = vpop.f32.mrb[0].mxu0
  %v5620 = vadd.f32 0.0, %v5619
  %5621 = vdwg.mxu0
  %v5622 = vpack.c.bf16 %v5535, %v5531
  %v5623 = vpack.c.bf16 %v5537, %v5533
  %v5624 = vpack.c.bf16 %v5608, %v5604
  %v5625 = vpack.c.bf16 %v5610, %v5606
  %v5626 = vpack.c.bf16 %v5545, %v5541
  %v5627 = vpack.c.bf16 %v5547, %v5543
  %v5628 = vpack.c.bf16 %v5618, %v5614
  %v5629 = vpack.c.bf16 %v5620, %v5616
  %v5630 = vld [vmem:[%s47] sm:$0xff]
  %v5631 = vld [vmem:[%s47 + $0x8] sm:$0xff]
  %v5632 = vld [vmem:[%s47 + $0x10] sm:$0xff]
  %v5633 = vld [vmem:[%s47 + $0x18] sm:$0xff]
  %v5634 = vld [vmem:[%s47 + $0x20] sm:$0xff]
  %v5635 = vld [vmem:[%s47 + $0x28] sm:$0xff]
  %v5636 = vld [vmem:[%s47 + $0x30] sm:$0xff]
  %v5637 = vld [vmem:[%s47 + $0x38] sm:$0xff]
  %v5638 = vld [vmem:[%s47 + $0x40] sm:$0xff]
  %v5639 = vld [vmem:[%s47 + $0x48] sm:$0xff]
  %v5640 = vld [vmem:[%s47 + $0x50] sm:$0xff]
  %v5641 = vld [vmem:[%s47 + $0x58] sm:$0xff]
  %v5642 = vld [vmem:[%s47 + $0x60] sm:$0xff]
  %v5643 = vld [vmem:[%s47 + $0x68] sm:$0xff]
  %v5644 = vld [vmem:[%s47 + $0x70] sm:$0xff]
  %v5645 = vld [vmem:[%s47 + $0x78] sm:$0xff]
  %v5646 = vld [vmem:[%s47 + $0x80] sm:$0xff]
  %v5647 = vld [vmem:[%s47 + $0x88] sm:$0xff]
  %v5648 = vld [vmem:[%s47 + $0x90] sm:$0xff]
  %v5649 = vld [vmem:[%s47 + $0x98] sm:$0xff]
  %v5650 = vld [vmem:[%s47 + $0xa0] sm:$0xff]
  %v5651 = vld [vmem:[%s47 + $0xa8] sm:$0xff]
  %v5652 = vld [vmem:[%s47 + $0xb0] sm:$0xff]
  %v5653 = vld [vmem:[%s47 + $0xb8] sm:$0xff]
  %v5654 = vld [vmem:[%s47 + $0xc0] sm:$0xff]
  %v5655 = vld [vmem:[%s47 + $0xc8] sm:$0xff]
  %v5656 = vld [vmem:[%s47 + $0xd0] sm:$0xff]
  %v5657 = vld [vmem:[%s47 + $0xd8] sm:$0xff]
  %v5658 = vld [vmem:[%s47 + $0xe0] sm:$0xff]
  %v5659 = vld [vmem:[%s47 + $0xe8] sm:$0xff]
  %v5660 = vld [vmem:[%s47 + $0xf0] sm:$0xff]
  %v5661 = vld [vmem:[%s47 + $0xf8] sm:$0xff]
  %v5662 = vld [vmem:[%s47 + $0x100] sm:$0xff]
  %v5663 = vld [vmem:[%s47 + $0x108] sm:$0xff]
  %v5664 = vld [vmem:[%s47 + $0x110] sm:$0xff]
  %v5665 = vld [vmem:[%s47 + $0x118] sm:$0xff]
  %v5666 = vld [vmem:[%s47 + $0x120] sm:$0xff]
  %v5667 = vld [vmem:[%s47 + $0x128] sm:$0xff]
  %v5668 = vld [vmem:[%s47 + $0x130] sm:$0xff]
  %v5669 = vld [vmem:[%s47 + $0x138] sm:$0xff]
  %v5670 = vld [vmem:[%s47 + $0x140] sm:$0xff]
  %v5671 = vld [vmem:[%s47 + $0x148] sm:$0xff]
  %v5672 = vld [vmem:[%s47 + $0x150] sm:$0xff]
  %v5673 = vld [vmem:[%s47 + $0x158] sm:$0xff]
  %v5674 = vld [vmem:[%s47 + $0x160] sm:$0xff]
  %v5675 = vld [vmem:[%s47 + $0x168] sm:$0xff]
  %v5676 = vld [vmem:[%s47 + $0x170] sm:$0xff]
  %v5677 = vld [vmem:[%s47 + $0x178] sm:$0xff]
  %v5678 = vld [vmem:[%s47 + $0x180] sm:$0xff]
  %v5679 = vld [vmem:[%s47 + $0x188] sm:$0xff]
  %v5680 = vld [vmem:[%s47 + $0x190] sm:$0xff]
  %v5681 = vld [vmem:[%s47 + $0x198] sm:$0xff]
  %v5682 = vld [vmem:[%s47 + $0x1a0] sm:$0xff]
  %v5683 = vld [vmem:[%s47 + $0x1a8] sm:$0xff]
  %v5684 = vld [vmem:[%s47 + $0x1b0] sm:$0xff]
  %v5685 = vld [vmem:[%s47 + $0x1b8] sm:$0xff]
  %v5686 = vld [vmem:[%s47 + $0x1c0] sm:$0xff]
  %v5687 = vld [vmem:[%s47 + $0x1c8] sm:$0xff]
  %v5688 = vld [vmem:[%s47 + $0x1d0] sm:$0xff]
  %v5689 = vld [vmem:[%s47 + $0x1d8] sm:$0xff]
  %v5690 = vld [vmem:[%s47 + $0x1e0] sm:$0xff]
  %v5691 = vld [vmem:[%s47 + $0x1e8] sm:$0xff]
  %v5692 = vld [vmem:[%s47 + $0x1f0] sm:$0xff]
  %v5693 = vld [vmem:[%s47 + $0x1f8] sm:$0xff]
  %v5694 = vld [vmem:[%s49] sm:$0xff]
  %v5695 = vld [vmem:[%s49 + $0x8] sm:$0xff]
  %v5696 = vld [vmem:[%s49 + $0x10] sm:$0xff]
  %v5697 = vld [vmem:[%s49 + $0x18] sm:$0xff]
  %v5698 = vld [vmem:[%s49 + $0x20] sm:$0xff]
  %v5699 = vld [vmem:[%s49 + $0x28] sm:$0xff]
  %v5700 = vld [vmem:[%s49 + $0x30] sm:$0xff]
  %v5701 = vld [vmem:[%s49 + $0x38] sm:$0xff]
  %v5702 = vld [vmem:[%s49 + $0x40] sm:$0xff]
  %v5703 = vld [vmem:[%s49 + $0x48] sm:$0xff]
  %v5704 = vld [vmem:[%s49 + $0x50] sm:$0xff]
  %v5705 = vld [vmem:[%s49 + $0x58] sm:$0xff]
  %v5706 = vld [vmem:[%s49 + $0x60] sm:$0xff]
  %v5707 = vld [vmem:[%s49 + $0x68] sm:$0xff]
  %v5708 = vld [vmem:[%s49 + $0x70] sm:$0xff]
  %v5709 = vld [vmem:[%s49 + $0x78] sm:$0xff]
  %v5710 = vld [vmem:[%s49 + $0x80] sm:$0xff]
  %v5711 = vld [vmem:[%s49 + $0x88] sm:$0xff]
  %v5712 = vld [vmem:[%s49 + $0x90] sm:$0xff]
  %v5713 = vld [vmem:[%s49 + $0x98] sm:$0xff]
  %v5714 = vld [vmem:[%s49 + $0xa0] sm:$0xff]
  %v5715 = vld [vmem:[%s49 + $0xa8] sm:$0xff]
  %v5716 = vld [vmem:[%s49 + $0xb0] sm:$0xff]
  %v5717 = vld [vmem:[%s49 + $0xb8] sm:$0xff]
  %v5718 = vld [vmem:[%s49 + $0xc0] sm:$0xff]
  %v5719 = vld [vmem:[%s49 + $0xc8] sm:$0xff]
  %v5720 = vld [vmem:[%s49 + $0xd0] sm:$0xff]
  %v5721 = vld [vmem:[%s49 + $0xd8] sm:$0xff]
  %v5722 = vld [vmem:[%s49 + $0xe0] sm:$0xff]
  %v5723 = vld [vmem:[%s49 + $0xe8] sm:$0xff]
  %v5724 = vld [vmem:[%s49 + $0xf0] sm:$0xff]
  %v5725 = vld [vmem:[%s49 + $0xf8] sm:$0xff]
  %v5726 = vld [vmem:[%s49 + $0x100] sm:$0xff]
  %v5727 = vld [vmem:[%s49 + $0x108] sm:$0xff]
  %v5728 = vld [vmem:[%s49 + $0x110] sm:$0xff]
  %v5729 = vld [vmem:[%s49 + $0x118] sm:$0xff]
  %v5730 = vld [vmem:[%s49 + $0x120] sm:$0xff]
  %v5731 = vld [vmem:[%s49 + $0x128] sm:$0xff]
  %v5732 = vld [vmem:[%s49 + $0x130] sm:$0xff]
  %v5733 = vld [vmem:[%s49 + $0x138] sm:$0xff]
  %v5734 = vld [vmem:[%s49 + $0x140] sm:$0xff]
  %v5735 = vld [vmem:[%s49 + $0x148] sm:$0xff]
  %v5736 = vld [vmem:[%s49 + $0x150] sm:$0xff]
  %v5737 = vld [vmem:[%s49 + $0x158] sm:$0xff]
  %v5738 = vld [vmem:[%s49 + $0x160] sm:$0xff]
  %v5739 = vld [vmem:[%s49 + $0x168] sm:$0xff]
  %v5740 = vld [vmem:[%s49 + $0x170] sm:$0xff]
  %v5741 = vld [vmem:[%s49 + $0x178] sm:$0xff]
  %v5742 = vld [vmem:[%s49 + $0x180] sm:$0xff]
  %v5743 = vld [vmem:[%s49 + $0x188] sm:$0xff]
  %v5744 = vld [vmem:[%s49 + $0x190] sm:$0xff]
  %v5745 = vld [vmem:[%s49 + $0x198] sm:$0xff]
  %v5746 = vld [vmem:[%s49 + $0x1a0] sm:$0xff]
  %v5747 = vld [vmem:[%s49 + $0x1a8] sm:$0xff]
  %v5748 = vld [vmem:[%s49 + $0x1b0] sm:$0xff]
  %v5749 = vld [vmem:[%s49 + $0x1b8] sm:$0xff]
  %v5750 = vld [vmem:[%s49 + $0x1c0] sm:$0xff]
  %v5751 = vld [vmem:[%s49 + $0x1c8] sm:$0xff]
  %v5752 = vld [vmem:[%s49 + $0x1d0] sm:$0xff]
  %v5753 = vld [vmem:[%s49 + $0x1d8] sm:$0xff]
  %v5754 = vld [vmem:[%s49 + $0x1e0] sm:$0xff]
  %v5755 = vld [vmem:[%s49 + $0x1e8] sm:$0xff]
  %v5756 = vld [vmem:[%s49 + $0x1f0] sm:$0xff]
  %v5757 = vld [vmem:[%s49 + $0x1f8] sm:$0xff]
  %v5759 = vshrl.u32 %v5622, 16
  %v5761 = vshll.u32 %v5622, 16
  %v5763 = vrot.slane %v5761, 1
  %v5764 = vor.u32 %v5759, %v5763
  %v5766 = vshll.u32 %v5626, 16
  %v5768 = vrot.slane %v5766, 1
  %v5769 = vsel %vm384, %v5764, %v5768
  %v5771 = vshrl.u32 %v5623, 16
  %v5773 = vshll.u32 %v5623, 16
  %v5775 = vrot.slane %v5773, 1
  %v5776 = vor.u32 %v5771, %v5775
  %v5778 = vshll.u32 %v5627, 16
  %v5780 = vrot.slane %v5778, 1
  %v5781 = vsel %vm384, %v5776, %v5780
  %v5783 = vshrl.u32 %v5624, 16
  %v5785 = vshll.u32 %v5624, 16
  %v5787 = vrot.slane %v5785, 1
  %v5788 = vor.u32 %v5783, %v5787
  %v5790 = vshll.u32 %v5628, 16
  %v5792 = vrot.slane %v5790, 1
  %v5793 = vsel %vm384, %v5788, %v5792
  %v5795 = vshrl.u32 %v5625, 16
  %v5797 = vshll.u32 %v5625, 16
  %v5799 = vrot.slane %v5797, 1
  %v5800 = vor.u32 %v5795, %v5799
  %v5802 = vshll.u32 %v5629, 16
  %v5804 = vrot.slane %v5802, 1
  %v5805 = vsel %vm384, %v5800, %v5804
  %v5806 = vshrl.u32 %v5626, 16
  %v5808 = vor.u32 %v5806, %v5768
  %v5809 = vshrl.u32 %v5627, 16
  %v5811 = vor.u32 %v5809, %v5780
  %v5812 = vshrl.u32 %v5628, 16
  %v5814 = vor.u32 %v5812, %v5792
  %v5815 = vshrl.u32 %v5629, 16
  %v5817 = vor.u32 %v5815, %v5804
  %v5890 = vunpack.c.l.b16 %v5694
  %v5891 = vunpack.c.h.b16 %v5694
  %v5892 = vunpack.c.l.b16 %v5695
  %v5893 = vunpack.c.h.b16 %v5695
  %v5894 = vunpack.c.l.b16 %v5696
  %v5895 = vunpack.c.h.b16 %v5696
  %v5896 = vunpack.c.l.b16 %v5697
  %v5897 = vunpack.c.h.b16 %v5697
  %v5898 = vunpack.c.l.b16 %v5698
  %v5899 = vunpack.c.h.b16 %v5698
  %v5900 = vunpack.c.l.b16 %v5699
  %v5901 = vunpack.c.h.b16 %v5699
  %v5902 = vunpack.c.l.b16 %v5700
  %v5903 = vunpack.c.h.b16 %v5700
  %v5904 = vunpack.c.l.b16 %v5701
  %v5905 = vunpack.c.h.b16 %v5701
  %v5906 = vunpack.c.l.b16 %v5702
  %v5907 = vunpack.c.h.b16 %v5702
  %v5908 = vunpack.c.l.b16 %v5703
  %v5909 = vunpack.c.h.b16 %v5703
  %v5910 = vunpack.c.l.b16 %v5704
  %v5911 = vunpack.c.h.b16 %v5704
  %v5912 = vunpack.c.l.b16 %v5705
  %v5913 = vunpack.c.h.b16 %v5705
  %v5914 = vunpack.c.l.b16 %v5706
  %v5915 = vunpack.c.h.b16 %v5706
  %v5916 = vunpack.c.l.b16 %v5707
  %v5917 = vunpack.c.h.b16 %v5707
  %v5918 = vunpack.c.l.b16 %v5708
  %v5919 = vunpack.c.h.b16 %v5708
  %v5920 = vunpack.c.l.b16 %v5709
  %v5921 = vunpack.c.h.b16 %v5709
  %v5922 = vunpack.c.l.b16 %v5710
  %v5923 = vunpack.c.h.b16 %v5710
  %v5924 = vunpack.c.l.b16 %v5711
  %v5925 = vunpack.c.h.b16 %v5711
  %v5926 = vunpack.c.l.b16 %v5712
  %v5927 = vunpack.c.h.b16 %v5712
  %v5928 = vunpack.c.l.b16 %v5713
  %v5929 = vunpack.c.h.b16 %v5713
  %v5930 = vunpack.c.l.b16 %v5714
  %v5931 = vunpack.c.h.b16 %v5714
  %v5932 = vunpack.c.l.b16 %v5715
  %v5933 = vunpack.c.h.b16 %v5715
  %v5934 = vunpack.c.l.b16 %v5716
  %v5935 = vunpack.c.h.b16 %v5716
  %v5936 = vunpack.c.l.b16 %v5717
  %v5937 = vunpack.c.h.b16 %v5717
  %v5938 = vunpack.c.l.b16 %v5718
  %v5939 = vunpack.c.h.b16 %v5718
  %v5940 = vunpack.c.l.b16 %v5719
  %v5941 = vunpack.c.h.b16 %v5719
  %v5942 = vunpack.c.l.b16 %v5720
  %v5943 = vunpack.c.h.b16 %v5720
  %v5944 = vunpack.c.l.b16 %v5721
  %v5945 = vunpack.c.h.b16 %v5721
  %v5946 = vunpack.c.l.b16 %v5722
  %v5947 = vunpack.c.h.b16 %v5722
  %v5948 = vunpack.c.l.b16 %v5723
  %v5949 = vunpack.c.h.b16 %v5723
  %v5950 = vunpack.c.l.b16 %v5724
  %v5951 = vunpack.c.h.b16 %v5724
  %v5952 = vunpack.c.l.b16 %v5725
  %v5953 = vunpack.c.h.b16 %v5725
  %v5954 = vunpack.c.l.b16 %v5726
  %v5955 = vunpack.c.h.b16 %v5726
  %v5956 = vunpack.c.l.b16 %v5727
  %v5957 = vunpack.c.h.b16 %v5727
  %v5958 = vunpack.c.l.b16 %v5728
  %v5959 = vunpack.c.h.b16 %v5728
  %v5960 = vunpack.c.l.b16 %v5729
  %v5961 = vunpack.c.h.b16 %v5729
  %v5962 = vunpack.c.l.b16 %v5730
  %v5963 = vunpack.c.h.b16 %v5730
  %v5964 = vunpack.c.l.b16 %v5731
  %v5965 = vunpack.c.h.b16 %v5731
  %v5966 = vunpack.c.l.b16 %v5732
  %v5967 = vunpack.c.h.b16 %v5732
  %v5968 = vunpack.c.l.b16 %v5733
  %v5969 = vunpack.c.h.b16 %v5733
  %v5970 = vunpack.c.l.b16 %v5734
  %v5971 = vunpack.c.h.b16 %v5734
  %v5972 = vunpack.c.l.b16 %v5735
  %v5973 = vunpack.c.h.b16 %v5735
  %v5974 = vunpack.c.l.b16 %v5736
  %v5975 = vunpack.c.h.b16 %v5736
  %v5976 = vunpack.c.l.b16 %v5737
  %v5977 = vunpack.c.h.b16 %v5737
  %v5978 = vunpack.c.l.b16 %v5738
  %v5979 = vunpack.c.h.b16 %v5738
  %v5980 = vunpack.c.l.b16 %v5739
  %v5981 = vunpack.c.h.b16 %v5739
  %v5982 = vunpack.c.l.b16 %v5740
  %v5983 = vunpack.c.h.b16 %v5740
  %v5984 = vunpack.c.l.b16 %v5741
  %v5985 = vunpack.c.h.b16 %v5741
  %v5986 = vunpack.c.l.b16 %v5742
  %v5987 = vunpack.c.h.b16 %v5742
  %v5988 = vunpack.c.l.b16 %v5743
  %v5989 = vunpack.c.h.b16 %v5743
  %v5990 = vunpack.c.l.b16 %v5744
  %v5991 = vunpack.c.h.b16 %v5744
  %v5992 = vunpack.c.l.b16 %v5745
  %v5993 = vunpack.c.h.b16 %v5745
  %v5994 = vunpack.c.l.b16 %v5746
  %v5995 = vunpack.c.h.b16 %v5746
  %v5996 = vunpack.c.l.b16 %v5747
  %v5997 = vunpack.c.h.b16 %v5747
  %v5998 = vunpack.c.l.b16 %v5748
  %v5999 = vunpack.c.h.b16 %v5748
  %v6000 = vunpack.c.l.b16 %v5749
  %v6001 = vunpack.c.h.b16 %v5749
  %v6002 = vunpack.c.l.b16 %v5750
  %v6003 = vunpack.c.h.b16 %v5750
  %v6004 = vunpack.c.l.b16 %v5751
  %v6005 = vunpack.c.h.b16 %v5751
  %v6006 = vunpack.c.l.b16 %v5752
  %v6007 = vunpack.c.h.b16 %v5752
  %v6008 = vunpack.c.l.b16 %v5753
  %v6009 = vunpack.c.h.b16 %v5753
  %v6010 = vunpack.c.l.b16 %v5754
  %v6011 = vunpack.c.h.b16 %v5754
  %v6012 = vunpack.c.l.b16 %v5755
  %v6013 = vunpack.c.h.b16 %v5755
  %v6014 = vunpack.c.l.b16 %v5756
  %v6015 = vunpack.c.h.b16 %v5756
  %v6016 = vunpack.c.l.b16 %v5757
  %v6017 = vunpack.c.h.b16 %v5757
  %v6018 = vpack.c.b16 %v5892, %v5890
  %v6019 = vpack.c.b16 %v5893, %v5891
  %v6020 = vpack.c.b16 %v5896, %v5894
  %v6021 = vpack.c.b16 %v5897, %v5895
  %v6022 = vpack.c.b16 %v5900, %v5898
  %v6023 = vpack.c.b16 %v5901, %v5899
  %v6024 = vpack.c.b16 %v5904, %v5902
  %v6025 = vpack.c.b16 %v5905, %v5903
  %v6026 = vpack.c.b16 %v5908, %v5906
  %v6027 = vpack.c.b16 %v5909, %v5907
  %v6028 = vpack.c.b16 %v5912, %v5910
  %v6029 = vpack.c.b16 %v5913, %v5911
  %v6030 = vpack.c.b16 %v5916, %v5914
  %v6031 = vpack.c.b16 %v5917, %v5915
  %v6032 = vpack.c.b16 %v5920, %v5918
  %v6033 = vpack.c.b16 %v5921, %v5919
  %v6034 = vpack.c.b16 %v5924, %v5922
  %v6035 = vpack.c.b16 %v5925, %v5923
  %v6036 = vpack.c.b16 %v5928, %v5926
  %v6037 = vpack.c.b16 %v5929, %v5927
  %v6038 = vpack.c.b16 %v5932, %v5930
  %v6039 = vpack.c.b16 %v5933, %v5931
  %v6040 = vpack.c.b16 %v5936, %v5934
  %v6041 = vpack.c.b16 %v5937, %v5935
  %v6042 = vpack.c.b16 %v5940, %v5938
  %v6043 = vpack.c.b16 %v5941, %v5939
  %v6044 = vpack.c.b16 %v5944, %v5942
  %v6045 = vpack.c.b16 %v5945, %v5943
  %v6046 = vpack.c.b16 %v5948, %v5946
  %v6047 = vpack.c.b16 %v5949, %v5947
  %v6048 = vpack.c.b16 %v5952, %v5950
  %v6049 = vpack.c.b16 %v5953, %v5951
  %v6050 = vpack.c.b16 %v5956, %v5954
  %v6051 = vpack.c.b16 %v5957, %v5955
  %v6052 = vpack.c.b16 %v5960, %v5958
  %v6053 = vpack.c.b16 %v5961, %v5959
  %v6054 = vpack.c.b16 %v5964, %v5962
  %v6055 = vpack.c.b16 %v5965, %v5963
  %v6056 = vpack.c.b16 %v5968, %v5966
  %v6057 = vpack.c.b16 %v5969, %v5967
  %v6058 = vpack.c.b16 %v5972, %v5970
  %v6059 = vpack.c.b16 %v5973, %v5971
  %v6060 = vpack.c.b16 %v5976, %v5974
  %v6061 = vpack.c.b16 %v5977, %v5975
  %v6062 = vpack.c.b16 %v5980, %v5978
  %v6063 = vpack.c.b16 %v5981, %v5979
  %v6064 = vpack.c.b16 %v5984, %v5982
  %v6065 = vpack.c.b16 %v5985, %v5983
  %v6066 = vpack.c.b16 %v5988, %v5986
  %v6067 = vpack.c.b16 %v5989, %v5987
  %v6068 = vpack.c.b16 %v5992, %v5990
  %v6069 = vpack.c.b16 %v5993, %v5991
  %v6070 = vpack.c.b16 %v5996, %v5994
  %v6071 = vpack.c.b16 %v5997, %v5995
  %v6072 = vpack.c.b16 %v6000, %v5998
  %v6073 = vpack.c.b16 %v6001, %v5999
  %v6074 = vpack.c.b16 %v6004, %v6002
  %v6075 = vpack.c.b16 %v6005, %v6003
  %v6076 = vpack.c.b16 %v6008, %v6006
  %v6077 = vpack.c.b16 %v6009, %v6007
  %v6078 = vpack.c.b16 %v6012, %v6010
  %v6079 = vpack.c.b16 %v6013, %v6011
  %v6080 = vpack.c.b16 %v6016, %v6014
  %v6081 = vpack.c.b16 %v6017, %v6015
  %6146 = vmatprep.subr.bf16.mxu0 %v6019
  %6147 = vmatpush1.bf16.msra.mxu0 %v6018
  %6148 = vmatprep.subr.bf16.mxu0 %v6021
  %6149 = vmatpush1.bf16.msra.mxu0 %v6020
  %6150 = vmatprep.subr.bf16.mxu0 %v6023
  %6151 = vmatpush1.bf16.msra.mxu0 %v6022
  %6152 = vmatprep.subr.bf16.mxu0 %v6025
  %6153 = vmatpush1.bf16.msra.mxu0 %v6024
  %6154 = vmatprep.subr.bf16.mxu0 %v6027
  %6155 = vmatpush1.bf16.msra.mxu0 %v6026
  %6156 = vmatprep.subr.bf16.mxu0 %v6029
  %6157 = vmatpush1.bf16.msra.mxu0 %v6028
  %6158 = vmatprep.subr.bf16.mxu0 %v6031
  %6159 = vmatpush1.bf16.msra.mxu0 %v6030
  %6160 = vmatprep.subr.bf16.mxu0 %v6033
  %6161 = vmatpush1.bf16.msra.mxu0 %v6032
  %6162 = vmatprep.subr.bf16.mxu0 %v6035
  %6163 = vmatpush1.bf16.msra.mxu0 %v6034
  %6164 = vmatprep.subr.bf16.mxu0 %v6037
  %6165 = vmatpush1.bf16.msra.mxu0 %v6036
  %6166 = vmatprep.subr.bf16.mxu0 %v6039
  %6167 = vmatpush1.bf16.msra.mxu0 %v6038
  %6168 = vmatprep.subr.bf16.mxu0 %v6041
  %6169 = vmatpush1.bf16.msra.mxu0 %v6040
  %6170 = vmatprep.subr.bf16.mxu0 %v6043
  %6171 = vmatpush1.bf16.msra.mxu0 %v6042
  %6172 = vmatprep.subr.bf16.mxu0 %v6045
  %6173 = vmatpush1.bf16.msra.mxu0 %v6044
  %6174 = vmatprep.subr.bf16.mxu0 %v6047
  %6175 = vmatpush1.bf16.msra.mxu0 %v6046
  %6176 = vmatprep.subr.bf16.mxu0 %v6049
  %6177 = vmatpush1.bf16.msra.mxu0 %v6048
  %6178 = vmatprep.mubr.bf16.mxu0 %v5781
  %6179 = vmatmul.mubr.bf16.gmra.mrb[0].mxu0 %v5769
  %v6180 = vpop.f32.mrb[0].mxu0
  %v6181 = vadd.f32 0.0, %v6180
  %v6182 = vpop.f32.mrb[0].mxu0
  %v6183 = vadd.f32 0.0, %v6182
  %v6184 = vpop.f32.mrb[0].mxu0
  %v6185 = vadd.f32 0.0, %v6184
  %v6186 = vpop.f32.mrb[0].mxu0
  %v6187 = vadd.f32 0.0, %v6186
  %6188 = vmatprep.mubr.bf16.mxu0 %v5811
  %6189 = vmatmul.mubr.bf16.gmra.mrb[0].mxu0 %v5808
  %v6190 = vpop.f32.mrb[0].mxu0
  %v6191 = vadd.f32 0.0, %v6190
  %v6192 = vpop.f32.mrb[0].mxu0
  %v6193 = vadd.f32 0.0, %v6192
  %v6194 = vpop.f32.mrb[0].mxu0
  %v6195 = vpop.f32.mrb[0].mxu0
  %6196 = vdwg.mxu0
  %6197 = vmatprep.subr.bf16.mxu0 %v6051
  %6198 = vmatpush1.bf16.msra.mxu0 %v6050
  %6199 = vmatprep.subr.bf16.mxu0 %v6053
  %6200 = vmatpush1.bf16.msra.mxu0 %v6052
  %6201 = vmatprep.subr.bf16.mxu0 %v6055
  %6202 = vmatpush1.bf16.msra.mxu0 %v6054
  %6203 = vmatprep.subr.bf16.mxu0 %v6057
  %6204 = vmatpush1.bf16.msra.mxu0 %v6056
  %6205 = vmatprep.subr.bf16.mxu0 %v6059
  %6206 = vmatpush1.bf16.msra.mxu0 %v6058
  %6207 = vmatprep.subr.bf16.mxu0 %v6061
  %6208 = vmatpush1.bf16.msra.mxu0 %v6060
  %6209 = vmatprep.subr.bf16.mxu0 %v6063
  %6210 = vmatpush1.bf16.msra.mxu0 %v6062
  %6211 = vmatprep.subr.bf16.mxu0 %v6065
  %6212 = vmatpush1.bf16.msra.mxu0 %v6064
  %6213 = vmatprep.subr.bf16.mxu0 %v6067
  %6214 = vmatpush1.bf16.msra.mxu0 %v6066
  %6215 = vmatprep.subr.bf16.mxu0 %v6069
  %6216 = vmatpush1.bf16.msra.mxu0 %v6068
  %6217 = vmatprep.subr.bf16.mxu0 %v6071
  %6218 = vmatpush1.bf16.msra.mxu0 %v6070
  %6219 = vmatprep.subr.bf16.mxu0 %v6073
  %6220 = vmatpush1.bf16.msra.mxu0 %v6072
  %6221 = vmatprep.subr.bf16.mxu0 %v6075
  %6222 = vmatpush1.bf16.msra.mxu0 %v6074
  %6223 = vmatprep.subr.bf16.mxu0 %v6077
  %6224 = vmatpush1.bf16.msra.mxu0 %v6076
  %6225 = vmatprep.subr.bf16.mxu0 %v6079
  %6226 = vmatpush1.bf16.msra.mxu0 %v6078
  %6227 = vmatprep.subr.bf16.mxu0 %v6081
  %6228 = vmatpush1.bf16.msra.mxu0 %v6080
  %6229 = vmatprep.mubr.bf16.mxu0 %v5805
  %6230 = vmatmul.mubr.bf16.gmra.mrb[0].mxu0 %v5793
  %v6231 = vpop.f32.mrb[0].mxu0
  %v6232 = vadd.f32 %v6181, %v6231
  %v6233 = vpop.f32.mrb[0].mxu0
  %v6234 = vadd.f32 %v6183, %v6233
  %v6235 = vpop.f32.mrb[0].mxu0
  %v6236 = vadd.f32 %v6185, %v6235
  %v6237 = vpop.f32.mrb[0].mxu0
  %v6238 = vadd.f32 %v6187, %v6237
  %6239 = vmatprep.mubr.bf16.mxu0 %v5817
  %6240 = vmatmul.mubr.bf16.gmra.mrb[0].mxu0 %v5814
  %v6241 = vpop.f32.mrb[0].mxu0
  %v6242 = vadd.f32 %v6191, %v6241
  %v6243 = vpop.f32.mrb[0].mxu0
  %v6244 = vadd.f32 %v6193, %v6243
  %v6245 = vpop.f32.mrb[0].mxu0
  %v6246 = vpop.f32.mrb[0].mxu0
  %6247 = vdwg.mxu0
  %v6312 = vunpack.c.l.b16 %v5630
  %v6313 = vunpack.c.h.b16 %v5630
  %v6314 = vunpack.c.l.b16 %v5631
  %v6315 = vunpack.c.h.b16 %v5631
  %v6316 = vunpack.c.l.b16 %v5632
  %v6317 = vunpack.c.h.b16 %v5632
  %v6318 = vunpack.c.l.b16 %v5633
  %v6319 = vunpack.c.h.b16 %v5633
  %v6320 = vunpack.c.l.b16 %v5634
  %v6321 = vunpack.c.h.b16 %v5634
  %v6322 = vunpack.c.l.b16 %v5635
  %v6323 = vunpack.c.h.b16 %v5635
  %v6324 = vunpack.c.l.b16 %v5636
  %v6325 = vunpack.c.h.b16 %v5636
  %v6326 = vunpack.c.l.b16 %v5637
  %v6327 = vunpack.c.h.b16 %v5637
  %v6328 = vunpack.c.l.b16 %v5638
  %v6329 = vunpack.c.h.b16 %v5638
  %v6330 = vunpack.c.l.b16 %v5639
  %v6331 = vunpack.c.h.b16 %v5639
  %v6332 = vunpack.c.l.b16 %v5640
  %v6333 = vunpack.c.h.b16 %v5640
  %v6334 = vunpack.c.l.b16 %v5641
  %v6335 = vunpack.c.h.b16 %v5641
  %v6336 = vunpack.c.l.b16 %v5642
  %v6337 = vunpack.c.h.b16 %v5642
  %v6338 = vunpack.c.l.b16 %v5643
  %v6339 = vunpack.c.h.b16 %v5643
  %v6340 = vunpack.c.l.b16 %v5644
  %v6341 = vunpack.c.h.b16 %v5644
  %v6342 = vunpack.c.l.b16 %v5645
  %v6343 = vunpack.c.h.b16 %v5645
  %v6344 = vunpack.c.l.b16 %v5646
  %v6345 = vunpack.c.h.b16 %v5646
  %v6346 = vunpack.c.l.b16 %v5647
  %v6347 = vunpack.c.h.b16 %v5647
  %v6348 = vunpack.c.l.b16 %v5648
  %v6349 = vunpack.c.h.b16 %v5648
  %v6350 = vunpack.c.l.b16 %v5649
  %v6351 = vunpack.c.h.b16 %v5649
  %v6352 = vunpack.c.l.b16 %v5650
  %v6353 = vunpack.c.h.b16 %v5650
  %v6354 = vunpack.c.l.b16 %v5651
  %v6355 = vunpack.c.h.b16 %v5651
  %v6356 = vunpack.c.l.b16 %v5652
  %v6357 = vunpack.c.h.b16 %v5652
  %v6358 = vunpack.c.l.b16 %v5653
  %v6359 = vunpack.c.h.b16 %v5653
  %v6360 = vunpack.c.l.b16 %v5654
  %v6361 = vunpack.c.h.b16 %v5654
  %v6362 = vunpack.c.l.b16 %v5655
  %v6363 = vunpack.c.h.b16 %v5655
  %v6364 = vunpack.c.l.b16 %v5656
  %v6365 = vunpack.c.h.b16 %v5656
  %v6366 = vunpack.c.l.b16 %v5657
  %v6367 = vunpack.c.h.b16 %v5657
  %v6368 = vunpack.c.l.b16 %v5658
  %v6369 = vunpack.c.h.b16 %v5658
  %v6370 = vunpack.c.l.b16 %v5659
  %v6371 = vunpack.c.h.b16 %v5659
  %v6372 = vunpack.c.l.b16 %v5660
  %v6373 = vunpack.c.h.b16 %v5660
  %v6374 = vunpack.c.l.b16 %v5661
  %v6375 = vunpack.c.h.b16 %v5661
  %v6376 = vunpack.c.l.b16 %v5662
  %v6377 = vunpack.c.h.b16 %v5662
  %v6378 = vunpack.c.l.b16 %v5663
  %v6379 = vunpack.c.h.b16 %v5663
  %v6380 = vunpack.c.l.b16 %v5664
  %v6381 = vunpack.c.h.b16 %v5664
  %v6382 = vunpack.c.l.b16 %v5665
  %v6383 = vunpack.c.h.b16 %v5665
  %v6384 = vunpack.c.l.b16 %v5666
  %v6385 = vunpack.c.h.b16 %v5666
  %v6386 = vunpack.c.l.b16 %v5667
  %v6387 = vunpack.c.h.b16 %v5667
  %v6388 = vunpack.c.l.b16 %v5668
  %v6389 = vunpack.c.h.b16 %v5668
  %v6390 = vunpack.c.l.b16 %v5669
  %v6391 = vunpack.c.h.b16 %v5669
  %v6392 = vunpack.c.l.b16 %v5670
  %v6393 = vunpack.c.h.b16 %v5670
  %v6394 = vunpack.c.l.b16 %v5671
  %v6395 = vunpack.c.h.b16 %v5671
  %v6396 = vunpack.c.l.b16 %v5672
  %v6397 = vunpack.c.h.b16 %v5672
  %v6398 = vunpack.c.l.b16 %v5673
  %v6399 = vunpack.c.h.b16 %v5673
  %v6400 = vunpack.c.l.b16 %v5674
  %v6401 = vunpack.c.h.b16 %v5674
  %v6402 = vunpack.c.l.b16 %v5675
  %v6403 = vunpack.c.h.b16 %v5675
  %v6404 = vunpack.c.l.b16 %v5676
  %v6405 = vunpack.c.h.b16 %v5676
  %v6406 = vunpack.c.l.b16 %v5677
  %v6407 = vunpack.c.h.b16 %v5677
  %v6408 = vunpack.c.l.b16 %v5678
  %v6409 = vunpack.c.h.b16 %v5678
  %v6410 = vunpack.c.l.b16 %v5679
  %v6411 = vunpack.c.h.b16 %v5679
  %v6412 = vunpack.c.l.b16 %v5680
  %v6413 = vunpack.c.h.b16 %v5680
  %v6414 = vunpack.c.l.b16 %v5681
  %v6415 = vunpack.c.h.b16 %v5681
  %v6416 = vunpack.c.l.b16 %v5682
  %v6417 = vunpack.c.h.b16 %v5682
  %v6418 = vunpack.c.l.b16 %v5683
  %v6419 = vunpack.c.h.b16 %v5683
  %v6420 = vunpack.c.l.b16 %v5684
  %v6421 = vunpack.c.h.b16 %v5684
  %v6422 = vunpack.c.l.b16 %v5685
  %v6423 = vunpack.c.h.b16 %v5685
  %v6424 = vunpack.c.l.b16 %v5686
  %v6425 = vunpack.c.h.b16 %v5686
  %v6426 = vunpack.c.l.b16 %v5687
  %v6427 = vunpack.c.h.b16 %v5687
  %v6428 = vunpack.c.l.b16 %v5688
  %v6429 = vunpack.c.h.b16 %v5688
  %v6430 = vunpack.c.l.b16 %v5689
  %v6431 = vunpack.c.h.b16 %v5689
  %v6432 = vunpack.c.l.b16 %v5690
  %v6433 = vunpack.c.h.b16 %v5690
  %v6434 = vunpack.c.l.b16 %v5691
  %v6435 = vunpack.c.h.b16 %v5691
  %v6436 = vunpack.c.l.b16 %v5692
  %v6437 = vunpack.c.h.b16 %v5692
  %v6438 = vunpack.c.l.b16 %v5693
  %v6439 = vunpack.c.h.b16 %v5693
  %v6440 = vpack.c.b16 %v6314, %v6312
  %v6441 = vpack.c.b16 %v6315, %v6313
  %v6442 = vpack.c.b16 %v6318, %v6316
  %v6443 = vpack.c.b16 %v6319, %v6317
  %v6444 = vpack.c.b16 %v6322, %v6320
  %v6445 = vpack.c.b16 %v6323, %v6321
  %v6446 = vpack.c.b16 %v6326, %v6324
  %v6447 = vpack.c.b16 %v6327, %v6325
  %v6448 = vpack.c.b16 %v6330, %v6328
  %v6449 = vpack.c.b16 %v6331, %v6329
  %v6450 = vpack.c.b16 %v6334, %v6332
  %v6451 = vpack.c.b16 %v6335, %v6333
  %v6452 = vpack.c.b16 %v6338, %v6336
  %v6453 = vpack.c.b16 %v6339, %v6337
  %v6454 = vpack.c.b16 %v6342, %v6340
  %v6455 = vpack.c.b16 %v6343, %v6341
  %v6456 = vpack.c.b16 %v6346, %v6344
  %v6457 = vpack.c.b16 %v6347, %v6345
  %v6458 = vpack.c.b16 %v6350, %v6348
  %v6459 = vpack.c.b16 %v6351, %v6349
  %v6460 = vpack.c.b16 %v6354, %v6352
  %v6461 = vpack.c.b16 %v6355, %v6353
  %v6462 = vpack.c.b16 %v6358, %v6356
  %v6463 = vpack.c.b16 %v6359, %v6357
  %v6464 = vpack.c.b16 %v6362, %v6360
  %v6465 = vpack.c.b16 %v6363, %v6361
  %v6466 = vpack.c.b16 %v6366, %v6364
  %v6467 = vpack.c.b16 %v6367, %v6365
  %v6468 = vpack.c.b16 %v6370, %v6368
  %v6469 = vpack.c.b16 %v6371, %v6369
  %v6470 = vpack.c.b16 %v6374, %v6372
  %v6471 = vpack.c.b16 %v6375, %v6373
  %v6472 = vpack.c.b16 %v6378, %v6376
  %v6473 = vpack.c.b16 %v6379, %v6377
  %v6474 = vpack.c.b16 %v6382, %v6380
  %v6475 = vpack.c.b16 %v6383, %v6381
  %v6476 = vpack.c.b16 %v6386, %v6384
  %v6477 = vpack.c.b16 %v6387, %v6385
  %v6478 = vpack.c.b16 %v6390, %v6388
  %v6479 = vpack.c.b16 %v6391, %v6389
  %v6480 = vpack.c.b16 %v6394, %v6392
  %v6481 = vpack.c.b16 %v6395, %v6393
  %v6482 = vpack.c.b16 %v6398, %v6396
  %v6483 = vpack.c.b16 %v6399, %v6397
  %v6484 = vpack.c.b16 %v6402, %v6400
  %v6485 = vpack.c.b16 %v6403, %v6401
  %v6486 = vpack.c.b16 %v6406, %v6404
  %v6487 = vpack.c.b16 %v6407, %v6405
  %v6488 = vpack.c.b16 %v6410, %v6408
  %v6489 = vpack.c.b16 %v6411, %v6409
  %v6490 = vpack.c.b16 %v6414, %v6412
  %v6491 = vpack.c.b16 %v6415, %v6413
  %v6492 = vpack.c.b16 %v6418, %v6416
  %v6493 = vpack.c.b16 %v6419, %v6417
  %v6494 = vpack.c.b16 %v6422, %v6420
  %v6495 = vpack.c.b16 %v6423, %v6421
  %v6496 = vpack.c.b16 %v6426, %v6424
  %v6497 = vpack.c.b16 %v6427, %v6425
  %v6498 = vpack.c.b16 %v6430, %v6428
  %v6499 = vpack.c.b16 %v6431, %v6429
  %v6500 = vpack.c.b16 %v6434, %v6432
  %v6501 = vpack.c.b16 %v6435, %v6433
  %v6502 = vpack.c.b16 %v6438, %v6436
  %v6503 = vpack.c.b16 %v6439, %v6437
  %6568 = vmatprep.subr.bf16.mxu0 %v6441
  %6569 = vmatpush1.bf16.msra.mxu0 %v6440
  %6570 = vmatprep.subr.bf16.mxu0 %v6443
  %6571 = vmatpush1.bf16.msra.mxu0 %v6442
  %6572 = vmatprep.subr.bf16.mxu0 %v6445
  %6573 = vmatpush1.bf16.msra.mxu0 %v6444
  %6574 = vmatprep.subr.bf16.mxu0 %v6447
  %6575 = vmatpush1.bf16.msra.mxu0 %v6446
  %6576 = vmatprep.subr.bf16.mxu0 %v6449
  %6577 = vmatpush1.bf16.msra.mxu0 %v6448
  %6578 = vmatprep.subr.bf16.mxu0 %v6451
  %6579 = vmatpush1.bf16.msra.mxu0 %v6450
  %6580 = vmatprep.subr.bf16.mxu0 %v6453
  %6581 = vmatpush1.bf16.msra.mxu0 %v6452
  %6582 = vmatprep.subr.bf16.mxu0 %v6455
  %6583 = vmatpush1.bf16.msra.mxu0 %v6454
  %6584 = vmatprep.subr.bf16.mxu0 %v6457
  %6585 = vmatpush1.bf16.msra.mxu0 %v6456
  %6586 = vmatprep.subr.bf16.mxu0 %v6459
  %6587 = vmatpush1.bf16.msra.mxu0 %v6458
  %6588 = vmatprep.subr.bf16.mxu0 %v6461
  %6589 = vmatpush1.bf16.msra.mxu0 %v6460
  %6590 = vmatprep.subr.bf16.mxu0 %v6463
  %6591 = vmatpush1.bf16.msra.mxu0 %v6462
  %6592 = vmatprep.subr.bf16.mxu0 %v6465
  %6593 = vmatpush1.bf16.msra.mxu0 %v6464
  %6594 = vmatprep.subr.bf16.mxu0 %v6467
  %6595 = vmatpush1.bf16.msra.mxu0 %v6466
  %6596 = vmatprep.subr.bf16.mxu0 %v6469
  %6597 = vmatpush1.bf16.msra.mxu0 %v6468
  %6598 = vmatprep.subr.bf16.mxu0 %v6471
  %6599 = vmatpush1.bf16.msra.mxu0 %v6470
  %6600 = vmatprep.mubr.bf16.mxu0 %v5623
  %6601 = vmatmul.mubr.bf16.gmra.mrb[0].mxu0 %v5622
  %v6602 = vpop.f32.mrb[0].mxu0
  %v6603 = vadd.f32 %v6232, %v6602
  %v6604 = vpop.f32.mrb[0].mxu0
  %v6605 = vadd.f32 %v6234, %v6604
  %v6606 = vpop.f32.mrb[0].mxu0
  %v6607 = vadd.f32 %v6236, %v6606
  %v6608 = vpop.f32.mrb[0].mxu0
  %v6609 = vadd.f32 %v6238, %v6608
  %6610 = vmatprep.mubr.bf16.mxu0 %v5627
  %6611 = vmatmul.mubr.bf16.gmra.mrb[0].mxu0 %v5626
  %v6612 = vpop.f32.mrb[0].mxu0
  %v6613 = vadd.f32 %v6242, %v6612
  %v6614 = vpop.f32.mrb[0].mxu0
  %v6615 = vadd.f32 %v6244, %v6614
  %v6616 = vpop.f32.mrb[0].mxu0
  %v6617 = vpop.f32.mrb[0].mxu0
  %6618 = vdwg.mxu0
  %6619 = vmatprep.subr.bf16.mxu0 %v6473
  %6620 = vmatpush1.bf16.msra.mxu0 %v6472
  %6621 = vmatprep.subr.bf16.mxu0 %v6475
  %6622 = vmatpush1.bf16.msra.mxu0 %v6474
  %6623 = vmatprep.subr.bf16.mxu0 %v6477
  %6624 = vmatpush1.bf16.msra.mxu0 %v6476
  %6625 = vmatprep.subr.bf16.mxu0 %v6479
  %6626 = vmatpush1.bf16.msra.mxu0 %v6478
  %6627 = vmatprep.subr.bf16.mxu0 %v6481
  %6628 = vmatpush1.bf16.msra.mxu0 %v6480
  %6629 = vmatprep.subr.bf16.mxu0 %v6483
  %6630 = vmatpush1.bf16.msra.mxu0 %v6482
  %6631 = vmatprep.subr.bf16.mxu0 %v6485
  %6632 = vmatpush1.bf16.msra.mxu0 %v6484
  %6633 = vmatprep.subr.bf16.mxu0 %v6487
  %6634 = vmatpush1.bf16.msra.mxu0 %v6486
  %6635 = vmatprep.subr.bf16.mxu0 %v6489
  %6636 = vmatpush1.bf16.msra.mxu0 %v6488
  %6637 = vmatprep.subr.bf16.mxu0 %v6491
  %6638 = vmatpush1.bf16.msra.mxu0 %v6490
  %6639 = vmatprep.subr.bf16.mxu0 %v6493
  %6640 = vmatpush1.bf16.msra.mxu0 %v6492
  %6641 = vmatprep.subr.bf16.mxu0 %v6495
  %6642 = vmatpush1.bf16.msra.mxu0 %v6494
  %6643 = vmatprep.subr.bf16.mxu0 %v6497
  %6644 = vmatpush1.bf16.msra.mxu0 %v6496
  %6645 = vmatprep.subr.bf16.mxu0 %v6499
  %6646 = vmatpush1.bf16.msra.mxu0 %v6498
  %6647 = vmatprep.subr.bf16.mxu0 %v6501
  %6648 = vmatpush1.bf16.msra.mxu0 %v6500
  %6649 = vmatprep.subr.bf16.mxu0 %v6503
  %6650 = vmatpush1.bf16.msra.mxu0 %v6502
  %6651 = vmatprep.mubr.bf16.mxu0 %v5625
  %6652 = vmatmul.mubr.bf16.gmra.mrb[0].mxu0 %v5624
  %v6653 = vpop.f32.mrb[0].mxu0
  %v6654 = vadd.f32 %v6603, %v6653
  %v6655 = vpop.f32.mrb[0].mxu0
  %v6656 = vadd.f32 %v6605, %v6655
  %v6657 = vpop.f32.mrb[0].mxu0
  %v6658 = vadd.f32 %v6607, %v6657
  %v6659 = vpop.f32.mrb[0].mxu0
  %v6660 = vadd.f32 %v6609, %v6659
  %6661 = vmatprep.mubr.bf16.mxu0 %v5629
  %6662 = vmatmul.mubr.bf16.gmra.mrb[0].mxu0 %v5628
  %v6663 = vpop.f32.mrb[0].mxu0
  %v6664 = vadd.f32 %v6613, %v6663
  %v6665 = vpop.f32.mrb[0].mxu0
  %v6666 = vadd.f32 %v6615, %v6665
  %v6667 = vpop.f32.mrb[0].mxu0
  %v6668 = vpop.f32.mrb[0].mxu0
  %6669 = vdwg.mxu0
  %v6670 = vld [vmem:[%s59] sm:$0xff]
  %v6671 = vld [vmem:[%s59 + $0x8] sm:$0xff]
  %v6672 = vld [vmem:[%s59 + $0x10] sm:$0xff]
  %6674 = vset.pattern.permute.xlu0 0
  %6675 = vperm.xlu0 %6674, %v6670
  %v6676 = vpop.permute.xlu0 %6675
  %6679 = vset.pattern.permute.xlu0 0
  %6680 = vperm.xlu0 %6679, %v6671
  %v6681 = vpop.permute.xlu0 %6680
  %6684 = vset.pattern.permute.xlu0 0
  %6685 = vperm.xlu0 %6684, %v6672
  %v6686 = vpop.permute.xlu0 %6685
  %v6688 = vmul.f32 %v6654, %v6676
  %v6689 = vmul.f32 %v6656, %v6676
  %v6690 = vmul.f32 %v6658, %v6681
  %v6691 = vmul.f32 %v6660, %v6681
  %v6692 = vmul.f32 %v6664, %v6686
  %v6693 = vmul.f32 %v6666, %v6686
  %v6694 = vadd.f32 %v6688, %v6690
  %v6695 = vadd.f32 %v6694, %v6692
  %v6696 = vrot.slane %v6695, 4
  %v6697 = vadd.f32 %v6695, %v6696
  %v6698 = vrot.slane %v6697, 2
  %v6699 = vadd.f32 %v6697, %v6698
  %v6700 = vrot.slane %v6699, 1
  %v6701 = vadd.f32 %v6699, %v6700
  %v6702 = vadd.f32 %v6689, %v6691
  %v6703 = vadd.f32 %v6702, %v6693
  %v6704 = vrot.slane %v6703, 4
  %v6705 = vadd.f32 %v6703, %v6704
  %v6706 = vrot.slane %v6705, 2
  %v6707 = vadd.f32 %v6705, %v6706
  %v6708 = vrot.slane %v6707, 1
  %v6709 = vadd.f32 %v6707, %v6708
  %v6710 = vmul.f32 %v6688, %v6688
  %v6711 = vmul.f32 %v6689, %v6689
  %v6712 = vmul.f32 %v6690, %v6690
  %v6713 = vmul.f32 %v6691, %v6691
  %v6714 = vmul.f32 %v6692, %v6692
  %v6715 = vmul.f32 %v6693, %v6693
  %v6716 = vadd.f32 %v6710, %v6712
  %v6717 = vadd.f32 %v6716, %v6714
  %v6718 = vrot.slane %v6717, 4
  %v6719 = vadd.f32 %v6717, %v6718
  %v6720 = vrot.slane %v6719, 2
  %v6721 = vadd.f32 %v6719, %v6720
  %v6722 = vrot.slane %v6721, 1
  %v6723 = vadd.f32 %v6721, %v6722
  %v6724 = vadd.f32 %v6711, %v6713
  %v6725 = vadd.f32 %v6724, %v6715
  %v6726 = vrot.slane %v6725, 4
  %v6727 = vadd.f32 %v6725, %v6726
  %v6728 = vrot.slane %v6727, 2
  %v6729 = vadd.f32 %v6727, %v6728
  %v6730 = vrot.slane %v6729, 1
  %v6731 = vadd.f32 %v6729, %v6730
  %v6732 = vsel %vm3453, %v6701, %v6723
  %v6733 = vsel %vm3453, %v6709, %v6731
  %v6734 = vld [vmem:[%s55] sm:$0xff]
  %v6735 = vld [vmem:[%s55 + $0x8] sm:$0xff]
  %v6736 = vld [vmem:[%s55 + $0x10] sm:$0xff]
  %v6737 = vld [vmem:[%s55 + $0x18] sm:$0xff]
  %v6738 = vld [vmem:[%s55 + $0x20] sm:$0xff]
  %v6739 = vld [vmem:[%s55 + $0x28] sm:$0xff]
  %v6740 = vld [vmem:[%s55 + $0x30] sm:$0xff]
  %v6741 = vld [vmem:[%s55 + $0x38] sm:$0xff]
  %v6742 = vld [vmem:[%s55 + $0x40] sm:$0xff]
  %v6743 = vld [vmem:[%s55 + $0x48] sm:$0xff]
  %v6744 = vld [vmem:[%s55 + $0x50] sm:$0xff]
  %v6745 = vld [vmem:[%s55 + $0x58] sm:$0xff]
  %v6746 = vld [vmem:[%s55 + $0x60] sm:$0xff]
  %v6747 = vld [vmem:[%s55 + $0x68] sm:$0xff]
  %v6748 = vld [vmem:[%s55 + $0x70] sm:$0xff]
  %v6749 = vld [vmem:[%s55 + $0x78] sm:$0xff]
  %v6750 = vld [vmem:[%s55 + $0x80] sm:$0xff]
  %v6751 = vld [vmem:[%s55 + $0x88] sm:$0xff]
  %v6752 = vld [vmem:[%s55 + $0x90] sm:$0xff]
  %v6753 = vld [vmem:[%s55 + $0x98] sm:$0xff]
  %v6754 = vld [vmem:[%s55 + $0xa0] sm:$0xff]
  %v6755 = vld [vmem:[%s55 + $0xa8] sm:$0xff]
  %v6756 = vld [vmem:[%s55 + $0xb0] sm:$0xff]
  %v6757 = vld [vmem:[%s55 + $0xb8] sm:$0xff]
  %v6758 = vld [vmem:[%s55 + $0xc0] sm:$0xff]
  %v6759 = vld [vmem:[%s55 + $0xc8] sm:$0xff]
  %v6760 = vld [vmem:[%s55 + $0xd0] sm:$0xff]
  %v6761 = vld [vmem:[%s55 + $0xd8] sm:$0xff]
  %v6762 = vld [vmem:[%s55 + $0xe0] sm:$0xff]
  %v6763 = vld [vmem:[%s55 + $0xe8] sm:$0xff]
  %v6764 = vld [vmem:[%s55 + $0xf0] sm:$0xff]
  %v6765 = vld [vmem:[%s55 + $0xf8] sm:$0xff]
  %6766 = vmatprep.subr.mxu0 0.0
  %6767 = vmatpush1.msra.mxu0 %v6734
  %6768 = vmatprep.subr.mxu0 0.0
  %6769 = vmatpush1.msra.mxu0 %v6735
  %6770 = vmatprep.subr.mxu0 0.0
  %6771 = vmatpush1.msra.mxu0 %v6736
  %6772 = vmatprep.subr.mxu0 0.0
  %6773 = vmatpush1.msra.mxu0 %v6737
  %6774 = vmatprep.subr.mxu0 0.0
  %6775 = vmatpush1.msra.mxu0 %v6738
  %6776 = vmatprep.subr.mxu0 0.0
  %6777 = vmatpush1.msra.mxu0 %v6739
  %6778 = vmatprep.subr.mxu0 0.0
  %6779 = vmatpush1.msra.mxu0 %v6740
  %6780 = vmatprep.subr.mxu0 0.0
  %6781 = vmatpush1.msra.mxu0 %v6741
  %6782 = vmatprep.subr.mxu0 0.0
  %6783 = vmatpush1.msra.mxu0 %v6742
  %6784 = vmatprep.subr.mxu0 0.0
  %6785 = vmatpush1.msra.mxu0 %v6743
  %6786 = vmatprep.subr.mxu0 0.0
  %6787 = vmatpush1.msra.mxu0 %v6744
  %6788 = vmatprep.subr.mxu0 0.0
  %6789 = vmatpush1.msra.mxu0 %v6745
  %6790 = vmatprep.subr.mxu0 0.0
  %6791 = vmatpush1.msra.mxu0 %v6746
  %6792 = vmatprep.subr.mxu0 0.0
  %6793 = vmatpush1.msra.mxu0 %v6747
  %6794 = vmatprep.subr.mxu0 0.0
  %6795 = vmatpush1.msra.mxu0 %v6748
  %6796 = vmatprep.subr.mxu0 0.0
  %6797 = vmatpush1.msra.mxu0 %v6749
  %6798 = vmatprep.subr.mxu0 0.0
  %6799 = vmatpush1.msra.mxu0 %v6750
  %6800 = vmatprep.subr.mxu0 0.0
  %6801 = vmatpush1.msra.mxu0 %v6751
  %6802 = vmatprep.subr.mxu0 0.0
  %6803 = vmatpush1.msra.mxu0 %v6752
  %6804 = vmatprep.subr.mxu0 0.0
  %6805 = vmatpush1.msra.mxu0 %v6753
  %6806 = vmatprep.subr.mxu0 0.0
  %6807 = vmatpush1.msra.mxu0 %v6754
  %6808 = vmatprep.subr.mxu0 0.0
  %6809 = vmatpush1.msra.mxu0 %v6755
  %6810 = vmatprep.subr.mxu0 0.0
  %6811 = vmatpush1.msra.mxu0 %v6756
  %6812 = vmatprep.subr.mxu0 0.0
  %6813 = vmatpush1.msra.mxu0 %v6757
  %6814 = vmatprep.subr.mxu0 0.0
  %6815 = vmatpush1.msra.mxu0 %v6758
  %6816 = vmatprep.subr.mxu0 0.0
  %6817 = vmatpush1.msra.mxu0 %v6759
  %6818 = vmatprep.subr.mxu0 0.0
  %6819 = vmatpush1.msra.mxu0 %v6760
  %6820 = vmatprep.subr.mxu0 0.0
  %6821 = vmatpush1.msra.mxu0 %v6761
  %6822 = vmatprep.subr.mxu0 0.0
  %6823 = vmatpush1.msra.mxu0 %v6762
  %6824 = vmatprep.subr.mxu0 0.0
  %6825 = vmatpush1.msra.mxu0 %v6763
  %6826 = vmatprep.subr.mxu0 0.0
  %6827 = vmatpush1.msra.mxu0 %v6764
  %6828 = vmatprep.subr.mxu0 0.0
  %6829 = vmatpush1.msra.mxu0 %v6765
  %6830 = vmatprep.mubr.f32.mxu0 %v6733
  %6831 = vmatmul.mubr.f32.gmra.mrb[0].mxu0 %v6732
  %v6832 = vpop.f32.mrb[0].mxu0
  %v6833 = vadd.f32 0.0, %v6832
  %v6834 = vpop.f32.mrb[0].mxu0
  %6835 = vdwg.mxu0
  %v6836 = vmul.f32 %v6833, 0.015625
  %v6837 = vmul.f32 %v6836, %v6836
  %v6839 = vrot.slane %v6837, 7
  %v6841 = vsub.f32 %v6836, %v6839
  %v6842 = vld [vmem:[%s51] sm:$0x1]
  %v6843 = vadd.f32 %v6841, 1e-05
  %v6844 = vrsqrt.pop %v6843
  %v6847 = vunpack.c.l.s4 1966171168
  %v6848 = vunpack.c.0.s8 %v6847
  %v6849 = vlaneseq
  %v6850 = vshrl.u32 %v6849, 7
  %v6851 = vsub.s32 %v6848, %v6850
  %v6852 = vrot.slane %v6844, %v6851
  %v6853 = vcombine.high %v6852, %v6852
  %v6855 = vunpack.c.l.s4 1966171168
  %v6856 = vunpack.c.0.s8 %v6855
  %v6857 = vlaneseq
  %v6858 = vshrl.u32 %v6857, 7
  %v6859 = vsub.s32 %v6856, %v6858
  %v6860 = vrot.slane %v6853, %v6859
  %v6862 = vmul.f32 %v6842, %v6860
  %v6863 = vld [vmem:[%s53] sm:$0x1]
  %v6864 = vmul.f32 %v6836, %v6862
  %v6865 = vsub.f32 %v6863, %v6864
  %v6867 = vlaneseq
  %v6868 = vshrl.u32 %v6867, 7
  %v6869 = vsub.s32 0, %v6868
  %v6870 = vrot.slane %v6865, %v6869
  %v6872 = vsel %vm3453, %v6862, %v6870
  %v6873 = vld [vmem:[%s57] sm:$0xff]
  %v6874 = vld [vmem:[%s57 + $0x8] sm:$0xff]
  %v6875 = vld [vmem:[%s57 + $0x10] sm:$0xff]
  %v6876 = vld [vmem:[%s57 + $0x18] sm:$0xff]
  %v6877 = vld [vmem:[%s57 + $0x20] sm:$0xff]
  %v6878 = vld [vmem:[%s57 + $0x28] sm:$0xff]
  %v6879 = vld [vmem:[%s57 + $0x30] sm:$0xff]
  %v6880 = vld [vmem:[%s57 + $0x38] sm:$0xff]
  %v6881 = vld [vmem:[%s57 + $0x40] sm:$0xff]
  %v6882 = vld [vmem:[%s57 + $0x48] sm:$0xff]
  %v6883 = vld [vmem:[%s57 + $0x50] sm:$0xff]
  %v6884 = vld [vmem:[%s57 + $0x58] sm:$0xff]
  %v6885 = vld [vmem:[%s57 + $0x60] sm:$0xff]
  %v6886 = vld [vmem:[%s57 + $0x68] sm:$0xff]
  %v6887 = vld [vmem:[%s57 + $0x70] sm:$0xff]
  %v6888 = vld [vmem:[%s57 + $0x78] sm:$0xff]
  %vm6889 = vcmask 523264
  %v6891 = vsel %vm6889, %v6872, 0
  %6893 = vmatprep.subr.mxu0 %v6874
  %6894 = vmatpush1.msra.mxu0 %v6873
  %6895 = vmatprep.subr.mxu0 %v6876
  %6896 = vmatpush1.msra.mxu0 %v6875
  %6897 = vmatprep.subr.mxu0 %v6878
  %6898 = vmatpush1.msra.mxu0 %v6877
  %6899 = vmatprep.subr.mxu0 %v6880
  %6900 = vmatpush1.msra.mxu0 %v6879
  %6901 = vmatprep.subr.mxu0 %v6882
  %6902 = vmatpush1.msra.mxu0 %v6881
  %6903 = vmatprep.subr.mxu0 %v6884
  %6904 = vmatpush1.msra.mxu0 %v6883
  %6905 = vmatprep.subr.mxu0 %v6886
  %6906 = vmatpush1.msra.mxu0 %v6885
  %6907 = vmatprep.subr.mxu0 %v6888
  %6908 = vmatpush1.msra.mxu0 %v6887
  %6909 = vmatprep.subr.mxu0 0.0
  %6910 = vmatpush1.msra.mxu0 0.0
  %6911 = vmatprep.subr.mxu0 0.0
  %6912 = vmatpush1.msra.mxu0 0.0
  %6913 = vmatprep.subr.mxu0 0.0
  %6914 = vmatpush1.msra.mxu0 0.0
  %6915 = vmatprep.subr.mxu0 0.0
  %6916 = vmatpush1.msra.mxu0 0.0
  %6917 = vmatprep.subr.mxu0 0.0
  %6918 = vmatpush1.msra.mxu0 0.0
  %6919 = vmatprep.subr.mxu0 0.0
  %6920 = vmatpush1.msra.mxu0 0.0
  %6921 = vmatprep.subr.mxu0 0.0
  %6922 = vmatpush1.msra.mxu0 0.0
  %6923 = vmatprep.subr.mxu0 0.0
  %6924 = vmatpush1.msra.mxu0 0.0
  %6925 = vmatprep.subr.mxu0 0.0
  %6926 = vmatpush1.msra.mxu0 0.0
  %6927 = vmatprep.subr.mxu0 0.0
  %6928 = vmatpush1.msra.mxu0 0.0
  %6929 = vmatprep.subr.mxu0 0.0
  %6930 = vmatpush1.msra.mxu0 0.0
  %6931 = vmatprep.subr.mxu0 0.0
  %6932 = vmatpush1.msra.mxu0 0.0
  %6933 = vmatprep.subr.mxu0 0.0
  %6934 = vmatpush1.msra.mxu0 0.0
  %6935 = vmatprep.subr.mxu0 0.0
  %6936 = vmatpush1.msra.mxu0 0.0
  %6937 = vmatprep.subr.mxu0 0.0
  %6938 = vmatpush1.msra.mxu0 0.0
  %6939 = vmatprep.subr.mxu0 0.0
  %6940 = vmatpush1.msra.mxu0 0.0
  %6941 = vmatprep.subr.mxu0 0.0
  %6942 = vmatpush1.msra.mxu0 0.0
  %6943 = vmatprep.subr.mxu0 0.0
  %6944 = vmatpush1.msra.mxu0 0.0
  %6945 = vmatprep.subr.mxu0 0.0
  %6946 = vmatpush1.msra.mxu0 0.0
  %6947 = vmatprep.subr.mxu0 0.0
  %6948 = vmatpush1.msra.mxu0 0.0
  %6949 = vmatprep.subr.mxu0 0.0
  %6950 = vmatpush1.msra.mxu0 0.0
  %6951 = vmatprep.subr.mxu0 0.0
  %6952 = vmatpush1.msra.mxu0 0.0
  %6953 = vmatprep.subr.mxu0 0.0
  %6954 = vmatpush1.msra.mxu0 0.0
  %6955 = vmatprep.subr.mxu0 0.0
  %6956 = vmatpush1.msra.mxu0 0.0
  %6957 = vmatprep.mubr.f32.mxu0 0.0
  %6958 = vmatmul.mubr.f32.gmra.mrb[0].mxu0 %v6891
  %v6959 = vpop.f32.mrb[0].mxu0
  %v6960 = vadd.f32 0.0, %v6959
  %v6961 = vpop.f32.mrb[0].mxu0
  %v6962 = vadd.f32 0.0, %v6961
  %6963 = vdwg.mxu0
  %v6964 = vlaneseq
  %v6965 = vshrl.u32 %v6964, 7
  %v6966 = vsub.s32 0, %v6965
  %v6967 = vrot.slane %v6960, %v6966
  %v6968 = vlaneseq
  %v6969 = vshrl.u32 %v6968, 7
  %v6970 = vsub.s32 0, %v6969
  %v6971 = vrot.slane %v6962, %v6970
  %v6972 = vmul.f32 %v6654, %v6967
  %v6973 = vmul.f32 %v6656, %v6971
  %v6974 = vmul.f32 %v6658, %v6967
  %v6975 = vmul.f32 %v6660, %v6971
  %v6976 = vmul.f32 %v6664, %v6967
  %v6977 = vmul.f32 %v6666, %v6971
  %v6978 = vlaneseq
  %v6979 = vshrl.u32 %v6978, 7
  %v6980 = vsub.s32 1, %v6979
  %v6981 = vrot.slane %v6960, %v6980
  %v6982 = vlaneseq
  %v6983 = vshrl.u32 %v6982, 7
  %v6984 = vsub.s32 1, %v6983
  %v6985 = vrot.slane %v6962, %v6984
  %v6986 = vadd.f32 %v6972, %v6981
  %v6987 = vadd.f32 %v6973, %v6985
  %v6988 = vadd.f32 %v6974, %v6981
  %v6989 = vadd.f32 %v6975, %v6985
  %v6990 = vadd.f32 %v6976, %v6981
  %v6991 = vadd.f32 %v6977, %v6985
  %v6992 = vmul.f32 %v6986, 0.2
  %v6993 = vmul.f32 %v6987, 0.2
  %v6994 = vmul.f32 %v6988, 0.2
  %v6995 = vmul.f32 %v6989, 0.2
  %v6996 = vmul.f32 %v6990, 0.2
  %v6997 = vmul.f32 %v6991, 0.2
  %v6998 = vmax.f32 %v6986, %v6992
  %v6999 = vmax.f32 %v6987, %v6993
  %v7000 = vmax.f32 %v6988, %v6994
  %v7001 = vmax.f32 %v6989, %v6995
  %v7002 = vmax.f32 %v6990, %v6996
  %v7003 = vmax.f32 %v6991, %v6997
  %v7004 = vld [vmem:[%s61] sm:$0xff]
  %v7005 = vld [vmem:[%s61 + $0x8] sm:$0xff]
  %v7006 = vld [vmem:[%s61 + $0x10] sm:$0xff]
  %v7007 = vld [vmem:[%s61 + $0x18] sm:$0xff]
  %v7008 = vld [vmem:[%s61 + $0x20] sm:$0xff]
  %v7009 = vld [vmem:[%s61 + $0x28] sm:$0xff]
  %v7010 = vmul.f32 %v6998, %v7004
  %v7011 = vmul.f32 %v6999, %v7005
  %v7012 = vmul.f32 %v7000, %v7006
  %v7013 = vmul.f32 %v7001, %v7007
  %v7014 = vmul.f32 %v7002, %v7008
  %v7015 = vmul.f32 %v7003, %v7009
  %v7016 = vadd.f32 %v7010, %v7011
  %7017 = vadd.xlane.f32.xlu0 %v7016
  %v7018 = vpop.xlane.xlu0 %7017
  %v7019 = vadd.f32 %v7012, %v7013
  %7020 = vadd.xlane.f32.xlu0 %v7019
  %v7021 = vpop.xlane.xlu0 %7020
  %v7022 = vadd.f32 %v7014, %v7015
  %7023 = vadd.xlane.f32.xlu0 %v7022
  %v7024 = vpop.xlane.xlu0 %7023
  %v7025 = vld [vmem:[%s63] sm:$0xf]
  %vm7026 = vcmask 195584
  %v7028 = vsel %vm7026, %v7025, 0
  %7030 = vmatprep.subr.mxu0 0.0
  %7031 = vmatpush1.msra.mxu0 %v7018
  %7032 = vmatprep.subr.mxu0 0.0
  %7033 = vmatpush1.msra.mxu0 %v7021
  %7034 = vmatprep.subr.mxu0 0.0
  %7035 = vmatpush1.msra.mxu0 %v7024
  %7036 = vmatprep.subr.mxu0 0.0
  %7037 = vmatpush1.msra.mxu0 0.0
  %7038 = vmatprep.subr.mxu0 0.0
  %7039 = vmatpush1.msra.mxu0 0.0
  %7040 = vmatprep.subr.mxu0 0.0
  %7041 = vmatpush1.msra.mxu0 0.0
  %7042 = vmatprep.subr.mxu0 0.0
  %7043 = vmatpush1.msra.mxu0 0.0
  %7044 = vmatprep.subr.mxu0 0.0
  %7045 = vmatpush1.msra.mxu0 0.0
  %7046 = vmatprep.subr.mxu0 0.0
  %7047 = vmatpush1.msra.mxu0 0.0
  %7048 = vmatprep.subr.mxu0 0.0
  %7049 = vmatpush1.msra.mxu0 0.0
  %7050 = vmatprep.subr.mxu0 0.0
  %7051 = vmatpush1.msra.mxu0 0.0
  %7052 = vmatprep.subr.mxu0 0.0
  %7053 = vmatpush1.msra.mxu0 0.0
  %7054 = vmatprep.subr.mxu0 0.0
  %7055 = vmatpush1.msra.mxu0 0.0
  %7056 = vmatprep.subr.mxu0 0.0
  %7057 = vmatpush1.msra.mxu0 0.0
  %7058 = vmatprep.subr.mxu0 0.0
  %7059 = vmatpush1.msra.mxu0 0.0
  %7060 = vmatprep.subr.mxu0 0.0
  %7061 = vmatpush1.msra.mxu0 0.0
  %7062 = vmatprep.subr.mxu0 0.0
  %7063 = vmatpush1.msra.mxu0 0.0
  %7064 = vmatprep.subr.mxu0 0.0
  %7065 = vmatpush1.msra.mxu0 0.0
  %7066 = vmatprep.subr.mxu0 0.0
  %7067 = vmatpush1.msra.mxu0 0.0
  %7068 = vmatprep.subr.mxu0 0.0
  %7069 = vmatpush1.msra.mxu0 0.0
  %7070 = vmatprep.subr.mxu0 0.0
  %7071 = vmatpush1.msra.mxu0 0.0
  %7072 = vmatprep.subr.mxu0 0.0
  %7073 = vmatpush1.msra.mxu0 0.0
  %7074 = vmatprep.subr.mxu0 0.0
  %7075 = vmatpush1.msra.mxu0 0.0
  %7076 = vmatprep.subr.mxu0 0.0
  %7077 = vmatpush1.msra.mxu0 0.0
  %7078 = vmatprep.subr.mxu0 0.0
  %7079 = vmatpush1.msra.mxu0 0.0
  %7080 = vmatprep.subr.mxu0 0.0
  %7081 = vmatpush1.msra.mxu0 0.0
  %7082 = vmatprep.subr.mxu0 0.0
  %7083 = vmatpush1.msra.mxu0 0.0
  %7084 = vmatprep.subr.mxu0 0.0
  %7085 = vmatpush1.msra.mxu0 0.0
  %7086 = vmatprep.subr.mxu0 0.0
  %7087 = vmatpush1.msra.mxu0 0.0
  %7088 = vmatprep.subr.mxu0 0.0
  %7089 = vmatpush1.msra.mxu0 0.0
  %7090 = vmatprep.subr.mxu0 0.0
  %7091 = vmatpush1.msra.mxu0 0.0
  %7092 = vmatprep.subr.mxu0 0.0
  %7093 = vmatpush1.msra.mxu0 0.0
  %7094 = vmatprep.mubr.f32.mxu0 0.0
  %7095 = vmatmul.mubr.f32.gmra.mrb[0].mxu0 %v7028
  %v7096 = vpop.f32.mrb[0].mxu0
  %v7097 = vadd.f32 0.0, %v7096
  %v7098 = vpop.f32.mrb[0].mxu0
  %7099 = vdwg.mxu0
  %v7100 = vxor.u32 %v7097, 2147483648
  %v7101 = vmul.f32 %v7100, 1.442695
  %v7102 = vpow.pop %v7101
  %v7103 = vadd.f32 %v7102, 1.0
  %v7104 = vrcp.pop %v7103
  %v7105 = vmul.f32 1.0, %v7104
  %vm7106 = vcmask 3072
  %7107 = vst.msk [vmem:[%s65] sm:$0xf] %vm7106, %v7105
  // Predicated region
  $region130: #{netd_forward.1} parent=0 // pred_check
    _
  $region131: #{netd_forward.1} parent=0 // pred_check_branch
    %7109 = sbr.rel (0) target = $region133
  $region132: #{netd_forward.1} parent=0 // pred_region
    _
  $region133: #{netd_forward.1} parent=0 // pred_fallthru
    _
  // Predicated region
  $region134: #{netd_forward.1} parent=0 // pred_check
    _
  $region135: #{netd_forward.1} parent=0 // pred_check_branch
    %7111 = sbr.rel (0) target = $region137
  $region136: #{netd_forward.1} parent=0 // pred_region
    _
  $region137: #{netd_forward.1} parent=0 // pred_fallthru
    _

</llo_original>
